<compile_context>
chip_gen: v7x
topology: tpu7x:2x2x1
jax: 0.10.0
libtpu: 0.0.40
codegen_flags: <defaults>
</compile_context>

<pallas_src>
import jax
import jax.numpy as jnp
from jax.experimental import pallas as pl
from jax.experimental.pallas import tpu as pltpu


def _round_up(x, m):
    return (x + m - 1) // m * m


# ----------------------------------------------------------------------------
# Pallas kernels
# ----------------------------------------------------------------------------
def _matmul_bias_relu_kernel(x_ref, w_ref, b_ref, o_ref):
    """(tm,K)@(K,N) + bias(1,N) + ReLU; bf16 operands, f32 accumulation."""
    acc = jnp.dot(x_ref[...], w_ref[...], preferred_element_type=jnp.float32)
    acc = jnp.maximum(acc + b_ref[...], 0.0)
    o_ref[...] = acc.astype(o_ref.dtype)


def _head_kernel(x_ref, wc_ref, bc_ref, w1_ref, b1_ref, w2_ref, b2_ref,
                 w3_ref, b3_ref, o_ref):
    """conv3(as matmul)+ReLU -> fc1+ReLU -> fc2+ReLU -> fc3, all VMEM-resident."""
    h = jnp.dot(x_ref[...], wc_ref[...], preferred_element_type=jnp.float32)
    h = jnp.maximum(h + bc_ref[...], 0.0).astype(jnp.bfloat16)          # conv3
    h = jnp.dot(h, w1_ref[...], preferred_element_type=jnp.float32)
    h = jnp.maximum(h + b1_ref[...], 0.0).astype(jnp.bfloat16)          # fc1
    h = jnp.dot(h, w2_ref[...], preferred_element_type=jnp.float32)
    h = jnp.maximum(h + b2_ref[...], 0.0).astype(jnp.bfloat16)          # fc2
    o = jnp.dot(h, w3_ref[...], preferred_element_type=jnp.float32) + b3_ref[...]
    o_ref[...] = o


# ----------------------------------------------------------------------------
# Pallas wrappers
# ----------------------------------------------------------------------------
def matmul_bias_relu(x, w, b, *, out_dtype=jnp.bfloat16, tm=512):
    """x:(M,K), w:(K,N), b:(N,). Pads K/N->128k, tiles M; returns padded (Mp,Np)."""
    M, K = x.shape
    K2, N = w.shape
    assert K == K2
    Kp, Np = _round_up(K, 128), _round_up(N, 128)
    tm = min(tm, _round_up(M, 8))            # multiple of 8 by construction
    Mp = _round_up(M, tm)
    x_p = jnp.pad(x.astype(jnp.bfloat16), ((0, Mp - M), (0, Kp - K)))
    w_p = jnp.pad(w.astype(jnp.bfloat16), ((0, Kp - K), (0, Np - N)))
    b_p = jnp.pad(b.astype(jnp.float32), (0, Np - N)).reshape(1, Np)
    return pl.pallas_call(
        _matmul_bias_relu_kernel,
        out_shape=jax.ShapeDtypeStruct((Mp, Np), out_dtype),
        grid=(Mp // tm,),
        in_specs=[
            pl.BlockSpec((tm, Kp), lambda i: (i, 0)),
            pl.BlockSpec((Kp, Np), lambda i: (0, 0)),   # weight resident across grid
            pl.BlockSpec((1, Np), lambda i: (0, 0)),
        ],
        out_specs=pl.BlockSpec((tm, Np), lambda i: (i, 0)),
        compiler_params=pltpu.CompilerParams(dimension_semantics=("parallel",)),
    )(x_p, w_p, b_p)


def fused_head(feat, p):
    """conv3(2304->384)+ReLU -> fc1(384->1024)+ReLU -> fc2(1024->256)+ReLU -> fc3(256->2)."""
    N, K = feat.shape                                            # K = 2304
    Mp = _round_up(N, 8)
    x_p = jnp.pad(feat.astype(jnp.bfloat16), ((0, Mp - N), (0, 0)))

    # conv3 weights OIHW (384,256,3,3) -> (kh,kw,cin,cout) -> (2304,384)
    wc = jnp.transpose(p["w3"], (2, 3, 1, 0)).reshape(K, 384).astype(jnp.bfloat16)
    bc = p["b3"].astype(jnp.float32).reshape(1, -1)
    w1 = jnp.transpose(p["fw1"]).astype(jnp.bfloat16)            # (384, 1024)
    b1 = p["fb1"].astype(jnp.float32).reshape(1, -1)
    w2 = jnp.transpose(p["fw2"]).astype(jnp.bfloat16)            # (1024, 256)
    b2 = p["fb2"].astype(jnp.float32).reshape(1, -1)
    w3 = jnp.transpose(p["fw3"]).astype(jnp.bfloat16)            # (256, 2)
    n_out = w3.shape[1]
    n_out_p = _round_up(n_out, 128)                              # lane-dense store
    w3 = jnp.pad(w3, ((0, 0), (0, n_out_p - n_out)))
    b3 = jnp.pad(p["fb3"].astype(jnp.float32), (0, n_out_p - n_out)).reshape(1, n_out_p)

    args = [x_p, wc, bc, w1, b1, w2, b2, w3, b3]
    out = pl.pallas_call(
        _head_kernel,
        out_shape=jax.ShapeDtypeStruct((Mp, n_out_p), jnp.float32),
        grid=(1,),
        in_specs=[pl.BlockSpec(a.shape, lambda i: (0, 0)) for a in args],
        out_specs=pl.BlockSpec((Mp, n_out_p), lambda i: (0, 0)),
    )(*args)
    return out[:N, :n_out]


# ----------------------------------------------------------------------------
# Glue: im2col / max pooling (fused strided slices; tiny tensors)
# ----------------------------------------------------------------------------
def _im2col(x_nhwc, kh, kw, stride):
    N, H, W, C = x_nhwc.shape
    oh = (H - kh) // stride + 1
    ow = (W - kw) // stride + 1
    patches = []
    for i in range(kh):
        for j in range(kw):
            patches.append(
                x_nhwc[:, i : i + stride * oh : stride, j : j + stride * ow : stride, :]
            )
    p = jnp.stack(patches, axis=3)             # (N, oh, ow, kh*kw, C)
    return p.reshape(N * oh * ow, kh * kw * C), oh, ow


def maxpool2d(x_nhwc, k, stride):
    """Floor-mode max pool as fused strided-slice maxes (no window blowup, no launch)."""
    N, H, W, C = x_nhwc.shape
    oh = (H - k) // stride + 1
    ow = (W - k) // stride + 1
    out = None
    for i in range(k):
        for j in range(k):
            win = x_nhwc[:, i : i + stride * oh : stride, j : j + stride * ow : stride, :]
            out = win if out is None else jnp.maximum(out, win)
    return out


# ----------------------------------------------------------------------------
# Layers
# ----------------------------------------------------------------------------
def conv2d(x_nhwc, w_oihw, b, stride, *, keep_padded_cout=False):
    """Valid conv + bias + ReLU. Tolerates zero-padded input channels (Cin >= cin_w)."""
    N, H, W, Cin = x_nhwc.shape
    cout, cin_w, kh, kw = w_oihw.shape
    w4 = jnp.transpose(w_oihw, (2, 3, 1, 0))                 # (kh, kw, cin_w, cout)
    if Cin != cin_w:                                         # input channels were zero-padded
        w4 = jnp.pad(w4, ((0, 0), (0, 0), (0, Cin - cin_w), (0, 0)))
    wmat = w4.reshape(kh * kw * Cin, cout)
    patches, oh, ow = _im2col(x_nhwc, kh, kw, stride)        # (M, kh*kw*Cin) bf16
    out_p = matmul_bias_relu(patches, wmat, b, out_dtype=jnp.bfloat16)
    M = N * oh * ow
    n_keep = out_p.shape[1] if keep_padded_cout else cout
    return out_p[:M, :n_keep].reshape(N, oh, ow, n_keep)


# ----------------------------------------------------------------------------
# SiameseNetwork forward
# ----------------------------------------------------------------------------
def forward_once(x_nchw, p):
    x = jnp.transpose(x_nchw, (0, 2, 3, 1)).astype(jnp.bfloat16)       # -> NHWC bf16
    # conv1: keep the zero-padded 128 output channels (lane-dense stores; carried
    # through pool1 and conv2's K dim -- padded channels are exactly zero).
    x = conv2d(x, p["w1"], p["b1"], stride=4, keep_padded_cout=True)   # (N,21,21,128)
    x = maxpool2d(x, 3, 2)                                             # (N,10,10,128)
    x = conv2d(x, p["w2"], p["b2"], stride=1)                          # (N,6,6,256)
    x = maxpool2d(x, 2, 2)                                             # (N,3,3,256)
    # conv3 is 3x3 on a 3x3 map -> its single im2col patch == flatten(H,W,C)
    feat = x.reshape(x.shape[0], -1)                                   # (N, 2304)
    return fused_head(feat, p)                                         # (N, 2) f32


def siamese_forward(input1, input2, params):
    n1 = input1.shape[0]
    x = jnp.concatenate([input1, input2], axis=0)   # single trunk pass over both twins
    out = forward_once(x, params)
    return out[:n1], out[n1:]


def init_params(key):
    ks = jax.random.split(key, 12)
    f32 = jnp.float32

    def n(k, shape, scale):
        return (jax.random.normal(k, shape, f32) * scale).astype(f32)

    return {
        "w1": n(ks[0], (96, 3, 11, 11), 0.02),
        "b1": n(ks[1], (96,), 0.01),
        "w2": n(ks[2], (256, 96, 5, 5), 0.02),
        "b2": n(ks[3], (256,), 0.01),
        "w3": n(ks[4], (384, 256, 3, 3), 0.02),
        "b3": n(ks[5], (384,), 0.01),
        "fw1": n(ks[6], (1024, 384), 0.02),
        "fb1": n(ks[7], (1024,), 0.01),
        "fw2": n(ks[8], (256, 1024), 0.02),
        "fb2": n(ks[9], (256,), 0.01),
        "fw3": n(ks[10], (2, 256), 0.02),
        "fb3": n(ks[11], (2,), 0.01),
    }


if __name__ == "__main__":
    key = jax.random.PRNGKey(0)
    k1, k2, kp = jax.random.split(key, 3)

    # Smallest valid spatial size for this architecture is 91x91 (gives 384-d features).
    input1 = jax.random.normal(k1, (2, 3, 91, 91), jnp.float32)
    input2 = jax.random.normal(k2, (2, 3, 91, 91), jnp.float32)
    params = init_params(kp)

    fwd = jax.jit(siamese_forward)
    out1, out2 = fwd(input1, input2, params)
    jax.block_until_ready((out1, out2))

    assert out1.shape == (2, 2) and out2.shape == (2, 2)
    assert out1.dtype == jnp.float32 and out2.dtype == jnp.float32
    print("KERNEL_OK")
</pallas_src>

<mosaic_0001>
module attributes {stable_mosaic.version = 11 : i64} {
  func.func @_matmul_bias_relu_kernel(%arg0: i32, %arg1: memref<512x384xbf16, #tpu.memory_space<vmem>>, %arg2: memref<384x128xbf16, #tpu.memory_space<vmem>>, %arg3: memref<1x128xf32, #tpu.memory_space<vmem>>, %arg4: memref<512x128xbf16, #tpu.memory_space<vmem>>) attributes {dimension_semantics = [#tpu.dimension_semantics<parallel>], iteration_bounds = array<i64: 4>, scalar_prefetch = 0 : i64, scratch_operands = 0 : i64, tpu.core_type = #tpu.core_type<tc>, window_params = [{transform_indices = @transform_0, window_bounds = array<i64: 512, 384>}, {pipeline_mode = #tpu.pipeline_mode<synchronous>, transform_indices = @transform_1, window_bounds = array<i64: 384, 128>}, {pipeline_mode = #tpu.pipeline_mode<synchronous>, transform_indices = @transform_2, window_bounds = array<i64: 1, 128>}, {transform_indices = @transform_3, window_bounds = array<i64: 512, 128>}]} {
    %c0 = arith.constant 0 : index
    %c0_0 = arith.constant 0 : index
    %0 = vector.load %arg1[%c0, %c0_0] : memref<512x384xbf16, #tpu.memory_space<vmem>>, vector<512x384xbf16>
    %c0_1 = arith.constant 0 : index
    %c0_2 = arith.constant 0 : index
    %1 = vector.load %arg2[%c0_1, %c0_2] : memref<384x128xbf16, #tpu.memory_space<vmem>>, vector<384x128xbf16>
    %cst = arith.constant dense<0.000000e+00> : vector<512x128xf32>
    %2 = tpu.matmul %0, %1, %cst {dimension_numbers = #tpu.dot_dimension_numbers<[1], [0], [0], [1], [0, 0, 1, 1], [], []>} : vector<512x384xbf16>, vector<384x128xbf16>, vector<512x128xf32> -> vector<512x128xf32>
    %c0_3 = arith.constant 0 : index
    %c0_4 = arith.constant 0 : index
    %3 = vector.load %arg3[%c0_3, %c0_4] : memref<1x128xf32, #tpu.memory_space<vmem>>, vector<1x128xf32>
    %4 = vector.broadcast %3 : vector<1x128xf32> to vector<512x128xf32>
    %5 = arith.addf %2, %4 : vector<512x128xf32>
    %cst_5 = arith.constant 0.000000e+00 : f32
    %6 = vector.broadcast %cst_5 : f32 to vector<512x128xf32>
    %7 = arith.maximumf %5, %6 : vector<512x128xf32>
    %8 = arith.truncf %7 : vector<512x128xf32> to vector<512x128xbf16>
    %c0_6 = arith.constant 0 : index
    %c0_7 = arith.constant 0 : index
    %9 = vector.load %arg4[%c0_6, %c0_7] : memref<512x128xbf16, #tpu.memory_space<vmem>>, vector<512x128xbf16>
    tpu.vector_store %arg4[%c0_6, %c0_7], %8 {strides = array<i32>} : memref<512x128xbf16, #tpu.memory_space<vmem>>, vector<512x128xbf16>,
    return
  }
  func.func @transform_0(%arg0: i32) -> (i32, i32) {
    %c0_i32 = arith.constant 0 : i32
    %c0_i32_0 = arith.constant 0 : i32
    return %arg0, %c0_i32 : i32, i32
  }
  func.func @transform_1(%arg0: i32) -> (i32, i32) {
    %c0_i32 = arith.constant 0 : i32
    %c0_i32_0 = arith.constant 0 : i32
    %c0_i32_1 = arith.constant 0 : i32
    return %c0_i32, %c0_i32_0 : i32, i32
  }
  func.func @transform_2(%arg0: i32) -> (i32, i32) {
    %c0_i32 = arith.constant 0 : i32
    %c0_i32_0 = arith.constant 0 : i32
    %c0_i32_1 = arith.constant 0 : i32
    return %c0_i32, %c0_i32_0 : i32, i32
  }
  func.func @transform_3(%arg0: i32) -> (i32, i32) {
    %c0_i32 = arith.constant 0 : i32
    %c0_i32_0 = arith.constant 0 : i32
    return %arg0, %c0_i32 : i32, i32
  }
}

module attributes {stable_mosaic.version = 11 : i64} {
  func.func @_matmul_bias_relu_kernel(%arg0: i32, %arg1: memref<144x3200xbf16, #tpu.memory_space<vmem>>, %arg2: memref<3200x256xbf16, #tpu.memory_space<vmem>>, %arg3: memref<1x256xf32, #tpu.memory_space<vmem>>, %arg4: memref<144x256xbf16, #tpu.memory_space<vmem>>) attributes {dimension_semantics = [#tpu.dimension_semantics<parallel>], iteration_bounds = array<i64: 1>, scalar_prefetch = 0 : i64, scratch_operands = 0 : i64, tpu.core_type = #tpu.core_type<tc>, window_params = [{transform_indices = @transform_0, window_bounds = array<i64: 144, 3200>}, {pipeline_mode = #tpu.pipeline_mode<synchronous>, transform_indices = @transform_1, window_bounds = array<i64: 3200, 256>}, {pipeline_mode = #tpu.pipeline_mode<synchronous>, transform_indices = @transform_2, window_bounds = array<i64: 1, 256>}, {transform_indices = @transform_3, window_bounds = array<i64: 144, 256>}]} {
    %c0 = arith.constant 0 : index
    %c0_0 = arith.constant 0 : index
    %0 = vector.load %arg1[%c0, %c0_0] : memref<144x3200xbf16, #tpu.memory_space<vmem>>, vector<144x3200xbf16>
    %c0_1 = arith.constant 0 : index
    %c0_2 = arith.constant 0 : index
    %1 = vector.load %arg2[%c0_1, %c0_2] : memref<3200x256xbf16, #tpu.memory_space<vmem>>, vector<3200x256xbf16>
    %cst = arith.constant dense<0.000000e+00> : vector<144x256xf32>
    %2 = tpu.matmul %0, %1, %cst {dimension_numbers = #tpu.dot_dimension_numbers<[1], [0], [0], [1], [0, 0, 1, 1], [], []>} : vector<144x3200xbf16>, vector<3200x256xbf16>, vector<144x256xf32> -> vector<144x256xf32>
    %c0_3 = arith.constant 0 : index
    %c0_4 = arith.constant 0 : index
    %3 = vector.load %arg3[%c0_3, %c0_4] : memref<1x256xf32, #tpu.memory_space<vmem>>, vector<1x256xf32>
    %4 = vector.broadcast %3 : vector<1x256xf32> to vector<144x256xf32>
    %5 = arith.addf %2, %4 : vector<144x256xf32>
    %cst_5 = arith.constant 0.000000e+00 : f32
    %6 = vector.broadcast %cst_5 : f32 to vector<144x256xf32>
    %7 = arith.maximumf %5, %6 : vector<144x256xf32>
    %8 = arith.truncf %7 : vector<144x256xf32> to vector<144x256xbf16>
    %c0_6 = arith.constant 0 : index
    %c0_7 = arith.constant 0 : index
    %9 = vector.load %arg4[%c0_6, %c0_7] : memref<144x256xbf16, #tpu.memory_space<vmem>>, vector<144x256xbf16>
    tpu.vector_store %arg4[%c0_6, %c0_7], %8 {strides = array<i32>} : memref<144x256xbf16, #tpu.memory_space<vmem>>, vector<144x256xbf16>,
    return
  }
  func.func @transform_0(%arg0: i32) -> (i32, i32) {
    %c0_i32 = arith.constant 0 : i32
    %c0_i32_0 = arith.constant 0 : i32
    return %arg0, %c0_i32 : i32, i32
  }
  func.func @transform_1(%arg0: i32) -> (i32, i32) {
    %c0_i32 = arith.constant 0 : i32
    %c0_i32_0 = arith.constant 0 : i32
    %c0_i32_1 = arith.constant 0 : i32
    return %c0_i32, %c0_i32_0 : i32, i32
  }
  func.func @transform_2(%arg0: i32) -> (i32, i32) {
    %c0_i32 = arith.constant 0 : i32
    %c0_i32_0 = arith.constant 0 : i32
    %c0_i32_1 = arith.constant 0 : i32
    return %c0_i32, %c0_i32_0 : i32, i32
  }
  func.func @transform_3(%arg0: i32) -> (i32, i32) {
    %c0_i32 = arith.constant 0 : i32
    %c0_i32_0 = arith.constant 0 : i32
    return %arg0, %c0_i32 : i32, i32
  }
}

module attributes {stable_mosaic.version = 11 : i64} {
  func.func @_head_kernel(%arg0: i32, %arg1: memref<8x2304xbf16, #tpu.memory_space<vmem>>, %arg2: memref<2304x384xbf16, #tpu.memory_space<vmem>>, %arg3: memref<1x384xf32, #tpu.memory_space<vmem>>, %arg4: memref<384x1024xbf16, #tpu.memory_space<vmem>>, %arg5: memref<1x1024xf32, #tpu.memory_space<vmem>>, %arg6: memref<1024x256xbf16, #tpu.memory_space<vmem>>, %arg7: memref<1x256xf32, #tpu.memory_space<vmem>>, %arg8: memref<256x128xbf16, #tpu.memory_space<vmem>>, %arg9: memref<1x128xf32, #tpu.memory_space<vmem>>, %arg10: memref<8x128xf32, #tpu.memory_space<vmem>>) attributes {dimension_semantics = [#tpu.dimension_semantics<arbitrary>], iteration_bounds = array<i64: 1>, scalar_prefetch = 0 : i64, scratch_operands = 0 : i64, tpu.core_type = #tpu.core_type<tc>, window_params = [{pipeline_mode = #tpu.pipeline_mode<synchronous>, transform_indices = @transform_0, window_bounds = array<i64: 8, 2304>}, {pipeline_mode = #tpu.pipeline_mode<synchronous>, transform_indices = @transform_1, window_bounds = array<i64: 2304, 384>}, {pipeline_mode = #tpu.pipeline_mode<synchronous>, transform_indices = @transform_2, window_bounds = array<i64: 1, 384>}, {pipeline_mode = #tpu.pipeline_mode<synchronous>, transform_indices = @transform_3, window_bounds = array<i64: 384, 1024>}, {pipeline_mode = #tpu.pipeline_mode<synchronous>, transform_indices = @transform_4, window_bounds = array<i64: 1, 1024>}, {pipeline_mode = #tpu.pipeline_mode<synchronous>, transform_indices = @transform_5, window_bounds = array<i64: 1024, 256>}, {pipeline_mode = #tpu.pipeline_mode<synchronous>, transform_indices = @transform_6, window_bounds = array<i64: 1, 256>}, {pipeline_mode = #tpu.pipeline_mode<synchronous>, transform_indices = @transform_7, window_bounds = array<i64: 256, 128>}, {pipeline_mode = #tpu.pipeline_mode<synchronous>, transform_indices = @transform_8, window_bounds = array<i64: 1, 128>}, {pipeline_mode = #tpu.pipeline_mode<synchronous>, transform_indices = @transform_9, window_bounds = array<i64: 8, 128>}]} {
    %c0 = arith.constant 0 : index
    %c0_0 = arith.constant 0 : index
    %0 = vector.load %arg1[%c0, %c0_0] : memref<8x2304xbf16, #tpu.memory_space<vmem>>, vector<8x2304xbf16>
    %c0_1 = arith.constant 0 : index
    %c0_2 = arith.constant 0 : index
    %1 = vector.load %arg2[%c0_1, %c0_2] : memref<2304x384xbf16, #tpu.memory_space<vmem>>, vector<2304x384xbf16>
    %cst = arith.constant dense<0.000000e+00> : vector<8x384xf32>
    %2 = tpu.matmul %0, %1, %cst {dimension_numbers = #tpu.dot_dimension_numbers<[1], [0], [0], [1], [0, 0, 1, 1], [], []>} : vector<8x2304xbf16>, vector<2304x384xbf16>, vector<8x384xf32> -> vector<8x384xf32>
    %c0_3 = arith.constant 0 : index
    %c0_4 = arith.constant 0 : index
    %3 = vector.load %arg3[%c0_3, %c0_4] : memref<1x384xf32, #tpu.memory_space<vmem>>, vector<1x384xf32>
    %4 = vector.broadcast %3 : vector<1x384xf32> to vector<8x384xf32>
    %5 = arith.addf %2, %4 : vector<8x384xf32>
    %cst_5 = arith.constant 0.000000e+00 : f32
    %6 = vector.broadcast %cst_5 : f32 to vector<8x384xf32>
    %7 = arith.maximumf %5, %6 : vector<8x384xf32>
    %8 = arith.truncf %7 : vector<8x384xf32> to vector<8x384xbf16>
    %c0_6 = arith.constant 0 : index
    %c0_7 = arith.constant 0 : index
    %9 = vector.load %arg4[%c0_6, %c0_7] : memref<384x1024xbf16, #tpu.memory_space<vmem>>, vector<384x1024xbf16>
    %cst_8 = arith.constant dense<0.000000e+00> : vector<8x1024xf32>
    %10 = tpu.matmul %8, %9, %cst_8 {dimension_numbers = #tpu.dot_dimension_numbers<[1], [0], [0], [1], [0, 0, 1, 1], [], []>} : vector<8x384xbf16>, vector<384x1024xbf16>, vector<8x1024xf32> -> vector<8x1024xf32>
    %c0_9 = arith.constant 0 : index
    %c0_10 = arith.constant 0 : index
    %11 = vector.load %arg5[%c0_9, %c0_10] : memref<1x1024xf32, #tpu.memory_space<vmem>>, vector<1x1024xf32>
    %12 = vector.broadcast %11 : vector<1x1024xf32> to vector<8x1024xf32>
    %13 = arith.addf %10, %12 : vector<8x1024xf32>
    %cst_11 = arith.constant 0.000000e+00 : f32
    %14 = vector.broadcast %cst_11 : f32 to vector<8x1024xf32>
    %15 = arith.maximumf %13, %14 : vector<8x1024xf32>
    %16 = arith.truncf %15 : vector<8x1024xf32> to vector<8x1024xbf16>
    %c0_12 = arith.constant 0 : index
    %c0_13 = arith.constant 0 : index
    %17 = vector.load %arg6[%c0_12, %c0_13] : memref<1024x256xbf16, #tpu.memory_space<vmem>>, vector<1024x256xbf16>
    %cst_14 = arith.constant dense<0.000000e+00> : vector<8x256xf32>
    %18 = tpu.matmul %16, %17, %cst_14 {dimension_numbers = #tpu.dot_dimension_numbers<[1], [0], [0], [1], [0, 0, 1, 1], [], []>} : vector<8x1024xbf16>, vector<1024x256xbf16>, vector<8x256xf32> -> vector<8x256xf32>
    %c0_15 = arith.constant 0 : index
    %c0_16 = arith.constant 0 : index
    %19 = vector.load %arg7[%c0_15, %c0_16] : memref<1x256xf32, #tpu.memory_space<vmem>>, vector<1x256xf32>
    %20 = vector.broadcast %19 : vector<1x256xf32> to vector<8x256xf32>
    %21 = arith.addf %18, %20 : vector<8x256xf32>
    %cst_17 = arith.constant 0.000000e+00 : f32
    %22 = vector.broadcast %cst_17 : f32 to vector<8x256xf32>
    %23 = arith.maximumf %21, %22 : vector<8x256xf32>
    %24 = arith.truncf %23 : vector<8x256xf32> to vector<8x256xbf16>
    %c0_18 = arith.constant 0 : index
    %c0_19 = arith.constant 0 : index
    %25 = vector.load %arg8[%c0_18, %c0_19] : memref<256x128xbf16, #tpu.memory_space<vmem>>, vector<256x128xbf16>
    %cst_20 = arith.constant dense<0.000000e+00> : vector<8x128xf32>
    %26 = tpu.matmul %24, %25, %cst_20 {dimension_numbers = #tpu.dot_dimension_numbers<[1], [0], [0], [1], [0, 0, 1, 1], [], []>} : vector<8x256xbf16>, vector<256x128xbf16>, vector<8x128xf32> -> vector<8x128xf32>
    %c0_21 = arith.constant 0 : index
    %c0_22 = arith.constant 0 : index
    %27 = vector.load %arg9[%c0_21, %c0_22] : memref<1x128xf32, #tpu.memory_space<vmem>>, vector<1x128xf32>
    %28 = vector.broadcast %27 : vector<1x128xf32> to vector<8x128xf32>
    %29 = arith.addf %26, %28 : vector<8x128xf32>
    %c0_23 = arith.constant 0 : index
    %c0_24 = arith.constant 0 : index
    %30 = vector.load %arg10[%c0_23, %c0_24] : memref<8x128xf32, #tpu.memory_space<vmem>>, vector<8x128xf32>
    tpu.vector_store %arg10[%c0_23, %c0_24], %29 {strides = array<i32>} : memref<8x128xf32, #tpu.memory_space<vmem>>, vector<8x128xf32>,
    return
  }
  func.func @transform_0(%arg0: i32) -> (i32, i32) {
    %c0_i32 = arith.constant 0 : i32
    %c0_i32_0 = arith.constant 0 : i32
    %c0_i32_1 = arith.constant 0 : i32
    return %c0_i32, %c0_i32_0 : i32, i32
  }
  func.func @transform_1(%arg0: i32) -> (i32, i32) {
    %c0_i32 = arith.constant 0 : i32
    %c0_i32_0 = arith.constant 0 : i32
    %c0_i32_1 = arith.constant 0 : i32
    return %c0_i32, %c0_i32_0 : i32, i32
  }
  func.func @transform_2(%arg0: i32) -> (i32, i32) {
    %c0_i32 = arith.constant 0 : i32
    %c0_i32_0 = arith.constant 0 : i32
    %c0_i32_1 = arith.constant 0 : i32
    return %c0_i32, %c0_i32_0 : i32, i32
  }
  func.func @transform_3(%arg0: i32) -> (i32, i32) {
    %c0_i32 = arith.constant 0 : i32
    %c0_i32_0 = arith.constant 0 : i32
    %c0_i32_1 = arith.constant 0 : i32
    return %c0_i32, %c0_i32_0 : i32, i32
  }
  func.func @transform_4(%arg0: i32) -> (i32, i32) {
    %c0_i32 = arith.constant 0 : i32
    %c0_i32_0 = arith.constant 0 : i32
    %c0_i32_1 = arith.constant 0 : i32
    return %c0_i32, %c0_i32_0 : i32, i32
  }
  func.func @transform_5(%arg0: i32) -> (i32, i32) {
    %c0_i32 = arith.constant 0 : i32
    %c0_i32_0 = arith.constant 0 : i32
    %c0_i32_1 = arith.constant 0 : i32
    return %c0_i32, %c0_i32_0 : i32, i32
  }
  func.func @transform_6(%arg0: i32) -> (i32, i32) {
    %c0_i32 = arith.constant 0 : i32
    %c0_i32_0 = arith.constant 0 : i32
    %c0_i32_1 = arith.constant 0 : i32
    return %c0_i32, %c0_i32_0 : i32, i32
  }
  func.func @transform_7(%arg0: i32) -> (i32, i32) {
    %c0_i32 = arith.constant 0 : i32
    %c0_i32_0 = arith.constant 0 : i32
    %c0_i32_1 = arith.constant 0 : i32
    return %c0_i32, %c0_i32_0 : i32, i32
  }
  func.func @transform_8(%arg0: i32) -> (i32, i32) {
    %c0_i32 = arith.constant 0 : i32
    %c0_i32_0 = arith.constant 0 : i32
    %c0_i32_1 = arith.constant 0 : i32
    return %c0_i32, %c0_i32_0 : i32, i32
  }
  func.func @transform_9(%arg0: i32) -> (i32, i32) {
    %c0_i32 = arith.constant 0 : i32
    %c0_i32_0 = arith.constant 0 : i32
    %c0_i32_1 = arith.constant 0 : i32
    return %c0_i32, %c0_i32_0 : i32, i32
  }
}

</mosaic_0001>

<llo_original>
// kernel: siamese_forward.3
$region0: #{siamese_forward.3}
  #allocation0 [shape = 'u32[]', space=smem, size = 0x4, offset = 0x4, fixed_abs, tag = 'smem constant byte address 0x4 - core index']
  #allocation1 [shape = 'u32[144,128]{1,0:T(1,128)}', space=vmem, size = 0x12000, scoped, tag = 'internal scratch']
  %s0 = inlined_call_operand.vmem [shape: bf16[2048,384], index: 0, kind: input, shape index: {}]
  %s1 = inlined_call_operand.vmem [shape: bf16[384,128], index: 1, kind: input, shape index: {}]
  %s2 = inlined_call_operand.vmem [shape: f32[1,128], index: 2, kind: input, shape index: {}]
  %s3 = inlined_call_operand.vmem [shape: bf16[2048,128], index: 3, kind: output, shape index: {}]
  %s4 = sld [smem:[#allocation0]]
  $region45: #{siamese_forward.3} parent=0
    _
  %s6 = ssub.s32 1, %s4
  %s7 = scalar_select 0, %s6, %s4
  loop: start=0, step=1, limit=6
  $region2: #{siamese_forward.3} parent=0 // loop_pre_header
    _
  $region3: #{siamese_forward.3} parent=0 // loop_header
    %s9 = sphi 0, %s13
    %p10 = scmp.ge.s32.totalorder %s9, 6
    %s19 = sphi 0, %s21
    %s22 = sphi 0, %s19
    %s23 = sphi 0, %s22
    %s39 = sphi 0, %s23
    %s43 = sphi 0, %s43
    %s45 = sphi 0, %s43
    %s46 = sphi 0, %s45
    %s60 = sphi 0, %s46
    %s64 = sphi 0, %s64
    %s66 = sphi 0, %s64
    %s67 = sphi 0, %s66
    %s81 = sphi 0, %s67
    %s87 = sphi 0, %s89
    %s90 = sphi 0, %s87
    %s91 = sphi 0, %s90
    %s107 = sphi 0, %s91
  $region4: #{siamese_forward.3} parent=0 // loop_header_branch
    %12 = sbr.rel (%p10) target = $region8
  $region5: #{siamese_forward.3} parent=0 // loop_body
    %s14 = ssub.s32 %s9, 1
    %s15 = ssub.s32 %s9, 2
    %s16 = sadd.s32 %s9, 1
    %s17 = ssub.s32 %s9, %s16
    %p18 = scmp.eq.s32.totalorder %s17, 0
    %s20 = sadd.s32 %s19, 1
    %s21 = scalar_select %p18, %s19, %s20
    %p24 = pneg %p18
    %p25 = scmp.eq.s32.totalorder %s9, 3
    %p26 = por %p24, %p25
    %p27 = scmp.ne.s32.totalorder %s19, %s22
    %p28 = scmp.eq.s32.totalorder %s9, 0
    %p29 = por %p27, %p28
    %p30 = scmp.ne.s32.totalorder %s19, %s22
    %p31 = scmp.eq.s32.totalorder %s14, 3
    %p32 = por %p30, %p31
    %p33 = scmp.ne.s32.totalorder %s22, %s23
    %p34 = scmp.eq.s32.totalorder %s14, 0
    %p35 = por %p33, %p34
    %p36 = scmp.ne.s32.totalorder %s22, %s23
    %p37 = scmp.eq.s32.totalorder %s15, 3
    %p38 = por %p36, %p37
    %p40 = scmp.ne.s32.totalorder %s23, %s39
    %p41 = scmp.eq.s32.totalorder %s15, 0
    %p42 = por %p40, %p41
    %s44 = sadd.s32 %s43, 1
    %p47 = scmp.eq.s32.totalorder %s9, 3
    %p48 = scmp.ne.s32.totalorder %s43, %s45
    %p49 = scmp.eq.s32.totalorder %s9, 0
    %p50 = por %p48, %p49
    %p51 = scmp.ne.s32.totalorder %s43, %s45
    %p52 = scmp.eq.s32.totalorder %s14, 3
    %p53 = por %p51, %p52
    %p54 = scmp.ne.s32.totalorder %s45, %s46
    %p55 = scmp.eq.s32.totalorder %s14, 0
    %p56 = por %p54, %p55
    %p57 = scmp.ne.s32.totalorder %s45, %s46
    %p58 = scmp.eq.s32.totalorder %s15, 3
    %p59 = por %p57, %p58
    %p61 = scmp.ne.s32.totalorder %s46, %s60
    %p62 = scmp.eq.s32.totalorder %s15, 0
    %p63 = por %p61, %p62
    %s65 = sadd.s32 %s64, 1
    %p68 = scmp.eq.s32.totalorder %s9, 3
    %p69 = scmp.ne.s32.totalorder %s64, %s66
    %p70 = scmp.eq.s32.totalorder %s9, 0
    %p71 = por %p69, %p70
    %p72 = scmp.ne.s32.totalorder %s64, %s66
    %p73 = scmp.eq.s32.totalorder %s14, 3
    %p74 = por %p72, %p73
    %p75 = scmp.ne.s32.totalorder %s66, %s67
    %p76 = scmp.eq.s32.totalorder %s14, 0
    %p77 = por %p75, %p76
    %p78 = scmp.ne.s32.totalorder %s66, %s67
    %p79 = scmp.eq.s32.totalorder %s15, 3
    %p80 = por %p78, %p79
    %p82 = scmp.ne.s32.totalorder %s67, %s81
    %p83 = scmp.eq.s32.totalorder %s15, 0
    %p84 = por %p82, %p83
    %s85 = ssub.s32 %s9, %s16
    %p86 = scmp.eq.s32.totalorder %s85, 0
    %s88 = sadd.s32 %s87, 1
    %s89 = scalar_select %p86, %s87, %s88
    %p92 = pneg %p86
    %p93 = scmp.eq.s32.totalorder %s9, 3
    %p94 = por %p92, %p93
    %p95 = scmp.ne.s32.totalorder %s87, %s90
    %p96 = scmp.eq.s32.totalorder %s9, 0
    %p97 = por %p95, %p96
    %p98 = scmp.ne.s32.totalorder %s87, %s90
    %p99 = scmp.eq.s32.totalorder %s14, 3
    %p100 = por %p98, %p99
    %p101 = scmp.ne.s32.totalorder %s90, %s91
    %p102 = scmp.eq.s32.totalorder %s14, 0
    %p103 = por %p101, %p102
    %p104 = scmp.ne.s32.totalorder %s90, %s91
    %p105 = scmp.eq.s32.totalorder %s15, 3
    %p106 = por %p104, %p105
    %p108 = scmp.ne.s32.totalorder %s91, %s107
    %p109 = scmp.eq.s32.totalorder %s15, 0
    %p110 = por %p108, %p109
    %p111 = scmp.le.s32.totalorder 1, %s9
    %p112 = scmp.lt.s32.totalorder %s9, 5
    %p113 = pnand %p111, %p112
    %p114 = pneg %p113
    // Predicated region
    $region9: #{siamese_forward.3} parent=5 // pred_check
      _
    $region10: #{siamese_forward.3} parent=5 // pred_check_branch
      %116 = sbr.rel (%p113) target = $region12
    $region11: #{siamese_forward.3} parent=5 // pred_region
      %s117 = ssub.s32 %s9, 1
      // Predicated region
      $region13: #{siamese_forward.3} parent=11 // pred_check
        %p118 = pneg %p56
      $region14: #{siamese_forward.3} parent=11 // pred_check_branch
        %120 = sbr.rel (%p118) target = $region16
      $region15: #{siamese_forward.3} parent=11 // pred_region
        _
      $region16: #{siamese_forward.3} parent=11 // pred_fallthru
        _
      // Predicated region
      $region17: #{siamese_forward.3} parent=11 // pred_check
        %p121 = pneg %p77
      $region18: #{siamese_forward.3} parent=11 // pred_check_branch
        %123 = sbr.rel (%p121) target = $region20
      $region19: #{siamese_forward.3} parent=11 // pred_region
        _
      $region20: #{siamese_forward.3} parent=11 // pred_fallthru
        _
    $region12: #{siamese_forward.3} parent=5 // pred_fallthru
      _
    %p124 = scmp.lt.s32.totalorder %s9, 4
    // Predicated region
    $region21: #{siamese_forward.3} parent=5 // pred_check
      %p125 = pneg %p124
    $region22: #{siamese_forward.3} parent=5 // pred_check_branch
      %127 = sbr.rel (%p125) target = $region24
    $region23: #{siamese_forward.3} parent=5 // pred_region
      // Predicated region
      $region25: #{siamese_forward.3} parent=23 // pred_check
        %p128 = pneg %p29
      $region26: #{siamese_forward.3} parent=23 // pred_check_branch
        %130 = sbr.rel (%p128) target = $region28
      $region27: #{siamese_forward.3} parent=23 // pred_region
        %s131 = smul.u32 64, %s9
        %p132 = scmp.lt.s32.totalorder %s131, 255
        %s133 = scalar_select %p132, %s131, 255
        %s134 = smul.addr %s133, 3
        %s135 = smul.addr %s134, 4
        %s136 = scalar_lea.vmem %s0, %s135
        %s137 = smul.u32 64, %s9
      $region28: #{siamese_forward.3} parent=23 // pred_fallthru
        _
    $region24: #{siamese_forward.3} parent=5 // pred_fallthru
      _
    %p138 = scmp.le.s32.totalorder 1, %s9
    %p139 = scmp.lt.s32.totalorder %s9, 5
    %p140 = pnand %p138, %p139
    %p141 = pneg %p140
    // Predicated region
    $region29: #{siamese_forward.3} parent=5 // pred_check
      _
    $region30: #{siamese_forward.3} parent=5 // pred_check_branch
      %143 = sbr.rel (%p140) target = $region32
    $region31: #{siamese_forward.3} parent=5 // pred_region
      %s144 = ssub.s32 %s9, 1
      %s145 = smul.u32 64, %s14
      %p146 = scmp.lt.s32.totalorder %s145, 255
      %s147 = scalar_select %p146, %s145, 255
      %s148 = smul.addr %s147, 3
      %s149 = smul.addr %s148, 4
      %s150 = scalar_lea.vmem %s0, %s149
      %p151 = pneg %p35
      %p152 = pneg %p32
      %p153 = pneg %p56
      %p154 = pneg %p53
      %p155 = pneg %p77
      %p156 = pneg %p74
      %p157 = pneg %p103
      %p158 = pneg %p100
      %s159 = smul.u32 64, %s14
      %p160 = scmp.lt.s32.totalorder %s159, 255
      %s161 = scalar_select %p160, %s159, 255
      %s162 = smul.addr %s161, 4
      %s163 = scalar_lea.vmem %s3, %s162
      %s164 = smul.u32 64, %s14
      %p165 = scmp.lt.s32.totalorder %s164, 255
      %s166 = scalar_select %p165, %s164, 255
      %s167 = smul.addr %s166, 3
      %s168 = smul.addr %s167, 4
      %s169 = scalar_lea.vmem %s0, %s168
      %s170 = smul.u32 64, %s14
      %s171 = smul.u32 64, %s14
      %p172 = scmp.lt.s32.totalorder %s171, 255
      %s173 = scalar_select %p172, %s171, 255
      %s174 = smul.addr %s173, 4
      %s175 = scalar_lea.vmem %s3, %s174
      %s176 = smul.u32 64, %s14
      %v178 = vld [vmem:[%s169] sm:$0xff]
      %v179 = vld [vmem:[%s169 + $0x8] sm:$0xf]
      %v180 = vld [vmem:[%s169 + $0xc] sm:$0xff]
      %v181 = vld [vmem:[%s169 + $0x14] sm:$0xf]
      %v182 = vld [vmem:[%s169 + $0x18] sm:$0xff]
      %v183 = vld [vmem:[%s169 + $0x20] sm:$0xf]
      %v184 = vld [vmem:[%s169 + $0x24] sm:$0xff]
      %v185 = vld [vmem:[%s169 + $0x2c] sm:$0xf]
      %v186 = vld [vmem:[%s169 + $0x30] sm:$0xff]
      %v187 = vld [vmem:[%s169 + $0x38] sm:$0xf]
      %v188 = vld [vmem:[%s169 + $0x3c] sm:$0xff]
      %v189 = vld [vmem:[%s169 + $0x44] sm:$0xf]
      %v190 = vld [vmem:[%s169 + $0x48] sm:$0xff]
      %v191 = vld [vmem:[%s169 + $0x50] sm:$0xf]
      %v192 = vld [vmem:[%s169 + $0x54] sm:$0xff]
      %v193 = vld [vmem:[%s169 + $0x5c] sm:$0xf]
      %v194 = vld [vmem:[%s169 + $0x60] sm:$0xff]
      %v195 = vld [vmem:[%s169 + $0x68] sm:$0xf]
      %v196 = vld [vmem:[%s169 + $0x6c] sm:$0xff]
      %v197 = vld [vmem:[%s169 + $0x74] sm:$0xf]
      %v198 = vld [vmem:[%s169 + $0x78] sm:$0xff]
      %v199 = vld [vmem:[%s169 + $0x80] sm:$0xf]
      %v200 = vld [vmem:[%s169 + $0x84] sm:$0xff]
      %v201 = vld [vmem:[%s169 + $0x8c] sm:$0xf]
      %v202 = vld [vmem:[%s169 + $0x90] sm:$0xff]
      %v203 = vld [vmem:[%s169 + $0x98] sm:$0xf]
      %v204 = vld [vmem:[%s169 + $0x9c] sm:$0xff]
      %v205 = vld [vmem:[%s169 + $0xa4] sm:$0xf]
      %v206 = vld [vmem:[%s169 + $0xa8] sm:$0xff]
      %v207 = vld [vmem:[%s169 + $0xb0] sm:$0xf]
      %v208 = vld [vmem:[%s169 + $0xb4] sm:$0xff]
      %v209 = vld [vmem:[%s169 + $0xbc] sm:$0xf]
      %v210 = vld [vmem:[%s169 + $0xc0] sm:$0xff]
      %v211 = vld [vmem:[%s169 + $0xc8] sm:$0xf]
      %v212 = vld [vmem:[%s169 + $0xcc] sm:$0xff]
      %v213 = vld [vmem:[%s169 + $0xd4] sm:$0xf]
      %v214 = vld [vmem:[%s169 + $0xd8] sm:$0xff]
      %v215 = vld [vmem:[%s169 + $0xe0] sm:$0xf]
      %v216 = vld [vmem:[%s169 + $0xe4] sm:$0xff]
      %v217 = vld [vmem:[%s169 + $0xec] sm:$0xf]
      %v218 = vld [vmem:[%s169 + $0xf0] sm:$0xff]
      %v219 = vld [vmem:[%s169 + $0xf8] sm:$0xf]
      %v220 = vld [vmem:[%s169 + $0xfc] sm:$0xff]
      %v221 = vld [vmem:[%s169 + $0x104] sm:$0xf]
      %v222 = vld [vmem:[%s169 + $0x108] sm:$0xff]
      %v223 = vld [vmem:[%s169 + $0x110] sm:$0xf]
      %v224 = vld [vmem:[%s169 + $0x114] sm:$0xff]
      %v225 = vld [vmem:[%s169 + $0x11c] sm:$0xf]
      %v226 = vld [vmem:[%s169 + $0x120] sm:$0xff]
      %v227 = vld [vmem:[%s169 + $0x128] sm:$0xf]
      %v228 = vld [vmem:[%s169 + $0x12c] sm:$0xff]
      %v229 = vld [vmem:[%s169 + $0x134] sm:$0xf]
      %v230 = vld [vmem:[%s169 + $0x138] sm:$0xff]
      %v231 = vld [vmem:[%s169 + $0x140] sm:$0xf]
      %v232 = vld [vmem:[%s169 + $0x144] sm:$0xff]
      %v233 = vld [vmem:[%s169 + $0x14c] sm:$0xf]
      %v234 = vld [vmem:[%s169 + $0x150] sm:$0xff]
      %v235 = vld [vmem:[%s169 + $0x158] sm:$0xf]
      %v236 = vld [vmem:[%s169 + $0x15c] sm:$0xff]
      %v237 = vld [vmem:[%s169 + $0x164] sm:$0xf]
      %v238 = vld [vmem:[%s169 + $0x168] sm:$0xff]
      %v239 = vld [vmem:[%s169 + $0x170] sm:$0xf]
      %v240 = vld [vmem:[%s169 + $0x174] sm:$0xff]
      %v241 = vld [vmem:[%s169 + $0x17c] sm:$0xf]
      %v242 = vld [vmem:[%s169 + $0x180] sm:$0xff]
      %v243 = vld [vmem:[%s169 + $0x188] sm:$0xf]
      %v244 = vld [vmem:[%s169 + $0x18c] sm:$0xff]
      %v245 = vld [vmem:[%s169 + $0x194] sm:$0xf]
      %v246 = vld [vmem:[%s169 + $0x198] sm:$0xff]
      %v247 = vld [vmem:[%s169 + $0x1a0] sm:$0xf]
      %v248 = vld [vmem:[%s169 + $0x1a4] sm:$0xff]
      %v249 = vld [vmem:[%s169 + $0x1ac] sm:$0xf]
      %v250 = vld [vmem:[%s169 + $0x1b0] sm:$0xff]
      %v251 = vld [vmem:[%s169 + $0x1b8] sm:$0xf]
      %v252 = vld [vmem:[%s169 + $0x1bc] sm:$0xff]
      %v253 = vld [vmem:[%s169 + $0x1c4] sm:$0xf]
      %v254 = vld [vmem:[%s169 + $0x1c8] sm:$0xff]
      %v255 = vld [vmem:[%s169 + $0x1d0] sm:$0xf]
      %v256 = vld [vmem:[%s169 + $0x1d4] sm:$0xff]
      %v257 = vld [vmem:[%s169 + $0x1dc] sm:$0xf]
      %v258 = vld [vmem:[%s169 + $0x1e0] sm:$0xff]
      %v259 = vld [vmem:[%s169 + $0x1e8] sm:$0xf]
      %v260 = vld [vmem:[%s169 + $0x1ec] sm:$0xff]
      %v261 = vld [vmem:[%s169 + $0x1f4] sm:$0xf]
      %v262 = vld [vmem:[%s169 + $0x1f8] sm:$0xff]
      %v263 = vld [vmem:[%s169 + $0x200] sm:$0xf]
      %v264 = vld [vmem:[%s169 + $0x204] sm:$0xff]
      %v265 = vld [vmem:[%s169 + $0x20c] sm:$0xf]
      %v266 = vld [vmem:[%s169 + $0x210] sm:$0xff]
      %v267 = vld [vmem:[%s169 + $0x218] sm:$0xf]
      %v268 = vld [vmem:[%s169 + $0x21c] sm:$0xff]
      %v269 = vld [vmem:[%s169 + $0x224] sm:$0xf]
      %v270 = vld [vmem:[%s169 + $0x228] sm:$0xff]
      %v271 = vld [vmem:[%s169 + $0x230] sm:$0xf]
      %v272 = vld [vmem:[%s169 + $0x234] sm:$0xff]
      %v273 = vld [vmem:[%s169 + $0x23c] sm:$0xf]
      %v274 = vld [vmem:[%s169 + $0x240] sm:$0xff]
      %v275 = vld [vmem:[%s169 + $0x248] sm:$0xf]
      %v276 = vld [vmem:[%s169 + $0x24c] sm:$0xff]
      %v277 = vld [vmem:[%s169 + $0x254] sm:$0xf]
      %v278 = vld [vmem:[%s169 + $0x258] sm:$0xff]
      %v279 = vld [vmem:[%s169 + $0x260] sm:$0xf]
      %v280 = vld [vmem:[%s169 + $0x264] sm:$0xff]
      %v281 = vld [vmem:[%s169 + $0x26c] sm:$0xf]
      %v282 = vld [vmem:[%s169 + $0x270] sm:$0xff]
      %v283 = vld [vmem:[%s169 + $0x278] sm:$0xf]
      %v284 = vld [vmem:[%s169 + $0x27c] sm:$0xff]
      %v285 = vld [vmem:[%s169 + $0x284] sm:$0xf]
      %v286 = vld [vmem:[%s169 + $0x288] sm:$0xff]
      %v287 = vld [vmem:[%s169 + $0x290] sm:$0xf]
      %v288 = vld [vmem:[%s169 + $0x294] sm:$0xff]
      %v289 = vld [vmem:[%s169 + $0x29c] sm:$0xf]
      %v290 = vld [vmem:[%s169 + $0x2a0] sm:$0xff]
      %v291 = vld [vmem:[%s169 + $0x2a8] sm:$0xf]
      %v292 = vld [vmem:[%s169 + $0x2ac] sm:$0xff]
      %v293 = vld [vmem:[%s169 + $0x2b4] sm:$0xf]
      %v294 = vld [vmem:[%s169 + $0x2b8] sm:$0xff]
      %v295 = vld [vmem:[%s169 + $0x2c0] sm:$0xf]
      %v296 = vld [vmem:[%s169 + $0x2c4] sm:$0xff]
      %v297 = vld [vmem:[%s169 + $0x2cc] sm:$0xf]
      %v298 = vld [vmem:[%s169 + $0x2d0] sm:$0xff]
      %v299 = vld [vmem:[%s169 + $0x2d8] sm:$0xf]
      %v300 = vld [vmem:[%s169 + $0x2dc] sm:$0xff]
      %v301 = vld [vmem:[%s169 + $0x2e4] sm:$0xf]
      %v302 = vld [vmem:[%s169 + $0x2e8] sm:$0xff]
      %v303 = vld [vmem:[%s169 + $0x2f0] sm:$0xf]
      %v304 = vld [vmem:[%s169 + $0x2f4] sm:$0xff]
      %v305 = vld [vmem:[%s169 + $0x2fc] sm:$0xf]
      %v306 = vld [vmem:[%s1] sm:$0xf]
      %v307 = vld [vmem:[%s1 + $0x4] sm:$0xf]
      %v308 = vld [vmem:[%s1 + $0x8] sm:$0xf]
      %v309 = vld [vmem:[%s1 + $0xc] sm:$0xf]
      %v310 = vld [vmem:[%s1 + $0x10] sm:$0xf]
      %v311 = vld [vmem:[%s1 + $0x14] sm:$0xf]
      %v312 = vld [vmem:[%s1 + $0x18] sm:$0xf]
      %v313 = vld [vmem:[%s1 + $0x1c] sm:$0xf]
      %v314 = vld [vmem:[%s1 + $0x20] sm:$0xf]
      %v315 = vld [vmem:[%s1 + $0x24] sm:$0xf]
      %v316 = vld [vmem:[%s1 + $0x28] sm:$0xf]
      %v317 = vld [vmem:[%s1 + $0x2c] sm:$0xf]
      %v318 = vld [vmem:[%s1 + $0x30] sm:$0xf]
      %v319 = vld [vmem:[%s1 + $0x34] sm:$0xf]
      %v320 = vld [vmem:[%s1 + $0x38] sm:$0xf]
      %v321 = vld [vmem:[%s1 + $0x3c] sm:$0xf]
      %v322 = vld [vmem:[%s1 + $0x40] sm:$0xf]
      %v323 = vld [vmem:[%s1 + $0x44] sm:$0xf]
      %v324 = vld [vmem:[%s1 + $0x48] sm:$0xf]
      %v325 = vld [vmem:[%s1 + $0x4c] sm:$0xf]
      %v326 = vld [vmem:[%s1 + $0x50] sm:$0xf]
      %v327 = vld [vmem:[%s1 + $0x54] sm:$0xf]
      %v328 = vld [vmem:[%s1 + $0x58] sm:$0xf]
      %v329 = vld [vmem:[%s1 + $0x5c] sm:$0xf]
      %v330 = vld [vmem:[%s1 + $0x60] sm:$0xf]
      %v331 = vld [vmem:[%s1 + $0x64] sm:$0xf]
      %v332 = vld [vmem:[%s1 + $0x68] sm:$0xf]
      %v333 = vld [vmem:[%s1 + $0x6c] sm:$0xf]
      %v334 = vld [vmem:[%s1 + $0x70] sm:$0xf]
      %v335 = vld [vmem:[%s1 + $0x74] sm:$0xf]
      %v336 = vld [vmem:[%s1 + $0x78] sm:$0xf]
      %v337 = vld [vmem:[%s1 + $0x7c] sm:$0xf]
      %v338 = vld [vmem:[%s1 + $0x80] sm:$0xf]
      %v339 = vld [vmem:[%s1 + $0x84] sm:$0xf]
      %v340 = vld [vmem:[%s1 + $0x88] sm:$0xf]
      %v341 = vld [vmem:[%s1 + $0x8c] sm:$0xf]
      %v342 = vld [vmem:[%s1 + $0x90] sm:$0xf]
      %v343 = vld [vmem:[%s1 + $0x94] sm:$0xf]
      %v344 = vld [vmem:[%s1 + $0x98] sm:$0xf]
      %v345 = vld [vmem:[%s1 + $0x9c] sm:$0xf]
      %v346 = vld [vmem:[%s1 + $0xa0] sm:$0xf]
      %v347 = vld [vmem:[%s1 + $0xa4] sm:$0xf]
      %v348 = vld [vmem:[%s1 + $0xa8] sm:$0xf]
      %v349 = vld [vmem:[%s1 + $0xac] sm:$0xf]
      %v350 = vld [vmem:[%s1 + $0xb0] sm:$0xf]
      %v351 = vld [vmem:[%s1 + $0xb4] sm:$0xf]
      %v352 = vld [vmem:[%s1 + $0xb8] sm:$0xf]
      %v353 = vld [vmem:[%s1 + $0xbc] sm:$0xf]
      %v354 = vld [vmem:[%s2] sm:$0x1]
      %v356 = vlaneseq
      %v357 = vshrl.u32 %v356, 7
      %v358 = vsub.s32 0, %v357
      %v359 = vrot.slane %v354, %v358
      %v489 = vunpack.c.l.b16 %v178
      %v490 = vunpack.c.h.b16 %v178
      %v491 = vunpack.c.l.b16 %v179
      %v492 = vunpack.c.l.b16 %v180
      %v493 = vunpack.c.h.b16 %v180
      %v494 = vunpack.c.l.b16 %v181
      %v495 = vunpack.c.l.b16 %v182
      %v496 = vunpack.c.h.b16 %v182
      %v497 = vunpack.c.l.b16 %v183
      %v498 = vunpack.c.l.b16 %v184
      %v499 = vunpack.c.h.b16 %v184
      %v500 = vunpack.c.l.b16 %v185
      %v501 = vunpack.c.l.b16 %v186
      %v502 = vunpack.c.h.b16 %v186
      %v503 = vunpack.c.l.b16 %v187
      %v504 = vunpack.c.l.b16 %v188
      %v505 = vunpack.c.h.b16 %v188
      %v506 = vunpack.c.l.b16 %v189
      %v507 = vunpack.c.l.b16 %v190
      %v508 = vunpack.c.h.b16 %v190
      %v509 = vunpack.c.l.b16 %v191
      %v510 = vunpack.c.l.b16 %v192
      %v511 = vunpack.c.h.b16 %v192
      %v512 = vunpack.c.l.b16 %v193
      %v513 = vunpack.c.l.b16 %v194
      %v514 = vunpack.c.h.b16 %v194
      %v515 = vunpack.c.l.b16 %v195
      %v516 = vunpack.c.l.b16 %v196
      %v517 = vunpack.c.h.b16 %v196
      %v518 = vunpack.c.l.b16 %v197
      %v519 = vunpack.c.l.b16 %v198
      %v520 = vunpack.c.h.b16 %v198
      %v521 = vunpack.c.l.b16 %v199
      %v522 = vunpack.c.l.b16 %v200
      %v523 = vunpack.c.h.b16 %v200
      %v524 = vunpack.c.l.b16 %v201
      %v525 = vunpack.c.l.b16 %v202
      %v526 = vunpack.c.h.b16 %v202
      %v527 = vunpack.c.l.b16 %v203
      %v528 = vunpack.c.l.b16 %v204
      %v529 = vunpack.c.h.b16 %v204
      %v530 = vunpack.c.l.b16 %v205
      %v531 = vunpack.c.l.b16 %v206
      %v532 = vunpack.c.h.b16 %v206
      %v533 = vunpack.c.l.b16 %v207
      %v534 = vunpack.c.l.b16 %v208
      %v535 = vunpack.c.h.b16 %v208
      %v536 = vunpack.c.l.b16 %v209
      %v537 = vunpack.c.l.b16 %v210
      %v538 = vunpack.c.h.b16 %v210
      %v539 = vunpack.c.l.b16 %v211
      %v540 = vunpack.c.l.b16 %v212
      %v541 = vunpack.c.h.b16 %v212
      %v542 = vunpack.c.l.b16 %v213
      %v543 = vunpack.c.l.b16 %v214
      %v544 = vunpack.c.h.b16 %v214
      %v545 = vunpack.c.l.b16 %v215
      %v546 = vunpack.c.l.b16 %v216
      %v547 = vunpack.c.h.b16 %v216
      %v548 = vunpack.c.l.b16 %v217
      %v549 = vunpack.c.l.b16 %v218
      %v550 = vunpack.c.h.b16 %v218
      %v551 = vunpack.c.l.b16 %v219
      %v552 = vunpack.c.l.b16 %v220
      %v553 = vunpack.c.h.b16 %v220
      %v554 = vunpack.c.l.b16 %v221
      %v555 = vunpack.c.l.b16 %v222
      %v556 = vunpack.c.h.b16 %v222
      %v557 = vunpack.c.l.b16 %v223
      %v558 = vunpack.c.l.b16 %v224
      %v559 = vunpack.c.h.b16 %v224
      %v560 = vunpack.c.l.b16 %v225
      %v561 = vunpack.c.l.b16 %v226
      %v562 = vunpack.c.h.b16 %v226
      %v563 = vunpack.c.l.b16 %v227
      %v564 = vunpack.c.l.b16 %v228
      %v565 = vunpack.c.h.b16 %v228
      %v566 = vunpack.c.l.b16 %v229
      %v567 = vunpack.c.l.b16 %v230
      %v568 = vunpack.c.h.b16 %v230
      %v569 = vunpack.c.l.b16 %v231
      %v570 = vunpack.c.l.b16 %v232
      %v571 = vunpack.c.h.b16 %v232
      %v572 = vunpack.c.l.b16 %v233
      %v573 = vunpack.c.l.b16 %v234
      %v574 = vunpack.c.h.b16 %v234
      %v575 = vunpack.c.l.b16 %v235
      %v576 = vunpack.c.l.b16 %v236
      %v577 = vunpack.c.h.b16 %v236
      %v578 = vunpack.c.l.b16 %v237
      %v579 = vunpack.c.l.b16 %v238
      %v580 = vunpack.c.h.b16 %v238
      %v581 = vunpack.c.l.b16 %v239
      %v582 = vunpack.c.l.b16 %v240
      %v583 = vunpack.c.h.b16 %v240
      %v584 = vunpack.c.l.b16 %v241
      %v585 = vunpack.c.l.b16 %v242
      %v586 = vunpack.c.h.b16 %v242
      %v587 = vunpack.c.l.b16 %v243
      %v588 = vunpack.c.l.b16 %v244
      %v589 = vunpack.c.h.b16 %v244
      %v590 = vunpack.c.l.b16 %v245
      %v591 = vunpack.c.l.b16 %v246
      %v592 = vunpack.c.h.b16 %v246
      %v593 = vunpack.c.l.b16 %v247
      %v594 = vunpack.c.l.b16 %v248
      %v595 = vunpack.c.h.b16 %v248
      %v596 = vunpack.c.l.b16 %v249
      %v597 = vunpack.c.l.b16 %v250
      %v598 = vunpack.c.h.b16 %v250
      %v599 = vunpack.c.l.b16 %v251
      %v600 = vunpack.c.l.b16 %v252
      %v601 = vunpack.c.h.b16 %v252
      %v602 = vunpack.c.l.b16 %v253
      %v603 = vunpack.c.l.b16 %v254
      %v604 = vunpack.c.h.b16 %v254
      %v605 = vunpack.c.l.b16 %v255
      %v606 = vunpack.c.l.b16 %v256
      %v607 = vunpack.c.h.b16 %v256
      %v608 = vunpack.c.l.b16 %v257
      %v609 = vunpack.c.l.b16 %v258
      %v610 = vunpack.c.h.b16 %v258
      %v611 = vunpack.c.l.b16 %v259
      %v612 = vunpack.c.l.b16 %v260
      %v613 = vunpack.c.h.b16 %v260
      %v614 = vunpack.c.l.b16 %v261
      %v615 = vunpack.c.l.b16 %v262
      %v616 = vunpack.c.h.b16 %v262
      %v617 = vunpack.c.l.b16 %v263
      %v618 = vunpack.c.l.b16 %v264
      %v619 = vunpack.c.h.b16 %v264
      %v620 = vunpack.c.l.b16 %v265
      %v621 = vunpack.c.l.b16 %v266
      %v622 = vunpack.c.h.b16 %v266
      %v623 = vunpack.c.l.b16 %v267
      %v624 = vunpack.c.l.b16 %v268
      %v625 = vunpack.c.h.b16 %v268
      %v626 = vunpack.c.l.b16 %v269
      %v627 = vunpack.c.l.b16 %v270
      %v628 = vunpack.c.h.b16 %v270
      %v629 = vunpack.c.l.b16 %v271
      %v630 = vunpack.c.l.b16 %v272
      %v631 = vunpack.c.h.b16 %v272
      %v632 = vunpack.c.l.b16 %v273
      %v633 = vunpack.c.l.b16 %v274
      %v634 = vunpack.c.h.b16 %v274
      %v635 = vunpack.c.l.b16 %v275
      %v636 = vunpack.c.l.b16 %v276
      %v637 = vunpack.c.h.b16 %v276
      %v638 = vunpack.c.l.b16 %v277
      %v639 = vunpack.c.l.b16 %v278
      %v640 = vunpack.c.h.b16 %v278
      %v641 = vunpack.c.l.b16 %v279
      %v642 = vunpack.c.l.b16 %v280
      %v643 = vunpack.c.h.b16 %v280
      %v644 = vunpack.c.l.b16 %v281
      %v645 = vunpack.c.l.b16 %v282
      %v646 = vunpack.c.h.b16 %v282
      %v647 = vunpack.c.l.b16 %v283
      %v648 = vunpack.c.l.b16 %v284
      %v649 = vunpack.c.h.b16 %v284
      %v650 = vunpack.c.l.b16 %v285
      %v651 = vunpack.c.l.b16 %v286
      %v652 = vunpack.c.h.b16 %v286
      %v653 = vunpack.c.l.b16 %v287
      %v654 = vunpack.c.l.b16 %v288
      %v655 = vunpack.c.h.b16 %v288
      %v656 = vunpack.c.l.b16 %v289
      %v657 = vunpack.c.l.b16 %v290
      %v658 = vunpack.c.h.b16 %v290
      %v659 = vunpack.c.l.b16 %v291
      %v660 = vunpack.c.l.b16 %v292
      %v661 = vunpack.c.h.b16 %v292
      %v662 = vunpack.c.l.b16 %v293
      %v663 = vunpack.c.l.b16 %v294
      %v664 = vunpack.c.h.b16 %v294
      %v665 = vunpack.c.l.b16 %v295
      %v666 = vunpack.c.l.b16 %v296
      %v667 = vunpack.c.h.b16 %v296
      %v668 = vunpack.c.l.b16 %v297
      %v669 = vunpack.c.l.b16 %v298
      %v670 = vunpack.c.h.b16 %v298
      %v671 = vunpack.c.l.b16 %v299
      %v672 = vunpack.c.l.b16 %v300
      %v673 = vunpack.c.h.b16 %v300
      %v674 = vunpack.c.l.b16 %v301
      %v675 = vunpack.c.l.b16 %v302
      %v676 = vunpack.c.h.b16 %v302
      %v677 = vunpack.c.l.b16 %v303
      %v678 = vunpack.c.l.b16 %v304
      %v679 = vunpack.c.h.b16 %v304
      %v680 = vunpack.c.l.b16 %v305
      %v681 = vpack.c.b16 %v492, %v489
      %v682 = vpack.c.b16 %v493, %v490
      %v683 = vpack.c.b16 %v494, %v491
      %v684 = vpack.c.b16 %v498, %v495
      %v685 = vpack.c.b16 %v499, %v496
      %v686 = vpack.c.b16 %v500, %v497
      %v687 = vpack.c.b16 %v504, %v501
      %v688 = vpack.c.b16 %v505, %v502
      %v689 = vpack.c.b16 %v506, %v503
      %v690 = vpack.c.b16 %v510, %v507
      %v691 = vpack.c.b16 %v511, %v508
      %v692 = vpack.c.b16 %v512, %v509
      %v693 = vpack.c.b16 %v516, %v513
      %v694 = vpack.c.b16 %v517, %v514
      %v695 = vpack.c.b16 %v518, %v515
      %v696 = vpack.c.b16 %v522, %v519
      %v697 = vpack.c.b16 %v523, %v520
      %v698 = vpack.c.b16 %v524, %v521
      %v699 = vpack.c.b16 %v528, %v525
      %v700 = vpack.c.b16 %v529, %v526
      %v701 = vpack.c.b16 %v530, %v527
      %v702 = vpack.c.b16 %v534, %v531
      %v703 = vpack.c.b16 %v535, %v532
      %v704 = vpack.c.b16 %v536, %v533
      %v705 = vpack.c.b16 %v540, %v537
      %v706 = vpack.c.b16 %v541, %v538
      %v707 = vpack.c.b16 %v542, %v539
      %v708 = vpack.c.b16 %v546, %v543
      %v709 = vpack.c.b16 %v547, %v544
      %v710 = vpack.c.b16 %v548, %v545
      %v711 = vpack.c.b16 %v552, %v549
      %v712 = vpack.c.b16 %v553, %v550
      %v713 = vpack.c.b16 %v554, %v551
      %v714 = vpack.c.b16 %v558, %v555
      %v715 = vpack.c.b16 %v559, %v556
      %v716 = vpack.c.b16 %v560, %v557
      %v717 = vpack.c.b16 %v564, %v561
      %v718 = vpack.c.b16 %v565, %v562
      %v719 = vpack.c.b16 %v566, %v563
      %v720 = vpack.c.b16 %v570, %v567
      %v721 = vpack.c.b16 %v571, %v568
      %v722 = vpack.c.b16 %v572, %v569
      %v723 = vpack.c.b16 %v576, %v573
      %v724 = vpack.c.b16 %v577, %v574
      %v725 = vpack.c.b16 %v578, %v575
      %v726 = vpack.c.b16 %v582, %v579
      %v727 = vpack.c.b16 %v583, %v580
      %v728 = vpack.c.b16 %v584, %v581
      %v729 = vpack.c.b16 %v588, %v585
      %v730 = vpack.c.b16 %v589, %v586
      %v731 = vpack.c.b16 %v590, %v587
      %v732 = vpack.c.b16 %v594, %v591
      %v733 = vpack.c.b16 %v595, %v592
      %v734 = vpack.c.b16 %v596, %v593
      %v735 = vpack.c.b16 %v600, %v597
      %v736 = vpack.c.b16 %v601, %v598
      %v737 = vpack.c.b16 %v602, %v599
      %v738 = vpack.c.b16 %v606, %v603
      %v739 = vpack.c.b16 %v607, %v604
      %v740 = vpack.c.b16 %v608, %v605
      %v741 = vpack.c.b16 %v612, %v609
      %v742 = vpack.c.b16 %v613, %v610
      %v743 = vpack.c.b16 %v614, %v611
      %v744 = vpack.c.b16 %v618, %v615
      %v745 = vpack.c.b16 %v619, %v616
      %v746 = vpack.c.b16 %v620, %v617
      %v747 = vpack.c.b16 %v624, %v621
      %v748 = vpack.c.b16 %v625, %v622
      %v749 = vpack.c.b16 %v626, %v623
      %v750 = vpack.c.b16 %v630, %v627
      %v751 = vpack.c.b16 %v631, %v628
      %v752 = vpack.c.b16 %v632, %v629
      %v753 = vpack.c.b16 %v636, %v633
      %v754 = vpack.c.b16 %v637, %v634
      %v755 = vpack.c.b16 %v638, %v635
      %v756 = vpack.c.b16 %v642, %v639
      %v757 = vpack.c.b16 %v643, %v640
      %v758 = vpack.c.b16 %v644, %v641
      %v759 = vpack.c.b16 %v648, %v645
      %v760 = vpack.c.b16 %v649, %v646
      %v761 = vpack.c.b16 %v650, %v647
      %v762 = vpack.c.b16 %v654, %v651
      %v763 = vpack.c.b16 %v655, %v652
      %v764 = vpack.c.b16 %v656, %v653
      %v765 = vpack.c.b16 %v660, %v657
      %v766 = vpack.c.b16 %v661, %v658
      %v767 = vpack.c.b16 %v662, %v659
      %v768 = vpack.c.b16 %v666, %v663
      %v769 = vpack.c.b16 %v667, %v664
      %v770 = vpack.c.b16 %v668, %v665
      %v771 = vpack.c.b16 %v672, %v669
      %v772 = vpack.c.b16 %v673, %v670
      %v773 = vpack.c.b16 %v674, %v671
      %v774 = vpack.c.b16 %v678, %v675
      %v775 = vpack.c.b16 %v679, %v676
      %v776 = vpack.c.b16 %v680, %v677
      %v921 = vunpack.c.l.b16 %v306
      %v922 = vunpack.c.l.b16 %v307
      %v923 = vunpack.c.l.b16 %v308
      %v924 = vunpack.c.l.b16 %v309
      %v925 = vunpack.c.l.b16 %v310
      %v926 = vunpack.c.l.b16 %v311
      %v927 = vunpack.c.l.b16 %v312
      %v928 = vunpack.c.l.b16 %v313
      %v929 = vunpack.c.l.b16 %v314
      %v930 = vunpack.c.l.b16 %v315
      %v931 = vunpack.c.l.b16 %v316
      %v932 = vunpack.c.l.b16 %v317
      %v933 = vunpack.c.l.b16 %v318
      %v934 = vunpack.c.l.b16 %v319
      %v935 = vunpack.c.l.b16 %v320
      %v936 = vunpack.c.l.b16 %v321
      %v937 = vunpack.c.l.b16 %v322
      %v938 = vunpack.c.l.b16 %v323
      %v939 = vunpack.c.l.b16 %v324
      %v940 = vunpack.c.l.b16 %v325
      %v941 = vunpack.c.l.b16 %v326
      %v942 = vunpack.c.l.b16 %v327
      %v943 = vunpack.c.l.b16 %v328
      %v944 = vunpack.c.l.b16 %v329
      %v945 = vunpack.c.l.b16 %v330
      %v946 = vunpack.c.l.b16 %v331
      %v947 = vunpack.c.l.b16 %v332
      %v948 = vunpack.c.l.b16 %v333
      %v949 = vunpack.c.l.b16 %v334
      %v950 = vunpack.c.l.b16 %v335
      %v951 = vunpack.c.l.b16 %v336
      %v952 = vunpack.c.l.b16 %v337
      %v953 = vunpack.c.l.b16 %v338
      %v954 = vunpack.c.l.b16 %v339
      %v955 = vunpack.c.l.b16 %v340
      %v956 = vunpack.c.l.b16 %v341
      %v957 = vunpack.c.l.b16 %v342
      %v958 = vunpack.c.l.b16 %v343
      %v959 = vunpack.c.l.b16 %v344
      %v960 = vunpack.c.l.b16 %v345
      %v961 = vunpack.c.l.b16 %v346
      %v962 = vunpack.c.l.b16 %v347
      %v963 = vunpack.c.l.b16 %v348
      %v964 = vunpack.c.l.b16 %v349
      %v965 = vunpack.c.l.b16 %v350
      %v966 = vunpack.c.l.b16 %v351
      %v967 = vunpack.c.l.b16 %v352
      %v968 = vunpack.c.l.b16 %v353
      %v969 = vpack.c.b16 %v922, %v921
      %v970 = vpack.c.b16 %v924, %v923
      %v971 = vpack.c.b16 %v926, %v925
      %v972 = vpack.c.b16 %v928, %v927
      %v973 = vpack.c.b16 %v930, %v929
      %v974 = vpack.c.b16 %v932, %v931
      %v975 = vpack.c.b16 %v934, %v933
      %v976 = vpack.c.b16 %v936, %v935
      %v977 = vpack.c.b16 %v938, %v937
      %v978 = vpack.c.b16 %v940, %v939
      %v979 = vpack.c.b16 %v942, %v941
      %v980 = vpack.c.b16 %v944, %v943
      %v981 = vpack.c.b16 %v946, %v945
      %v982 = vpack.c.b16 %v948, %v947
      %v983 = vpack.c.b16 %v950, %v949
      %v984 = vpack.c.b16 %v952, %v951
      %v985 = vpack.c.b16 %v954, %v953
      %v986 = vpack.c.b16 %v956, %v955
      %v987 = vpack.c.b16 %v958, %v957
      %v988 = vpack.c.b16 %v960, %v959
      %v989 = vpack.c.b16 %v962, %v961
      %v990 = vpack.c.b16 %v964, %v963
      %v991 = vpack.c.b16 %v966, %v965
      %v992 = vpack.c.b16 %v968, %v967
      %1017 = vmatprep.subr.bf16.mxu0 0
      %1018 = vmatpush1.bf16.msra.mxu0 %v969
      %1019 = vmatprep.subr.bf16.mxu0 0
      %1020 = vmatpush1.bf16.msra.mxu0 %v970
      %1021 = vmatprep.subr.bf16.mxu0 0
      %1022 = vmatpush1.bf16.msra.mxu0 %v971
      %1023 = vmatprep.subr.bf16.mxu0 0
      %1024 = vmatpush1.bf16.msra.mxu0 %v972
      %1025 = vmatprep.subr.bf16.mxu0 0
      %1026 = vmatpush1.bf16.msra.mxu0 %v973
      %1027 = vmatprep.subr.bf16.mxu0 0
      %1028 = vmatpush1.bf16.msra.mxu0 %v974
      %1029 = vmatprep.subr.bf16.mxu0 0
      %1030 = vmatpush1.bf16.msra.mxu0 %v975
      %1031 = vmatprep.subr.bf16.mxu0 0
      %1032 = vmatpush1.bf16.msra.mxu0 %v976
      %1033 = vmatprep.subr.bf16.mxu0 0
      %1034 = vmatpush1.bf16.msra.mxu0 %v977
      %1035 = vmatprep.subr.bf16.mxu0 0
      %1036 = vmatpush1.bf16.msra.mxu0 %v978
      %1037 = vmatprep.subr.bf16.mxu0 0
      %1038 = vmatpush1.bf16.msra.mxu0 %v979
      %1039 = vmatprep.subr.bf16.mxu0 0
      %1040 = vmatpush1.bf16.msra.mxu0 %v980
      %1041 = vmatprep.subr.bf16.mxu0 0
      %1042 = vmatpush1.bf16.msra.mxu0 %v981
      %1043 = vmatprep.subr.bf16.mxu0 0
      %1044 = vmatpush1.bf16.msra.mxu0 %v982
      %1045 = vmatprep.subr.bf16.mxu0 0
      %1046 = vmatpush1.bf16.msra.mxu0 %v983
      %1047 = vmatprep.subr.bf16.mxu0 0
      %1048 = vmatpush1.bf16.msra.mxu0 %v984
      %1049 = vmatprep.mubr.bf16.mxu0 %v682
      %1050 = vmatmul.mubr.bf16.gmra.mrb[0].mxu0 %v681
      %v1051 = vpop.f32.mrb[0].mxu0
      %v1052 = vadd.f32 %v359, %v1051
      %v1053 = vpop.f32.mrb[0].mxu0
      %v1054 = vpop.f32.mrb[0].mxu0
      %v1055 = vadd.f32 %v359, %v1054
      %v1056 = vpop.f32.mrb[0].mxu0
      %1057 = vmatprep.mubr.bf16.mxu0 %v685
      %1058 = vmatmul.mubr.bf16.gmra.mrb[0].mxu0 %v684
      %v1059 = vpop.f32.mrb[0].mxu0
      %v1060 = vadd.f32 %v359, %v1059
      %v1061 = vpop.f32.mrb[0].mxu0
      %v1062 = vpop.f32.mrb[0].mxu0
      %v1063 = vadd.f32 %v359, %v1062
      %v1064 = vpop.f32.mrb[0].mxu0
      %1065 = vmatprep.mubr.bf16.mxu0 %v688
      %1066 = vmatmul.mubr.bf16.gmra.mrb[0].mxu0 %v687
      %v1067 = vpop.f32.mrb[0].mxu0
      %v1068 = vadd.f32 %v359, %v1067
      %v1069 = vpop.f32.mrb[0].mxu0
      %v1070 = vpop.f32.mrb[0].mxu0
      %v1071 = vadd.f32 %v359, %v1070
      %v1072 = vpop.f32.mrb[0].mxu0
      %1073 = vmatprep.mubr.bf16.mxu0 %v691
      %1074 = vmatmul.mubr.bf16.gmra.mrb[0].mxu0 %v690
      %v1075 = vpop.f32.mrb[0].mxu0
      %v1076 = vadd.f32 %v359, %v1075
      %v1077 = vpop.f32.mrb[0].mxu0
      %v1078 = vpop.f32.mrb[0].mxu0
      %v1079 = vadd.f32 %v359, %v1078
      %v1080 = vpop.f32.mrb[0].mxu0
      %1081 = vmatprep.mubr.bf16.mxu0 %v694
      %1082 = vmatmul.mubr.bf16.gmra.mrb[0].mxu0 %v693
      %v1083 = vpop.f32.mrb[0].mxu0
      %v1084 = vadd.f32 %v359, %v1083
      %v1085 = vpop.f32.mrb[0].mxu0
      %v1086 = vpop.f32.mrb[0].mxu0
      %v1087 = vadd.f32 %v359, %v1086
      %v1088 = vpop.f32.mrb[0].mxu0
      %1089 = vmatprep.mubr.bf16.mxu0 %v697
      %1090 = vmatmul.mubr.bf16.gmra.mrb[0].mxu0 %v696
      %v1091 = vpop.f32.mrb[0].mxu0
      %v1092 = vadd.f32 %v359, %v1091
      %v1093 = vpop.f32.mrb[0].mxu0
      %v1094 = vpop.f32.mrb[0].mxu0
      %v1095 = vadd.f32 %v359, %v1094
      %v1096 = vpop.f32.mrb[0].mxu0
      %1097 = vmatprep.mubr.bf16.mxu0 %v700
      %1098 = vmatmul.mubr.bf16.gmra.mrb[0].mxu0 %v699
      %v1099 = vpop.f32.mrb[0].mxu0
      %v1100 = vadd.f32 %v359, %v1099
      %v1101 = vpop.f32.mrb[0].mxu0
      %v1102 = vpop.f32.mrb[0].mxu0
      %v1103 = vadd.f32 %v359, %v1102
      %v1104 = vpop.f32.mrb[0].mxu0
      %1105 = vmatprep.mubr.bf16.mxu0 %v703
      %1106 = vmatmul.mubr.bf16.gmra.mrb[0].mxu0 %v702
      %v1107 = vpop.f32.mrb[0].mxu0
      %v1108 = vadd.f32 %v359, %v1107
      %v1109 = vpop.f32.mrb[0].mxu0
      %v1110 = vpop.f32.mrb[0].mxu0
      %v1111 = vadd.f32 %v359, %v1110
      %v1112 = vpop.f32.mrb[0].mxu0
      %1113 = vmatprep.mubr.bf16.mxu0 %v706
      %1114 = vmatmul.mubr.bf16.gmra.mrb[0].mxu0 %v705
      %v1115 = vpop.f32.mrb[0].mxu0
      %v1116 = vadd.f32 %v359, %v1115
      %v1117 = vpop.f32.mrb[0].mxu0
      %v1118 = vpop.f32.mrb[0].mxu0
      %v1119 = vadd.f32 %v359, %v1118
      %v1120 = vpop.f32.mrb[0].mxu0
      %1121 = vmatprep.mubr.bf16.mxu0 %v709
      %1122 = vmatmul.mubr.bf16.gmra.mrb[0].mxu0 %v708
      %v1123 = vpop.f32.mrb[0].mxu0
      %v1124 = vadd.f32 %v359, %v1123
      %v1125 = vpop.f32.mrb[0].mxu0
      %v1126 = vpop.f32.mrb[0].mxu0
      %v1127 = vadd.f32 %v359, %v1126
      %v1128 = vpop.f32.mrb[0].mxu0
      %1129 = vmatprep.mubr.bf16.mxu0 %v712
      %1130 = vmatmul.mubr.bf16.gmra.mrb[0].mxu0 %v711
      %v1131 = vpop.f32.mrb[0].mxu0
      %v1132 = vadd.f32 %v359, %v1131
      %v1133 = vpop.f32.mrb[0].mxu0
      %v1134 = vpop.f32.mrb[0].mxu0
      %v1135 = vadd.f32 %v359, %v1134
      %v1136 = vpop.f32.mrb[0].mxu0
      %1137 = vmatprep.mubr.bf16.mxu0 %v715
      %1138 = vmatmul.mubr.bf16.gmra.mrb[0].mxu0 %v714
      %v1139 = vpop.f32.mrb[0].mxu0
      %v1140 = vadd.f32 %v359, %v1139
      %v1141 = vpop.f32.mrb[0].mxu0
      %v1142 = vpop.f32.mrb[0].mxu0
      %v1143 = vadd.f32 %v359, %v1142
      %v1144 = vpop.f32.mrb[0].mxu0
      %1145 = vmatprep.mubr.bf16.mxu0 %v718
      %1146 = vmatmul.mubr.bf16.gmra.mrb[0].mxu0 %v717
      %v1147 = vpop.f32.mrb[0].mxu0
      %v1148 = vadd.f32 %v359, %v1147
      %v1149 = vpop.f32.mrb[0].mxu0
      %v1150 = vpop.f32.mrb[0].mxu0
      %v1151 = vadd.f32 %v359, %v1150
      %v1152 = vpop.f32.mrb[0].mxu0
      %1153 = vmatprep.mubr.bf16.mxu0 %v721
      %1154 = vmatmul.mubr.bf16.gmra.mrb[0].mxu0 %v720
      %v1155 = vpop.f32.mrb[0].mxu0
      %v1156 = vadd.f32 %v359, %v1155
      %v1157 = vpop.f32.mrb[0].mxu0
      %v1158 = vpop.f32.mrb[0].mxu0
      %v1159 = vadd.f32 %v359, %v1158
      %v1160 = vpop.f32.mrb[0].mxu0
      %1161 = vmatprep.mubr.bf16.mxu0 %v724
      %1162 = vmatmul.mubr.bf16.gmra.mrb[0].mxu0 %v723
      %v1163 = vpop.f32.mrb[0].mxu0
      %v1164 = vadd.f32 %v359, %v1163
      %v1165 = vpop.f32.mrb[0].mxu0
      %v1166 = vpop.f32.mrb[0].mxu0
      %v1167 = vadd.f32 %v359, %v1166
      %v1168 = vpop.f32.mrb[0].mxu0
      %1169 = vmatprep.mubr.bf16.mxu0 %v727
      %1170 = vmatmul.mubr.bf16.gmra.mrb[0].mxu0 %v726
      %v1171 = vpop.f32.mrb[0].mxu0
      %v1172 = vadd.f32 %v359, %v1171
      %v1173 = vpop.f32.mrb[0].mxu0
      %v1174 = vpop.f32.mrb[0].mxu0
      %v1175 = vadd.f32 %v359, %v1174
      %v1176 = vpop.f32.mrb[0].mxu0
      %1177 = vmatprep.mubr.bf16.mxu0 %v730
      %1178 = vmatmul.mubr.bf16.gmra.mrb[0].mxu0 %v729
      %v1179 = vpop.f32.mrb[0].mxu0
      %v1180 = vadd.f32 %v359, %v1179
      %v1181 = vpop.f32.mrb[0].mxu0
      %v1182 = vpop.f32.mrb[0].mxu0
      %v1183 = vadd.f32 %v359, %v1182
      %v1184 = vpop.f32.mrb[0].mxu0
      %1185 = vmatprep.mubr.bf16.mxu0 %v733
      %1186 = vmatmul.mubr.bf16.gmra.mrb[0].mxu0 %v732
      %v1187 = vpop.f32.mrb[0].mxu0
      %v1188 = vadd.f32 %v359, %v1187
      %v1189 = vpop.f32.mrb[0].mxu0
      %v1190 = vpop.f32.mrb[0].mxu0
      %v1191 = vadd.f32 %v359, %v1190
      %v1192 = vpop.f32.mrb[0].mxu0
      %1193 = vmatprep.mubr.bf16.mxu0 %v736
      %1194 = vmatmul.mubr.bf16.gmra.mrb[0].mxu0 %v735
      %v1195 = vpop.f32.mrb[0].mxu0
      %v1196 = vadd.f32 %v359, %v1195
      %v1197 = vpop.f32.mrb[0].mxu0
      %v1198 = vpop.f32.mrb[0].mxu0
      %v1199 = vadd.f32 %v359, %v1198
      %v1200 = vpop.f32.mrb[0].mxu0
      %1201 = vmatprep.mubr.bf16.mxu0 %v739
      %1202 = vmatmul.mubr.bf16.gmra.mrb[0].mxu0 %v738
      %v1203 = vpop.f32.mrb[0].mxu0
      %v1204 = vadd.f32 %v359, %v1203
      %v1205 = vpop.f32.mrb[0].mxu0
      %v1206 = vpop.f32.mrb[0].mxu0
      %v1207 = vadd.f32 %v359, %v1206
      %v1208 = vpop.f32.mrb[0].mxu0
      %1209 = vmatprep.mubr.bf16.mxu0 %v742
      %1210 = vmatmul.mubr.bf16.gmra.mrb[0].mxu0 %v741
      %v1211 = vpop.f32.mrb[0].mxu0
      %v1212 = vadd.f32 %v359, %v1211
      %v1213 = vpop.f32.mrb[0].mxu0
      %v1214 = vpop.f32.mrb[0].mxu0
      %v1215 = vadd.f32 %v359, %v1214
      %v1216 = vpop.f32.mrb[0].mxu0
      %1217 = vmatprep.mubr.bf16.mxu0 %v745
      %1218 = vmatmul.mubr.bf16.gmra.mrb[0].mxu0 %v744
      %v1219 = vpop.f32.mrb[0].mxu0
      %v1220 = vadd.f32 %v359, %v1219
      %v1221 = vpop.f32.mrb[0].mxu0
      %v1222 = vpop.f32.mrb[0].mxu0
      %v1223 = vadd.f32 %v359, %v1222
      %v1224 = vpop.f32.mrb[0].mxu0
      %1225 = vmatprep.mubr.bf16.mxu0 %v748
      %1226 = vmatmul.mubr.bf16.gmra.mrb[0].mxu0 %v747
      %v1227 = vpop.f32.mrb[0].mxu0
      %v1228 = vadd.f32 %v359, %v1227
      %v1229 = vpop.f32.mrb[0].mxu0
      %v1230 = vpop.f32.mrb[0].mxu0
      %v1231 = vadd.f32 %v359, %v1230
      %v1232 = vpop.f32.mrb[0].mxu0
      %1233 = vmatprep.mubr.bf16.mxu0 %v751
      %1234 = vmatmul.mubr.bf16.gmra.mrb[0].mxu0 %v750
      %v1235 = vpop.f32.mrb[0].mxu0
      %v1236 = vadd.f32 %v359, %v1235
      %v1237 = vpop.f32.mrb[0].mxu0
      %v1238 = vpop.f32.mrb[0].mxu0
      %v1239 = vadd.f32 %v359, %v1238
      %v1240 = vpop.f32.mrb[0].mxu0
      %1241 = vmatprep.mubr.bf16.mxu0 %v754
      %1242 = vmatmul.mubr.bf16.gmra.mrb[0].mxu0 %v753
      %v1243 = vpop.f32.mrb[0].mxu0
      %v1244 = vadd.f32 %v359, %v1243
      %v1245 = vpop.f32.mrb[0].mxu0
      %v1246 = vpop.f32.mrb[0].mxu0
      %v1247 = vadd.f32 %v359, %v1246
      %v1248 = vpop.f32.mrb[0].mxu0
      %1249 = vmatprep.mubr.bf16.mxu0 %v757
      %1250 = vmatmul.mubr.bf16.gmra.mrb[0].mxu0 %v756
      %v1251 = vpop.f32.mrb[0].mxu0
      %v1252 = vadd.f32 %v359, %v1251
      %v1253 = vpop.f32.mrb[0].mxu0
      %v1254 = vpop.f32.mrb[0].mxu0
      %v1255 = vadd.f32 %v359, %v1254
      %v1256 = vpop.f32.mrb[0].mxu0
      %1257 = vmatprep.mubr.bf16.mxu0 %v760
      %1258 = vmatmul.mubr.bf16.gmra.mrb[0].mxu0 %v759
      %v1259 = vpop.f32.mrb[0].mxu0
      %v1260 = vadd.f32 %v359, %v1259
      %v1261 = vpop.f32.mrb[0].mxu0
      %v1262 = vpop.f32.mrb[0].mxu0
      %v1263 = vadd.f32 %v359, %v1262
      %v1264 = vpop.f32.mrb[0].mxu0
      %1265 = vmatprep.mubr.bf16.mxu0 %v763
      %1266 = vmatmul.mubr.bf16.gmra.mrb[0].mxu0 %v762
      %v1267 = vpop.f32.mrb[0].mxu0
      %v1268 = vadd.f32 %v359, %v1267
      %v1269 = vpop.f32.mrb[0].mxu0
      %v1270 = vpop.f32.mrb[0].mxu0
      %v1271 = vadd.f32 %v359, %v1270
      %v1272 = vpop.f32.mrb[0].mxu0
      %1273 = vmatprep.mubr.bf16.mxu0 %v766
      %1274 = vmatmul.mubr.bf16.gmra.mrb[0].mxu0 %v765
      %v1275 = vpop.f32.mrb[0].mxu0
      %v1276 = vadd.f32 %v359, %v1275
      %v1277 = vpop.f32.mrb[0].mxu0
      %v1278 = vpop.f32.mrb[0].mxu0
      %v1279 = vadd.f32 %v359, %v1278
      %v1280 = vpop.f32.mrb[0].mxu0
      %1281 = vmatprep.mubr.bf16.mxu0 %v769
      %1282 = vmatmul.mubr.bf16.gmra.mrb[0].mxu0 %v768
      %v1283 = vpop.f32.mrb[0].mxu0
      %v1284 = vadd.f32 %v359, %v1283
      %v1285 = vpop.f32.mrb[0].mxu0
      %v1286 = vpop.f32.mrb[0].mxu0
      %v1287 = vadd.f32 %v359, %v1286
      %v1288 = vpop.f32.mrb[0].mxu0
      %1289 = vmatprep.mubr.bf16.mxu0 %v772
      %1290 = vmatmul.mubr.bf16.gmra.mrb[0].mxu0 %v771
      %v1291 = vpop.f32.mrb[0].mxu0
      %v1292 = vadd.f32 %v359, %v1291
      %v1293 = vpop.f32.mrb[0].mxu0
      %v1294 = vpop.f32.mrb[0].mxu0
      %v1295 = vadd.f32 %v359, %v1294
      %v1296 = vpop.f32.mrb[0].mxu0
      %1297 = vmatprep.mubr.bf16.mxu0 %v775
      %1298 = vmatmul.mubr.bf16.gmra.mrb[0].mxu0 %v774
      %v1299 = vpop.f32.mrb[0].mxu0
      %v1300 = vadd.f32 %v359, %v1299
      %v1301 = vpop.f32.mrb[0].mxu0
      %v1302 = vpop.f32.mrb[0].mxu0
      %v1303 = vadd.f32 %v359, %v1302
      %v1304 = vpop.f32.mrb[0].mxu0
      %1305 = vdwg.mxu0
      %1306 = vmatprep.subr.bf16.mxu0 0
      %1307 = vmatpush1.bf16.msra.mxu0 %v985
      %1308 = vmatprep.subr.bf16.mxu0 0
      %1309 = vmatpush1.bf16.msra.mxu0 %v986
      %1310 = vmatprep.subr.bf16.mxu0 0
      %1311 = vmatpush1.bf16.msra.mxu0 %v987
      %1312 = vmatprep.subr.bf16.mxu0 0
      %1313 = vmatpush1.bf16.msra.mxu0 %v988
      %1314 = vmatprep.subr.bf16.mxu0 0
      %1315 = vmatpush1.bf16.msra.mxu0 %v989
      %1316 = vmatprep.subr.bf16.mxu0 0
      %1317 = vmatpush1.bf16.msra.mxu0 %v990
      %1318 = vmatprep.subr.bf16.mxu0 0
      %1319 = vmatpush1.bf16.msra.mxu0 %v991
      %1320 = vmatprep.subr.bf16.mxu0 0
      %1321 = vmatpush1.bf16.msra.mxu0 %v992
      %1322 = vmatprep.subr.bf16.mxu0 0
      %1323 = vmatpush1.bf16.msra.mxu0 0
      %1324 = vmatprep.subr.bf16.mxu0 0
      %1325 = vmatpush1.bf16.msra.mxu0 0
      %1326 = vmatprep.subr.bf16.mxu0 0
      %1327 = vmatpush1.bf16.msra.mxu0 0
      %1328 = vmatprep.subr.bf16.mxu0 0
      %1329 = vmatpush1.bf16.msra.mxu0 0
      %1330 = vmatprep.subr.bf16.mxu0 0
      %1331 = vmatpush1.bf16.msra.mxu0 0
      %1332 = vmatprep.subr.bf16.mxu0 0
      %1333 = vmatpush1.bf16.msra.mxu0 0
      %1334 = vmatprep.subr.bf16.mxu0 0
      %1335 = vmatpush1.bf16.msra.mxu0 0
      %1336 = vmatprep.subr.bf16.mxu0 0
      %1337 = vmatpush1.bf16.msra.mxu0 0
      %1338 = vmatprep.mubr.bf16.mxu0 0
      %1339 = vmatmul.mubr.bf16.gmra.mrb[0].mxu0 %v683
      %v1340 = vpop.f32.mrb[0].mxu0
      %v1341 = vadd.f32 %v1052, %v1340
      %v1342 = vpop.f32.mrb[0].mxu0
      %v1343 = vpop.f32.mrb[0].mxu0
      %v1344 = vadd.f32 %v1055, %v1343
      %v1345 = vpop.f32.mrb[0].mxu0
      %1346 = vmatprep.mubr.bf16.mxu0 0
      %1347 = vmatmul.mubr.bf16.gmra.mrb[0].mxu0 %v686
      %v1348 = vpop.f32.mrb[0].mxu0
      %v1349 = vadd.f32 %v1060, %v1348
      %v1350 = vpop.f32.mrb[0].mxu0
      %v1351 = vpop.f32.mrb[0].mxu0
      %v1352 = vadd.f32 %v1063, %v1351
      %v1353 = vpop.f32.mrb[0].mxu0
      %1354 = vmatprep.mubr.bf16.mxu0 0
      %1355 = vmatmul.mubr.bf16.gmra.mrb[0].mxu0 %v689
      %v1356 = vpop.f32.mrb[0].mxu0
      %v1357 = vadd.f32 %v1068, %v1356
      %v1358 = vpop.f32.mrb[0].mxu0
      %v1359 = vpop.f32.mrb[0].mxu0
      %v1360 = vadd.f32 %v1071, %v1359
      %v1361 = vpop.f32.mrb[0].mxu0
      %1362 = vmatprep.mubr.bf16.mxu0 0
      %1363 = vmatmul.mubr.bf16.gmra.mrb[0].mxu0 %v692
      %v1364 = vpop.f32.mrb[0].mxu0
      %v1365 = vadd.f32 %v1076, %v1364
      %v1366 = vpop.f32.mrb[0].mxu0
      %v1367 = vpop.f32.mrb[0].mxu0
      %v1368 = vadd.f32 %v1079, %v1367
      %v1369 = vpop.f32.mrb[0].mxu0
      %1370 = vmatprep.mubr.bf16.mxu0 0
      %1371 = vmatmul.mubr.bf16.gmra.mrb[0].mxu0 %v695
      %v1372 = vpop.f32.mrb[0].mxu0
      %v1373 = vadd.f32 %v1084, %v1372
      %v1374 = vpop.f32.mrb[0].mxu0
      %v1375 = vpop.f32.mrb[0].mxu0
      %v1376 = vadd.f32 %v1087, %v1375
      %v1377 = vpop.f32.mrb[0].mxu0
      %1378 = vmatprep.mubr.bf16.mxu0 0
      %1379 = vmatmul.mubr.bf16.gmra.mrb[0].mxu0 %v698
      %v1380 = vpop.f32.mrb[0].mxu0
      %v1381 = vadd.f32 %v1092, %v1380
      %v1382 = vpop.f32.mrb[0].mxu0
      %v1383 = vpop.f32.mrb[0].mxu0
      %v1384 = vadd.f32 %v1095, %v1383
      %v1385 = vpop.f32.mrb[0].mxu0
      %1386 = vmatprep.mubr.bf16.mxu0 0
      %1387 = vmatmul.mubr.bf16.gmra.mrb[0].mxu0 %v701
      %v1388 = vpop.f32.mrb[0].mxu0
      %v1389 = vadd.f32 %v1100, %v1388
      %v1390 = vpop.f32.mrb[0].mxu0
      %v1391 = vpop.f32.mrb[0].mxu0
      %v1392 = vadd.f32 %v1103, %v1391
      %v1393 = vpop.f32.mrb[0].mxu0
      %1394 = vmatprep.mubr.bf16.mxu0 0
      %1395 = vmatmul.mubr.bf16.gmra.mrb[0].mxu0 %v704
      %v1396 = vpop.f32.mrb[0].mxu0
      %v1397 = vadd.f32 %v1108, %v1396
      %v1398 = vpop.f32.mrb[0].mxu0
      %v1399 = vpop.f32.mrb[0].mxu0
      %v1400 = vadd.f32 %v1111, %v1399
      %v1401 = vpop.f32.mrb[0].mxu0
      %1402 = vmatprep.mubr.bf16.mxu0 0
      %1403 = vmatmul.mubr.bf16.gmra.mrb[0].mxu0 %v707
      %v1404 = vpop.f32.mrb[0].mxu0
      %v1405 = vadd.f32 %v1116, %v1404
      %v1406 = vpop.f32.mrb[0].mxu0
      %v1407 = vpop.f32.mrb[0].mxu0
      %v1408 = vadd.f32 %v1119, %v1407
      %v1409 = vpop.f32.mrb[0].mxu0
      %1410 = vmatprep.mubr.bf16.mxu0 0
      %1411 = vmatmul.mubr.bf16.gmra.mrb[0].mxu0 %v710
      %v1412 = vpop.f32.mrb[0].mxu0
      %v1413 = vadd.f32 %v1124, %v1412
      %v1414 = vpop.f32.mrb[0].mxu0
      %v1415 = vpop.f32.mrb[0].mxu0
      %v1416 = vadd.f32 %v1127, %v1415
      %v1417 = vpop.f32.mrb[0].mxu0
      %1418 = vmatprep.mubr.bf16.mxu0 0
      %1419 = vmatmul.mubr.bf16.gmra.mrb[0].mxu0 %v713
      %v1420 = vpop.f32.mrb[0].mxu0
      %v1421 = vadd.f32 %v1132, %v1420
      %v1422 = vpop.f32.mrb[0].mxu0
      %v1423 = vpop.f32.mrb[0].mxu0
      %v1424 = vadd.f32 %v1135, %v1423
      %v1425 = vpop.f32.mrb[0].mxu0
      %1426 = vmatprep.mubr.bf16.mxu0 0
      %1427 = vmatmul.mubr.bf16.gmra.mrb[0].mxu0 %v716
      %v1428 = vpop.f32.mrb[0].mxu0
      %v1429 = vadd.f32 %v1140, %v1428
      %v1430 = vpop.f32.mrb[0].mxu0
      %v1431 = vpop.f32.mrb[0].mxu0
      %v1432 = vadd.f32 %v1143, %v1431
      %v1433 = vpop.f32.mrb[0].mxu0
      %1434 = vmatprep.mubr.bf16.mxu0 0
      %1435 = vmatmul.mubr.bf16.gmra.mrb[0].mxu0 %v719
      %v1436 = vpop.f32.mrb[0].mxu0
      %v1437 = vadd.f32 %v1148, %v1436
      %v1438 = vpop.f32.mrb[0].mxu0
      %v1439 = vpop.f32.mrb[0].mxu0
      %v1440 = vadd.f32 %v1151, %v1439
      %v1441 = vpop.f32.mrb[0].mxu0
      %1442 = vmatprep.mubr.bf16.mxu0 0
      %1443 = vmatmul.mubr.bf16.gmra.mrb[0].mxu0 %v722
      %v1444 = vpop.f32.mrb[0].mxu0
      %v1445 = vadd.f32 %v1156, %v1444
      %v1446 = vpop.f32.mrb[0].mxu0
      %v1447 = vpop.f32.mrb[0].mxu0
      %v1448 = vadd.f32 %v1159, %v1447
      %v1449 = vpop.f32.mrb[0].mxu0
      %1450 = vmatprep.mubr.bf16.mxu0 0
      %1451 = vmatmul.mubr.bf16.gmra.mrb[0].mxu0 %v725
      %v1452 = vpop.f32.mrb[0].mxu0
      %v1453 = vadd.f32 %v1164, %v1452
      %v1454 = vpop.f32.mrb[0].mxu0
      %v1455 = vpop.f32.mrb[0].mxu0
      %v1456 = vadd.f32 %v1167, %v1455
      %v1457 = vpop.f32.mrb[0].mxu0
      %1458 = vmatprep.mubr.bf16.mxu0 0
      %1459 = vmatmul.mubr.bf16.gmra.mrb[0].mxu0 %v728
      %v1460 = vpop.f32.mrb[0].mxu0
      %v1461 = vadd.f32 %v1172, %v1460
      %v1462 = vpop.f32.mrb[0].mxu0
      %v1463 = vpop.f32.mrb[0].mxu0
      %v1464 = vadd.f32 %v1175, %v1463
      %v1465 = vpop.f32.mrb[0].mxu0
      %1466 = vmatprep.mubr.bf16.mxu0 0
      %1467 = vmatmul.mubr.bf16.gmra.mrb[0].mxu0 %v731
      %v1468 = vpop.f32.mrb[0].mxu0
      %v1469 = vadd.f32 %v1180, %v1468
      %v1470 = vpop.f32.mrb[0].mxu0
      %v1471 = vpop.f32.mrb[0].mxu0
      %v1472 = vadd.f32 %v1183, %v1471
      %v1473 = vpop.f32.mrb[0].mxu0
      %1474 = vmatprep.mubr.bf16.mxu0 0
      %1475 = vmatmul.mubr.bf16.gmra.mrb[0].mxu0 %v734
      %v1476 = vpop.f32.mrb[0].mxu0
      %v1477 = vadd.f32 %v1188, %v1476
      %v1478 = vpop.f32.mrb[0].mxu0
      %v1479 = vpop.f32.mrb[0].mxu0
      %v1480 = vadd.f32 %v1191, %v1479
      %v1481 = vpop.f32.mrb[0].mxu0
      %1482 = vmatprep.mubr.bf16.mxu0 0
      %1483 = vmatmul.mubr.bf16.gmra.mrb[0].mxu0 %v737
      %v1484 = vpop.f32.mrb[0].mxu0
      %v1485 = vadd.f32 %v1196, %v1484
      %v1486 = vpop.f32.mrb[0].mxu0
      %v1487 = vpop.f32.mrb[0].mxu0
      %v1488 = vadd.f32 %v1199, %v1487
      %v1489 = vpop.f32.mrb[0].mxu0
      %1490 = vmatprep.mubr.bf16.mxu0 0
      %1491 = vmatmul.mubr.bf16.gmra.mrb[0].mxu0 %v740
      %v1492 = vpop.f32.mrb[0].mxu0
      %v1493 = vadd.f32 %v1204, %v1492
      %v1494 = vpop.f32.mrb[0].mxu0
      %v1495 = vpop.f32.mrb[0].mxu0
      %v1496 = vadd.f32 %v1207, %v1495
      %v1497 = vpop.f32.mrb[0].mxu0
      %1498 = vmatprep.mubr.bf16.mxu0 0
      %1499 = vmatmul.mubr.bf16.gmra.mrb[0].mxu0 %v743
      %v1500 = vpop.f32.mrb[0].mxu0
      %v1501 = vadd.f32 %v1212, %v1500
      %v1502 = vpop.f32.mrb[0].mxu0
      %v1503 = vpop.f32.mrb[0].mxu0
      %v1504 = vadd.f32 %v1215, %v1503
      %v1505 = vpop.f32.mrb[0].mxu0
      %1506 = vmatprep.mubr.bf16.mxu0 0
      %1507 = vmatmul.mubr.bf16.gmra.mrb[0].mxu0 %v746
      %v1508 = vpop.f32.mrb[0].mxu0
      %v1509 = vadd.f32 %v1220, %v1508
      %v1510 = vpop.f32.mrb[0].mxu0
      %v1511 = vpop.f32.mrb[0].mxu0
      %v1512 = vadd.f32 %v1223, %v1511
      %v1513 = vpop.f32.mrb[0].mxu0
      %1514 = vmatprep.mubr.bf16.mxu0 0
      %1515 = vmatmul.mubr.bf16.gmra.mrb[0].mxu0 %v749
      %v1516 = vpop.f32.mrb[0].mxu0
      %v1517 = vadd.f32 %v1228, %v1516
      %v1518 = vpop.f32.mrb[0].mxu0
      %v1519 = vpop.f32.mrb[0].mxu0
      %v1520 = vadd.f32 %v1231, %v1519
      %v1521 = vpop.f32.mrb[0].mxu0
      %1522 = vmatprep.mubr.bf16.mxu0 0
      %1523 = vmatmul.mubr.bf16.gmra.mrb[0].mxu0 %v752
      %v1524 = vpop.f32.mrb[0].mxu0
      %v1525 = vadd.f32 %v1236, %v1524
      %v1526 = vpop.f32.mrb[0].mxu0
      %v1527 = vpop.f32.mrb[0].mxu0
      %v1528 = vadd.f32 %v1239, %v1527
      %v1529 = vpop.f32.mrb[0].mxu0
      %1530 = vmatprep.mubr.bf16.mxu0 0
      %1531 = vmatmul.mubr.bf16.gmra.mrb[0].mxu0 %v755
      %v1532 = vpop.f32.mrb[0].mxu0
      %v1533 = vadd.f32 %v1244, %v1532
      %v1534 = vpop.f32.mrb[0].mxu0
      %v1535 = vpop.f32.mrb[0].mxu0
      %v1536 = vadd.f32 %v1247, %v1535
      %v1537 = vpop.f32.mrb[0].mxu0
      %1538 = vmatprep.mubr.bf16.mxu0 0
      %1539 = vmatmul.mubr.bf16.gmra.mrb[0].mxu0 %v758
      %v1540 = vpop.f32.mrb[0].mxu0
      %v1541 = vadd.f32 %v1252, %v1540
      %v1542 = vpop.f32.mrb[0].mxu0
      %v1543 = vpop.f32.mrb[0].mxu0
      %v1544 = vadd.f32 %v1255, %v1543
      %v1545 = vpop.f32.mrb[0].mxu0
      %1546 = vmatprep.mubr.bf16.mxu0 0
      %1547 = vmatmul.mubr.bf16.gmra.mrb[0].mxu0 %v761
      %v1548 = vpop.f32.mrb[0].mxu0
      %v1549 = vadd.f32 %v1260, %v1548
      %v1550 = vpop.f32.mrb[0].mxu0
      %v1551 = vpop.f32.mrb[0].mxu0
      %v1552 = vadd.f32 %v1263, %v1551
      %v1553 = vpop.f32.mrb[0].mxu0
      %1554 = vmatprep.mubr.bf16.mxu0 0
      %1555 = vmatmul.mubr.bf16.gmra.mrb[0].mxu0 %v764
      %v1556 = vpop.f32.mrb[0].mxu0
      %v1557 = vadd.f32 %v1268, %v1556
      %v1558 = vpop.f32.mrb[0].mxu0
      %v1559 = vpop.f32.mrb[0].mxu0
      %v1560 = vadd.f32 %v1271, %v1559
      %v1561 = vpop.f32.mrb[0].mxu0
      %1562 = vmatprep.mubr.bf16.mxu0 0
      %1563 = vmatmul.mubr.bf16.gmra.mrb[0].mxu0 %v767
      %v1564 = vpop.f32.mrb[0].mxu0
      %v1565 = vadd.f32 %v1276, %v1564
      %v1566 = vpop.f32.mrb[0].mxu0
      %v1567 = vpop.f32.mrb[0].mxu0
      %v1568 = vadd.f32 %v1279, %v1567
      %v1569 = vpop.f32.mrb[0].mxu0
      %1570 = vmatprep.mubr.bf16.mxu0 0
      %1571 = vmatmul.mubr.bf16.gmra.mrb[0].mxu0 %v770
      %v1572 = vpop.f32.mrb[0].mxu0
      %v1573 = vadd.f32 %v1284, %v1572
      %v1574 = vpop.f32.mrb[0].mxu0
      %v1575 = vpop.f32.mrb[0].mxu0
      %v1576 = vadd.f32 %v1287, %v1575
      %v1577 = vpop.f32.mrb[0].mxu0
      %1578 = vmatprep.mubr.bf16.mxu0 0
      %1579 = vmatmul.mubr.bf16.gmra.mrb[0].mxu0 %v773
      %v1580 = vpop.f32.mrb[0].mxu0
      %v1581 = vadd.f32 %v1292, %v1580
      %v1582 = vpop.f32.mrb[0].mxu0
      %v1583 = vpop.f32.mrb[0].mxu0
      %v1584 = vadd.f32 %v1295, %v1583
      %v1585 = vpop.f32.mrb[0].mxu0
      %1586 = vmatprep.mubr.bf16.mxu0 0
      %1587 = vmatmul.mubr.bf16.gmra.mrb[0].mxu0 %v776
      %v1588 = vpop.f32.mrb[0].mxu0
      %v1589 = vadd.f32 %v1300, %v1588
      %v1590 = vpop.f32.mrb[0].mxu0
      %v1591 = vpop.f32.mrb[0].mxu0
      %v1592 = vadd.f32 %v1303, %v1591
      %v1593 = vpop.f32.mrb[0].mxu0
      %1594 = vdwg.mxu0
      %v1595 = vmax.f32 %v1341, 0.0
      %v1596 = vmax.f32 %v1344, 0.0
      %v1597 = vmax.f32 %v1349, 0.0
      %v1598 = vmax.f32 %v1352, 0.0
      %v1599 = vmax.f32 %v1357, 0.0
      %v1600 = vmax.f32 %v1360, 0.0
      %v1601 = vmax.f32 %v1365, 0.0
      %v1602 = vmax.f32 %v1368, 0.0
      %v1603 = vmax.f32 %v1373, 0.0
      %v1604 = vmax.f32 %v1376, 0.0
      %v1605 = vmax.f32 %v1381, 0.0
      %v1606 = vmax.f32 %v1384, 0.0
      %v1607 = vmax.f32 %v1389, 0.0
      %v1608 = vmax.f32 %v1392, 0.0
      %v1609 = vmax.f32 %v1397, 0.0
      %v1610 = vmax.f32 %v1400, 0.0
      %v1611 = vmax.f32 %v1405, 0.0
      %v1612 = vmax.f32 %v1408, 0.0
      %v1613 = vmax.f32 %v1413, 0.0
      %v1614 = vmax.f32 %v1416, 0.0
      %v1615 = vmax.f32 %v1421, 0.0
      %v1616 = vmax.f32 %v1424, 0.0
      %v1617 = vmax.f32 %v1429, 0.0
      %v1618 = vmax.f32 %v1432, 0.0
      %v1619 = vmax.f32 %v1437, 0.0
      %v1620 = vmax.f32 %v1440, 0.0
      %v1621 = vmax.f32 %v1445, 0.0
      %v1622 = vmax.f32 %v1448, 0.0
      %v1623 = vmax.f32 %v1453, 0.0
      %v1624 = vmax.f32 %v1456, 0.0
      %v1625 = vmax.f32 %v1461, 0.0
      %v1626 = vmax.f32 %v1464, 0.0
      %v1627 = vmax.f32 %v1469, 0.0
      %v1628 = vmax.f32 %v1472, 0.0
      %v1629 = vmax.f32 %v1477, 0.0
      %v1630 = vmax.f32 %v1480, 0.0
      %v1631 = vmax.f32 %v1485, 0.0
      %v1632 = vmax.f32 %v1488, 0.0
      %v1633 = vmax.f32 %v1493, 0.0
      %v1634 = vmax.f32 %v1496, 0.0
      %v1635 = vmax.f32 %v1501, 0.0
      %v1636 = vmax.f32 %v1504, 0.0
      %v1637 = vmax.f32 %v1509, 0.0
      %v1638 = vmax.f32 %v1512, 0.0
      %v1639 = vmax.f32 %v1517, 0.0
      %v1640 = vmax.f32 %v1520, 0.0
      %v1641 = vmax.f32 %v1525, 0.0
      %v1642 = vmax.f32 %v1528, 0.0
      %v1643 = vmax.f32 %v1533, 0.0
      %v1644 = vmax.f32 %v1536, 0.0
      %v1645 = vmax.f32 %v1541, 0.0
      %v1646 = vmax.f32 %v1544, 0.0
      %v1647 = vmax.f32 %v1549, 0.0
      %v1648 = vmax.f32 %v1552, 0.0
      %v1649 = vmax.f32 %v1557, 0.0
      %v1650 = vmax.f32 %v1560, 0.0
      %v1651 = vmax.f32 %v1565, 0.0
      %v1652 = vmax.f32 %v1568, 0.0
      %v1653 = vmax.f32 %v1573, 0.0
      %v1654 = vmax.f32 %v1576, 0.0
      %v1655 = vmax.f32 %v1581, 0.0
      %v1656 = vmax.f32 %v1584, 0.0
      %v1657 = vmax.f32 %v1589, 0.0
      %v1658 = vmax.f32 %v1592, 0.0
      %v1659 = vpack.c.bf16 %v1596, %v1595
      %v1660 = vpack.c.bf16 %v1598, %v1597
      %v1661 = vpack.c.bf16 %v1600, %v1599
      %v1662 = vpack.c.bf16 %v1602, %v1601
      %v1663 = vpack.c.bf16 %v1604, %v1603
      %v1664 = vpack.c.bf16 %v1606, %v1605
      %v1665 = vpack.c.bf16 %v1608, %v1607
      %v1666 = vpack.c.bf16 %v1610, %v1609
      %v1667 = vpack.c.bf16 %v1612, %v1611
      %v1668 = vpack.c.bf16 %v1614, %v1613
      %v1669 = vpack.c.bf16 %v1616, %v1615
      %v1670 = vpack.c.bf16 %v1618, %v1617
      %v1671 = vpack.c.bf16 %v1620, %v1619
      %v1672 = vpack.c.bf16 %v1622, %v1621
      %v1673 = vpack.c.bf16 %v1624, %v1623
      %v1674 = vpack.c.bf16 %v1626, %v1625
      %v1675 = vpack.c.bf16 %v1628, %v1627
      %v1676 = vpack.c.bf16 %v1630, %v1629
      %v1677 = vpack.c.bf16 %v1632, %v1631
      %v1678 = vpack.c.bf16 %v1634, %v1633
      %v1679 = vpack.c.bf16 %v1636, %v1635
      %v1680 = vpack.c.bf16 %v1638, %v1637
      %v1681 = vpack.c.bf16 %v1640, %v1639
      %v1682 = vpack.c.bf16 %v1642, %v1641
      %v1683 = vpack.c.bf16 %v1644, %v1643
      %v1684 = vpack.c.bf16 %v1646, %v1645
      %v1685 = vpack.c.bf16 %v1648, %v1647
      %v1686 = vpack.c.bf16 %v1650, %v1649
      %v1687 = vpack.c.bf16 %v1652, %v1651
      %v1688 = vpack.c.bf16 %v1654, %v1653
      %v1689 = vpack.c.bf16 %v1656, %v1655
      %v1690 = vpack.c.bf16 %v1658, %v1657
      %v1723 = vunpack.c.l.b16 %v1659
      %v1724 = vunpack.c.h.b16 %v1659
      %v1725 = vunpack.c.l.b16 %v1660
      %v1726 = vunpack.c.h.b16 %v1660
      %v1727 = vunpack.c.l.b16 %v1661
      %v1728 = vunpack.c.h.b16 %v1661
      %v1729 = vunpack.c.l.b16 %v1662
      %v1730 = vunpack.c.h.b16 %v1662
      %v1731 = vunpack.c.l.b16 %v1663
      %v1732 = vunpack.c.h.b16 %v1663
      %v1733 = vunpack.c.l.b16 %v1664
      %v1734 = vunpack.c.h.b16 %v1664
      %v1735 = vunpack.c.l.b16 %v1665
      %v1736 = vunpack.c.h.b16 %v1665
      %v1737 = vunpack.c.l.b16 %v1666
      %v1738 = vunpack.c.h.b16 %v1666
      %v1739 = vunpack.c.l.b16 %v1667
      %v1740 = vunpack.c.h.b16 %v1667
      %v1741 = vunpack.c.l.b16 %v1668
      %v1742 = vunpack.c.h.b16 %v1668
      %v1743 = vunpack.c.l.b16 %v1669
      %v1744 = vunpack.c.h.b16 %v1669
      %v1745 = vunpack.c.l.b16 %v1670
      %v1746 = vunpack.c.h.b16 %v1670
      %v1747 = vunpack.c.l.b16 %v1671
      %v1748 = vunpack.c.h.b16 %v1671
      %v1749 = vunpack.c.l.b16 %v1672
      %v1750 = vunpack.c.h.b16 %v1672
      %v1751 = vunpack.c.l.b16 %v1673
      %v1752 = vunpack.c.h.b16 %v1673
      %v1753 = vunpack.c.l.b16 %v1674
      %v1754 = vunpack.c.h.b16 %v1674
      %v1755 = vunpack.c.l.b16 %v1675
      %v1756 = vunpack.c.h.b16 %v1675
      %v1757 = vunpack.c.l.b16 %v1676
      %v1758 = vunpack.c.h.b16 %v1676
      %v1759 = vunpack.c.l.b16 %v1677
      %v1760 = vunpack.c.h.b16 %v1677
      %v1761 = vunpack.c.l.b16 %v1678
      %v1762 = vunpack.c.h.b16 %v1678
      %v1763 = vunpack.c.l.b16 %v1679
      %v1764 = vunpack.c.h.b16 %v1679
      %v1765 = vunpack.c.l.b16 %v1680
      %v1766 = vunpack.c.h.b16 %v1680
      %v1767 = vunpack.c.l.b16 %v1681
      %v1768 = vunpack.c.h.b16 %v1681
      %v1769 = vunpack.c.l.b16 %v1682
      %v1770 = vunpack.c.h.b16 %v1682
      %v1771 = vunpack.c.l.b16 %v1683
      %v1772 = vunpack.c.h.b16 %v1683
      %v1773 = vunpack.c.l.b16 %v1684
      %v1774 = vunpack.c.h.b16 %v1684
      %v1775 = vunpack.c.l.b16 %v1685
      %v1776 = vunpack.c.h.b16 %v1685
      %v1777 = vunpack.c.l.b16 %v1686
      %v1778 = vunpack.c.h.b16 %v1686
      %v1779 = vunpack.c.l.b16 %v1687
      %v1780 = vunpack.c.h.b16 %v1687
      %v1781 = vunpack.c.l.b16 %v1688
      %v1782 = vunpack.c.h.b16 %v1688
      %v1783 = vunpack.c.l.b16 %v1689
      %v1784 = vunpack.c.h.b16 %v1689
      %v1785 = vunpack.c.l.b16 %v1690
      %v1786 = vunpack.c.h.b16 %v1690
      %v1787 = vpack.c.b16 %v1723, %v1723
      %v1788 = vpack.c.b16 %v1724, %v1724
      %v1789 = vpack.c.b16 %v1725, %v1725
      %v1790 = vpack.c.b16 %v1726, %v1726
      %v1791 = vpack.c.b16 %v1727, %v1727
      %v1792 = vpack.c.b16 %v1728, %v1728
      %v1793 = vpack.c.b16 %v1729, %v1729
      %v1794 = vpack.c.b16 %v1730, %v1730
      %v1795 = vpack.c.b16 %v1731, %v1731
      %v1796 = vpack.c.b16 %v1732, %v1732
      %v1797 = vpack.c.b16 %v1733, %v1733
      %v1798 = vpack.c.b16 %v1734, %v1734
      %v1799 = vpack.c.b16 %v1735, %v1735
      %v1800 = vpack.c.b16 %v1736, %v1736
      %v1801 = vpack.c.b16 %v1737, %v1737
      %v1802 = vpack.c.b16 %v1738, %v1738
      %v1803 = vpack.c.b16 %v1739, %v1739
      %v1804 = vpack.c.b16 %v1740, %v1740
      %v1805 = vpack.c.b16 %v1741, %v1741
      %v1806 = vpack.c.b16 %v1742, %v1742
      %v1807 = vpack.c.b16 %v1743, %v1743
      %v1808 = vpack.c.b16 %v1744, %v1744
      %v1809 = vpack.c.b16 %v1745, %v1745
      %v1810 = vpack.c.b16 %v1746, %v1746
      %v1811 = vpack.c.b16 %v1747, %v1747
      %v1812 = vpack.c.b16 %v1748, %v1748
      %v1813 = vpack.c.b16 %v1749, %v1749
      %v1814 = vpack.c.b16 %v1750, %v1750
      %v1815 = vpack.c.b16 %v1751, %v1751
      %v1816 = vpack.c.b16 %v1752, %v1752
      %v1817 = vpack.c.b16 %v1753, %v1753
      %v1818 = vpack.c.b16 %v1754, %v1754
      %v1819 = vpack.c.b16 %v1755, %v1755
      %v1820 = vpack.c.b16 %v1756, %v1756
      %v1821 = vpack.c.b16 %v1757, %v1757
      %v1822 = vpack.c.b16 %v1758, %v1758
      %v1823 = vpack.c.b16 %v1759, %v1759
      %v1824 = vpack.c.b16 %v1760, %v1760
      %v1825 = vpack.c.b16 %v1761, %v1761
      %v1826 = vpack.c.b16 %v1762, %v1762
      %v1827 = vpack.c.b16 %v1763, %v1763
      %v1828 = vpack.c.b16 %v1764, %v1764
      %v1829 = vpack.c.b16 %v1765, %v1765
      %v1830 = vpack.c.b16 %v1766, %v1766
      %v1831 = vpack.c.b16 %v1767, %v1767
      %v1832 = vpack.c.b16 %v1768, %v1768
      %v1833 = vpack.c.b16 %v1769, %v1769
      %v1834 = vpack.c.b16 %v1770, %v1770
      %v1835 = vpack.c.b16 %v1771, %v1771
      %v1836 = vpack.c.b16 %v1772, %v1772
      %v1837 = vpack.c.b16 %v1773, %v1773
      %v1838 = vpack.c.b16 %v1774, %v1774
      %v1839 = vpack.c.b16 %v1775, %v1775
      %v1840 = vpack.c.b16 %v1776, %v1776
      %v1841 = vpack.c.b16 %v1777, %v1777
      %v1842 = vpack.c.b16 %v1778, %v1778
      %v1843 = vpack.c.b16 %v1779, %v1779
      %v1844 = vpack.c.b16 %v1780, %v1780
      %v1845 = vpack.c.b16 %v1781, %v1781
      %v1846 = vpack.c.b16 %v1782, %v1782
      %v1847 = vpack.c.b16 %v1783, %v1783
      %v1848 = vpack.c.b16 %v1784, %v1784
      %v1849 = vpack.c.b16 %v1785, %v1785
      %v1850 = vpack.c.b16 %v1786, %v1786
      %1915 = vst [vmem:[%s175] sm:$0xf] %v1787
      %1916 = vst [vmem:[%s175 + $0x4] sm:$0xf] %v1788
      %1917 = vst [vmem:[%s175 + $0x8] sm:$0xf] %v1789
      %1918 = vst [vmem:[%s175 + $0xc] sm:$0xf] %v1790
      %1919 = vst [vmem:[%s175 + $0x10] sm:$0xf] %v1791
      %1920 = vst [vmem:[%s175 + $0x14] sm:$0xf] %v1792
      %1921 = vst [vmem:[%s175 + $0x18] sm:$0xf] %v1793
      %1922 = vst [vmem:[%s175 + $0x1c] sm:$0xf] %v1794
      %1923 = vst [vmem:[%s175 + $0x20] sm:$0xf] %v1795
      %1924 = vst [vmem:[%s175 + $0x24] sm:$0xf] %v1796
      %1925 = vst [vmem:[%s175 + $0x28] sm:$0xf] %v1797
      %1926 = vst [vmem:[%s175 + $0x2c] sm:$0xf] %v1798
      %1927 = vst [vmem:[%s175 + $0x30] sm:$0xf] %v1799
      %1928 = vst [vmem:[%s175 + $0x34] sm:$0xf] %v1800
      %1929 = vst [vmem:[%s175 + $0x38] sm:$0xf] %v1801
      %1930 = vst [vmem:[%s175 + $0x3c] sm:$0xf] %v1802
      %1931 = vst [vmem:[%s175 + $0x40] sm:$0xf] %v1803
      %1932 = vst [vmem:[%s175 + $0x44] sm:$0xf] %v1804
      %1933 = vst [vmem:[%s175 + $0x48] sm:$0xf] %v1805
      %1934 = vst [vmem:[%s175 + $0x4c] sm:$0xf] %v1806
      %1935 = vst [vmem:[%s175 + $0x50] sm:$0xf] %v1807
      %1936 = vst [vmem:[%s175 + $0x54] sm:$0xf] %v1808
      %1937 = vst [vmem:[%s175 + $0x58] sm:$0xf] %v1809
      %1938 = vst [vmem:[%s175 + $0x5c] sm:$0xf] %v1810
      %1939 = vst [vmem:[%s175 + $0x60] sm:$0xf] %v1811
      %1940 = vst [vmem:[%s175 + $0x64] sm:$0xf] %v1812
      %1941 = vst [vmem:[%s175 + $0x68] sm:$0xf] %v1813
      %1942 = vst [vmem:[%s175 + $0x6c] sm:$0xf] %v1814
      %1943 = vst [vmem:[%s175 + $0x70] sm:$0xf] %v1815
      %1944 = vst [vmem:[%s175 + $0x74] sm:$0xf] %v1816
      %1945 = vst [vmem:[%s175 + $0x78] sm:$0xf] %v1817
      %1946 = vst [vmem:[%s175 + $0x7c] sm:$0xf] %v1818
      %1947 = vst [vmem:[%s175 + $0x80] sm:$0xf] %v1819
      %1948 = vst [vmem:[%s175 + $0x84] sm:$0xf] %v1820
      %1949 = vst [vmem:[%s175 + $0x88] sm:$0xf] %v1821
      %1950 = vst [vmem:[%s175 + $0x8c] sm:$0xf] %v1822
      %1951 = vst [vmem:[%s175 + $0x90] sm:$0xf] %v1823
      %1952 = vst [vmem:[%s175 + $0x94] sm:$0xf] %v1824
      %1953 = vst [vmem:[%s175 + $0x98] sm:$0xf] %v1825
      %1954 = vst [vmem:[%s175 + $0x9c] sm:$0xf] %v1826
      %1955 = vst [vmem:[%s175 + $0xa0] sm:$0xf] %v1827
      %1956 = vst [vmem:[%s175 + $0xa4] sm:$0xf] %v1828
      %1957 = vst [vmem:[%s175 + $0xa8] sm:$0xf] %v1829
      %1958 = vst [vmem:[%s175 + $0xac] sm:$0xf] %v1830
      %1959 = vst [vmem:[%s175 + $0xb0] sm:$0xf] %v1831
      %1960 = vst [vmem:[%s175 + $0xb4] sm:$0xf] %v1832
      %1961 = vst [vmem:[%s175 + $0xb8] sm:$0xf] %v1833
      %1962 = vst [vmem:[%s175 + $0xbc] sm:$0xf] %v1834
      %1963 = vst [vmem:[%s175 + $0xc0] sm:$0xf] %v1835
      %1964 = vst [vmem:[%s175 + $0xc4] sm:$0xf] %v1836
      %1965 = vst [vmem:[%s175 + $0xc8] sm:$0xf] %v1837
      %1966 = vst [vmem:[%s175 + $0xcc] sm:$0xf] %v1838
      %1967 = vst [vmem:[%s175 + $0xd0] sm:$0xf] %v1839
      %1968 = vst [vmem:[%s175 + $0xd4] sm:$0xf] %v1840
      %1969 = vst [vmem:[%s175 + $0xd8] sm:$0xf] %v1841
      %1970 = vst [vmem:[%s175 + $0xdc] sm:$0xf] %v1842
      %1971 = vst [vmem:[%s175 + $0xe0] sm:$0xf] %v1843
      %1972 = vst [vmem:[%s175 + $0xe4] sm:$0xf] %v1844
      %1973 = vst [vmem:[%s175 + $0xe8] sm:$0xf] %v1845
      %1974 = vst [vmem:[%s175 + $0xec] sm:$0xf] %v1846
      %1975 = vst [vmem:[%s175 + $0xf0] sm:$0xf] %v1847
      %1976 = vst [vmem:[%s175 + $0xf4] sm:$0xf] %v1848
      %1977 = vst [vmem:[%s175 + $0xf8] sm:$0xf] %v1849
      %1978 = vst [vmem:[%s175 + $0xfc] sm:$0xf] %v1850
      %s1979 = smul.u32 64, %s14
      %p1980 = scmp.lt.s32.totalorder %s1979, 255
      %s1981 = scalar_select %p1980, %s1979, 255
      %s1982 = smul.addr %s1981, 4
      %s1983 = scalar_lea.vmem %s3, %s1982
      // Predicated region
      $region33: #{siamese_forward.3} parent=31 // pred_check
        %p1984 = pneg %p100
      $region34: #{siamese_forward.3} parent=31 // pred_check_branch
        %1986 = sbr.rel (%p1984) target = $region36
      $region35: #{siamese_forward.3} parent=31 // pred_region
        %s1987 = smul.u32 64, %s14
      $region36: #{siamese_forward.3} parent=31 // pred_fallthru
        _
    $region32: #{siamese_forward.3} parent=5 // pred_fallthru
      _
    %p1988 = scmp.le.s32.totalorder 2, %s9
    // Predicated region
    $region37: #{siamese_forward.3} parent=5 // pred_check
      %p1989 = pneg %p1988
    $region38: #{siamese_forward.3} parent=5 // pred_check_branch
      %1991 = sbr.rel (%p1989) target = $region40
    $region39: #{siamese_forward.3} parent=5 // pred_region
      %s1992 = ssub.s32 %s9, 2
      // Predicated region
      $region41: #{siamese_forward.3} parent=39 // pred_check
        %p1993 = pneg %p106
      $region42: #{siamese_forward.3} parent=39 // pred_check_branch
        %1995 = sbr.rel (%p1993) target = $region44
      $region43: #{siamese_forward.3} parent=39 // pred_region
        %s1996 = smul.u32 64, %s15
        %p1997 = scmp.lt.s32.totalorder %s1996, 255
        %s1998 = scalar_select %p1997, %s1996, 255
        %s1999 = smul.addr %s1998, 4
        %s2000 = scalar_lea.vmem %s3, %s1999
      $region44: #{siamese_forward.3} parent=39 // pred_fallthru
        _
    $region40: #{siamese_forward.3} parent=5 // pred_fallthru
      _
  $region6: #{siamese_forward.3} parent=0 // loop_footer
    %s13 = sadd.s32 1, %s9
  $region7: #{siamese_forward.3} parent=0 // loop_footer_branch
    %8 = sbr.rel target = $region3
  $region8: #{siamese_forward.3} parent=0 // loop_exit
    _

// kernel: siamese_forward.4
$region0: #{siamese_forward.4}
  #allocation0 [shape = 'u32[]', space=smem, size = 0x4, offset = 0x4, fixed_abs, tag = 'smem constant byte address 0x4 - core index']
  #allocation1 [shape = 'u32[144,128]{1,0:T(1,128)}', space=vmem, size = 0x12000, scoped, tag = 'internal scratch']
  %s0 = inlined_call_operand.vmem [shape: bf16[144,3200], index: 0, kind: input, shape index: {}]
  %s1 = inlined_call_operand.vmem [shape: bf16[3200,256], index: 1, kind: input, shape index: {}]
  %s2 = inlined_call_operand.vmem [shape: f32[1,256], index: 2, kind: input, shape index: {}]
  %s3 = inlined_call_operand.vmem [shape: bf16[144,256], index: 3, kind: output, shape index: {}]
  %s4 = sld [smem:[#allocation0]]
  $region22: #{siamese_forward.4} parent=0
    _
  %s6 = ssub.s32 1, %s4
  %s7 = scalar_select 0, %s6, %s4
  // Predicated region
  $region2: #{siamese_forward.4} parent=0 // pred_check
    _
  $region3: #{siamese_forward.4} parent=0 // pred_check_branch
    %9 = sbr.rel (0) target = $region5
  $region4: #{siamese_forward.4} parent=0 // pred_region
    _
  $region5: #{siamese_forward.4} parent=0 // pred_fallthru
    _
  // Predicated region
  $region6: #{siamese_forward.4} parent=0 // pred_check
    _
  $region7: #{siamese_forward.4} parent=0 // pred_check_branch
    %11 = sbr.rel (0) target = $region9
  $region8: #{siamese_forward.4} parent=0 // pred_region
    _
  $region9: #{siamese_forward.4} parent=0 // pred_fallthru
    _
  // Predicated region
  $region10: #{siamese_forward.4} parent=0 // pred_check
    _
  $region11: #{siamese_forward.4} parent=0 // pred_check_branch
    %13 = sbr.rel (0) target = $region13
  $region12: #{siamese_forward.4} parent=0 // pred_region
    _
  $region13: #{siamese_forward.4} parent=0 // pred_fallthru
    _
  %v15 = vld [vmem:[%s0] sm:$0xff]
  %v16 = vld [vmem:[%s0 + $0x8] sm:$0xff]
  %v17 = vld [vmem:[%s0 + $0x10] sm:$0xff]
  %v18 = vld [vmem:[%s0 + $0x18] sm:$0xff]
  %v19 = vld [vmem:[%s0 + $0x20] sm:$0xff]
  %v20 = vld [vmem:[%s0 + $0x28] sm:$0xff]
  %v21 = vld [vmem:[%s0 + $0x30] sm:$0xff]
  %v22 = vld [vmem:[%s0 + $0x38] sm:$0xff]
  %v23 = vld [vmem:[%s0 + $0x40] sm:$0xff]
  %v24 = vld [vmem:[%s0 + $0x48] sm:$0xff]
  %v25 = vld [vmem:[%s0 + $0x50] sm:$0xff]
  %v26 = vld [vmem:[%s0 + $0x58] sm:$0xff]
  %v27 = vld [vmem:[%s0 + $0x60] sm:$0xf]
  %v28 = vld [vmem:[%s0 + $0x64] sm:$0xff]
  %v29 = vld [vmem:[%s0 + $0x6c] sm:$0xff]
  %v30 = vld [vmem:[%s0 + $0x74] sm:$0xff]
  %v31 = vld [vmem:[%s0 + $0x7c] sm:$0xff]
  %v32 = vld [vmem:[%s0 + $0x84] sm:$0xff]
  %v33 = vld [vmem:[%s0 + $0x8c] sm:$0xff]
  %v34 = vld [vmem:[%s0 + $0x94] sm:$0xff]
  %v35 = vld [vmem:[%s0 + $0x9c] sm:$0xff]
  %v36 = vld [vmem:[%s0 + $0xa4] sm:$0xff]
  %v37 = vld [vmem:[%s0 + $0xac] sm:$0xff]
  %v38 = vld [vmem:[%s0 + $0xb4] sm:$0xff]
  %v39 = vld [vmem:[%s0 + $0xbc] sm:$0xff]
  %v40 = vld [vmem:[%s0 + $0xc4] sm:$0xf]
  %v41 = vld [vmem:[%s0 + $0xc8] sm:$0xff]
  %v42 = vld [vmem:[%s0 + $0xd0] sm:$0xff]
  %v43 = vld [vmem:[%s0 + $0xd8] sm:$0xff]
  %v44 = vld [vmem:[%s0 + $0xe0] sm:$0xff]
  %v45 = vld [vmem:[%s0 + $0xe8] sm:$0xff]
  %v46 = vld [vmem:[%s0 + $0xf0] sm:$0xff]
  %v47 = vld [vmem:[%s0 + $0xf8] sm:$0xff]
  %v48 = vld [vmem:[%s0 + $0x100] sm:$0xff]
  %v49 = vld [vmem:[%s0 + $0x108] sm:$0xff]
  %v50 = vld [vmem:[%s0 + $0x110] sm:$0xff]
  %v51 = vld [vmem:[%s0 + $0x118] sm:$0xff]
  %v52 = vld [vmem:[%s0 + $0x120] sm:$0xff]
  %v53 = vld [vmem:[%s0 + $0x128] sm:$0xf]
  %v54 = vld [vmem:[%s0 + $0x12c] sm:$0xff]
  %v55 = vld [vmem:[%s0 + $0x134] sm:$0xff]
  %v56 = vld [vmem:[%s0 + $0x13c] sm:$0xff]
  %v57 = vld [vmem:[%s0 + $0x144] sm:$0xff]
  %v58 = vld [vmem:[%s0 + $0x14c] sm:$0xff]
  %v59 = vld [vmem:[%s0 + $0x154] sm:$0xff]
  %v60 = vld [vmem:[%s0 + $0x15c] sm:$0xff]
  %v61 = vld [vmem:[%s0 + $0x164] sm:$0xff]
  %v62 = vld [vmem:[%s0 + $0x16c] sm:$0xff]
  %v63 = vld [vmem:[%s0 + $0x174] sm:$0xff]
  %v64 = vld [vmem:[%s0 + $0x17c] sm:$0xff]
  %v65 = vld [vmem:[%s0 + $0x184] sm:$0xff]
  %v66 = vld [vmem:[%s0 + $0x18c] sm:$0xf]
  %v67 = vld [vmem:[%s0 + $0x190] sm:$0xff]
  %v68 = vld [vmem:[%s0 + $0x198] sm:$0xff]
  %v69 = vld [vmem:[%s0 + $0x1a0] sm:$0xff]
  %v70 = vld [vmem:[%s0 + $0x1a8] sm:$0xff]
  %v71 = vld [vmem:[%s0 + $0x1b0] sm:$0xff]
  %v72 = vld [vmem:[%s0 + $0x1b8] sm:$0xff]
  %v73 = vld [vmem:[%s0 + $0x1c0] sm:$0xff]
  %v74 = vld [vmem:[%s0 + $0x1c8] sm:$0xff]
  %v75 = vld [vmem:[%s0 + $0x1d0] sm:$0xff]
  %v76 = vld [vmem:[%s0 + $0x1d8] sm:$0xff]
  %v77 = vld [vmem:[%s0 + $0x1e0] sm:$0xff]
  %v78 = vld [vmem:[%s0 + $0x1e8] sm:$0xff]
  %v79 = vld [vmem:[%s0 + $0x1f0] sm:$0xf]
  %v80 = vld [vmem:[%s0 + $0x1f4] sm:$0xff]
  %v81 = vld [vmem:[%s0 + $0x1fc] sm:$0xff]
  %v82 = vld [vmem:[%s0 + $0x204] sm:$0xff]
  %v83 = vld [vmem:[%s0 + $0x20c] sm:$0xff]
  %v84 = vld [vmem:[%s0 + $0x214] sm:$0xff]
  %v85 = vld [vmem:[%s0 + $0x21c] sm:$0xff]
  %v86 = vld [vmem:[%s0 + $0x224] sm:$0xff]
  %v87 = vld [vmem:[%s0 + $0x22c] sm:$0xff]
  %v88 = vld [vmem:[%s0 + $0x234] sm:$0xff]
  %v89 = vld [vmem:[%s0 + $0x23c] sm:$0xff]
  %v90 = vld [vmem:[%s0 + $0x244] sm:$0xff]
  %v91 = vld [vmem:[%s0 + $0x24c] sm:$0xff]
  %v92 = vld [vmem:[%s0 + $0x254] sm:$0xf]
  %v93 = vld [vmem:[%s0 + $0x258] sm:$0xff]
  %v94 = vld [vmem:[%s0 + $0x260] sm:$0xff]
  %v95 = vld [vmem:[%s0 + $0x268] sm:$0xff]
  %v96 = vld [vmem:[%s0 + $0x270] sm:$0xff]
  %v97 = vld [vmem:[%s0 + $0x278] sm:$0xff]
  %v98 = vld [vmem:[%s0 + $0x280] sm:$0xff]
  %v99 = vld [vmem:[%s0 + $0x288] sm:$0xff]
  %v100 = vld [vmem:[%s0 + $0x290] sm:$0xff]
  %v101 = vld [vmem:[%s0 + $0x298] sm:$0xff]
  %v102 = vld [vmem:[%s0 + $0x2a0] sm:$0xff]
  %v103 = vld [vmem:[%s0 + $0x2a8] sm:$0xff]
  %v104 = vld [vmem:[%s0 + $0x2b0] sm:$0xff]
  %v105 = vld [vmem:[%s0 + $0x2b8] sm:$0xf]
  %v106 = vld [vmem:[%s0 + $0x2bc] sm:$0xff]
  %v107 = vld [vmem:[%s0 + $0x2c4] sm:$0xff]
  %v108 = vld [vmem:[%s0 + $0x2cc] sm:$0xff]
  %v109 = vld [vmem:[%s0 + $0x2d4] sm:$0xff]
  %v110 = vld [vmem:[%s0 + $0x2dc] sm:$0xff]
  %v111 = vld [vmem:[%s0 + $0x2e4] sm:$0xff]
  %v112 = vld [vmem:[%s0 + $0x2ec] sm:$0xff]
  %v113 = vld [vmem:[%s0 + $0x2f4] sm:$0xff]
  %v114 = vld [vmem:[%s0 + $0x2fc] sm:$0xff]
  %v115 = vld [vmem:[%s0 + $0x304] sm:$0xff]
  %v116 = vld [vmem:[%s0 + $0x30c] sm:$0xff]
  %v117 = vld [vmem:[%s0 + $0x314] sm:$0xff]
  %v118 = vld [vmem:[%s0 + $0x31c] sm:$0xf]
  %v119 = vld [vmem:[%s0 + $0x320] sm:$0xff]
  %v120 = vld [vmem:[%s0 + $0x328] sm:$0xff]
  %v121 = vld [vmem:[%s0 + $0x330] sm:$0xff]
  %v122 = vld [vmem:[%s0 + $0x338] sm:$0xff]
  %v123 = vld [vmem:[%s0 + $0x340] sm:$0xff]
  %v124 = vld [vmem:[%s0 + $0x348] sm:$0xff]
  %v125 = vld [vmem:[%s0 + $0x350] sm:$0xff]
  %v126 = vld [vmem:[%s0 + $0x358] sm:$0xff]
  %v127 = vld [vmem:[%s0 + $0x360] sm:$0xff]
  %v128 = vld [vmem:[%s0 + $0x368] sm:$0xff]
  %v129 = vld [vmem:[%s0 + $0x370] sm:$0xff]
  %v130 = vld [vmem:[%s0 + $0x378] sm:$0xff]
  %v131 = vld [vmem:[%s0 + $0x380] sm:$0xf]
  %v132 = vld [vmem:[%s0 + $0x384] sm:$0xff]
  %v133 = vld [vmem:[%s0 + $0x38c] sm:$0xff]
  %v134 = vld [vmem:[%s0 + $0x394] sm:$0xff]
  %v135 = vld [vmem:[%s0 + $0x39c] sm:$0xff]
  %v136 = vld [vmem:[%s0 + $0x3a4] sm:$0xff]
  %v137 = vld [vmem:[%s0 + $0x3ac] sm:$0xff]
  %v138 = vld [vmem:[%s0 + $0x3b4] sm:$0xff]
  %v139 = vld [vmem:[%s0 + $0x3bc] sm:$0xff]
  %v140 = vld [vmem:[%s0 + $0x3c4] sm:$0xff]
  %v141 = vld [vmem:[%s0 + $0x3cc] sm:$0xff]
  %v142 = vld [vmem:[%s0 + $0x3d4] sm:$0xff]
  %v143 = vld [vmem:[%s0 + $0x3dc] sm:$0xff]
  %v144 = vld [vmem:[%s0 + $0x3e4] sm:$0xf]
  %v145 = vld [vmem:[%s0 + $0x3e8] sm:$0xff]
  %v146 = vld [vmem:[%s0 + $0x3f0] sm:$0xff]
  %v147 = vld [vmem:[%s0 + $0x3f8] sm:$0xff]
  %v148 = vld [vmem:[%s0 + $0x400] sm:$0xff]
  %v149 = vld [vmem:[%s0 + $0x408] sm:$0xff]
  %v150 = vld [vmem:[%s0 + $0x410] sm:$0xff]
  %v151 = vld [vmem:[%s0 + $0x418] sm:$0xff]
  %v152 = vld [vmem:[%s0 + $0x420] sm:$0xff]
  %v153 = vld [vmem:[%s0 + $0x428] sm:$0xff]
  %v154 = vld [vmem:[%s0 + $0x430] sm:$0xff]
  %v155 = vld [vmem:[%s0 + $0x438] sm:$0xff]
  %v156 = vld [vmem:[%s0 + $0x440] sm:$0xff]
  %v157 = vld [vmem:[%s0 + $0x448] sm:$0xf]
  %v158 = vld [vmem:[%s0 + $0x44c] sm:$0xff]
  %v159 = vld [vmem:[%s0 + $0x454] sm:$0xff]
  %v160 = vld [vmem:[%s0 + $0x45c] sm:$0xff]
  %v161 = vld [vmem:[%s0 + $0x464] sm:$0xff]
  %v162 = vld [vmem:[%s0 + $0x46c] sm:$0xff]
  %v163 = vld [vmem:[%s0 + $0x474] sm:$0xff]
  %v164 = vld [vmem:[%s0 + $0x47c] sm:$0xff]
  %v165 = vld [vmem:[%s0 + $0x484] sm:$0xff]
  %v166 = vld [vmem:[%s0 + $0x48c] sm:$0xff]
  %v167 = vld [vmem:[%s0 + $0x494] sm:$0xff]
  %v168 = vld [vmem:[%s0 + $0x49c] sm:$0xff]
  %v169 = vld [vmem:[%s0 + $0x4a4] sm:$0xff]
  %v170 = vld [vmem:[%s0 + $0x4ac] sm:$0xf]
  %v171 = vld [vmem:[%s0 + $0x4b0] sm:$0xff]
  %v172 = vld [vmem:[%s0 + $0x4b8] sm:$0xff]
  %v173 = vld [vmem:[%s0 + $0x4c0] sm:$0xff]
  %v174 = vld [vmem:[%s0 + $0x4c8] sm:$0xff]
  %v175 = vld [vmem:[%s0 + $0x4d0] sm:$0xff]
  %v176 = vld [vmem:[%s0 + $0x4d8] sm:$0xff]
  %v177 = vld [vmem:[%s0 + $0x4e0] sm:$0xff]
  %v178 = vld [vmem:[%s0 + $0x4e8] sm:$0xff]
  %v179 = vld [vmem:[%s0 + $0x4f0] sm:$0xff]
  %v180 = vld [vmem:[%s0 + $0x4f8] sm:$0xff]
  %v181 = vld [vmem:[%s0 + $0x500] sm:$0xff]
  %v182 = vld [vmem:[%s0 + $0x508] sm:$0xff]
  %v183 = vld [vmem:[%s0 + $0x510] sm:$0xf]
  %v184 = vld [vmem:[%s0 + $0x514] sm:$0xff]
  %v185 = vld [vmem:[%s0 + $0x51c] sm:$0xff]
  %v186 = vld [vmem:[%s0 + $0x524] sm:$0xff]
  %v187 = vld [vmem:[%s0 + $0x52c] sm:$0xff]
  %v188 = vld [vmem:[%s0 + $0x534] sm:$0xff]
  %v189 = vld [vmem:[%s0 + $0x53c] sm:$0xff]
  %v190 = vld [vmem:[%s0 + $0x544] sm:$0xff]
  %v191 = vld [vmem:[%s0 + $0x54c] sm:$0xff]
  %v192 = vld [vmem:[%s0 + $0x554] sm:$0xff]
  %v193 = vld [vmem:[%s0 + $0x55c] sm:$0xff]
  %v194 = vld [vmem:[%s0 + $0x564] sm:$0xff]
  %v195 = vld [vmem:[%s0 + $0x56c] sm:$0xff]
  %v196 = vld [vmem:[%s0 + $0x574] sm:$0xf]
  %v197 = vld [vmem:[%s0 + $0x578] sm:$0xff]
  %v198 = vld [vmem:[%s0 + $0x580] sm:$0xff]
  %v199 = vld [vmem:[%s0 + $0x588] sm:$0xff]
  %v200 = vld [vmem:[%s0 + $0x590] sm:$0xff]
  %v201 = vld [vmem:[%s0 + $0x598] sm:$0xff]
  %v202 = vld [vmem:[%s0 + $0x5a0] sm:$0xff]
  %v203 = vld [vmem:[%s0 + $0x5a8] sm:$0xff]
  %v204 = vld [vmem:[%s0 + $0x5b0] sm:$0xff]
  %v205 = vld [vmem:[%s0 + $0x5b8] sm:$0xff]
  %v206 = vld [vmem:[%s0 + $0x5c0] sm:$0xff]
  %v207 = vld [vmem:[%s0 + $0x5c8] sm:$0xff]
  %v208 = vld [vmem:[%s0 + $0x5d0] sm:$0xff]
  %v209 = vld [vmem:[%s0 + $0x5d8] sm:$0xf]
  %v210 = vld [vmem:[%s0 + $0x5dc] sm:$0xff]
  %v211 = vld [vmem:[%s0 + $0x5e4] sm:$0xff]
  %v212 = vld [vmem:[%s0 + $0x5ec] sm:$0xff]
  %v213 = vld [vmem:[%s0 + $0x5f4] sm:$0xff]
  %v214 = vld [vmem:[%s0 + $0x5fc] sm:$0xff]
  %v215 = vld [vmem:[%s0 + $0x604] sm:$0xff]
  %v216 = vld [vmem:[%s0 + $0x60c] sm:$0xff]
  %v217 = vld [vmem:[%s0 + $0x614] sm:$0xff]
  %v218 = vld [vmem:[%s0 + $0x61c] sm:$0xff]
  %v219 = vld [vmem:[%s0 + $0x624] sm:$0xff]
  %v220 = vld [vmem:[%s0 + $0x62c] sm:$0xff]
  %v221 = vld [vmem:[%s0 + $0x634] sm:$0xff]
  %v222 = vld [vmem:[%s0 + $0x63c] sm:$0xf]
  %v223 = vld [vmem:[%s0 + $0x640] sm:$0xff]
  %v224 = vld [vmem:[%s0 + $0x648] sm:$0xff]
  %v225 = vld [vmem:[%s0 + $0x650] sm:$0xff]
  %v226 = vld [vmem:[%s0 + $0x658] sm:$0xff]
  %v227 = vld [vmem:[%s0 + $0x660] sm:$0xff]
  %v228 = vld [vmem:[%s0 + $0x668] sm:$0xff]
  %v229 = vld [vmem:[%s0 + $0x670] sm:$0xff]
  %v230 = vld [vmem:[%s0 + $0x678] sm:$0xff]
  %v231 = vld [vmem:[%s0 + $0x680] sm:$0xff]
  %v232 = vld [vmem:[%s0 + $0x688] sm:$0xff]
  %v233 = vld [vmem:[%s0 + $0x690] sm:$0xff]
  %v234 = vld [vmem:[%s0 + $0x698] sm:$0xff]
  %v235 = vld [vmem:[%s0 + $0x6a0] sm:$0xf]
  %v236 = vld [vmem:[%s0 + $0x6a4] sm:$0xff]
  %v237 = vld [vmem:[%s0 + $0x6ac] sm:$0xff]
  %v238 = vld [vmem:[%s0 + $0x6b4] sm:$0xff]
  %v239 = vld [vmem:[%s0 + $0x6bc] sm:$0xff]
  %v240 = vld [vmem:[%s0 + $0x6c4] sm:$0xff]
  %v241 = vld [vmem:[%s0 + $0x6cc] sm:$0xff]
  %v242 = vld [vmem:[%s0 + $0x6d4] sm:$0xff]
  %v243 = vld [vmem:[%s0 + $0x6dc] sm:$0xff]
  %v244 = vld [vmem:[%s0 + $0x6e4] sm:$0xff]
  %v245 = vld [vmem:[%s0 + $0x6ec] sm:$0xff]
  %v246 = vld [vmem:[%s0 + $0x6f4] sm:$0xff]
  %v247 = vld [vmem:[%s0 + $0x6fc] sm:$0xff]
  %v248 = vld [vmem:[%s0 + $0x704] sm:$0xf]
  %v249 = vld [vmem:[%s1] sm:$0xff]
  %v250 = vld [vmem:[%s1 + $0x8] sm:$0xff]
  %v251 = vld [vmem:[%s1 + $0x10] sm:$0xff]
  %v252 = vld [vmem:[%s1 + $0x18] sm:$0xff]
  %v253 = vld [vmem:[%s1 + $0x20] sm:$0xff]
  %v254 = vld [vmem:[%s1 + $0x28] sm:$0xff]
  %v255 = vld [vmem:[%s1 + $0x30] sm:$0xff]
  %v256 = vld [vmem:[%s1 + $0x38] sm:$0xff]
  %v257 = vld [vmem:[%s1 + $0x40] sm:$0xff]
  %v258 = vld [vmem:[%s1 + $0x48] sm:$0xff]
  %v259 = vld [vmem:[%s1 + $0x50] sm:$0xff]
  %v260 = vld [vmem:[%s1 + $0x58] sm:$0xff]
  %v261 = vld [vmem:[%s1 + $0x60] sm:$0xff]
  %v262 = vld [vmem:[%s1 + $0x68] sm:$0xff]
  %v263 = vld [vmem:[%s1 + $0x70] sm:$0xff]
  %v264 = vld [vmem:[%s1 + $0x78] sm:$0xff]
  %v265 = vld [vmem:[%s1 + $0x80] sm:$0xff]
  %v266 = vld [vmem:[%s1 + $0x88] sm:$0xff]
  %v267 = vld [vmem:[%s1 + $0x90] sm:$0xff]
  %v268 = vld [vmem:[%s1 + $0x98] sm:$0xff]
  %v269 = vld [vmem:[%s1 + $0xa0] sm:$0xff]
  %v270 = vld [vmem:[%s1 + $0xa8] sm:$0xff]
  %v271 = vld [vmem:[%s1 + $0xb0] sm:$0xff]
  %v272 = vld [vmem:[%s1 + $0xb8] sm:$0xff]
  %v273 = vld [vmem:[%s1 + $0xc0] sm:$0xff]
  %v274 = vld [vmem:[%s1 + $0xc8] sm:$0xff]
  %v275 = vld [vmem:[%s1 + $0xd0] sm:$0xff]
  %v276 = vld [vmem:[%s1 + $0xd8] sm:$0xff]
  %v277 = vld [vmem:[%s1 + $0xe0] sm:$0xff]
  %v278 = vld [vmem:[%s1 + $0xe8] sm:$0xff]
  %v279 = vld [vmem:[%s1 + $0xf0] sm:$0xff]
  %v280 = vld [vmem:[%s1 + $0xf8] sm:$0xff]
  %v281 = vld [vmem:[%s1 + $0x100] sm:$0xff]
  %v282 = vld [vmem:[%s1 + $0x108] sm:$0xff]
  %v283 = vld [vmem:[%s1 + $0x110] sm:$0xff]
  %v284 = vld [vmem:[%s1 + $0x118] sm:$0xff]
  %v285 = vld [vmem:[%s1 + $0x120] sm:$0xff]
  %v286 = vld [vmem:[%s1 + $0x128] sm:$0xff]
  %v287 = vld [vmem:[%s1 + $0x130] sm:$0xff]
  %v288 = vld [vmem:[%s1 + $0x138] sm:$0xff]
  %v289 = vld [vmem:[%s1 + $0x140] sm:$0xff]
  %v290 = vld [vmem:[%s1 + $0x148] sm:$0xff]
  %v291 = vld [vmem:[%s1 + $0x150] sm:$0xff]
  %v292 = vld [vmem:[%s1 + $0x158] sm:$0xff]
  %v293 = vld [vmem:[%s1 + $0x160] sm:$0xff]
  %v294 = vld [vmem:[%s1 + $0x168] sm:$0xff]
  %v295 = vld [vmem:[%s1 + $0x170] sm:$0xff]
  %v296 = vld [vmem:[%s1 + $0x178] sm:$0xff]
  %v297 = vld [vmem:[%s1 + $0x180] sm:$0xff]
  %v298 = vld [vmem:[%s1 + $0x188] sm:$0xff]
  %v299 = vld [vmem:[%s1 + $0x190] sm:$0xff]
  %v300 = vld [vmem:[%s1 + $0x198] sm:$0xff]
  %v301 = vld [vmem:[%s1 + $0x1a0] sm:$0xff]
  %v302 = vld [vmem:[%s1 + $0x1a8] sm:$0xff]
  %v303 = vld [vmem:[%s1 + $0x1b0] sm:$0xff]
  %v304 = vld [vmem:[%s1 + $0x1b8] sm:$0xff]
  %v305 = vld [vmem:[%s1 + $0x1c0] sm:$0xff]
  %v306 = vld [vmem:[%s1 + $0x1c8] sm:$0xff]
  %v307 = vld [vmem:[%s1 + $0x1d0] sm:$0xff]
  %v308 = vld [vmem:[%s1 + $0x1d8] sm:$0xff]
  %v309 = vld [vmem:[%s1 + $0x1e0] sm:$0xff]
  %v310 = vld [vmem:[%s1 + $0x1e8] sm:$0xff]
  %v311 = vld [vmem:[%s1 + $0x1f0] sm:$0xff]
  %v312 = vld [vmem:[%s1 + $0x1f8] sm:$0xff]
  %v313 = vld [vmem:[%s1 + $0x200] sm:$0xff]
  %v314 = vld [vmem:[%s1 + $0x208] sm:$0xff]
  %v315 = vld [vmem:[%s1 + $0x210] sm:$0xff]
  %v316 = vld [vmem:[%s1 + $0x218] sm:$0xff]
  %v317 = vld [vmem:[%s1 + $0x220] sm:$0xff]
  %v318 = vld [vmem:[%s1 + $0x228] sm:$0xff]
  %v319 = vld [vmem:[%s1 + $0x230] sm:$0xff]
  %v320 = vld [vmem:[%s1 + $0x238] sm:$0xff]
  %v321 = vld [vmem:[%s1 + $0x240] sm:$0xff]
  %v322 = vld [vmem:[%s1 + $0x248] sm:$0xff]
  %v323 = vld [vmem:[%s1 + $0x250] sm:$0xff]
  %v324 = vld [vmem:[%s1 + $0x258] sm:$0xff]
  %v325 = vld [vmem:[%s1 + $0x260] sm:$0xff]
  %v326 = vld [vmem:[%s1 + $0x268] sm:$0xff]
  %v327 = vld [vmem:[%s1 + $0x270] sm:$0xff]
  %v328 = vld [vmem:[%s1 + $0x278] sm:$0xff]
  %v329 = vld [vmem:[%s1 + $0x280] sm:$0xff]
  %v330 = vld [vmem:[%s1 + $0x288] sm:$0xff]
  %v331 = vld [vmem:[%s1 + $0x290] sm:$0xff]
  %v332 = vld [vmem:[%s1 + $0x298] sm:$0xff]
  %v333 = vld [vmem:[%s1 + $0x2a0] sm:$0xff]
  %v334 = vld [vmem:[%s1 + $0x2a8] sm:$0xff]
  %v335 = vld [vmem:[%s1 + $0x2b0] sm:$0xff]
  %v336 = vld [vmem:[%s1 + $0x2b8] sm:$0xff]
  %v337 = vld [vmem:[%s1 + $0x2c0] sm:$0xff]
  %v338 = vld [vmem:[%s1 + $0x2c8] sm:$0xff]
  %v339 = vld [vmem:[%s1 + $0x2d0] sm:$0xff]
  %v340 = vld [vmem:[%s1 + $0x2d8] sm:$0xff]
  %v341 = vld [vmem:[%s1 + $0x2e0] sm:$0xff]
  %v342 = vld [vmem:[%s1 + $0x2e8] sm:$0xff]
  %v343 = vld [vmem:[%s1 + $0x2f0] sm:$0xff]
  %v344 = vld [vmem:[%s1 + $0x2f8] sm:$0xff]
  %v345 = vld [vmem:[%s1 + $0x300] sm:$0xff]
  %v346 = vld [vmem:[%s1 + $0x308] sm:$0xff]
  %v347 = vld [vmem:[%s1 + $0x310] sm:$0xff]
  %v348 = vld [vmem:[%s1 + $0x318] sm:$0xff]
  %v349 = vld [vmem:[%s1 + $0x320] sm:$0xff]
  %v350 = vld [vmem:[%s1 + $0x328] sm:$0xff]
  %v351 = vld [vmem:[%s1 + $0x330] sm:$0xff]
  %v352 = vld [vmem:[%s1 + $0x338] sm:$0xff]
  %v353 = vld [vmem:[%s1 + $0x340] sm:$0xff]
  %v354 = vld [vmem:[%s1 + $0x348] sm:$0xff]
  %v355 = vld [vmem:[%s1 + $0x350] sm:$0xff]
  %v356 = vld [vmem:[%s1 + $0x358] sm:$0xff]
  %v357 = vld [vmem:[%s1 + $0x360] sm:$0xff]
  %v358 = vld [vmem:[%s1 + $0x368] sm:$0xff]
  %v359 = vld [vmem:[%s1 + $0x370] sm:$0xff]
  %v360 = vld [vmem:[%s1 + $0x378] sm:$0xff]
  %v361 = vld [vmem:[%s1 + $0x380] sm:$0xff]
  %v362 = vld [vmem:[%s1 + $0x388] sm:$0xff]
  %v363 = vld [vmem:[%s1 + $0x390] sm:$0xff]
  %v364 = vld [vmem:[%s1 + $0x398] sm:$0xff]
  %v365 = vld [vmem:[%s1 + $0x3a0] sm:$0xff]
  %v366 = vld [vmem:[%s1 + $0x3a8] sm:$0xff]
  %v367 = vld [vmem:[%s1 + $0x3b0] sm:$0xff]
  %v368 = vld [vmem:[%s1 + $0x3b8] sm:$0xff]
  %v369 = vld [vmem:[%s1 + $0x3c0] sm:$0xff]
  %v370 = vld [vmem:[%s1 + $0x3c8] sm:$0xff]
  %v371 = vld [vmem:[%s1 + $0x3d0] sm:$0xff]
  %v372 = vld [vmem:[%s1 + $0x3d8] sm:$0xff]
  %v373 = vld [vmem:[%s1 + $0x3e0] sm:$0xff]
  %v374 = vld [vmem:[%s1 + $0x3e8] sm:$0xff]
  %v375 = vld [vmem:[%s1 + $0x3f0] sm:$0xff]
  %v376 = vld [vmem:[%s1 + $0x3f8] sm:$0xff]
  %v377 = vld [vmem:[%s1 + $0x400] sm:$0xff]
  %v378 = vld [vmem:[%s1 + $0x408] sm:$0xff]
  %v379 = vld [vmem:[%s1 + $0x410] sm:$0xff]
  %v380 = vld [vmem:[%s1 + $0x418] sm:$0xff]
  %v381 = vld [vmem:[%s1 + $0x420] sm:$0xff]
  %v382 = vld [vmem:[%s1 + $0x428] sm:$0xff]
  %v383 = vld [vmem:[%s1 + $0x430] sm:$0xff]
  %v384 = vld [vmem:[%s1 + $0x438] sm:$0xff]
  %v385 = vld [vmem:[%s1 + $0x440] sm:$0xff]
  %v386 = vld [vmem:[%s1 + $0x448] sm:$0xff]
  %v387 = vld [vmem:[%s1 + $0x450] sm:$0xff]
  %v388 = vld [vmem:[%s1 + $0x458] sm:$0xff]
  %v389 = vld [vmem:[%s1 + $0x460] sm:$0xff]
  %v390 = vld [vmem:[%s1 + $0x468] sm:$0xff]
  %v391 = vld [vmem:[%s1 + $0x470] sm:$0xff]
  %v392 = vld [vmem:[%s1 + $0x478] sm:$0xff]
  %v393 = vld [vmem:[%s1 + $0x480] sm:$0xff]
  %v394 = vld [vmem:[%s1 + $0x488] sm:$0xff]
  %v395 = vld [vmem:[%s1 + $0x490] sm:$0xff]
  %v396 = vld [vmem:[%s1 + $0x498] sm:$0xff]
  %v397 = vld [vmem:[%s1 + $0x4a0] sm:$0xff]
  %v398 = vld [vmem:[%s1 + $0x4a8] sm:$0xff]
  %v399 = vld [vmem:[%s1 + $0x4b0] sm:$0xff]
  %v400 = vld [vmem:[%s1 + $0x4b8] sm:$0xff]
  %v401 = vld [vmem:[%s1 + $0x4c0] sm:$0xff]
  %v402 = vld [vmem:[%s1 + $0x4c8] sm:$0xff]
  %v403 = vld [vmem:[%s1 + $0x4d0] sm:$0xff]
  %v404 = vld [vmem:[%s1 + $0x4d8] sm:$0xff]
  %v405 = vld [vmem:[%s1 + $0x4e0] sm:$0xff]
  %v406 = vld [vmem:[%s1 + $0x4e8] sm:$0xff]
  %v407 = vld [vmem:[%s1 + $0x4f0] sm:$0xff]
  %v408 = vld [vmem:[%s1 + $0x4f8] sm:$0xff]
  %v409 = vld [vmem:[%s1 + $0x500] sm:$0xff]
  %v410 = vld [vmem:[%s1 + $0x508] sm:$0xff]
  %v411 = vld [vmem:[%s1 + $0x510] sm:$0xff]
  %v412 = vld [vmem:[%s1 + $0x518] sm:$0xff]
  %v413 = vld [vmem:[%s1 + $0x520] sm:$0xff]
  %v414 = vld [vmem:[%s1 + $0x528] sm:$0xff]
  %v415 = vld [vmem:[%s1 + $0x530] sm:$0xff]
  %v416 = vld [vmem:[%s1 + $0x538] sm:$0xff]
  %v417 = vld [vmem:[%s1 + $0x540] sm:$0xff]
  %v418 = vld [vmem:[%s1 + $0x548] sm:$0xff]
  %v419 = vld [vmem:[%s1 + $0x550] sm:$0xff]
  %v420 = vld [vmem:[%s1 + $0x558] sm:$0xff]
  %v421 = vld [vmem:[%s1 + $0x560] sm:$0xff]
  %v422 = vld [vmem:[%s1 + $0x568] sm:$0xff]
  %v423 = vld [vmem:[%s1 + $0x570] sm:$0xff]
  %v424 = vld [vmem:[%s1 + $0x578] sm:$0xff]
  %v425 = vld [vmem:[%s1 + $0x580] sm:$0xff]
  %v426 = vld [vmem:[%s1 + $0x588] sm:$0xff]
  %v427 = vld [vmem:[%s1 + $0x590] sm:$0xff]
  %v428 = vld [vmem:[%s1 + $0x598] sm:$0xff]
  %v429 = vld [vmem:[%s1 + $0x5a0] sm:$0xff]
  %v430 = vld [vmem:[%s1 + $0x5a8] sm:$0xff]
  %v431 = vld [vmem:[%s1 + $0x5b0] sm:$0xff]
  %v432 = vld [vmem:[%s1 + $0x5b8] sm:$0xff]
  %v433 = vld [vmem:[%s1 + $0x5c0] sm:$0xff]
  %v434 = vld [vmem:[%s1 + $0x5c8] sm:$0xff]
  %v435 = vld [vmem:[%s1 + $0x5d0] sm:$0xff]
  %v436 = vld [vmem:[%s1 + $0x5d8] sm:$0xff]
  %v437 = vld [vmem:[%s1 + $0x5e0] sm:$0xff]
  %v438 = vld [vmem:[%s1 + $0x5e8] sm:$0xff]
  %v439 = vld [vmem:[%s1 + $0x5f0] sm:$0xff]
  %v440 = vld [vmem:[%s1 + $0x5f8] sm:$0xff]
  %v441 = vld [vmem:[%s1 + $0x600] sm:$0xff]
  %v442 = vld [vmem:[%s1 + $0x608] sm:$0xff]
  %v443 = vld [vmem:[%s1 + $0x610] sm:$0xff]
  %v444 = vld [vmem:[%s1 + $0x618] sm:$0xff]
  %v445 = vld [vmem:[%s1 + $0x620] sm:$0xff]
  %v446 = vld [vmem:[%s1 + $0x628] sm:$0xff]
  %v447 = vld [vmem:[%s1 + $0x630] sm:$0xff]
  %v448 = vld [vmem:[%s1 + $0x638] sm:$0xff]
  %v449 = vld [vmem:[%s1 + $0x640] sm:$0xff]
  %v450 = vld [vmem:[%s1 + $0x648] sm:$0xff]
  %v451 = vld [vmem:[%s1 + $0x650] sm:$0xff]
  %v452 = vld [vmem:[%s1 + $0x658] sm:$0xff]
  %v453 = vld [vmem:[%s1 + $0x660] sm:$0xff]
  %v454 = vld [vmem:[%s1 + $0x668] sm:$0xff]
  %v455 = vld [vmem:[%s1 + $0x670] sm:$0xff]
  %v456 = vld [vmem:[%s1 + $0x678] sm:$0xff]
  %v457 = vld [vmem:[%s1 + $0x680] sm:$0xff]
  %v458 = vld [vmem:[%s1 + $0x688] sm:$0xff]
  %v459 = vld [vmem:[%s1 + $0x690] sm:$0xff]
  %v460 = vld [vmem:[%s1 + $0x698] sm:$0xff]
  %v461 = vld [vmem:[%s1 + $0x6a0] sm:$0xff]
  %v462 = vld [vmem:[%s1 + $0x6a8] sm:$0xff]
  %v463 = vld [vmem:[%s1 + $0x6b0] sm:$0xff]
  %v464 = vld [vmem:[%s1 + $0x6b8] sm:$0xff]
  %v465 = vld [vmem:[%s1 + $0x6c0] sm:$0xff]
  %v466 = vld [vmem:[%s1 + $0x6c8] sm:$0xff]
  %v467 = vld [vmem:[%s1 + $0x6d0] sm:$0xff]
  %v468 = vld [vmem:[%s1 + $0x6d8] sm:$0xff]
  %v469 = vld [vmem:[%s1 + $0x6e0] sm:$0xff]
  %v470 = vld [vmem:[%s1 + $0x6e8] sm:$0xff]
  %v471 = vld [vmem:[%s1 + $0x6f0] sm:$0xff]
  %v472 = vld [vmem:[%s1 + $0x6f8] sm:$0xff]
  %v473 = vld [vmem:[%s1 + $0x700] sm:$0xff]
  %v474 = vld [vmem:[%s1 + $0x708] sm:$0xff]
  %v475 = vld [vmem:[%s1 + $0x710] sm:$0xff]
  %v476 = vld [vmem:[%s1 + $0x718] sm:$0xff]
  %v477 = vld [vmem:[%s1 + $0x720] sm:$0xff]
  %v478 = vld [vmem:[%s1 + $0x728] sm:$0xff]
  %v479 = vld [vmem:[%s1 + $0x730] sm:$0xff]
  %v480 = vld [vmem:[%s1 + $0x738] sm:$0xff]
  %v481 = vld [vmem:[%s1 + $0x740] sm:$0xff]
  %v482 = vld [vmem:[%s1 + $0x748] sm:$0xff]
  %v483 = vld [vmem:[%s1 + $0x750] sm:$0xff]
  %v484 = vld [vmem:[%s1 + $0x758] sm:$0xff]
  %v485 = vld [vmem:[%s1 + $0x760] sm:$0xff]
  %v486 = vld [vmem:[%s1 + $0x768] sm:$0xff]
  %v487 = vld [vmem:[%s1 + $0x770] sm:$0xff]
  %v488 = vld [vmem:[%s1 + $0x778] sm:$0xff]
  %v489 = vld [vmem:[%s1 + $0x780] sm:$0xff]
  %v490 = vld [vmem:[%s1 + $0x788] sm:$0xff]
  %v491 = vld [vmem:[%s1 + $0x790] sm:$0xff]
  %v492 = vld [vmem:[%s1 + $0x798] sm:$0xff]
  %v493 = vld [vmem:[%s1 + $0x7a0] sm:$0xff]
  %v494 = vld [vmem:[%s1 + $0x7a8] sm:$0xff]
  %v495 = vld [vmem:[%s1 + $0x7b0] sm:$0xff]
  %v496 = vld [vmem:[%s1 + $0x7b8] sm:$0xff]
  %v497 = vld [vmem:[%s1 + $0x7c0] sm:$0xff]
  %v498 = vld [vmem:[%s1 + $0x7c8] sm:$0xff]
  %v499 = vld [vmem:[%s1 + $0x7d0] sm:$0xff]
  %v500 = vld [vmem:[%s1 + $0x7d8] sm:$0xff]
  %v501 = vld [vmem:[%s1 + $0x7e0] sm:$0xff]
  %v502 = vld [vmem:[%s1 + $0x7e8] sm:$0xff]
  %v503 = vld [vmem:[%s1 + $0x7f0] sm:$0xff]
  %v504 = vld [vmem:[%s1 + $0x7f8] sm:$0xff]
  %v505 = vld [vmem:[%s1 + $0x800] sm:$0xff]
  %v506 = vld [vmem:[%s1 + $0x808] sm:$0xff]
  %v507 = vld [vmem:[%s1 + $0x810] sm:$0xff]
  %v508 = vld [vmem:[%s1 + $0x818] sm:$0xff]
  %v509 = vld [vmem:[%s1 + $0x820] sm:$0xff]
  %v510 = vld [vmem:[%s1 + $0x828] sm:$0xff]
  %v511 = vld [vmem:[%s1 + $0x830] sm:$0xff]
  %v512 = vld [vmem:[%s1 + $0x838] sm:$0xff]
  %v513 = vld [vmem:[%s1 + $0x840] sm:$0xff]
  %v514 = vld [vmem:[%s1 + $0x848] sm:$0xff]
  %v515 = vld [vmem:[%s1 + $0x850] sm:$0xff]
  %v516 = vld [vmem:[%s1 + $0x858] sm:$0xff]
  %v517 = vld [vmem:[%s1 + $0x860] sm:$0xff]
  %v518 = vld [vmem:[%s1 + $0x868] sm:$0xff]
  %v519 = vld [vmem:[%s1 + $0x870] sm:$0xff]
  %v520 = vld [vmem:[%s1 + $0x878] sm:$0xff]
  %v521 = vld [vmem:[%s1 + $0x880] sm:$0xff]
  %v522 = vld [vmem:[%s1 + $0x888] sm:$0xff]
  %v523 = vld [vmem:[%s1 + $0x890] sm:$0xff]
  %v524 = vld [vmem:[%s1 + $0x898] sm:$0xff]
  %v525 = vld [vmem:[%s1 + $0x8a0] sm:$0xff]
  %v526 = vld [vmem:[%s1 + $0x8a8] sm:$0xff]
  %v527 = vld [vmem:[%s1 + $0x8b0] sm:$0xff]
  %v528 = vld [vmem:[%s1 + $0x8b8] sm:$0xff]
  %v529 = vld [vmem:[%s1 + $0x8c0] sm:$0xff]
  %v530 = vld [vmem:[%s1 + $0x8c8] sm:$0xff]
  %v531 = vld [vmem:[%s1 + $0x8d0] sm:$0xff]
  %v532 = vld [vmem:[%s1 + $0x8d8] sm:$0xff]
  %v533 = vld [vmem:[%s1 + $0x8e0] sm:$0xff]
  %v534 = vld [vmem:[%s1 + $0x8e8] sm:$0xff]
  %v535 = vld [vmem:[%s1 + $0x8f0] sm:$0xff]
  %v536 = vld [vmem:[%s1 + $0x8f8] sm:$0xff]
  %v537 = vld [vmem:[%s1 + $0x900] sm:$0xff]
  %v538 = vld [vmem:[%s1 + $0x908] sm:$0xff]
  %v539 = vld [vmem:[%s1 + $0x910] sm:$0xff]
  %v540 = vld [vmem:[%s1 + $0x918] sm:$0xff]
  %v541 = vld [vmem:[%s1 + $0x920] sm:$0xff]
  %v542 = vld [vmem:[%s1 + $0x928] sm:$0xff]
  %v543 = vld [vmem:[%s1 + $0x930] sm:$0xff]
  %v544 = vld [vmem:[%s1 + $0x938] sm:$0xff]
  %v545 = vld [vmem:[%s1 + $0x940] sm:$0xff]
  %v546 = vld [vmem:[%s1 + $0x948] sm:$0xff]
  %v547 = vld [vmem:[%s1 + $0x950] sm:$0xff]
  %v548 = vld [vmem:[%s1 + $0x958] sm:$0xff]
  %v549 = vld [vmem:[%s1 + $0x960] sm:$0xff]
  %v550 = vld [vmem:[%s1 + $0x968] sm:$0xff]
  %v551 = vld [vmem:[%s1 + $0x970] sm:$0xff]
  %v552 = vld [vmem:[%s1 + $0x978] sm:$0xff]
  %v553 = vld [vmem:[%s1 + $0x980] sm:$0xff]
  %v554 = vld [vmem:[%s1 + $0x988] sm:$0xff]
  %v555 = vld [vmem:[%s1 + $0x990] sm:$0xff]
  %v556 = vld [vmem:[%s1 + $0x998] sm:$0xff]
  %v557 = vld [vmem:[%s1 + $0x9a0] sm:$0xff]
  %v558 = vld [vmem:[%s1 + $0x9a8] sm:$0xff]
  %v559 = vld [vmem:[%s1 + $0x9b0] sm:$0xff]
  %v560 = vld [vmem:[%s1 + $0x9b8] sm:$0xff]
  %v561 = vld [vmem:[%s1 + $0x9c0] sm:$0xff]
  %v562 = vld [vmem:[%s1 + $0x9c8] sm:$0xff]
  %v563 = vld [vmem:[%s1 + $0x9d0] sm:$0xff]
  %v564 = vld [vmem:[%s1 + $0x9d8] sm:$0xff]
  %v565 = vld [vmem:[%s1 + $0x9e0] sm:$0xff]
  %v566 = vld [vmem:[%s1 + $0x9e8] sm:$0xff]
  %v567 = vld [vmem:[%s1 + $0x9f0] sm:$0xff]
  %v568 = vld [vmem:[%s1 + $0x9f8] sm:$0xff]
  %v569 = vld [vmem:[%s1 + $0xa00] sm:$0xff]
  %v570 = vld [vmem:[%s1 + $0xa08] sm:$0xff]
  %v571 = vld [vmem:[%s1 + $0xa10] sm:$0xff]
  %v572 = vld [vmem:[%s1 + $0xa18] sm:$0xff]
  %v573 = vld [vmem:[%s1 + $0xa20] sm:$0xff]
  %v574 = vld [vmem:[%s1 + $0xa28] sm:$0xff]
  %v575 = vld [vmem:[%s1 + $0xa30] sm:$0xff]
  %v576 = vld [vmem:[%s1 + $0xa38] sm:$0xff]
  %v577 = vld [vmem:[%s1 + $0xa40] sm:$0xff]
  %v578 = vld [vmem:[%s1 + $0xa48] sm:$0xff]
  %v579 = vld [vmem:[%s1 + $0xa50] sm:$0xff]
  %v580 = vld [vmem:[%s1 + $0xa58] sm:$0xff]
  %v581 = vld [vmem:[%s1 + $0xa60] sm:$0xff]
  %v582 = vld [vmem:[%s1 + $0xa68] sm:$0xff]
  %v583 = vld [vmem:[%s1 + $0xa70] sm:$0xff]
  %v584 = vld [vmem:[%s1 + $0xa78] sm:$0xff]
  %v585 = vld [vmem:[%s1 + $0xa80] sm:$0xff]
  %v586 = vld [vmem:[%s1 + $0xa88] sm:$0xff]
  %v587 = vld [vmem:[%s1 + $0xa90] sm:$0xff]
  %v588 = vld [vmem:[%s1 + $0xa98] sm:$0xff]
  %v589 = vld [vmem:[%s1 + $0xaa0] sm:$0xff]
  %v590 = vld [vmem:[%s1 + $0xaa8] sm:$0xff]
  %v591 = vld [vmem:[%s1 + $0xab0] sm:$0xff]
  %v592 = vld [vmem:[%s1 + $0xab8] sm:$0xff]
  %v593 = vld [vmem:[%s1 + $0xac0] sm:$0xff]
  %v594 = vld [vmem:[%s1 + $0xac8] sm:$0xff]
  %v595 = vld [vmem:[%s1 + $0xad0] sm:$0xff]
  %v596 = vld [vmem:[%s1 + $0xad8] sm:$0xff]
  %v597 = vld [vmem:[%s1 + $0xae0] sm:$0xff]
  %v598 = vld [vmem:[%s1 + $0xae8] sm:$0xff]
  %v599 = vld [vmem:[%s1 + $0xaf0] sm:$0xff]
  %v600 = vld [vmem:[%s1 + $0xaf8] sm:$0xff]
  %v601 = vld [vmem:[%s1 + $0xb00] sm:$0xff]
  %v602 = vld [vmem:[%s1 + $0xb08] sm:$0xff]
  %v603 = vld [vmem:[%s1 + $0xb10] sm:$0xff]
  %v604 = vld [vmem:[%s1 + $0xb18] sm:$0xff]
  %v605 = vld [vmem:[%s1 + $0xb20] sm:$0xff]
  %v606 = vld [vmem:[%s1 + $0xb28] sm:$0xff]
  %v607 = vld [vmem:[%s1 + $0xb30] sm:$0xff]
  %v608 = vld [vmem:[%s1 + $0xb38] sm:$0xff]
  %v609 = vld [vmem:[%s1 + $0xb40] sm:$0xff]
  %v610 = vld [vmem:[%s1 + $0xb48] sm:$0xff]
  %v611 = vld [vmem:[%s1 + $0xb50] sm:$0xff]
  %v612 = vld [vmem:[%s1 + $0xb58] sm:$0xff]
  %v613 = vld [vmem:[%s1 + $0xb60] sm:$0xff]
  %v614 = vld [vmem:[%s1 + $0xb68] sm:$0xff]
  %v615 = vld [vmem:[%s1 + $0xb70] sm:$0xff]
  %v616 = vld [vmem:[%s1 + $0xb78] sm:$0xff]
  %v617 = vld [vmem:[%s1 + $0xb80] sm:$0xff]
  %v618 = vld [vmem:[%s1 + $0xb88] sm:$0xff]
  %v619 = vld [vmem:[%s1 + $0xb90] sm:$0xff]
  %v620 = vld [vmem:[%s1 + $0xb98] sm:$0xff]
  %v621 = vld [vmem:[%s1 + $0xba0] sm:$0xff]
  %v622 = vld [vmem:[%s1 + $0xba8] sm:$0xff]
  %v623 = vld [vmem:[%s1 + $0xbb0] sm:$0xff]
  %v624 = vld [vmem:[%s1 + $0xbb8] sm:$0xff]
  %v625 = vld [vmem:[%s1 + $0xbc0] sm:$0xff]
  %v626 = vld [vmem:[%s1 + $0xbc8] sm:$0xff]
  %v627 = vld [vmem:[%s1 + $0xbd0] sm:$0xff]
  %v628 = vld [vmem:[%s1 + $0xbd8] sm:$0xff]
  %v629 = vld [vmem:[%s1 + $0xbe0] sm:$0xff]
  %v630 = vld [vmem:[%s1 + $0xbe8] sm:$0xff]
  %v631 = vld [vmem:[%s1 + $0xbf0] sm:$0xff]
  %v632 = vld [vmem:[%s1 + $0xbf8] sm:$0xff]
  %v633 = vld [vmem:[%s1 + $0xc00] sm:$0xff]
  %v634 = vld [vmem:[%s1 + $0xc08] sm:$0xff]
  %v635 = vld [vmem:[%s1 + $0xc10] sm:$0xff]
  %v636 = vld [vmem:[%s1 + $0xc18] sm:$0xff]
  %v637 = vld [vmem:[%s1 + $0xc20] sm:$0xff]
  %v638 = vld [vmem:[%s1 + $0xc28] sm:$0xff]
  %v639 = vld [vmem:[%s1 + $0xc30] sm:$0xff]
  %v640 = vld [vmem:[%s1 + $0xc38] sm:$0xff]
  %v641 = vld [vmem:[%s1 + $0xc40] sm:$0xff]
  %v642 = vld [vmem:[%s1 + $0xc48] sm:$0xff]
  %v643 = vld [vmem:[%s1 + $0xc50] sm:$0xff]
  %v644 = vld [vmem:[%s1 + $0xc58] sm:$0xff]
  %v645 = vld [vmem:[%s1 + $0xc60] sm:$0xff]
  %v646 = vld [vmem:[%s1 + $0xc68] sm:$0xff]
  %v647 = vld [vmem:[%s1 + $0xc70] sm:$0xff]
  %v648 = vld [vmem:[%s1 + $0xc78] sm:$0xff]
  %v649 = vld [vmem:[%s2] sm:$0x3]
  %v651 = vlaneseq
  %v652 = vshrl.u32 %v651, 7
  %v653 = vsub.s32 0, %v652
  %v654 = vrot.slane %v649, %v653
  %v655 = vlaneseq
  %v656 = vshrl.u32 %v655, 7
  %v657 = vsub.s32 1, %v656
  %v658 = vrot.slane %v649, %v657
  %v895 = vunpack.c.l.b16 %v15
  %v896 = vunpack.c.h.b16 %v15
  %v897 = vunpack.c.l.b16 %v16
  %v898 = vunpack.c.h.b16 %v16
  %v899 = vunpack.c.l.b16 %v17
  %v900 = vunpack.c.h.b16 %v17
  %v901 = vunpack.c.l.b16 %v18
  %v902 = vunpack.c.h.b16 %v18
  %v903 = vunpack.c.l.b16 %v19
  %v904 = vunpack.c.h.b16 %v19
  %v905 = vunpack.c.l.b16 %v20
  %v906 = vunpack.c.h.b16 %v20
  %v907 = vunpack.c.l.b16 %v21
  %v908 = vunpack.c.h.b16 %v21
  %v909 = vunpack.c.l.b16 %v22
  %v910 = vunpack.c.h.b16 %v22
  %v911 = vunpack.c.l.b16 %v23
  %v912 = vunpack.c.h.b16 %v23
  %v913 = vunpack.c.l.b16 %v24
  %v914 = vunpack.c.h.b16 %v24
  %v915 = vunpack.c.l.b16 %v25
  %v916 = vunpack.c.h.b16 %v25
  %v917 = vunpack.c.l.b16 %v26
  %v918 = vunpack.c.h.b16 %v26
  %v919 = vunpack.c.l.b16 %v27
  %v920 = vunpack.c.l.b16 %v28
  %v921 = vunpack.c.h.b16 %v28
  %v922 = vunpack.c.l.b16 %v29
  %v923 = vunpack.c.h.b16 %v29
  %v924 = vunpack.c.l.b16 %v30
  %v925 = vunpack.c.h.b16 %v30
  %v926 = vunpack.c.l.b16 %v31
  %v927 = vunpack.c.h.b16 %v31
  %v928 = vunpack.c.l.b16 %v32
  %v929 = vunpack.c.h.b16 %v32
  %v930 = vunpack.c.l.b16 %v33
  %v931 = vunpack.c.h.b16 %v33
  %v932 = vunpack.c.l.b16 %v34
  %v933 = vunpack.c.h.b16 %v34
  %v934 = vunpack.c.l.b16 %v35
  %v935 = vunpack.c.h.b16 %v35
  %v936 = vunpack.c.l.b16 %v36
  %v937 = vunpack.c.h.b16 %v36
  %v938 = vunpack.c.l.b16 %v37
  %v939 = vunpack.c.h.b16 %v37
  %v940 = vunpack.c.l.b16 %v38
  %v941 = vunpack.c.h.b16 %v38
  %v942 = vunpack.c.l.b16 %v39
  %v943 = vunpack.c.h.b16 %v39
  %v944 = vunpack.c.l.b16 %v40
  %v945 = vunpack.c.l.b16 %v41
  %v946 = vunpack.c.h.b16 %v41
  %v947 = vunpack.c.l.b16 %v42
  %v948 = vunpack.c.h.b16 %v42
  %v949 = vunpack.c.l.b16 %v43
  %v950 = vunpack.c.h.b16 %v43
  %v951 = vunpack.c.l.b16 %v44
  %v952 = vunpack.c.h.b16 %v44
  %v953 = vunpack.c.l.b16 %v45
  %v954 = vunpack.c.h.b16 %v45
  %v955 = vunpack.c.l.b16 %v46
  %v956 = vunpack.c.h.b16 %v46
  %v957 = vunpack.c.l.b16 %v47
  %v958 = vunpack.c.h.b16 %v47
  %v959 = vunpack.c.l.b16 %v48
  %v960 = vunpack.c.h.b16 %v48
  %v961 = vunpack.c.l.b16 %v49
  %v962 = vunpack.c.h.b16 %v49
  %v963 = vunpack.c.l.b16 %v50
  %v964 = vunpack.c.h.b16 %v50
  %v965 = vunpack.c.l.b16 %v51
  %v966 = vunpack.c.h.b16 %v51
  %v967 = vunpack.c.l.b16 %v52
  %v968 = vunpack.c.h.b16 %v52
  %v969 = vunpack.c.l.b16 %v53
  %v970 = vunpack.c.l.b16 %v54
  %v971 = vunpack.c.h.b16 %v54
  %v972 = vunpack.c.l.b16 %v55
  %v973 = vunpack.c.h.b16 %v55
  %v974 = vunpack.c.l.b16 %v56
  %v975 = vunpack.c.h.b16 %v56
  %v976 = vunpack.c.l.b16 %v57
  %v977 = vunpack.c.h.b16 %v57
  %v978 = vunpack.c.l.b16 %v58
  %v979 = vunpack.c.h.b16 %v58
  %v980 = vunpack.c.l.b16 %v59
  %v981 = vunpack.c.h.b16 %v59
  %v982 = vunpack.c.l.b16 %v60
  %v983 = vunpack.c.h.b16 %v60
  %v984 = vunpack.c.l.b16 %v61
  %v985 = vunpack.c.h.b16 %v61
  %v986 = vunpack.c.l.b16 %v62
  %v987 = vunpack.c.h.b16 %v62
  %v988 = vunpack.c.l.b16 %v63
  %v989 = vunpack.c.h.b16 %v63
  %v990 = vunpack.c.l.b16 %v64
  %v991 = vunpack.c.h.b16 %v64
  %v992 = vunpack.c.l.b16 %v65
  %v993 = vunpack.c.h.b16 %v65
  %v994 = vunpack.c.l.b16 %v66
  %v995 = vunpack.c.l.b16 %v67
  %v996 = vunpack.c.h.b16 %v67
  %v997 = vunpack.c.l.b16 %v68
  %v998 = vunpack.c.h.b16 %v68
  %v999 = vunpack.c.l.b16 %v69
  %v1000 = vunpack.c.h.b16 %v69
  %v1001 = vunpack.c.l.b16 %v70
  %v1002 = vunpack.c.h.b16 %v70
  %v1003 = vunpack.c.l.b16 %v71
  %v1004 = vunpack.c.h.b16 %v71
  %v1005 = vunpack.c.l.b16 %v72
  %v1006 = vunpack.c.h.b16 %v72
  %v1007 = vunpack.c.l.b16 %v73
  %v1008 = vunpack.c.h.b16 %v73
  %v1009 = vunpack.c.l.b16 %v74
  %v1010 = vunpack.c.h.b16 %v74
  %v1011 = vunpack.c.l.b16 %v75
  %v1012 = vunpack.c.h.b16 %v75
  %v1013 = vunpack.c.l.b16 %v76
  %v1014 = vunpack.c.h.b16 %v76
  %v1015 = vunpack.c.l.b16 %v77
  %v1016 = vunpack.c.h.b16 %v77
  %v1017 = vunpack.c.l.b16 %v78
  %v1018 = vunpack.c.h.b16 %v78
  %v1019 = vunpack.c.l.b16 %v79
  %v1020 = vunpack.c.l.b16 %v80
  %v1021 = vunpack.c.h.b16 %v80
  %v1022 = vunpack.c.l.b16 %v81
  %v1023 = vunpack.c.h.b16 %v81
  %v1024 = vunpack.c.l.b16 %v82
  %v1025 = vunpack.c.h.b16 %v82
  %v1026 = vunpack.c.l.b16 %v83
  %v1027 = vunpack.c.h.b16 %v83
  %v1028 = vunpack.c.l.b16 %v84
  %v1029 = vunpack.c.h.b16 %v84
  %v1030 = vunpack.c.l.b16 %v85
  %v1031 = vunpack.c.h.b16 %v85
  %v1032 = vunpack.c.l.b16 %v86
  %v1033 = vunpack.c.h.b16 %v86
  %v1034 = vunpack.c.l.b16 %v87
  %v1035 = vunpack.c.h.b16 %v87
  %v1036 = vunpack.c.l.b16 %v88
  %v1037 = vunpack.c.h.b16 %v88
  %v1038 = vunpack.c.l.b16 %v89
  %v1039 = vunpack.c.h.b16 %v89
  %v1040 = vunpack.c.l.b16 %v90
  %v1041 = vunpack.c.h.b16 %v90
  %v1042 = vunpack.c.l.b16 %v91
  %v1043 = vunpack.c.h.b16 %v91
  %v1044 = vunpack.c.l.b16 %v92
  %v1045 = vunpack.c.l.b16 %v93
  %v1046 = vunpack.c.h.b16 %v93
  %v1047 = vunpack.c.l.b16 %v94
  %v1048 = vunpack.c.h.b16 %v94
  %v1049 = vunpack.c.l.b16 %v95
  %v1050 = vunpack.c.h.b16 %v95
  %v1051 = vunpack.c.l.b16 %v96
  %v1052 = vunpack.c.h.b16 %v96
  %v1053 = vunpack.c.l.b16 %v97
  %v1054 = vunpack.c.h.b16 %v97
  %v1055 = vunpack.c.l.b16 %v98
  %v1056 = vunpack.c.h.b16 %v98
  %v1057 = vunpack.c.l.b16 %v99
  %v1058 = vunpack.c.h.b16 %v99
  %v1059 = vunpack.c.l.b16 %v100
  %v1060 = vunpack.c.h.b16 %v100
  %v1061 = vunpack.c.l.b16 %v101
  %v1062 = vunpack.c.h.b16 %v101
  %v1063 = vunpack.c.l.b16 %v102
  %v1064 = vunpack.c.h.b16 %v102
  %v1065 = vunpack.c.l.b16 %v103
  %v1066 = vunpack.c.h.b16 %v103
  %v1067 = vunpack.c.l.b16 %v104
  %v1068 = vunpack.c.h.b16 %v104
  %v1069 = vunpack.c.l.b16 %v105
  %v1070 = vunpack.c.l.b16 %v106
  %v1071 = vunpack.c.h.b16 %v106
  %v1072 = vunpack.c.l.b16 %v107
  %v1073 = vunpack.c.h.b16 %v107
  %v1074 = vunpack.c.l.b16 %v108
  %v1075 = vunpack.c.h.b16 %v108
  %v1076 = vunpack.c.l.b16 %v109
  %v1077 = vunpack.c.h.b16 %v109
  %v1078 = vunpack.c.l.b16 %v110
  %v1079 = vunpack.c.h.b16 %v110
  %v1080 = vunpack.c.l.b16 %v111
  %v1081 = vunpack.c.h.b16 %v111
  %v1082 = vunpack.c.l.b16 %v112
  %v1083 = vunpack.c.h.b16 %v112
  %v1084 = vunpack.c.l.b16 %v113
  %v1085 = vunpack.c.h.b16 %v113
  %v1086 = vunpack.c.l.b16 %v114
  %v1087 = vunpack.c.h.b16 %v114
  %v1088 = vunpack.c.l.b16 %v115
  %v1089 = vunpack.c.h.b16 %v115
  %v1090 = vunpack.c.l.b16 %v116
  %v1091 = vunpack.c.h.b16 %v116
  %v1092 = vunpack.c.l.b16 %v117
  %v1093 = vunpack.c.h.b16 %v117
  %v1094 = vunpack.c.l.b16 %v118
  %v1095 = vunpack.c.l.b16 %v119
  %v1096 = vunpack.c.h.b16 %v119
  %v1097 = vunpack.c.l.b16 %v120
  %v1098 = vunpack.c.h.b16 %v120
  %v1099 = vunpack.c.l.b16 %v121
  %v1100 = vunpack.c.h.b16 %v121
  %v1101 = vunpack.c.l.b16 %v122
  %v1102 = vunpack.c.h.b16 %v122
  %v1103 = vunpack.c.l.b16 %v123
  %v1104 = vunpack.c.h.b16 %v123
  %v1105 = vunpack.c.l.b16 %v124
  %v1106 = vunpack.c.h.b16 %v124
  %v1107 = vunpack.c.l.b16 %v125
  %v1108 = vunpack.c.h.b16 %v125
  %v1109 = vunpack.c.l.b16 %v126
  %v1110 = vunpack.c.h.b16 %v126
  %v1111 = vunpack.c.l.b16 %v127
  %v1112 = vunpack.c.h.b16 %v127
  %v1113 = vunpack.c.l.b16 %v128
  %v1114 = vunpack.c.h.b16 %v128
  %v1115 = vunpack.c.l.b16 %v129
  %v1116 = vunpack.c.h.b16 %v129
  %v1117 = vunpack.c.l.b16 %v130
  %v1118 = vunpack.c.h.b16 %v130
  %v1119 = vunpack.c.l.b16 %v131
  %v1120 = vunpack.c.l.b16 %v132
  %v1121 = vunpack.c.h.b16 %v132
  %v1122 = vunpack.c.l.b16 %v133
  %v1123 = vunpack.c.h.b16 %v133
  %v1124 = vunpack.c.l.b16 %v134
  %v1125 = vunpack.c.h.b16 %v134
  %v1126 = vunpack.c.l.b16 %v135
  %v1127 = vunpack.c.h.b16 %v135
  %v1128 = vunpack.c.l.b16 %v136
  %v1129 = vunpack.c.h.b16 %v136
  %v1130 = vunpack.c.l.b16 %v137
  %v1131 = vunpack.c.h.b16 %v137
  %v1132 = vunpack.c.l.b16 %v138
  %v1133 = vunpack.c.h.b16 %v138
  %v1134 = vunpack.c.l.b16 %v139
  %v1135 = vunpack.c.h.b16 %v139
  %v1136 = vunpack.c.l.b16 %v140
  %v1137 = vunpack.c.h.b16 %v140
  %v1138 = vunpack.c.l.b16 %v141
  %v1139 = vunpack.c.h.b16 %v141
  %v1140 = vunpack.c.l.b16 %v142
  %v1141 = vunpack.c.h.b16 %v142
  %v1142 = vunpack.c.l.b16 %v143
  %v1143 = vunpack.c.h.b16 %v143
  %v1144 = vunpack.c.l.b16 %v144
  %v1145 = vunpack.c.l.b16 %v145
  %v1146 = vunpack.c.h.b16 %v145
  %v1147 = vunpack.c.l.b16 %v146
  %v1148 = vunpack.c.h.b16 %v146
  %v1149 = vunpack.c.l.b16 %v147
  %v1150 = vunpack.c.h.b16 %v147
  %v1151 = vunpack.c.l.b16 %v148
  %v1152 = vunpack.c.h.b16 %v148
  %v1153 = vunpack.c.l.b16 %v149
  %v1154 = vunpack.c.h.b16 %v149
  %v1155 = vunpack.c.l.b16 %v150
  %v1156 = vunpack.c.h.b16 %v150
  %v1157 = vunpack.c.l.b16 %v151
  %v1158 = vunpack.c.h.b16 %v151
  %v1159 = vunpack.c.l.b16 %v152
  %v1160 = vunpack.c.h.b16 %v152
  %v1161 = vunpack.c.l.b16 %v153
  %v1162 = vunpack.c.h.b16 %v153
  %v1163 = vunpack.c.l.b16 %v154
  %v1164 = vunpack.c.h.b16 %v154
  %v1165 = vunpack.c.l.b16 %v155
  %v1166 = vunpack.c.h.b16 %v155
  %v1167 = vunpack.c.l.b16 %v156
  %v1168 = vunpack.c.h.b16 %v156
  %v1169 = vunpack.c.l.b16 %v157
  %v1170 = vunpack.c.l.b16 %v158
  %v1171 = vunpack.c.h.b16 %v158
  %v1172 = vunpack.c.l.b16 %v159
  %v1173 = vunpack.c.h.b16 %v159
  %v1174 = vunpack.c.l.b16 %v160
  %v1175 = vunpack.c.h.b16 %v160
  %v1176 = vunpack.c.l.b16 %v161
  %v1177 = vunpack.c.h.b16 %v161
  %v1178 = vunpack.c.l.b16 %v162
  %v1179 = vunpack.c.h.b16 %v162
  %v1180 = vunpack.c.l.b16 %v163
  %v1181 = vunpack.c.h.b16 %v163
  %v1182 = vunpack.c.l.b16 %v164
  %v1183 = vunpack.c.h.b16 %v164
  %v1184 = vunpack.c.l.b16 %v165
  %v1185 = vunpack.c.h.b16 %v165
  %v1186 = vunpack.c.l.b16 %v166
  %v1187 = vunpack.c.h.b16 %v166
  %v1188 = vunpack.c.l.b16 %v167
  %v1189 = vunpack.c.h.b16 %v167
  %v1190 = vunpack.c.l.b16 %v168
  %v1191 = vunpack.c.h.b16 %v168
  %v1192 = vunpack.c.l.b16 %v169
  %v1193 = vunpack.c.h.b16 %v169
  %v1194 = vunpack.c.l.b16 %v170
  %v1195 = vunpack.c.l.b16 %v171
  %v1196 = vunpack.c.h.b16 %v171
  %v1197 = vunpack.c.l.b16 %v172
  %v1198 = vunpack.c.h.b16 %v172
  %v1199 = vunpack.c.l.b16 %v173
  %v1200 = vunpack.c.h.b16 %v173
  %v1201 = vunpack.c.l.b16 %v174
  %v1202 = vunpack.c.h.b16 %v174
  %v1203 = vunpack.c.l.b16 %v175
  %v1204 = vunpack.c.h.b16 %v175
  %v1205 = vunpack.c.l.b16 %v176
  %v1206 = vunpack.c.h.b16 %v176
  %v1207 = vunpack.c.l.b16 %v177
  %v1208 = vunpack.c.h.b16 %v177
  %v1209 = vunpack.c.l.b16 %v178
  %v1210 = vunpack.c.h.b16 %v178
  %v1211 = vunpack.c.l.b16 %v179
  %v1212 = vunpack.c.h.b16 %v179
  %v1213 = vunpack.c.l.b16 %v180
  %v1214 = vunpack.c.h.b16 %v180
  %v1215 = vunpack.c.l.b16 %v181
  %v1216 = vunpack.c.h.b16 %v181
  %v1217 = vunpack.c.l.b16 %v182
  %v1218 = vunpack.c.h.b16 %v182
  %v1219 = vunpack.c.l.b16 %v183
  %v1220 = vunpack.c.l.b16 %v184
  %v1221 = vunpack.c.h.b16 %v184
  %v1222 = vunpack.c.l.b16 %v185
  %v1223 = vunpack.c.h.b16 %v185
  %v1224 = vunpack.c.l.b16 %v186
  %v1225 = vunpack.c.h.b16 %v186
  %v1226 = vunpack.c.l.b16 %v187
  %v1227 = vunpack.c.h.b16 %v187
  %v1228 = vunpack.c.l.b16 %v188
  %v1229 = vunpack.c.h.b16 %v188
  %v1230 = vunpack.c.l.b16 %v189
  %v1231 = vunpack.c.h.b16 %v189
  %v1232 = vunpack.c.l.b16 %v190
  %v1233 = vunpack.c.h.b16 %v190
  %v1234 = vunpack.c.l.b16 %v191
  %v1235 = vunpack.c.h.b16 %v191
  %v1236 = vunpack.c.l.b16 %v192
  %v1237 = vunpack.c.h.b16 %v192
  %v1238 = vunpack.c.l.b16 %v193
  %v1239 = vunpack.c.h.b16 %v193
  %v1240 = vunpack.c.l.b16 %v194
  %v1241 = vunpack.c.h.b16 %v194
  %v1242 = vunpack.c.l.b16 %v195
  %v1243 = vunpack.c.h.b16 %v195
  %v1244 = vunpack.c.l.b16 %v196
  %v1245 = vunpack.c.l.b16 %v197
  %v1246 = vunpack.c.h.b16 %v197
  %v1247 = vunpack.c.l.b16 %v198
  %v1248 = vunpack.c.h.b16 %v198
  %v1249 = vunpack.c.l.b16 %v199
  %v1250 = vunpack.c.h.b16 %v199
  %v1251 = vunpack.c.l.b16 %v200
  %v1252 = vunpack.c.h.b16 %v200
  %v1253 = vunpack.c.l.b16 %v201
  %v1254 = vunpack.c.h.b16 %v201
  %v1255 = vunpack.c.l.b16 %v202
  %v1256 = vunpack.c.h.b16 %v202
  %v1257 = vunpack.c.l.b16 %v203
  %v1258 = vunpack.c.h.b16 %v203
  %v1259 = vunpack.c.l.b16 %v204
  %v1260 = vunpack.c.h.b16 %v204
  %v1261 = vunpack.c.l.b16 %v205
  %v1262 = vunpack.c.h.b16 %v205
  %v1263 = vunpack.c.l.b16 %v206
  %v1264 = vunpack.c.h.b16 %v206
  %v1265 = vunpack.c.l.b16 %v207
  %v1266 = vunpack.c.h.b16 %v207
  %v1267 = vunpack.c.l.b16 %v208
  %v1268 = vunpack.c.h.b16 %v208
  %v1269 = vunpack.c.l.b16 %v209
  %v1270 = vunpack.c.l.b16 %v210
  %v1271 = vunpack.c.h.b16 %v210
  %v1272 = vunpack.c.l.b16 %v211
  %v1273 = vunpack.c.h.b16 %v211
  %v1274 = vunpack.c.l.b16 %v212
  %v1275 = vunpack.c.h.b16 %v212
  %v1276 = vunpack.c.l.b16 %v213
  %v1277 = vunpack.c.h.b16 %v213
  %v1278 = vunpack.c.l.b16 %v214
  %v1279 = vunpack.c.h.b16 %v214
  %v1280 = vunpack.c.l.b16 %v215
  %v1281 = vunpack.c.h.b16 %v215
  %v1282 = vunpack.c.l.b16 %v216
  %v1283 = vunpack.c.h.b16 %v216
  %v1284 = vunpack.c.l.b16 %v217
  %v1285 = vunpack.c.h.b16 %v217
  %v1286 = vunpack.c.l.b16 %v218
  %v1287 = vunpack.c.h.b16 %v218
  %v1288 = vunpack.c.l.b16 %v219
  %v1289 = vunpack.c.h.b16 %v219
  %v1290 = vunpack.c.l.b16 %v220
  %v1291 = vunpack.c.h.b16 %v220
  %v1292 = vunpack.c.l.b16 %v221
  %v1293 = vunpack.c.h.b16 %v221
  %v1294 = vunpack.c.l.b16 %v222
  %v1295 = vunpack.c.l.b16 %v223
  %v1296 = vunpack.c.h.b16 %v223
  %v1297 = vunpack.c.l.b16 %v224
  %v1298 = vunpack.c.h.b16 %v224
  %v1299 = vunpack.c.l.b16 %v225
  %v1300 = vunpack.c.h.b16 %v225
  %v1301 = vunpack.c.l.b16 %v226
  %v1302 = vunpack.c.h.b16 %v226
  %v1303 = vunpack.c.l.b16 %v227
  %v1304 = vunpack.c.h.b16 %v227
  %v1305 = vunpack.c.l.b16 %v228
  %v1306 = vunpack.c.h.b16 %v228
  %v1307 = vunpack.c.l.b16 %v229
  %v1308 = vunpack.c.h.b16 %v229
  %v1309 = vunpack.c.l.b16 %v230
  %v1310 = vunpack.c.h.b16 %v230
  %v1311 = vunpack.c.l.b16 %v231
  %v1312 = vunpack.c.h.b16 %v231
  %v1313 = vunpack.c.l.b16 %v232
  %v1314 = vunpack.c.h.b16 %v232
  %v1315 = vunpack.c.l.b16 %v233
  %v1316 = vunpack.c.h.b16 %v233
  %v1317 = vunpack.c.l.b16 %v234
  %v1318 = vunpack.c.h.b16 %v234
  %v1319 = vunpack.c.l.b16 %v235
  %v1320 = vunpack.c.l.b16 %v236
  %v1321 = vunpack.c.h.b16 %v236
  %v1322 = vunpack.c.l.b16 %v237
  %v1323 = vunpack.c.h.b16 %v237
  %v1324 = vunpack.c.l.b16 %v238
  %v1325 = vunpack.c.h.b16 %v238
  %v1326 = vunpack.c.l.b16 %v239
  %v1327 = vunpack.c.h.b16 %v239
  %v1328 = vunpack.c.l.b16 %v240
  %v1329 = vunpack.c.h.b16 %v240
  %v1330 = vunpack.c.l.b16 %v241
  %v1331 = vunpack.c.h.b16 %v241
  %v1332 = vunpack.c.l.b16 %v242
  %v1333 = vunpack.c.h.b16 %v242
  %v1334 = vunpack.c.l.b16 %v243
  %v1335 = vunpack.c.h.b16 %v243
  %v1336 = vunpack.c.l.b16 %v244
  %v1337 = vunpack.c.h.b16 %v244
  %v1338 = vunpack.c.l.b16 %v245
  %v1339 = vunpack.c.h.b16 %v245
  %v1340 = vunpack.c.l.b16 %v246
  %v1341 = vunpack.c.h.b16 %v246
  %v1342 = vunpack.c.l.b16 %v247
  %v1343 = vunpack.c.h.b16 %v247
  %v1344 = vunpack.c.l.b16 %v248
  %v1345 = vpack.c.b16 %v920, %v895
  %v1346 = vpack.c.b16 %v921, %v896
  %v1347 = vpack.c.b16 %v922, %v897
  %v1348 = vpack.c.b16 %v923, %v898
  %v1349 = vpack.c.b16 %v924, %v899
  %v1350 = vpack.c.b16 %v925, %v900
  %v1351 = vpack.c.b16 %v926, %v901
  %v1352 = vpack.c.b16 %v927, %v902
  %v1353 = vpack.c.b16 %v928, %v903
  %v1354 = vpack.c.b16 %v929, %v904
  %v1355 = vpack.c.b16 %v930, %v905
  %v1356 = vpack.c.b16 %v931, %v906
  %v1357 = vpack.c.b16 %v932, %v907
  %v1358 = vpack.c.b16 %v933, %v908
  %v1359 = vpack.c.b16 %v934, %v909
  %v1360 = vpack.c.b16 %v935, %v910
  %v1361 = vpack.c.b16 %v936, %v911
  %v1362 = vpack.c.b16 %v937, %v912
  %v1363 = vpack.c.b16 %v938, %v913
  %v1364 = vpack.c.b16 %v939, %v914
  %v1365 = vpack.c.b16 %v940, %v915
  %v1366 = vpack.c.b16 %v941, %v916
  %v1367 = vpack.c.b16 %v942, %v917
  %v1368 = vpack.c.b16 %v943, %v918
  %v1369 = vpack.c.b16 %v944, %v919
  %v1370 = vpack.c.b16 %v970, %v945
  %v1371 = vpack.c.b16 %v971, %v946
  %v1372 = vpack.c.b16 %v972, %v947
  %v1373 = vpack.c.b16 %v973, %v948
  %v1374 = vpack.c.b16 %v974, %v949
  %v1375 = vpack.c.b16 %v975, %v950
  %v1376 = vpack.c.b16 %v976, %v951
  %v1377 = vpack.c.b16 %v977, %v952
  %v1378 = vpack.c.b16 %v978, %v953
  %v1379 = vpack.c.b16 %v979, %v954
  %v1380 = vpack.c.b16 %v980, %v955
  %v1381 = vpack.c.b16 %v981, %v956
  %v1382 = vpack.c.b16 %v982, %v957
  %v1383 = vpack.c.b16 %v983, %v958
  %v1384 = vpack.c.b16 %v984, %v959
  %v1385 = vpack.c.b16 %v985, %v960
  %v1386 = vpack.c.b16 %v986, %v961
  %v1387 = vpack.c.b16 %v987, %v962
  %v1388 = vpack.c.b16 %v988, %v963
  %v1389 = vpack.c.b16 %v989, %v964
  %v1390 = vpack.c.b16 %v990, %v965
  %v1391 = vpack.c.b16 %v991, %v966
  %v1392 = vpack.c.b16 %v992, %v967
  %v1393 = vpack.c.b16 %v993, %v968
  %v1394 = vpack.c.b16 %v994, %v969
  %v1395 = vpack.c.b16 %v1020, %v995
  %v1396 = vpack.c.b16 %v1021, %v996
  %v1397 = vpack.c.b16 %v1022, %v997
  %v1398 = vpack.c.b16 %v1023, %v998
  %v1399 = vpack.c.b16 %v1024, %v999
  %v1400 = vpack.c.b16 %v1025, %v1000
  %v1401 = vpack.c.b16 %v1026, %v1001
  %v1402 = vpack.c.b16 %v1027, %v1002
  %v1403 = vpack.c.b16 %v1028, %v1003
  %v1404 = vpack.c.b16 %v1029, %v1004
  %v1405 = vpack.c.b16 %v1030, %v1005
  %v1406 = vpack.c.b16 %v1031, %v1006
  %v1407 = vpack.c.b16 %v1032, %v1007
  %v1408 = vpack.c.b16 %v1033, %v1008
  %v1409 = vpack.c.b16 %v1034, %v1009
  %v1410 = vpack.c.b16 %v1035, %v1010
  %v1411 = vpack.c.b16 %v1036, %v1011
  %v1412 = vpack.c.b16 %v1037, %v1012
  %v1413 = vpack.c.b16 %v1038, %v1013
  %v1414 = vpack.c.b16 %v1039, %v1014
  %v1415 = vpack.c.b16 %v1040, %v1015
  %v1416 = vpack.c.b16 %v1041, %v1016
  %v1417 = vpack.c.b16 %v1042, %v1017
  %v1418 = vpack.c.b16 %v1043, %v1018
  %v1419 = vpack.c.b16 %v1044, %v1019
  %v1420 = vpack.c.b16 %v1070, %v1045
  %v1421 = vpack.c.b16 %v1071, %v1046
  %v1422 = vpack.c.b16 %v1072, %v1047
  %v1423 = vpack.c.b16 %v1073, %v1048
  %v1424 = vpack.c.b16 %v1074, %v1049
  %v1425 = vpack.c.b16 %v1075, %v1050
  %v1426 = vpack.c.b16 %v1076, %v1051
  %v1427 = vpack.c.b16 %v1077, %v1052
  %v1428 = vpack.c.b16 %v1078, %v1053
  %v1429 = vpack.c.b16 %v1079, %v1054
  %v1430 = vpack.c.b16 %v1080, %v1055
  %v1431 = vpack.c.b16 %v1081, %v1056
  %v1432 = vpack.c.b16 %v1082, %v1057
  %v1433 = vpack.c.b16 %v1083, %v1058
  %v1434 = vpack.c.b16 %v1084, %v1059
  %v1435 = vpack.c.b16 %v1085, %v1060
  %v1436 = vpack.c.b16 %v1086, %v1061
  %v1437 = vpack.c.b16 %v1087, %v1062
  %v1438 = vpack.c.b16 %v1088, %v1063
  %v1439 = vpack.c.b16 %v1089, %v1064
  %v1440 = vpack.c.b16 %v1090, %v1065
  %v1441 = vpack.c.b16 %v1091, %v1066
  %v1442 = vpack.c.b16 %v1092, %v1067
  %v1443 = vpack.c.b16 %v1093, %v1068
  %v1444 = vpack.c.b16 %v1094, %v1069
  %v1445 = vpack.c.b16 %v1120, %v1095
  %v1446 = vpack.c.b16 %v1121, %v1096
  %v1447 = vpack.c.b16 %v1122, %v1097
  %v1448 = vpack.c.b16 %v1123, %v1098
  %v1449 = vpack.c.b16 %v1124, %v1099
  %v1450 = vpack.c.b16 %v1125, %v1100
  %v1451 = vpack.c.b16 %v1126, %v1101
  %v1452 = vpack.c.b16 %v1127, %v1102
  %v1453 = vpack.c.b16 %v1128, %v1103
  %v1454 = vpack.c.b16 %v1129, %v1104
  %v1455 = vpack.c.b16 %v1130, %v1105
  %v1456 = vpack.c.b16 %v1131, %v1106
  %v1457 = vpack.c.b16 %v1132, %v1107
  %v1458 = vpack.c.b16 %v1133, %v1108
  %v1459 = vpack.c.b16 %v1134, %v1109
  %v1460 = vpack.c.b16 %v1135, %v1110
  %v1461 = vpack.c.b16 %v1136, %v1111
  %v1462 = vpack.c.b16 %v1137, %v1112
  %v1463 = vpack.c.b16 %v1138, %v1113
  %v1464 = vpack.c.b16 %v1139, %v1114
  %v1465 = vpack.c.b16 %v1140, %v1115
  %v1466 = vpack.c.b16 %v1141, %v1116
  %v1467 = vpack.c.b16 %v1142, %v1117
  %v1468 = vpack.c.b16 %v1143, %v1118
  %v1469 = vpack.c.b16 %v1144, %v1119
  %v1470 = vpack.c.b16 %v1170, %v1145
  %v1471 = vpack.c.b16 %v1171, %v1146
  %v1472 = vpack.c.b16 %v1172, %v1147
  %v1473 = vpack.c.b16 %v1173, %v1148
  %v1474 = vpack.c.b16 %v1174, %v1149
  %v1475 = vpack.c.b16 %v1175, %v1150
  %v1476 = vpack.c.b16 %v1176, %v1151
  %v1477 = vpack.c.b16 %v1177, %v1152
  %v1478 = vpack.c.b16 %v1178, %v1153
  %v1479 = vpack.c.b16 %v1179, %v1154
  %v1480 = vpack.c.b16 %v1180, %v1155
  %v1481 = vpack.c.b16 %v1181, %v1156
  %v1482 = vpack.c.b16 %v1182, %v1157
  %v1483 = vpack.c.b16 %v1183, %v1158
  %v1484 = vpack.c.b16 %v1184, %v1159
  %v1485 = vpack.c.b16 %v1185, %v1160
  %v1486 = vpack.c.b16 %v1186, %v1161
  %v1487 = vpack.c.b16 %v1187, %v1162
  %v1488 = vpack.c.b16 %v1188, %v1163
  %v1489 = vpack.c.b16 %v1189, %v1164
  %v1490 = vpack.c.b16 %v1190, %v1165
  %v1491 = vpack.c.b16 %v1191, %v1166
  %v1492 = vpack.c.b16 %v1192, %v1167
  %v1493 = vpack.c.b16 %v1193, %v1168
  %v1494 = vpack.c.b16 %v1194, %v1169
  %v1495 = vpack.c.b16 %v1220, %v1195
  %v1496 = vpack.c.b16 %v1221, %v1196
  %v1497 = vpack.c.b16 %v1222, %v1197
  %v1498 = vpack.c.b16 %v1223, %v1198
  %v1499 = vpack.c.b16 %v1224, %v1199
  %v1500 = vpack.c.b16 %v1225, %v1200
  %v1501 = vpack.c.b16 %v1226, %v1201
  %v1502 = vpack.c.b16 %v1227, %v1202
  %v1503 = vpack.c.b16 %v1228, %v1203
  %v1504 = vpack.c.b16 %v1229, %v1204
  %v1505 = vpack.c.b16 %v1230, %v1205
  %v1506 = vpack.c.b16 %v1231, %v1206
  %v1507 = vpack.c.b16 %v1232, %v1207
  %v1508 = vpack.c.b16 %v1233, %v1208
  %v1509 = vpack.c.b16 %v1234, %v1209
  %v1510 = vpack.c.b16 %v1235, %v1210
  %v1511 = vpack.c.b16 %v1236, %v1211
  %v1512 = vpack.c.b16 %v1237, %v1212
  %v1513 = vpack.c.b16 %v1238, %v1213
  %v1514 = vpack.c.b16 %v1239, %v1214
  %v1515 = vpack.c.b16 %v1240, %v1215
  %v1516 = vpack.c.b16 %v1241, %v1216
  %v1517 = vpack.c.b16 %v1242, %v1217
  %v1518 = vpack.c.b16 %v1243, %v1218
  %v1519 = vpack.c.b16 %v1244, %v1219
  %v1520 = vpack.c.b16 %v1270, %v1245
  %v1521 = vpack.c.b16 %v1271, %v1246
  %v1522 = vpack.c.b16 %v1272, %v1247
  %v1523 = vpack.c.b16 %v1273, %v1248
  %v1524 = vpack.c.b16 %v1274, %v1249
  %v1525 = vpack.c.b16 %v1275, %v1250
  %v1526 = vpack.c.b16 %v1276, %v1251
  %v1527 = vpack.c.b16 %v1277, %v1252
  %v1528 = vpack.c.b16 %v1278, %v1253
  %v1529 = vpack.c.b16 %v1279, %v1254
  %v1530 = vpack.c.b16 %v1280, %v1255
  %v1531 = vpack.c.b16 %v1281, %v1256
  %v1532 = vpack.c.b16 %v1282, %v1257
  %v1533 = vpack.c.b16 %v1283, %v1258
  %v1534 = vpack.c.b16 %v1284, %v1259
  %v1535 = vpack.c.b16 %v1285, %v1260
  %v1536 = vpack.c.b16 %v1286, %v1261
  %v1537 = vpack.c.b16 %v1287, %v1262
  %v1538 = vpack.c.b16 %v1288, %v1263
  %v1539 = vpack.c.b16 %v1289, %v1264
  %v1540 = vpack.c.b16 %v1290, %v1265
  %v1541 = vpack.c.b16 %v1291, %v1266
  %v1542 = vpack.c.b16 %v1292, %v1267
  %v1543 = vpack.c.b16 %v1293, %v1268
  %v1544 = vpack.c.b16 %v1294, %v1269
  %v1545 = vpack.c.b16 %v1320, %v1295
  %v1546 = vpack.c.b16 %v1321, %v1296
  %v1547 = vpack.c.b16 %v1322, %v1297
  %v1548 = vpack.c.b16 %v1323, %v1298
  %v1549 = vpack.c.b16 %v1324, %v1299
  %v1550 = vpack.c.b16 %v1325, %v1300
  %v1551 = vpack.c.b16 %v1326, %v1301
  %v1552 = vpack.c.b16 %v1327, %v1302
  %v1553 = vpack.c.b16 %v1328, %v1303
  %v1554 = vpack.c.b16 %v1329, %v1304
  %v1555 = vpack.c.b16 %v1330, %v1305
  %v1556 = vpack.c.b16 %v1331, %v1306
  %v1557 = vpack.c.b16 %v1332, %v1307
  %v1558 = vpack.c.b16 %v1333, %v1308
  %v1559 = vpack.c.b16 %v1334, %v1309
  %v1560 = vpack.c.b16 %v1335, %v1310
  %v1561 = vpack.c.b16 %v1336, %v1311
  %v1562 = vpack.c.b16 %v1337, %v1312
  %v1563 = vpack.c.b16 %v1338, %v1313
  %v1564 = vpack.c.b16 %v1339, %v1314
  %v1565 = vpack.c.b16 %v1340, %v1315
  %v1566 = vpack.c.b16 %v1341, %v1316
  %v1567 = vpack.c.b16 %v1342, %v1317
  %v1568 = vpack.c.b16 %v1343, %v1318
  %v1569 = vpack.c.b16 %v1344, %v1319
  %v2195 = vunpack.c.l.b16 %v249
  %v2196 = vunpack.c.h.b16 %v249
  %v2197 = vunpack.c.l.b16 %v250
  %v2198 = vunpack.c.h.b16 %v250
  %v2199 = vunpack.c.l.b16 %v251
  %v2200 = vunpack.c.h.b16 %v251
  %v2201 = vunpack.c.l.b16 %v252
  %v2202 = vunpack.c.h.b16 %v252
  %v2203 = vunpack.c.l.b16 %v253
  %v2204 = vunpack.c.h.b16 %v253
  %v2205 = vunpack.c.l.b16 %v254
  %v2206 = vunpack.c.h.b16 %v254
  %v2207 = vunpack.c.l.b16 %v255
  %v2208 = vunpack.c.h.b16 %v255
  %v2209 = vunpack.c.l.b16 %v256
  %v2210 = vunpack.c.h.b16 %v256
  %v2211 = vunpack.c.l.b16 %v257
  %v2212 = vunpack.c.h.b16 %v257
  %v2213 = vunpack.c.l.b16 %v258
  %v2214 = vunpack.c.h.b16 %v258
  %v2215 = vunpack.c.l.b16 %v259
  %v2216 = vunpack.c.h.b16 %v259
  %v2217 = vunpack.c.l.b16 %v260
  %v2218 = vunpack.c.h.b16 %v260
  %v2219 = vunpack.c.l.b16 %v261
  %v2220 = vunpack.c.h.b16 %v261
  %v2221 = vunpack.c.l.b16 %v262
  %v2222 = vunpack.c.h.b16 %v262
  %v2223 = vunpack.c.l.b16 %v263
  %v2224 = vunpack.c.h.b16 %v263
  %v2225 = vunpack.c.l.b16 %v264
  %v2226 = vunpack.c.h.b16 %v264
  %v2227 = vunpack.c.l.b16 %v265
  %v2228 = vunpack.c.h.b16 %v265
  %v2229 = vunpack.c.l.b16 %v266
  %v2230 = vunpack.c.h.b16 %v266
  %v2231 = vunpack.c.l.b16 %v267
  %v2232 = vunpack.c.h.b16 %v267
  %v2233 = vunpack.c.l.b16 %v268
  %v2234 = vunpack.c.h.b16 %v268
  %v2235 = vunpack.c.l.b16 %v269
  %v2236 = vunpack.c.h.b16 %v269
  %v2237 = vunpack.c.l.b16 %v270
  %v2238 = vunpack.c.h.b16 %v270
  %v2239 = vunpack.c.l.b16 %v271
  %v2240 = vunpack.c.h.b16 %v271
  %v2241 = vunpack.c.l.b16 %v272
  %v2242 = vunpack.c.h.b16 %v272
  %v2243 = vunpack.c.l.b16 %v273
  %v2244 = vunpack.c.h.b16 %v273
  %v2245 = vunpack.c.l.b16 %v274
  %v2246 = vunpack.c.h.b16 %v274
  %v2247 = vunpack.c.l.b16 %v275
  %v2248 = vunpack.c.h.b16 %v275
  %v2249 = vunpack.c.l.b16 %v276
  %v2250 = vunpack.c.h.b16 %v276
  %v2251 = vunpack.c.l.b16 %v277
  %v2252 = vunpack.c.h.b16 %v277
  %v2253 = vunpack.c.l.b16 %v278
  %v2254 = vunpack.c.h.b16 %v278
  %v2255 = vunpack.c.l.b16 %v279
  %v2256 = vunpack.c.h.b16 %v279
  %v2257 = vunpack.c.l.b16 %v280
  %v2258 = vunpack.c.h.b16 %v280
  %v2259 = vunpack.c.l.b16 %v281
  %v2260 = vunpack.c.h.b16 %v281
  %v2261 = vunpack.c.l.b16 %v282
  %v2262 = vunpack.c.h.b16 %v282
  %v2263 = vunpack.c.l.b16 %v283
  %v2264 = vunpack.c.h.b16 %v283
  %v2265 = vunpack.c.l.b16 %v284
  %v2266 = vunpack.c.h.b16 %v284
  %v2267 = vunpack.c.l.b16 %v285
  %v2268 = vunpack.c.h.b16 %v285
  %v2269 = vunpack.c.l.b16 %v286
  %v2270 = vunpack.c.h.b16 %v286
  %v2271 = vunpack.c.l.b16 %v287
  %v2272 = vunpack.c.h.b16 %v287
  %v2273 = vunpack.c.l.b16 %v288
  %v2274 = vunpack.c.h.b16 %v288
  %v2275 = vunpack.c.l.b16 %v289
  %v2276 = vunpack.c.h.b16 %v289
  %v2277 = vunpack.c.l.b16 %v290
  %v2278 = vunpack.c.h.b16 %v290
  %v2279 = vunpack.c.l.b16 %v291
  %v2280 = vunpack.c.h.b16 %v291
  %v2281 = vunpack.c.l.b16 %v292
  %v2282 = vunpack.c.h.b16 %v292
  %v2283 = vunpack.c.l.b16 %v293
  %v2284 = vunpack.c.h.b16 %v293
  %v2285 = vunpack.c.l.b16 %v294
  %v2286 = vunpack.c.h.b16 %v294
  %v2287 = vunpack.c.l.b16 %v295
  %v2288 = vunpack.c.h.b16 %v295
  %v2289 = vunpack.c.l.b16 %v296
  %v2290 = vunpack.c.h.b16 %v296
  %v2291 = vunpack.c.l.b16 %v297
  %v2292 = vunpack.c.h.b16 %v297
  %v2293 = vunpack.c.l.b16 %v298
  %v2294 = vunpack.c.h.b16 %v298
  %v2295 = vunpack.c.l.b16 %v299
  %v2296 = vunpack.c.h.b16 %v299
  %v2297 = vunpack.c.l.b16 %v300
  %v2298 = vunpack.c.h.b16 %v300
  %v2299 = vunpack.c.l.b16 %v301
  %v2300 = vunpack.c.h.b16 %v301
  %v2301 = vunpack.c.l.b16 %v302
  %v2302 = vunpack.c.h.b16 %v302
  %v2303 = vunpack.c.l.b16 %v303
  %v2304 = vunpack.c.h.b16 %v303
  %v2305 = vunpack.c.l.b16 %v304
  %v2306 = vunpack.c.h.b16 %v304
  %v2307 = vunpack.c.l.b16 %v305
  %v2308 = vunpack.c.h.b16 %v305
  %v2309 = vunpack.c.l.b16 %v306
  %v2310 = vunpack.c.h.b16 %v306
  %v2311 = vunpack.c.l.b16 %v307
  %v2312 = vunpack.c.h.b16 %v307
  %v2313 = vunpack.c.l.b16 %v308
  %v2314 = vunpack.c.h.b16 %v308
  %v2315 = vunpack.c.l.b16 %v309
  %v2316 = vunpack.c.h.b16 %v309
  %v2317 = vunpack.c.l.b16 %v310
  %v2318 = vunpack.c.h.b16 %v310
  %v2319 = vunpack.c.l.b16 %v311
  %v2320 = vunpack.c.h.b16 %v311
  %v2321 = vunpack.c.l.b16 %v312
  %v2322 = vunpack.c.h.b16 %v312
  %v2323 = vunpack.c.l.b16 %v313
  %v2324 = vunpack.c.h.b16 %v313
  %v2325 = vunpack.c.l.b16 %v314
  %v2326 = vunpack.c.h.b16 %v314
  %v2327 = vunpack.c.l.b16 %v315
  %v2328 = vunpack.c.h.b16 %v315
  %v2329 = vunpack.c.l.b16 %v316
  %v2330 = vunpack.c.h.b16 %v316
  %v2331 = vunpack.c.l.b16 %v317
  %v2332 = vunpack.c.h.b16 %v317
  %v2333 = vunpack.c.l.b16 %v318
  %v2334 = vunpack.c.h.b16 %v318
  %v2335 = vunpack.c.l.b16 %v319
  %v2336 = vunpack.c.h.b16 %v319
  %v2337 = vunpack.c.l.b16 %v320
  %v2338 = vunpack.c.h.b16 %v320
  %v2339 = vunpack.c.l.b16 %v321
  %v2340 = vunpack.c.h.b16 %v321
  %v2341 = vunpack.c.l.b16 %v322
  %v2342 = vunpack.c.h.b16 %v322
  %v2343 = vunpack.c.l.b16 %v323
  %v2344 = vunpack.c.h.b16 %v323
  %v2345 = vunpack.c.l.b16 %v324
  %v2346 = vunpack.c.h.b16 %v324
  %v2347 = vunpack.c.l.b16 %v325
  %v2348 = vunpack.c.h.b16 %v325
  %v2349 = vunpack.c.l.b16 %v326
  %v2350 = vunpack.c.h.b16 %v326
  %v2351 = vunpack.c.l.b16 %v327
  %v2352 = vunpack.c.h.b16 %v327
  %v2353 = vunpack.c.l.b16 %v328
  %v2354 = vunpack.c.h.b16 %v328
  %v2355 = vunpack.c.l.b16 %v329
  %v2356 = vunpack.c.h.b16 %v329
  %v2357 = vunpack.c.l.b16 %v330
  %v2358 = vunpack.c.h.b16 %v330
  %v2359 = vunpack.c.l.b16 %v331
  %v2360 = vunpack.c.h.b16 %v331
  %v2361 = vunpack.c.l.b16 %v332
  %v2362 = vunpack.c.h.b16 %v332
  %v2363 = vunpack.c.l.b16 %v333
  %v2364 = vunpack.c.h.b16 %v333
  %v2365 = vunpack.c.l.b16 %v334
  %v2366 = vunpack.c.h.b16 %v334
  %v2367 = vunpack.c.l.b16 %v335
  %v2368 = vunpack.c.h.b16 %v335
  %v2369 = vunpack.c.l.b16 %v336
  %v2370 = vunpack.c.h.b16 %v336
  %v2371 = vunpack.c.l.b16 %v337
  %v2372 = vunpack.c.h.b16 %v337
  %v2373 = vunpack.c.l.b16 %v338
  %v2374 = vunpack.c.h.b16 %v338
  %v2375 = vunpack.c.l.b16 %v339
  %v2376 = vunpack.c.h.b16 %v339
  %v2377 = vunpack.c.l.b16 %v340
  %v2378 = vunpack.c.h.b16 %v340
  %v2379 = vunpack.c.l.b16 %v341
  %v2380 = vunpack.c.h.b16 %v341
  %v2381 = vunpack.c.l.b16 %v342
  %v2382 = vunpack.c.h.b16 %v342
  %v2383 = vunpack.c.l.b16 %v343
  %v2384 = vunpack.c.h.b16 %v343
  %v2385 = vunpack.c.l.b16 %v344
  %v2386 = vunpack.c.h.b16 %v344
  %v2387 = vunpack.c.l.b16 %v345
  %v2388 = vunpack.c.h.b16 %v345
  %v2389 = vunpack.c.l.b16 %v346
  %v2390 = vunpack.c.h.b16 %v346
  %v2391 = vunpack.c.l.b16 %v347
  %v2392 = vunpack.c.h.b16 %v347
  %v2393 = vunpack.c.l.b16 %v348
  %v2394 = vunpack.c.h.b16 %v348
  %v2395 = vunpack.c.l.b16 %v349
  %v2396 = vunpack.c.h.b16 %v349
  %v2397 = vunpack.c.l.b16 %v350
  %v2398 = vunpack.c.h.b16 %v350
  %v2399 = vunpack.c.l.b16 %v351
  %v2400 = vunpack.c.h.b16 %v351
  %v2401 = vunpack.c.l.b16 %v352
  %v2402 = vunpack.c.h.b16 %v352
  %v2403 = vunpack.c.l.b16 %v353
  %v2404 = vunpack.c.h.b16 %v353
  %v2405 = vunpack.c.l.b16 %v354
  %v2406 = vunpack.c.h.b16 %v354
  %v2407 = vunpack.c.l.b16 %v355
  %v2408 = vunpack.c.h.b16 %v355
  %v2409 = vunpack.c.l.b16 %v356
  %v2410 = vunpack.c.h.b16 %v356
  %v2411 = vunpack.c.l.b16 %v357
  %v2412 = vunpack.c.h.b16 %v357
  %v2413 = vunpack.c.l.b16 %v358
  %v2414 = vunpack.c.h.b16 %v358
  %v2415 = vunpack.c.l.b16 %v359
  %v2416 = vunpack.c.h.b16 %v359
  %v2417 = vunpack.c.l.b16 %v360
  %v2418 = vunpack.c.h.b16 %v360
  %v2419 = vunpack.c.l.b16 %v361
  %v2420 = vunpack.c.h.b16 %v361
  %v2421 = vunpack.c.l.b16 %v362
  %v2422 = vunpack.c.h.b16 %v362
  %v2423 = vunpack.c.l.b16 %v363
  %v2424 = vunpack.c.h.b16 %v363
  %v2425 = vunpack.c.l.b16 %v364
  %v2426 = vunpack.c.h.b16 %v364
  %v2427 = vunpack.c.l.b16 %v365
  %v2428 = vunpack.c.h.b16 %v365
  %v2429 = vunpack.c.l.b16 %v366
  %v2430 = vunpack.c.h.b16 %v366
  %v2431 = vunpack.c.l.b16 %v367
  %v2432 = vunpack.c.h.b16 %v367
  %v2433 = vunpack.c.l.b16 %v368
  %v2434 = vunpack.c.h.b16 %v368
  %v2435 = vunpack.c.l.b16 %v369
  %v2436 = vunpack.c.h.b16 %v369
  %v2437 = vunpack.c.l.b16 %v370
  %v2438 = vunpack.c.h.b16 %v370
  %v2439 = vunpack.c.l.b16 %v371
  %v2440 = vunpack.c.h.b16 %v371
  %v2441 = vunpack.c.l.b16 %v372
  %v2442 = vunpack.c.h.b16 %v372
  %v2443 = vunpack.c.l.b16 %v373
  %v2444 = vunpack.c.h.b16 %v373
  %v2445 = vunpack.c.l.b16 %v374
  %v2446 = vunpack.c.h.b16 %v374
  %v2447 = vunpack.c.l.b16 %v375
  %v2448 = vunpack.c.h.b16 %v375
  %v2449 = vunpack.c.l.b16 %v376
  %v2450 = vunpack.c.h.b16 %v376
  %v2451 = vunpack.c.l.b16 %v377
  %v2452 = vunpack.c.h.b16 %v377
  %v2453 = vunpack.c.l.b16 %v378
  %v2454 = vunpack.c.h.b16 %v378
  %v2455 = vunpack.c.l.b16 %v379
  %v2456 = vunpack.c.h.b16 %v379
  %v2457 = vunpack.c.l.b16 %v380
  %v2458 = vunpack.c.h.b16 %v380
  %v2459 = vunpack.c.l.b16 %v381
  %v2460 = vunpack.c.h.b16 %v381
  %v2461 = vunpack.c.l.b16 %v382
  %v2462 = vunpack.c.h.b16 %v382
  %v2463 = vunpack.c.l.b16 %v383
  %v2464 = vunpack.c.h.b16 %v383
  %v2465 = vunpack.c.l.b16 %v384
  %v2466 = vunpack.c.h.b16 %v384
  %v2467 = vunpack.c.l.b16 %v385
  %v2468 = vunpack.c.h.b16 %v385
  %v2469 = vunpack.c.l.b16 %v386
  %v2470 = vunpack.c.h.b16 %v386
  %v2471 = vunpack.c.l.b16 %v387
  %v2472 = vunpack.c.h.b16 %v387
  %v2473 = vunpack.c.l.b16 %v388
  %v2474 = vunpack.c.h.b16 %v388
  %v2475 = vunpack.c.l.b16 %v389
  %v2476 = vunpack.c.h.b16 %v389
  %v2477 = vunpack.c.l.b16 %v390
  %v2478 = vunpack.c.h.b16 %v390
  %v2479 = vunpack.c.l.b16 %v391
  %v2480 = vunpack.c.h.b16 %v391
  %v2481 = vunpack.c.l.b16 %v392
  %v2482 = vunpack.c.h.b16 %v392
  %v2483 = vunpack.c.l.b16 %v393
  %v2484 = vunpack.c.h.b16 %v393
  %v2485 = vunpack.c.l.b16 %v394
  %v2486 = vunpack.c.h.b16 %v394
  %v2487 = vunpack.c.l.b16 %v395
  %v2488 = vunpack.c.h.b16 %v395
  %v2489 = vunpack.c.l.b16 %v396
  %v2490 = vunpack.c.h.b16 %v396
  %v2491 = vunpack.c.l.b16 %v397
  %v2492 = vunpack.c.h.b16 %v397
  %v2493 = vunpack.c.l.b16 %v398
  %v2494 = vunpack.c.h.b16 %v398
  %v2495 = vunpack.c.l.b16 %v399
  %v2496 = vunpack.c.h.b16 %v399
  %v2497 = vunpack.c.l.b16 %v400
  %v2498 = vunpack.c.h.b16 %v400
  %v2499 = vunpack.c.l.b16 %v401
  %v2500 = vunpack.c.h.b16 %v401
  %v2501 = vunpack.c.l.b16 %v402
  %v2502 = vunpack.c.h.b16 %v402
  %v2503 = vunpack.c.l.b16 %v403
  %v2504 = vunpack.c.h.b16 %v403
  %v2505 = vunpack.c.l.b16 %v404
  %v2506 = vunpack.c.h.b16 %v404
  %v2507 = vunpack.c.l.b16 %v405
  %v2508 = vunpack.c.h.b16 %v405
  %v2509 = vunpack.c.l.b16 %v406
  %v2510 = vunpack.c.h.b16 %v406
  %v2511 = vunpack.c.l.b16 %v407
  %v2512 = vunpack.c.h.b16 %v407
  %v2513 = vunpack.c.l.b16 %v408
  %v2514 = vunpack.c.h.b16 %v408
  %v2515 = vunpack.c.l.b16 %v409
  %v2516 = vunpack.c.h.b16 %v409
  %v2517 = vunpack.c.l.b16 %v410
  %v2518 = vunpack.c.h.b16 %v410
  %v2519 = vunpack.c.l.b16 %v411
  %v2520 = vunpack.c.h.b16 %v411
  %v2521 = vunpack.c.l.b16 %v412
  %v2522 = vunpack.c.h.b16 %v412
  %v2523 = vunpack.c.l.b16 %v413
  %v2524 = vunpack.c.h.b16 %v413
  %v2525 = vunpack.c.l.b16 %v414
  %v2526 = vunpack.c.h.b16 %v414
  %v2527 = vunpack.c.l.b16 %v415
  %v2528 = vunpack.c.h.b16 %v415
  %v2529 = vunpack.c.l.b16 %v416
  %v2530 = vunpack.c.h.b16 %v416
  %v2531 = vunpack.c.l.b16 %v417
  %v2532 = vunpack.c.h.b16 %v417
  %v2533 = vunpack.c.l.b16 %v418
  %v2534 = vunpack.c.h.b16 %v418
  %v2535 = vunpack.c.l.b16 %v419
  %v2536 = vunpack.c.h.b16 %v419
  %v2537 = vunpack.c.l.b16 %v420
  %v2538 = vunpack.c.h.b16 %v420
  %v2539 = vunpack.c.l.b16 %v421
  %v2540 = vunpack.c.h.b16 %v421
  %v2541 = vunpack.c.l.b16 %v422
  %v2542 = vunpack.c.h.b16 %v422
  %v2543 = vunpack.c.l.b16 %v423
  %v2544 = vunpack.c.h.b16 %v423
  %v2545 = vunpack.c.l.b16 %v424
  %v2546 = vunpack.c.h.b16 %v424
  %v2547 = vunpack.c.l.b16 %v425
  %v2548 = vunpack.c.h.b16 %v425
  %v2549 = vunpack.c.l.b16 %v426
  %v2550 = vunpack.c.h.b16 %v426
  %v2551 = vunpack.c.l.b16 %v427
  %v2552 = vunpack.c.h.b16 %v427
  %v2553 = vunpack.c.l.b16 %v428
  %v2554 = vunpack.c.h.b16 %v428
  %v2555 = vunpack.c.l.b16 %v429
  %v2556 = vunpack.c.h.b16 %v429
  %v2557 = vunpack.c.l.b16 %v430
  %v2558 = vunpack.c.h.b16 %v430
  %v2559 = vunpack.c.l.b16 %v431
  %v2560 = vunpack.c.h.b16 %v431
  %v2561 = vunpack.c.l.b16 %v432
  %v2562 = vunpack.c.h.b16 %v432
  %v2563 = vunpack.c.l.b16 %v433
  %v2564 = vunpack.c.h.b16 %v433
  %v2565 = vunpack.c.l.b16 %v434
  %v2566 = vunpack.c.h.b16 %v434
  %v2567 = vunpack.c.l.b16 %v435
  %v2568 = vunpack.c.h.b16 %v435
  %v2569 = vunpack.c.l.b16 %v436
  %v2570 = vunpack.c.h.b16 %v436
  %v2571 = vunpack.c.l.b16 %v437
  %v2572 = vunpack.c.h.b16 %v437
  %v2573 = vunpack.c.l.b16 %v438
  %v2574 = vunpack.c.h.b16 %v438
  %v2575 = vunpack.c.l.b16 %v439
  %v2576 = vunpack.c.h.b16 %v439
  %v2577 = vunpack.c.l.b16 %v440
  %v2578 = vunpack.c.h.b16 %v440
  %v2579 = vunpack.c.l.b16 %v441
  %v2580 = vunpack.c.h.b16 %v441
  %v2581 = vunpack.c.l.b16 %v442
  %v2582 = vunpack.c.h.b16 %v442
  %v2583 = vunpack.c.l.b16 %v443
  %v2584 = vunpack.c.h.b16 %v443
  %v2585 = vunpack.c.l.b16 %v444
  %v2586 = vunpack.c.h.b16 %v444
  %v2587 = vunpack.c.l.b16 %v445
  %v2588 = vunpack.c.h.b16 %v445
  %v2589 = vunpack.c.l.b16 %v446
  %v2590 = vunpack.c.h.b16 %v446
  %v2591 = vunpack.c.l.b16 %v447
  %v2592 = vunpack.c.h.b16 %v447
  %v2593 = vunpack.c.l.b16 %v448
  %v2594 = vunpack.c.h.b16 %v448
  %v2595 = vunpack.c.l.b16 %v449
  %v2596 = vunpack.c.h.b16 %v449
  %v2597 = vunpack.c.l.b16 %v450
  %v2598 = vunpack.c.h.b16 %v450
  %v2599 = vunpack.c.l.b16 %v451
  %v2600 = vunpack.c.h.b16 %v451
  %v2601 = vunpack.c.l.b16 %v452
  %v2602 = vunpack.c.h.b16 %v452
  %v2603 = vunpack.c.l.b16 %v453
  %v2604 = vunpack.c.h.b16 %v453
  %v2605 = vunpack.c.l.b16 %v454
  %v2606 = vunpack.c.h.b16 %v454
  %v2607 = vunpack.c.l.b16 %v455
  %v2608 = vunpack.c.h.b16 %v455
  %v2609 = vunpack.c.l.b16 %v456
  %v2610 = vunpack.c.h.b16 %v456
  %v2611 = vunpack.c.l.b16 %v457
  %v2612 = vunpack.c.h.b16 %v457
  %v2613 = vunpack.c.l.b16 %v458
  %v2614 = vunpack.c.h.b16 %v458
  %v2615 = vunpack.c.l.b16 %v459
  %v2616 = vunpack.c.h.b16 %v459
  %v2617 = vunpack.c.l.b16 %v460
  %v2618 = vunpack.c.h.b16 %v460
  %v2619 = vunpack.c.l.b16 %v461
  %v2620 = vunpack.c.h.b16 %v461
  %v2621 = vunpack.c.l.b16 %v462
  %v2622 = vunpack.c.h.b16 %v462
  %v2623 = vunpack.c.l.b16 %v463
  %v2624 = vunpack.c.h.b16 %v463
  %v2625 = vunpack.c.l.b16 %v464
  %v2626 = vunpack.c.h.b16 %v464
  %v2627 = vunpack.c.l.b16 %v465
  %v2628 = vunpack.c.h.b16 %v465
  %v2629 = vunpack.c.l.b16 %v466
  %v2630 = vunpack.c.h.b16 %v466
  %v2631 = vunpack.c.l.b16 %v467
  %v2632 = vunpack.c.h.b16 %v467
  %v2633 = vunpack.c.l.b16 %v468
  %v2634 = vunpack.c.h.b16 %v468
  %v2635 = vunpack.c.l.b16 %v469
  %v2636 = vunpack.c.h.b16 %v469
  %v2637 = vunpack.c.l.b16 %v470
  %v2638 = vunpack.c.h.b16 %v470
  %v2639 = vunpack.c.l.b16 %v471
  %v2640 = vunpack.c.h.b16 %v471
  %v2641 = vunpack.c.l.b16 %v472
  %v2642 = vunpack.c.h.b16 %v472
  %v2643 = vunpack.c.l.b16 %v473
  %v2644 = vunpack.c.h.b16 %v473
  %v2645 = vunpack.c.l.b16 %v474
  %v2646 = vunpack.c.h.b16 %v474
  %v2647 = vunpack.c.l.b16 %v475
  %v2648 = vunpack.c.h.b16 %v475
  %v2649 = vunpack.c.l.b16 %v476
  %v2650 = vunpack.c.h.b16 %v476
  %v2651 = vunpack.c.l.b16 %v477
  %v2652 = vunpack.c.h.b16 %v477
  %v2653 = vunpack.c.l.b16 %v478
  %v2654 = vunpack.c.h.b16 %v478
  %v2655 = vunpack.c.l.b16 %v479
  %v2656 = vunpack.c.h.b16 %v479
  %v2657 = vunpack.c.l.b16 %v480
  %v2658 = vunpack.c.h.b16 %v480
  %v2659 = vunpack.c.l.b16 %v481
  %v2660 = vunpack.c.h.b16 %v481
  %v2661 = vunpack.c.l.b16 %v482
  %v2662 = vunpack.c.h.b16 %v482
  %v2663 = vunpack.c.l.b16 %v483
  %v2664 = vunpack.c.h.b16 %v483
  %v2665 = vunpack.c.l.b16 %v484
  %v2666 = vunpack.c.h.b16 %v484
  %v2667 = vunpack.c.l.b16 %v485
  %v2668 = vunpack.c.h.b16 %v485
  %v2669 = vunpack.c.l.b16 %v486
  %v2670 = vunpack.c.h.b16 %v486
  %v2671 = vunpack.c.l.b16 %v487
  %v2672 = vunpack.c.h.b16 %v487
  %v2673 = vunpack.c.l.b16 %v488
  %v2674 = vunpack.c.h.b16 %v488
  %v2675 = vunpack.c.l.b16 %v489
  %v2676 = vunpack.c.h.b16 %v489
  %v2677 = vunpack.c.l.b16 %v490
  %v2678 = vunpack.c.h.b16 %v490
  %v2679 = vunpack.c.l.b16 %v491
  %v2680 = vunpack.c.h.b16 %v491
  %v2681 = vunpack.c.l.b16 %v492
  %v2682 = vunpack.c.h.b16 %v492
  %v2683 = vunpack.c.l.b16 %v493
  %v2684 = vunpack.c.h.b16 %v493
  %v2685 = vunpack.c.l.b16 %v494
  %v2686 = vunpack.c.h.b16 %v494
  %v2687 = vunpack.c.l.b16 %v495
  %v2688 = vunpack.c.h.b16 %v495
  %v2689 = vunpack.c.l.b16 %v496
  %v2690 = vunpack.c.h.b16 %v496
  %v2691 = vunpack.c.l.b16 %v497
  %v2692 = vunpack.c.h.b16 %v497
  %v2693 = vunpack.c.l.b16 %v498
  %v2694 = vunpack.c.h.b16 %v498
  %v2695 = vunpack.c.l.b16 %v499
  %v2696 = vunpack.c.h.b16 %v499
  %v2697 = vunpack.c.l.b16 %v500
  %v2698 = vunpack.c.h.b16 %v500
  %v2699 = vunpack.c.l.b16 %v501
  %v2700 = vunpack.c.h.b16 %v501
  %v2701 = vunpack.c.l.b16 %v502
  %v2702 = vunpack.c.h.b16 %v502
  %v2703 = vunpack.c.l.b16 %v503
  %v2704 = vunpack.c.h.b16 %v503
  %v2705 = vunpack.c.l.b16 %v504
  %v2706 = vunpack.c.h.b16 %v504
  %v2707 = vunpack.c.l.b16 %v505
  %v2708 = vunpack.c.h.b16 %v505
  %v2709 = vunpack.c.l.b16 %v506
  %v2710 = vunpack.c.h.b16 %v506
  %v2711 = vunpack.c.l.b16 %v507
  %v2712 = vunpack.c.h.b16 %v507
  %v2713 = vunpack.c.l.b16 %v508
  %v2714 = vunpack.c.h.b16 %v508
  %v2715 = vunpack.c.l.b16 %v509
  %v2716 = vunpack.c.h.b16 %v509
  %v2717 = vunpack.c.l.b16 %v510
  %v2718 = vunpack.c.h.b16 %v510
  %v2719 = vunpack.c.l.b16 %v511
  %v2720 = vunpack.c.h.b16 %v511
  %v2721 = vunpack.c.l.b16 %v512
  %v2722 = vunpack.c.h.b16 %v512
  %v2723 = vunpack.c.l.b16 %v513
  %v2724 = vunpack.c.h.b16 %v513
  %v2725 = vunpack.c.l.b16 %v514
  %v2726 = vunpack.c.h.b16 %v514
  %v2727 = vunpack.c.l.b16 %v515
  %v2728 = vunpack.c.h.b16 %v515
  %v2729 = vunpack.c.l.b16 %v516
  %v2730 = vunpack.c.h.b16 %v516
  %v2731 = vunpack.c.l.b16 %v517
  %v2732 = vunpack.c.h.b16 %v517
  %v2733 = vunpack.c.l.b16 %v518
  %v2734 = vunpack.c.h.b16 %v518
  %v2735 = vunpack.c.l.b16 %v519
  %v2736 = vunpack.c.h.b16 %v519
  %v2737 = vunpack.c.l.b16 %v520
  %v2738 = vunpack.c.h.b16 %v520
  %v2739 = vunpack.c.l.b16 %v521
  %v2740 = vunpack.c.h.b16 %v521
  %v2741 = vunpack.c.l.b16 %v522
  %v2742 = vunpack.c.h.b16 %v522
  %v2743 = vunpack.c.l.b16 %v523
  %v2744 = vunpack.c.h.b16 %v523
  %v2745 = vunpack.c.l.b16 %v524
  %v2746 = vunpack.c.h.b16 %v524
  %v2747 = vunpack.c.l.b16 %v525
  %v2748 = vunpack.c.h.b16 %v525
  %v2749 = vunpack.c.l.b16 %v526
  %v2750 = vunpack.c.h.b16 %v526
  %v2751 = vunpack.c.l.b16 %v527
  %v2752 = vunpack.c.h.b16 %v527
  %v2753 = vunpack.c.l.b16 %v528
  %v2754 = vunpack.c.h.b16 %v528
  %v2755 = vunpack.c.l.b16 %v529
  %v2756 = vunpack.c.h.b16 %v529
  %v2757 = vunpack.c.l.b16 %v530
  %v2758 = vunpack.c.h.b16 %v530
  %v2759 = vunpack.c.l.b16 %v531
  %v2760 = vunpack.c.h.b16 %v531
  %v2761 = vunpack.c.l.b16 %v532
  %v2762 = vunpack.c.h.b16 %v532
  %v2763 = vunpack.c.l.b16 %v533
  %v2764 = vunpack.c.h.b16 %v533
  %v2765 = vunpack.c.l.b16 %v534
  %v2766 = vunpack.c.h.b16 %v534
  %v2767 = vunpack.c.l.b16 %v535
  %v2768 = vunpack.c.h.b16 %v535
  %v2769 = vunpack.c.l.b16 %v536
  %v2770 = vunpack.c.h.b16 %v536
  %v2771 = vunpack.c.l.b16 %v537
  %v2772 = vunpack.c.h.b16 %v537
  %v2773 = vunpack.c.l.b16 %v538
  %v2774 = vunpack.c.h.b16 %v538
  %v2775 = vunpack.c.l.b16 %v539
  %v2776 = vunpack.c.h.b16 %v539
  %v2777 = vunpack.c.l.b16 %v540
  %v2778 = vunpack.c.h.b16 %v540
  %v2779 = vunpack.c.l.b16 %v541
  %v2780 = vunpack.c.h.b16 %v541
  %v2781 = vunpack.c.l.b16 %v542
  %v2782 = vunpack.c.h.b16 %v542
  %v2783 = vunpack.c.l.b16 %v543
  %v2784 = vunpack.c.h.b16 %v543
  %v2785 = vunpack.c.l.b16 %v544
  %v2786 = vunpack.c.h.b16 %v544
  %v2787 = vunpack.c.l.b16 %v545
  %v2788 = vunpack.c.h.b16 %v545
  %v2789 = vunpack.c.l.b16 %v546
  %v2790 = vunpack.c.h.b16 %v546
  %v2791 = vunpack.c.l.b16 %v547
  %v2792 = vunpack.c.h.b16 %v547
  %v2793 = vunpack.c.l.b16 %v548
  %v2794 = vunpack.c.h.b16 %v548
  %v2795 = vunpack.c.l.b16 %v549
  %v2796 = vunpack.c.h.b16 %v549
  %v2797 = vunpack.c.l.b16 %v550
  %v2798 = vunpack.c.h.b16 %v550
  %v2799 = vunpack.c.l.b16 %v551
  %v2800 = vunpack.c.h.b16 %v551
  %v2801 = vunpack.c.l.b16 %v552
  %v2802 = vunpack.c.h.b16 %v552
  %v2803 = vunpack.c.l.b16 %v553
  %v2804 = vunpack.c.h.b16 %v553
  %v2805 = vunpack.c.l.b16 %v554
  %v2806 = vunpack.c.h.b16 %v554
  %v2807 = vunpack.c.l.b16 %v555
  %v2808 = vunpack.c.h.b16 %v555
  %v2809 = vunpack.c.l.b16 %v556
  %v2810 = vunpack.c.h.b16 %v556
  %v2811 = vunpack.c.l.b16 %v557
  %v2812 = vunpack.c.h.b16 %v557
  %v2813 = vunpack.c.l.b16 %v558
  %v2814 = vunpack.c.h.b16 %v558
  %v2815 = vunpack.c.l.b16 %v559
  %v2816 = vunpack.c.h.b16 %v559
  %v2817 = vunpack.c.l.b16 %v560
  %v2818 = vunpack.c.h.b16 %v560
  %v2819 = vunpack.c.l.b16 %v561
  %v2820 = vunpack.c.h.b16 %v561
  %v2821 = vunpack.c.l.b16 %v562
  %v2822 = vunpack.c.h.b16 %v562
  %v2823 = vunpack.c.l.b16 %v563
  %v2824 = vunpack.c.h.b16 %v563
  %v2825 = vunpack.c.l.b16 %v564
  %v2826 = vunpack.c.h.b16 %v564
  %v2827 = vunpack.c.l.b16 %v565
  %v2828 = vunpack.c.h.b16 %v565
  %v2829 = vunpack.c.l.b16 %v566
  %v2830 = vunpack.c.h.b16 %v566
  %v2831 = vunpack.c.l.b16 %v567
  %v2832 = vunpack.c.h.b16 %v567
  %v2833 = vunpack.c.l.b16 %v568
  %v2834 = vunpack.c.h.b16 %v568
  %v2835 = vunpack.c.l.b16 %v569
  %v2836 = vunpack.c.h.b16 %v569
  %v2837 = vunpack.c.l.b16 %v570
  %v2838 = vunpack.c.h.b16 %v570
  %v2839 = vunpack.c.l.b16 %v571
  %v2840 = vunpack.c.h.b16 %v571
  %v2841 = vunpack.c.l.b16 %v572
  %v2842 = vunpack.c.h.b16 %v572
  %v2843 = vunpack.c.l.b16 %v573
  %v2844 = vunpack.c.h.b16 %v573
  %v2845 = vunpack.c.l.b16 %v574
  %v2846 = vunpack.c.h.b16 %v574
  %v2847 = vunpack.c.l.b16 %v575
  %v2848 = vunpack.c.h.b16 %v575
  %v2849 = vunpack.c.l.b16 %v576
  %v2850 = vunpack.c.h.b16 %v576
  %v2851 = vunpack.c.l.b16 %v577
  %v2852 = vunpack.c.h.b16 %v577
  %v2853 = vunpack.c.l.b16 %v578
  %v2854 = vunpack.c.h.b16 %v578
  %v2855 = vunpack.c.l.b16 %v579
  %v2856 = vunpack.c.h.b16 %v579
  %v2857 = vunpack.c.l.b16 %v580
  %v2858 = vunpack.c.h.b16 %v580
  %v2859 = vunpack.c.l.b16 %v581
  %v2860 = vunpack.c.h.b16 %v581
  %v2861 = vunpack.c.l.b16 %v582
  %v2862 = vunpack.c.h.b16 %v582
  %v2863 = vunpack.c.l.b16 %v583
  %v2864 = vunpack.c.h.b16 %v583
  %v2865 = vunpack.c.l.b16 %v584
  %v2866 = vunpack.c.h.b16 %v584
  %v2867 = vunpack.c.l.b16 %v585
  %v2868 = vunpack.c.h.b16 %v585
  %v2869 = vunpack.c.l.b16 %v586
  %v2870 = vunpack.c.h.b16 %v586
  %v2871 = vunpack.c.l.b16 %v587
  %v2872 = vunpack.c.h.b16 %v587
  %v2873 = vunpack.c.l.b16 %v588
  %v2874 = vunpack.c.h.b16 %v588
  %v2875 = vunpack.c.l.b16 %v589
  %v2876 = vunpack.c.h.b16 %v589
  %v2877 = vunpack.c.l.b16 %v590
  %v2878 = vunpack.c.h.b16 %v590
  %v2879 = vunpack.c.l.b16 %v591
  %v2880 = vunpack.c.h.b16 %v591
  %v2881 = vunpack.c.l.b16 %v592
  %v2882 = vunpack.c.h.b16 %v592
  %v2883 = vunpack.c.l.b16 %v593
  %v2884 = vunpack.c.h.b16 %v593
  %v2885 = vunpack.c.l.b16 %v594
  %v2886 = vunpack.c.h.b16 %v594
  %v2887 = vunpack.c.l.b16 %v595
  %v2888 = vunpack.c.h.b16 %v595
  %v2889 = vunpack.c.l.b16 %v596
  %v2890 = vunpack.c.h.b16 %v596
  %v2891 = vunpack.c.l.b16 %v597
  %v2892 = vunpack.c.h.b16 %v597
  %v2893 = vunpack.c.l.b16 %v598
  %v2894 = vunpack.c.h.b16 %v598
  %v2895 = vunpack.c.l.b16 %v599
  %v2896 = vunpack.c.h.b16 %v599
  %v2897 = vunpack.c.l.b16 %v600
  %v2898 = vunpack.c.h.b16 %v600
  %v2899 = vunpack.c.l.b16 %v601
  %v2900 = vunpack.c.h.b16 %v601
  %v2901 = vunpack.c.l.b16 %v602
  %v2902 = vunpack.c.h.b16 %v602
  %v2903 = vunpack.c.l.b16 %v603
  %v2904 = vunpack.c.h.b16 %v603
  %v2905 = vunpack.c.l.b16 %v604
  %v2906 = vunpack.c.h.b16 %v604
  %v2907 = vunpack.c.l.b16 %v605
  %v2908 = vunpack.c.h.b16 %v605
  %v2909 = vunpack.c.l.b16 %v606
  %v2910 = vunpack.c.h.b16 %v606
  %v2911 = vunpack.c.l.b16 %v607
  %v2912 = vunpack.c.h.b16 %v607
  %v2913 = vunpack.c.l.b16 %v608
  %v2914 = vunpack.c.h.b16 %v608
  %v2915 = vunpack.c.l.b16 %v609
  %v2916 = vunpack.c.h.b16 %v609
  %v2917 = vunpack.c.l.b16 %v610
  %v2918 = vunpack.c.h.b16 %v610
  %v2919 = vunpack.c.l.b16 %v611
  %v2920 = vunpack.c.h.b16 %v611
  %v2921 = vunpack.c.l.b16 %v612
  %v2922 = vunpack.c.h.b16 %v612
  %v2923 = vunpack.c.l.b16 %v613
  %v2924 = vunpack.c.h.b16 %v613
  %v2925 = vunpack.c.l.b16 %v614
  %v2926 = vunpack.c.h.b16 %v614
  %v2927 = vunpack.c.l.b16 %v615
  %v2928 = vunpack.c.h.b16 %v615
  %v2929 = vunpack.c.l.b16 %v616
  %v2930 = vunpack.c.h.b16 %v616
  %v2931 = vunpack.c.l.b16 %v617
  %v2932 = vunpack.c.h.b16 %v617
  %v2933 = vunpack.c.l.b16 %v618
  %v2934 = vunpack.c.h.b16 %v618
  %v2935 = vunpack.c.l.b16 %v619
  %v2936 = vunpack.c.h.b16 %v619
  %v2937 = vunpack.c.l.b16 %v620
  %v2938 = vunpack.c.h.b16 %v620
  %v2939 = vunpack.c.l.b16 %v621
  %v2940 = vunpack.c.h.b16 %v621
  %v2941 = vunpack.c.l.b16 %v622
  %v2942 = vunpack.c.h.b16 %v622
  %v2943 = vunpack.c.l.b16 %v623
  %v2944 = vunpack.c.h.b16 %v623
  %v2945 = vunpack.c.l.b16 %v624
  %v2946 = vunpack.c.h.b16 %v624
  %v2947 = vunpack.c.l.b16 %v625
  %v2948 = vunpack.c.h.b16 %v625
  %v2949 = vunpack.c.l.b16 %v626
  %v2950 = vunpack.c.h.b16 %v626
  %v2951 = vunpack.c.l.b16 %v627
  %v2952 = vunpack.c.h.b16 %v627
  %v2953 = vunpack.c.l.b16 %v628
  %v2954 = vunpack.c.h.b16 %v628
  %v2955 = vunpack.c.l.b16 %v629
  %v2956 = vunpack.c.h.b16 %v629
  %v2957 = vunpack.c.l.b16 %v630
  %v2958 = vunpack.c.h.b16 %v630
  %v2959 = vunpack.c.l.b16 %v631
  %v2960 = vunpack.c.h.b16 %v631
  %v2961 = vunpack.c.l.b16 %v632
  %v2962 = vunpack.c.h.b16 %v632
  %v2963 = vunpack.c.l.b16 %v633
  %v2964 = vunpack.c.h.b16 %v633
  %v2965 = vunpack.c.l.b16 %v634
  %v2966 = vunpack.c.h.b16 %v634
  %v2967 = vunpack.c.l.b16 %v635
  %v2968 = vunpack.c.h.b16 %v635
  %v2969 = vunpack.c.l.b16 %v636
  %v2970 = vunpack.c.h.b16 %v636
  %v2971 = vunpack.c.l.b16 %v637
  %v2972 = vunpack.c.h.b16 %v637
  %v2973 = vunpack.c.l.b16 %v638
  %v2974 = vunpack.c.h.b16 %v638
  %v2975 = vunpack.c.l.b16 %v639
  %v2976 = vunpack.c.h.b16 %v639
  %v2977 = vunpack.c.l.b16 %v640
  %v2978 = vunpack.c.h.b16 %v640
  %v2979 = vunpack.c.l.b16 %v641
  %v2980 = vunpack.c.h.b16 %v641
  %v2981 = vunpack.c.l.b16 %v642
  %v2982 = vunpack.c.h.b16 %v642
  %v2983 = vunpack.c.l.b16 %v643
  %v2984 = vunpack.c.h.b16 %v643
  %v2985 = vunpack.c.l.b16 %v644
  %v2986 = vunpack.c.h.b16 %v644
  %v2987 = vunpack.c.l.b16 %v645
  %v2988 = vunpack.c.h.b16 %v645
  %v2989 = vunpack.c.l.b16 %v646
  %v2990 = vunpack.c.h.b16 %v646
  %v2991 = vunpack.c.l.b16 %v647
  %v2992 = vunpack.c.h.b16 %v647
  %v2993 = vunpack.c.l.b16 %v648
  %v2994 = vunpack.c.h.b16 %v648
  %v2995 = vpack.c.b16 %v2197, %v2195
  %v2996 = vpack.c.b16 %v2198, %v2196
  %v2997 = vpack.c.b16 %v2201, %v2199
  %v2998 = vpack.c.b16 %v2202, %v2200
  %v2999 = vpack.c.b16 %v2205, %v2203
  %v3000 = vpack.c.b16 %v2206, %v2204
  %v3001 = vpack.c.b16 %v2209, %v2207
  %v3002 = vpack.c.b16 %v2210, %v2208
  %v3003 = vpack.c.b16 %v2213, %v2211
  %v3004 = vpack.c.b16 %v2214, %v2212
  %v3005 = vpack.c.b16 %v2217, %v2215
  %v3006 = vpack.c.b16 %v2218, %v2216
  %v3007 = vpack.c.b16 %v2221, %v2219
  %v3008 = vpack.c.b16 %v2222, %v2220
  %v3009 = vpack.c.b16 %v2225, %v2223
  %v3010 = vpack.c.b16 %v2226, %v2224
  %v3011 = vpack.c.b16 %v2229, %v2227
  %v3012 = vpack.c.b16 %v2230, %v2228
  %v3013 = vpack.c.b16 %v2233, %v2231
  %v3014 = vpack.c.b16 %v2234, %v2232
  %v3015 = vpack.c.b16 %v2237, %v2235
  %v3016 = vpack.c.b16 %v2238, %v2236
  %v3017 = vpack.c.b16 %v2241, %v2239
  %v3018 = vpack.c.b16 %v2242, %v2240
  %v3019 = vpack.c.b16 %v2245, %v2243
  %v3020 = vpack.c.b16 %v2246, %v2244
  %v3021 = vpack.c.b16 %v2249, %v2247
  %v3022 = vpack.c.b16 %v2250, %v2248
  %v3023 = vpack.c.b16 %v2253, %v2251
  %v3024 = vpack.c.b16 %v2254, %v2252
  %v3025 = vpack.c.b16 %v2257, %v2255
  %v3026 = vpack.c.b16 %v2258, %v2256
  %v3027 = vpack.c.b16 %v2261, %v2259
  %v3028 = vpack.c.b16 %v2262, %v2260
  %v3029 = vpack.c.b16 %v2265, %v2263
  %v3030 = vpack.c.b16 %v2266, %v2264
  %v3031 = vpack.c.b16 %v2269, %v2267
  %v3032 = vpack.c.b16 %v2270, %v2268
  %v3033 = vpack.c.b16 %v2273, %v2271
  %v3034 = vpack.c.b16 %v2274, %v2272
  %v3035 = vpack.c.b16 %v2277, %v2275
  %v3036 = vpack.c.b16 %v2278, %v2276
  %v3037 = vpack.c.b16 %v2281, %v2279
  %v3038 = vpack.c.b16 %v2282, %v2280
  %v3039 = vpack.c.b16 %v2285, %v2283
  %v3040 = vpack.c.b16 %v2286, %v2284
  %v3041 = vpack.c.b16 %v2289, %v2287
  %v3042 = vpack.c.b16 %v2290, %v2288
  %v3043 = vpack.c.b16 %v2293, %v2291
  %v3044 = vpack.c.b16 %v2294, %v2292
  %v3045 = vpack.c.b16 %v2297, %v2295
  %v3046 = vpack.c.b16 %v2298, %v2296
  %v3047 = vpack.c.b16 %v2301, %v2299
  %v3048 = vpack.c.b16 %v2302, %v2300
  %v3049 = vpack.c.b16 %v2305, %v2303
  %v3050 = vpack.c.b16 %v2306, %v2304
  %v3051 = vpack.c.b16 %v2309, %v2307
  %v3052 = vpack.c.b16 %v2310, %v2308
  %v3053 = vpack.c.b16 %v2313, %v2311
  %v3054 = vpack.c.b16 %v2314, %v2312
  %v3055 = vpack.c.b16 %v2317, %v2315
  %v3056 = vpack.c.b16 %v2318, %v2316
  %v3057 = vpack.c.b16 %v2321, %v2319
  %v3058 = vpack.c.b16 %v2322, %v2320
  %v3059 = vpack.c.b16 %v2325, %v2323
  %v3060 = vpack.c.b16 %v2326, %v2324
  %v3061 = vpack.c.b16 %v2329, %v2327
  %v3062 = vpack.c.b16 %v2330, %v2328
  %v3063 = vpack.c.b16 %v2333, %v2331
  %v3064 = vpack.c.b16 %v2334, %v2332
  %v3065 = vpack.c.b16 %v2337, %v2335
  %v3066 = vpack.c.b16 %v2338, %v2336
  %v3067 = vpack.c.b16 %v2341, %v2339
  %v3068 = vpack.c.b16 %v2342, %v2340
  %v3069 = vpack.c.b16 %v2345, %v2343
  %v3070 = vpack.c.b16 %v2346, %v2344
  %v3071 = vpack.c.b16 %v2349, %v2347
  %v3072 = vpack.c.b16 %v2350, %v2348
  %v3073 = vpack.c.b16 %v2353, %v2351
  %v3074 = vpack.c.b16 %v2354, %v2352
  %v3075 = vpack.c.b16 %v2357, %v2355
  %v3076 = vpack.c.b16 %v2358, %v2356
  %v3077 = vpack.c.b16 %v2361, %v2359
  %v3078 = vpack.c.b16 %v2362, %v2360
  %v3079 = vpack.c.b16 %v2365, %v2363
  %v3080 = vpack.c.b16 %v2366, %v2364
  %v3081 = vpack.c.b16 %v2369, %v2367
  %v3082 = vpack.c.b16 %v2370, %v2368
  %v3083 = vpack.c.b16 %v2373, %v2371
  %v3084 = vpack.c.b16 %v2374, %v2372
  %v3085 = vpack.c.b16 %v2377, %v2375
  %v3086 = vpack.c.b16 %v2378, %v2376
  %v3087 = vpack.c.b16 %v2381, %v2379
  %v3088 = vpack.c.b16 %v2382, %v2380
  %v3089 = vpack.c.b16 %v2385, %v2383
  %v3090 = vpack.c.b16 %v2386, %v2384
  %v3091 = vpack.c.b16 %v2389, %v2387
  %v3092 = vpack.c.b16 %v2390, %v2388
  %v3093 = vpack.c.b16 %v2393, %v2391
  %v3094 = vpack.c.b16 %v2394, %v2392
  %v3095 = vpack.c.b16 %v2397, %v2395
  %v3096 = vpack.c.b16 %v2398, %v2396
  %v3097 = vpack.c.b16 %v2401, %v2399
  %v3098 = vpack.c.b16 %v2402, %v2400
  %v3099 = vpack.c.b16 %v2405, %v2403
  %v3100 = vpack.c.b16 %v2406, %v2404
  %v3101 = vpack.c.b16 %v2409, %v2407
  %v3102 = vpack.c.b16 %v2410, %v2408
  %v3103 = vpack.c.b16 %v2413, %v2411
  %v3104 = vpack.c.b16 %v2414, %v2412
  %v3105 = vpack.c.b16 %v2417, %v2415
  %v3106 = vpack.c.b16 %v2418, %v2416
  %v3107 = vpack.c.b16 %v2421, %v2419
  %v3108 = vpack.c.b16 %v2422, %v2420
  %v3109 = vpack.c.b16 %v2425, %v2423
  %v3110 = vpack.c.b16 %v2426, %v2424
  %v3111 = vpack.c.b16 %v2429, %v2427
  %v3112 = vpack.c.b16 %v2430, %v2428
  %v3113 = vpack.c.b16 %v2433, %v2431
  %v3114 = vpack.c.b16 %v2434, %v2432
  %v3115 = vpack.c.b16 %v2437, %v2435
  %v3116 = vpack.c.b16 %v2438, %v2436
  %v3117 = vpack.c.b16 %v2441, %v2439
  %v3118 = vpack.c.b16 %v2442, %v2440
  %v3119 = vpack.c.b16 %v2445, %v2443
  %v3120 = vpack.c.b16 %v2446, %v2444
  %v3121 = vpack.c.b16 %v2449, %v2447
  %v3122 = vpack.c.b16 %v2450, %v2448
  %v3123 = vpack.c.b16 %v2453, %v2451
  %v3124 = vpack.c.b16 %v2454, %v2452
  %v3125 = vpack.c.b16 %v2457, %v2455
  %v3126 = vpack.c.b16 %v2458, %v2456
  %v3127 = vpack.c.b16 %v2461, %v2459
  %v3128 = vpack.c.b16 %v2462, %v2460
  %v3129 = vpack.c.b16 %v2465, %v2463
  %v3130 = vpack.c.b16 %v2466, %v2464
  %v3131 = vpack.c.b16 %v2469, %v2467
  %v3132 = vpack.c.b16 %v2470, %v2468
  %v3133 = vpack.c.b16 %v2473, %v2471
  %v3134 = vpack.c.b16 %v2474, %v2472
  %v3135 = vpack.c.b16 %v2477, %v2475
  %v3136 = vpack.c.b16 %v2478, %v2476
  %v3137 = vpack.c.b16 %v2481, %v2479
  %v3138 = vpack.c.b16 %v2482, %v2480
  %v3139 = vpack.c.b16 %v2485, %v2483
  %v3140 = vpack.c.b16 %v2486, %v2484
  %v3141 = vpack.c.b16 %v2489, %v2487
  %v3142 = vpack.c.b16 %v2490, %v2488
  %v3143 = vpack.c.b16 %v2493, %v2491
  %v3144 = vpack.c.b16 %v2494, %v2492
  %v3145 = vpack.c.b16 %v2497, %v2495
  %v3146 = vpack.c.b16 %v2498, %v2496
  %v3147 = vpack.c.b16 %v2501, %v2499
  %v3148 = vpack.c.b16 %v2502, %v2500
  %v3149 = vpack.c.b16 %v2505, %v2503
  %v3150 = vpack.c.b16 %v2506, %v2504
  %v3151 = vpack.c.b16 %v2509, %v2507
  %v3152 = vpack.c.b16 %v2510, %v2508
  %v3153 = vpack.c.b16 %v2513, %v2511
  %v3154 = vpack.c.b16 %v2514, %v2512
  %v3155 = vpack.c.b16 %v2517, %v2515
  %v3156 = vpack.c.b16 %v2518, %v2516
  %v3157 = vpack.c.b16 %v2521, %v2519
  %v3158 = vpack.c.b16 %v2522, %v2520
  %v3159 = vpack.c.b16 %v2525, %v2523
  %v3160 = vpack.c.b16 %v2526, %v2524
  %v3161 = vpack.c.b16 %v2529, %v2527
  %v3162 = vpack.c.b16 %v2530, %v2528
  %v3163 = vpack.c.b16 %v2533, %v2531
  %v3164 = vpack.c.b16 %v2534, %v2532
  %v3165 = vpack.c.b16 %v2537, %v2535
  %v3166 = vpack.c.b16 %v2538, %v2536
  %v3167 = vpack.c.b16 %v2541, %v2539
  %v3168 = vpack.c.b16 %v2542, %v2540
  %v3169 = vpack.c.b16 %v2545, %v2543
  %v3170 = vpack.c.b16 %v2546, %v2544
  %v3171 = vpack.c.b16 %v2549, %v2547
  %v3172 = vpack.c.b16 %v2550, %v2548
  %v3173 = vpack.c.b16 %v2553, %v2551
  %v3174 = vpack.c.b16 %v2554, %v2552
  %v3175 = vpack.c.b16 %v2557, %v2555
  %v3176 = vpack.c.b16 %v2558, %v2556
  %v3177 = vpack.c.b16 %v2561, %v2559
  %v3178 = vpack.c.b16 %v2562, %v2560
  %v3179 = vpack.c.b16 %v2565, %v2563
  %v3180 = vpack.c.b16 %v2566, %v2564
  %v3181 = vpack.c.b16 %v2569, %v2567
  %v3182 = vpack.c.b16 %v2570, %v2568
  %v3183 = vpack.c.b16 %v2573, %v2571
  %v3184 = vpack.c.b16 %v2574, %v2572
  %v3185 = vpack.c.b16 %v2577, %v2575
  %v3186 = vpack.c.b16 %v2578, %v2576
  %v3187 = vpack.c.b16 %v2581, %v2579
  %v3188 = vpack.c.b16 %v2582, %v2580
  %v3189 = vpack.c.b16 %v2585, %v2583
  %v3190 = vpack.c.b16 %v2586, %v2584
  %v3191 = vpack.c.b16 %v2589, %v2587
  %v3192 = vpack.c.b16 %v2590, %v2588
  %v3193 = vpack.c.b16 %v2593, %v2591
  %v3194 = vpack.c.b16 %v2594, %v2592
  %v3195 = vpack.c.b16 %v2597, %v2595
  %v3196 = vpack.c.b16 %v2598, %v2596
  %v3197 = vpack.c.b16 %v2601, %v2599
  %v3198 = vpack.c.b16 %v2602, %v2600
  %v3199 = vpack.c.b16 %v2605, %v2603
  %v3200 = vpack.c.b16 %v2606, %v2604
  %v3201 = vpack.c.b16 %v2609, %v2607
  %v3202 = vpack.c.b16 %v2610, %v2608
  %v3203 = vpack.c.b16 %v2613, %v2611
  %v3204 = vpack.c.b16 %v2614, %v2612
  %v3205 = vpack.c.b16 %v2617, %v2615
  %v3206 = vpack.c.b16 %v2618, %v2616
  %v3207 = vpack.c.b16 %v2621, %v2619
  %v3208 = vpack.c.b16 %v2622, %v2620
  %v3209 = vpack.c.b16 %v2625, %v2623
  %v3210 = vpack.c.b16 %v2626, %v2624
  %v3211 = vpack.c.b16 %v2629, %v2627
  %v3212 = vpack.c.b16 %v2630, %v2628
  %v3213 = vpack.c.b16 %v2633, %v2631
  %v3214 = vpack.c.b16 %v2634, %v2632
  %v3215 = vpack.c.b16 %v2637, %v2635
  %v3216 = vpack.c.b16 %v2638, %v2636
  %v3217 = vpack.c.b16 %v2641, %v2639
  %v3218 = vpack.c.b16 %v2642, %v2640
  %v3219 = vpack.c.b16 %v2645, %v2643
  %v3220 = vpack.c.b16 %v2646, %v2644
  %v3221 = vpack.c.b16 %v2649, %v2647
  %v3222 = vpack.c.b16 %v2650, %v2648
  %v3223 = vpack.c.b16 %v2653, %v2651
  %v3224 = vpack.c.b16 %v2654, %v2652
  %v3225 = vpack.c.b16 %v2657, %v2655
  %v3226 = vpack.c.b16 %v2658, %v2656
  %v3227 = vpack.c.b16 %v2661, %v2659
  %v3228 = vpack.c.b16 %v2662, %v2660
  %v3229 = vpack.c.b16 %v2665, %v2663
  %v3230 = vpack.c.b16 %v2666, %v2664
  %v3231 = vpack.c.b16 %v2669, %v2667
  %v3232 = vpack.c.b16 %v2670, %v2668
  %v3233 = vpack.c.b16 %v2673, %v2671
  %v3234 = vpack.c.b16 %v2674, %v2672
  %v3235 = vpack.c.b16 %v2677, %v2675
  %v3236 = vpack.c.b16 %v2678, %v2676
  %v3237 = vpack.c.b16 %v2681, %v2679
  %v3238 = vpack.c.b16 %v2682, %v2680
  %v3239 = vpack.c.b16 %v2685, %v2683
  %v3240 = vpack.c.b16 %v2686, %v2684
  %v3241 = vpack.c.b16 %v2689, %v2687
  %v3242 = vpack.c.b16 %v2690, %v2688
  %v3243 = vpack.c.b16 %v2693, %v2691
  %v3244 = vpack.c.b16 %v2694, %v2692
  %v3245 = vpack.c.b16 %v2697, %v2695
  %v3246 = vpack.c.b16 %v2698, %v2696
  %v3247 = vpack.c.b16 %v2701, %v2699
  %v3248 = vpack.c.b16 %v2702, %v2700
  %v3249 = vpack.c.b16 %v2705, %v2703
  %v3250 = vpack.c.b16 %v2706, %v2704
  %v3251 = vpack.c.b16 %v2709, %v2707
  %v3252 = vpack.c.b16 %v2710, %v2708
  %v3253 = vpack.c.b16 %v2713, %v2711
  %v3254 = vpack.c.b16 %v2714, %v2712
  %v3255 = vpack.c.b16 %v2717, %v2715
  %v3256 = vpack.c.b16 %v2718, %v2716
  %v3257 = vpack.c.b16 %v2721, %v2719
  %v3258 = vpack.c.b16 %v2722, %v2720
  %v3259 = vpack.c.b16 %v2725, %v2723
  %v3260 = vpack.c.b16 %v2726, %v2724
  %v3261 = vpack.c.b16 %v2729, %v2727
  %v3262 = vpack.c.b16 %v2730, %v2728
  %v3263 = vpack.c.b16 %v2733, %v2731
  %v3264 = vpack.c.b16 %v2734, %v2732
  %v3265 = vpack.c.b16 %v2737, %v2735
  %v3266 = vpack.c.b16 %v2738, %v2736
  %v3267 = vpack.c.b16 %v2741, %v2739
  %v3268 = vpack.c.b16 %v2742, %v2740
  %v3269 = vpack.c.b16 %v2745, %v2743
  %v3270 = vpack.c.b16 %v2746, %v2744
  %v3271 = vpack.c.b16 %v2749, %v2747
  %v3272 = vpack.c.b16 %v2750, %v2748
  %v3273 = vpack.c.b16 %v2753, %v2751
  %v3274 = vpack.c.b16 %v2754, %v2752
  %v3275 = vpack.c.b16 %v2757, %v2755
  %v3276 = vpack.c.b16 %v2758, %v2756
  %v3277 = vpack.c.b16 %v2761, %v2759
  %v3278 = vpack.c.b16 %v2762, %v2760
  %v3279 = vpack.c.b16 %v2765, %v2763
  %v3280 = vpack.c.b16 %v2766, %v2764
  %v3281 = vpack.c.b16 %v2769, %v2767
  %v3282 = vpack.c.b16 %v2770, %v2768
  %v3283 = vpack.c.b16 %v2773, %v2771
  %v3284 = vpack.c.b16 %v2774, %v2772
  %v3285 = vpack.c.b16 %v2777, %v2775
  %v3286 = vpack.c.b16 %v2778, %v2776
  %v3287 = vpack.c.b16 %v2781, %v2779
  %v3288 = vpack.c.b16 %v2782, %v2780
  %v3289 = vpack.c.b16 %v2785, %v2783
  %v3290 = vpack.c.b16 %v2786, %v2784
  %v3291 = vpack.c.b16 %v2789, %v2787
  %v3292 = vpack.c.b16 %v2790, %v2788
  %v3293 = vpack.c.b16 %v2793, %v2791
  %v3294 = vpack.c.b16 %v2794, %v2792
  %v3295 = vpack.c.b16 %v2797, %v2795
  %v3296 = vpack.c.b16 %v2798, %v2796
  %v3297 = vpack.c.b16 %v2801, %v2799
  %v3298 = vpack.c.b16 %v2802, %v2800
  %v3299 = vpack.c.b16 %v2805, %v2803
  %v3300 = vpack.c.b16 %v2806, %v2804
  %v3301 = vpack.c.b16 %v2809, %v2807
  %v3302 = vpack.c.b16 %v2810, %v2808
  %v3303 = vpack.c.b16 %v2813, %v2811
  %v3304 = vpack.c.b16 %v2814, %v2812
  %v3305 = vpack.c.b16 %v2817, %v2815
  %v3306 = vpack.c.b16 %v2818, %v2816
  %v3307 = vpack.c.b16 %v2821, %v2819
  %v3308 = vpack.c.b16 %v2822, %v2820
  %v3309 = vpack.c.b16 %v2825, %v2823
  %v3310 = vpack.c.b16 %v2826, %v2824
  %v3311 = vpack.c.b16 %v2829, %v2827
  %v3312 = vpack.c.b16 %v2830, %v2828
  %v3313 = vpack.c.b16 %v2833, %v2831
  %v3314 = vpack.c.b16 %v2834, %v2832
  %v3315 = vpack.c.b16 %v2837, %v2835
  %v3316 = vpack.c.b16 %v2838, %v2836
  %v3317 = vpack.c.b16 %v2841, %v2839
  %v3318 = vpack.c.b16 %v2842, %v2840
  %v3319 = vpack.c.b16 %v2845, %v2843
  %v3320 = vpack.c.b16 %v2846, %v2844
  %v3321 = vpack.c.b16 %v2849, %v2847
  %v3322 = vpack.c.b16 %v2850, %v2848
  %v3323 = vpack.c.b16 %v2853, %v2851
  %v3324 = vpack.c.b16 %v2854, %v2852
  %v3325 = vpack.c.b16 %v2857, %v2855
  %v3326 = vpack.c.b16 %v2858, %v2856
  %v3327 = vpack.c.b16 %v2861, %v2859
  %v3328 = vpack.c.b16 %v2862, %v2860
  %v3329 = vpack.c.b16 %v2865, %v2863
  %v3330 = vpack.c.b16 %v2866, %v2864
  %v3331 = vpack.c.b16 %v2869, %v2867
  %v3332 = vpack.c.b16 %v2870, %v2868
  %v3333 = vpack.c.b16 %v2873, %v2871
  %v3334 = vpack.c.b16 %v2874, %v2872
  %v3335 = vpack.c.b16 %v2877, %v2875
  %v3336 = vpack.c.b16 %v2878, %v2876
  %v3337 = vpack.c.b16 %v2881, %v2879
  %v3338 = vpack.c.b16 %v2882, %v2880
  %v3339 = vpack.c.b16 %v2885, %v2883
  %v3340 = vpack.c.b16 %v2886, %v2884
  %v3341 = vpack.c.b16 %v2889, %v2887
  %v3342 = vpack.c.b16 %v2890, %v2888
  %v3343 = vpack.c.b16 %v2893, %v2891
  %v3344 = vpack.c.b16 %v2894, %v2892
  %v3345 = vpack.c.b16 %v2897, %v2895
  %v3346 = vpack.c.b16 %v2898, %v2896
  %v3347 = vpack.c.b16 %v2901, %v2899
  %v3348 = vpack.c.b16 %v2902, %v2900
  %v3349 = vpack.c.b16 %v2905, %v2903
  %v3350 = vpack.c.b16 %v2906, %v2904
  %v3351 = vpack.c.b16 %v2909, %v2907
  %v3352 = vpack.c.b16 %v2910, %v2908
  %v3353 = vpack.c.b16 %v2913, %v2911
  %v3354 = vpack.c.b16 %v2914, %v2912
  %v3355 = vpack.c.b16 %v2917, %v2915
  %v3356 = vpack.c.b16 %v2918, %v2916
  %v3357 = vpack.c.b16 %v2921, %v2919
  %v3358 = vpack.c.b16 %v2922, %v2920
  %v3359 = vpack.c.b16 %v2925, %v2923
  %v3360 = vpack.c.b16 %v2926, %v2924
  %v3361 = vpack.c.b16 %v2929, %v2927
  %v3362 = vpack.c.b16 %v2930, %v2928
  %v3363 = vpack.c.b16 %v2933, %v2931
  %v3364 = vpack.c.b16 %v2934, %v2932
  %v3365 = vpack.c.b16 %v2937, %v2935
  %v3366 = vpack.c.b16 %v2938, %v2936
  %v3367 = vpack.c.b16 %v2941, %v2939
  %v3368 = vpack.c.b16 %v2942, %v2940
  %v3369 = vpack.c.b16 %v2945, %v2943
  %v3370 = vpack.c.b16 %v2946, %v2944
  %v3371 = vpack.c.b16 %v2949, %v2947
  %v3372 = vpack.c.b16 %v2950, %v2948
  %v3373 = vpack.c.b16 %v2953, %v2951
  %v3374 = vpack.c.b16 %v2954, %v2952
  %v3375 = vpack.c.b16 %v2957, %v2955
  %v3376 = vpack.c.b16 %v2958, %v2956
  %v3377 = vpack.c.b16 %v2961, %v2959
  %v3378 = vpack.c.b16 %v2962, %v2960
  %v3379 = vpack.c.b16 %v2965, %v2963
  %v3380 = vpack.c.b16 %v2966, %v2964
  %v3381 = vpack.c.b16 %v2969, %v2967
  %v3382 = vpack.c.b16 %v2970, %v2968
  %v3383 = vpack.c.b16 %v2973, %v2971
  %v3384 = vpack.c.b16 %v2974, %v2972
  %v3385 = vpack.c.b16 %v2977, %v2975
  %v3386 = vpack.c.b16 %v2978, %v2976
  %v3387 = vpack.c.b16 %v2981, %v2979
  %v3388 = vpack.c.b16 %v2982, %v2980
  %v3389 = vpack.c.b16 %v2985, %v2983
  %v3390 = vpack.c.b16 %v2986, %v2984
  %v3391 = vpack.c.b16 %v2989, %v2987
  %v3392 = vpack.c.b16 %v2990, %v2988
  %v3393 = vpack.c.b16 %v2993, %v2991
  %v3394 = vpack.c.b16 %v2994, %v2992
  %3795 = vmatprep.subr.bf16.mxu0 %v2996
  %3796 = vmatpush1.bf16.msra.mxu0 %v2995
  %3797 = vmatprep.subr.bf16.mxu0 %v2998
  %3798 = vmatpush1.bf16.msra.mxu0 %v2997
  %3799 = vmatprep.subr.bf16.mxu0 %v3000
  %3800 = vmatpush1.bf16.msra.mxu0 %v2999
  %3801 = vmatprep.subr.bf16.mxu0 %v3002
  %3802 = vmatpush1.bf16.msra.mxu0 %v3001
  %3803 = vmatprep.subr.bf16.mxu0 %v3004
  %3804 = vmatpush1.bf16.msra.mxu0 %v3003
  %3805 = vmatprep.subr.bf16.mxu0 %v3006
  %3806 = vmatpush1.bf16.msra.mxu0 %v3005
  %3807 = vmatprep.subr.bf16.mxu0 %v3008
  %3808 = vmatpush1.bf16.msra.mxu0 %v3007
  %3809 = vmatprep.subr.bf16.mxu0 %v3010
  %3810 = vmatpush1.bf16.msra.mxu0 %v3009
  %3811 = vmatprep.subr.bf16.mxu0 %v3012
  %3812 = vmatpush1.bf16.msra.mxu0 %v3011
  %3813 = vmatprep.subr.bf16.mxu0 %v3014
  %3814 = vmatpush1.bf16.msra.mxu0 %v3013
  %3815 = vmatprep.subr.bf16.mxu0 %v3016
  %3816 = vmatpush1.bf16.msra.mxu0 %v3015
  %3817 = vmatprep.subr.bf16.mxu0 %v3018
  %3818 = vmatpush1.bf16.msra.mxu0 %v3017
  %3819 = vmatprep.subr.bf16.mxu0 %v3020
  %3820 = vmatpush1.bf16.msra.mxu0 %v3019
  %3821 = vmatprep.subr.bf16.mxu0 %v3022
  %3822 = vmatpush1.bf16.msra.mxu0 %v3021
  %3823 = vmatprep.subr.bf16.mxu0 %v3024
  %3824 = vmatpush1.bf16.msra.mxu0 %v3023
  %3825 = vmatprep.subr.bf16.mxu0 %v3026
  %3826 = vmatpush1.bf16.msra.mxu0 %v3025
  %3827 = vmatprep.mubr.bf16.mxu0 %v1346
  %3828 = vmatmul.mubr.bf16.gmra.mrb[0].mxu0 %v1345
  %v3829 = vpop.f32.mrb[0].mxu0
  %v3830 = vadd.f32 %v654, %v3829
  %v3831 = vpop.f32.mrb[0].mxu0
  %v3832 = vadd.f32 %v658, %v3831
  %v3833 = vpop.f32.mrb[0].mxu0
  %v3834 = vadd.f32 %v654, %v3833
  %v3835 = vpop.f32.mrb[0].mxu0
  %v3836 = vadd.f32 %v658, %v3835
  %3837 = vmatprep.mubr.bf16.mxu0 %v1371
  %3838 = vmatmul.mubr.bf16.gmra.mrb[0].mxu0 %v1370
  %v3839 = vpop.f32.mrb[0].mxu0
  %v3840 = vadd.f32 %v654, %v3839
  %v3841 = vpop.f32.mrb[0].mxu0
  %v3842 = vadd.f32 %v658, %v3841
  %v3843 = vpop.f32.mrb[0].mxu0
  %v3844 = vadd.f32 %v654, %v3843
  %v3845 = vpop.f32.mrb[0].mxu0
  %v3846 = vadd.f32 %v658, %v3845
  %3847 = vmatprep.mubr.bf16.mxu0 %v1396
  %3848 = vmatmul.mubr.bf16.gmra.mrb[0].mxu0 %v1395
  %v3849 = vpop.f32.mrb[0].mxu0
  %v3850 = vadd.f32 %v654, %v3849
  %v3851 = vpop.f32.mrb[0].mxu0
  %v3852 = vadd.f32 %v658, %v3851
  %v3853 = vpop.f32.mrb[0].mxu0
  %v3854 = vadd.f32 %v654, %v3853
  %v3855 = vpop.f32.mrb[0].mxu0
  %v3856 = vadd.f32 %v658, %v3855
  %3857 = vmatprep.mubr.bf16.mxu0 %v1421
  %3858 = vmatmul.mubr.bf16.gmra.mrb[0].mxu0 %v1420
  %v3859 = vpop.f32.mrb[0].mxu0
  %v3860 = vadd.f32 %v654, %v3859
  %v3861 = vpop.f32.mrb[0].mxu0
  %v3862 = vadd.f32 %v658, %v3861
  %v3863 = vpop.f32.mrb[0].mxu0
  %v3864 = vadd.f32 %v654, %v3863
  %v3865 = vpop.f32.mrb[0].mxu0
  %v3866 = vadd.f32 %v658, %v3865
  %3867 = vmatprep.mubr.bf16.mxu0 %v1446
  %3868 = vmatmul.mubr.bf16.gmra.mrb[0].mxu0 %v1445
  %v3869 = vpop.f32.mrb[0].mxu0
  %v3870 = vadd.f32 %v654, %v3869
  %v3871 = vpop.f32.mrb[0].mxu0
  %v3872 = vadd.f32 %v658, %v3871
  %v3873 = vpop.f32.mrb[0].mxu0
  %v3874 = vadd.f32 %v654, %v3873
  %v3875 = vpop.f32.mrb[0].mxu0
  %v3876 = vadd.f32 %v658, %v3875
  %3877 = vmatprep.mubr.bf16.mxu0 %v1471
  %3878 = vmatmul.mubr.bf16.gmra.mrb[0].mxu0 %v1470
  %v3879 = vpop.f32.mrb[0].mxu0
  %v3880 = vadd.f32 %v654, %v3879
  %v3881 = vpop.f32.mrb[0].mxu0
  %v3882 = vadd.f32 %v658, %v3881
  %v3883 = vpop.f32.mrb[0].mxu0
  %v3884 = vadd.f32 %v654, %v3883
  %v3885 = vpop.f32.mrb[0].mxu0
  %v3886 = vadd.f32 %v658, %v3885
  %3887 = vmatprep.mubr.bf16.mxu0 %v1496
  %3888 = vmatmul.mubr.bf16.gmra.mrb[0].mxu0 %v1495
  %v3889 = vpop.f32.mrb[0].mxu0
  %v3890 = vadd.f32 %v654, %v3889
  %v3891 = vpop.f32.mrb[0].mxu0
  %v3892 = vadd.f32 %v658, %v3891
  %v3893 = vpop.f32.mrb[0].mxu0
  %v3894 = vadd.f32 %v654, %v3893
  %v3895 = vpop.f32.mrb[0].mxu0
  %v3896 = vadd.f32 %v658, %v3895
  %3897 = vmatprep.mubr.bf16.mxu0 %v1521
  %3898 = vmatmul.mubr.bf16.gmra.mrb[0].mxu0 %v1520
  %v3899 = vpop.f32.mrb[0].mxu0
  %v3900 = vadd.f32 %v654, %v3899
  %v3901 = vpop.f32.mrb[0].mxu0
  %v3902 = vadd.f32 %v658, %v3901
  %v3903 = vpop.f32.mrb[0].mxu0
  %v3904 = vadd.f32 %v654, %v3903
  %v3905 = vpop.f32.mrb[0].mxu0
  %v3906 = vadd.f32 %v658, %v3905
  %3907 = vmatprep.mubr.bf16.mxu0 %v1546
  %3908 = vmatmul.mubr.bf16.gmra.mrb[0].mxu0 %v1545
  %v3909 = vpop.f32.mrb[0].mxu0
  %v3910 = vadd.f32 %v654, %v3909
  %v3911 = vpop.f32.mrb[0].mxu0
  %v3912 = vadd.f32 %v658, %v3911
  %v3913 = vpop.f32.mrb[0].mxu0
  %v3914 = vadd.f32 %v654, %v3913
  %v3915 = vpop.f32.mrb[0].mxu0
  %v3916 = vadd.f32 %v658, %v3915
  %3917 = vdwg.mxu0
  %3918 = vmatprep.subr.bf16.mxu0 %v3028
  %3919 = vmatpush1.bf16.msra.mxu0 %v3027
  %3920 = vmatprep.subr.bf16.mxu0 %v3030
  %3921 = vmatpush1.bf16.msra.mxu0 %v3029
  %3922 = vmatprep.subr.bf16.mxu0 %v3032
  %3923 = vmatpush1.bf16.msra.mxu0 %v3031
  %3924 = vmatprep.subr.bf16.mxu0 %v3034
  %3925 = vmatpush1.bf16.msra.mxu0 %v3033
  %3926 = vmatprep.subr.bf16.mxu0 %v3036
  %3927 = vmatpush1.bf16.msra.mxu0 %v3035
  %3928 = vmatprep.subr.bf16.mxu0 %v3038
  %3929 = vmatpush1.bf16.msra.mxu0 %v3037
  %3930 = vmatprep.subr.bf16.mxu0 %v3040
  %3931 = vmatpush1.bf16.msra.mxu0 %v3039
  %3932 = vmatprep.subr.bf16.mxu0 %v3042
  %3933 = vmatpush1.bf16.msra.mxu0 %v3041
  %3934 = vmatprep.subr.bf16.mxu0 %v3044
  %3935 = vmatpush1.bf16.msra.mxu0 %v3043
  %3936 = vmatprep.subr.bf16.mxu0 %v3046
  %3937 = vmatpush1.bf16.msra.mxu0 %v3045
  %3938 = vmatprep.subr.bf16.mxu0 %v3048
  %3939 = vmatpush1.bf16.msra.mxu0 %v3047
  %3940 = vmatprep.subr.bf16.mxu0 %v3050
  %3941 = vmatpush1.bf16.msra.mxu0 %v3049
  %3942 = vmatprep.subr.bf16.mxu0 %v3052
  %3943 = vmatpush1.bf16.msra.mxu0 %v3051
  %3944 = vmatprep.subr.bf16.mxu0 %v3054
  %3945 = vmatpush1.bf16.msra.mxu0 %v3053
  %3946 = vmatprep.subr.bf16.mxu0 %v3056
  %3947 = vmatpush1.bf16.msra.mxu0 %v3055
  %3948 = vmatprep.subr.bf16.mxu0 %v3058
  %3949 = vmatpush1.bf16.msra.mxu0 %v3057
  %3950 = vmatprep.mubr.bf16.mxu0 %v1348
  %3951 = vmatmul.mubr.bf16.gmra.mrb[0].mxu0 %v1347
  %v3952 = vpop.f32.mrb[0].mxu0
  %v3953 = vadd.f32 %v3830, %v3952
  %v3954 = vpop.f32.mrb[0].mxu0
  %v3955 = vadd.f32 %v3832, %v3954
  %v3956 = vpop.f32.mrb[0].mxu0
  %v3957 = vadd.f32 %v3834, %v3956
  %v3958 = vpop.f32.mrb[0].mxu0
  %v3959 = vadd.f32 %v3836, %v3958
  %3960 = vmatprep.mubr.bf16.mxu0 %v1373
  %3961 = vmatmul.mubr.bf16.gmra.mrb[0].mxu0 %v1372
  %v3962 = vpop.f32.mrb[0].mxu0
  %v3963 = vadd.f32 %v3840, %v3962
  %v3964 = vpop.f32.mrb[0].mxu0
  %v3965 = vadd.f32 %v3842, %v3964
  %v3966 = vpop.f32.mrb[0].mxu0
  %v3967 = vadd.f32 %v3844, %v3966
  %v3968 = vpop.f32.mrb[0].mxu0
  %v3969 = vadd.f32 %v3846, %v3968
  %3970 = vmatprep.mubr.bf16.mxu0 %v1398
  %3971 = vmatmul.mubr.bf16.gmra.mrb[0].mxu0 %v1397
  %v3972 = vpop.f32.mrb[0].mxu0
  %v3973 = vadd.f32 %v3850, %v3972
  %v3974 = vpop.f32.mrb[0].mxu0
  %v3975 = vadd.f32 %v3852, %v3974
  %v3976 = vpop.f32.mrb[0].mxu0
  %v3977 = vadd.f32 %v3854, %v3976
  %v3978 = vpop.f32.mrb[0].mxu0
  %v3979 = vadd.f32 %v3856, %v3978
  %3980 = vmatprep.mubr.bf16.mxu0 %v1423
  %3981 = vmatmul.mubr.bf16.gmra.mrb[0].mxu0 %v1422
  %v3982 = vpop.f32.mrb[0].mxu0
  %v3983 = vadd.f32 %v3860, %v3982
  %v3984 = vpop.f32.mrb[0].mxu0
  %v3985 = vadd.f32 %v3862, %v3984
  %v3986 = vpop.f32.mrb[0].mxu0
  %v3987 = vadd.f32 %v3864, %v3986
  %v3988 = vpop.f32.mrb[0].mxu0
  %v3989 = vadd.f32 %v3866, %v3988
  %3990 = vmatprep.mubr.bf16.mxu0 %v1448
  %3991 = vmatmul.mubr.bf16.gmra.mrb[0].mxu0 %v1447
  %v3992 = vpop.f32.mrb[0].mxu0
  %v3993 = vadd.f32 %v3870, %v3992
  %v3994 = vpop.f32.mrb[0].mxu0
  %v3995 = vadd.f32 %v3872, %v3994
  %v3996 = vpop.f32.mrb[0].mxu0
  %v3997 = vadd.f32 %v3874, %v3996
  %v3998 = vpop.f32.mrb[0].mxu0
  %v3999 = vadd.f32 %v3876, %v3998
  %4000 = vmatprep.mubr.bf16.mxu0 %v1473
  %4001 = vmatmul.mubr.bf16.gmra.mrb[0].mxu0 %v1472
  %v4002 = vpop.f32.mrb[0].mxu0
  %v4003 = vadd.f32 %v3880, %v4002
  %v4004 = vpop.f32.mrb[0].mxu0
  %v4005 = vadd.f32 %v3882, %v4004
  %v4006 = vpop.f32.mrb[0].mxu0
  %v4007 = vadd.f32 %v3884, %v4006
  %v4008 = vpop.f32.mrb[0].mxu0
  %v4009 = vadd.f32 %v3886, %v4008
  %4010 = vmatprep.mubr.bf16.mxu0 %v1498
  %4011 = vmatmul.mubr.bf16.gmra.mrb[0].mxu0 %v1497
  %v4012 = vpop.f32.mrb[0].mxu0
  %v4013 = vadd.f32 %v3890, %v4012
  %v4014 = vpop.f32.mrb[0].mxu0
  %v4015 = vadd.f32 %v3892, %v4014
  %v4016 = vpop.f32.mrb[0].mxu0
  %v4017 = vadd.f32 %v3894, %v4016
  %v4018 = vpop.f32.mrb[0].mxu0
  %v4019 = vadd.f32 %v3896, %v4018
  %4020 = vmatprep.mubr.bf16.mxu0 %v1523
  %4021 = vmatmul.mubr.bf16.gmra.mrb[0].mxu0 %v1522
  %v4022 = vpop.f32.mrb[0].mxu0
  %v4023 = vadd.f32 %v3900, %v4022
  %v4024 = vpop.f32.mrb[0].mxu0
  %v4025 = vadd.f32 %v3902, %v4024
  %v4026 = vpop.f32.mrb[0].mxu0
  %v4027 = vadd.f32 %v3904, %v4026
  %v4028 = vpop.f32.mrb[0].mxu0
  %v4029 = vadd.f32 %v3906, %v4028
  %4030 = vmatprep.mubr.bf16.mxu0 %v1548
  %4031 = vmatmul.mubr.bf16.gmra.mrb[0].mxu0 %v1547
  %v4032 = vpop.f32.mrb[0].mxu0
  %v4033 = vadd.f32 %v3910, %v4032
  %v4034 = vpop.f32.mrb[0].mxu0
  %v4035 = vadd.f32 %v3912, %v4034
  %v4036 = vpop.f32.mrb[0].mxu0
  %v4037 = vadd.f32 %v3914, %v4036
  %v4038 = vpop.f32.mrb[0].mxu0
  %v4039 = vadd.f32 %v3916, %v4038
  %4040 = vdwg.mxu0
  %4041 = vmatprep.subr.bf16.mxu0 %v3060
  %4042 = vmatpush1.bf16.msra.mxu0 %v3059
  %4043 = vmatprep.subr.bf16.mxu0 %v3062
  %4044 = vmatpush1.bf16.msra.mxu0 %v3061
  %4045 = vmatprep.subr.bf16.mxu0 %v3064
  %4046 = vmatpush1.bf16.msra.mxu0 %v3063
  %4047 = vmatprep.subr.bf16.mxu0 %v3066
  %4048 = vmatpush1.bf16.msra.mxu0 %v3065
  %4049 = vmatprep.subr.bf16.mxu0 %v3068
  %4050 = vmatpush1.bf16.msra.mxu0 %v3067
  %4051 = vmatprep.subr.bf16.mxu0 %v3070
  %4052 = vmatpush1.bf16.msra.mxu0 %v3069
  %4053 = vmatprep.subr.bf16.mxu0 %v3072
  %4054 = vmatpush1.bf16.msra.mxu0 %v3071
  %4055 = vmatprep.subr.bf16.mxu0 %v3074
  %4056 = vmatpush1.bf16.msra.mxu0 %v3073
  %4057 = vmatprep.subr.bf16.mxu0 %v3076
  %4058 = vmatpush1.bf16.msra.mxu0 %v3075
  %4059 = vmatprep.subr.bf16.mxu0 %v3078
  %4060 = vmatpush1.bf16.msra.mxu0 %v3077
  %4061 = vmatprep.subr.bf16.mxu0 %v3080
  %4062 = vmatpush1.bf16.msra.mxu0 %v3079
  %4063 = vmatprep.subr.bf16.mxu0 %v3082
  %4064 = vmatpush1.bf16.msra.mxu0 %v3081
  %4065 = vmatprep.subr.bf16.mxu0 %v3084
  %4066 = vmatpush1.bf16.msra.mxu0 %v3083
  %4067 = vmatprep.subr.bf16.mxu0 %v3086
  %4068 = vmatpush1.bf16.msra.mxu0 %v3085
  %4069 = vmatprep.subr.bf16.mxu0 %v3088
  %4070 = vmatpush1.bf16.msra.mxu0 %v3087
  %4071 = vmatprep.subr.bf16.mxu0 %v3090
  %4072 = vmatpush1.bf16.msra.mxu0 %v3089
  %4073 = vmatprep.mubr.bf16.mxu0 %v1350
  %4074 = vmatmul.mubr.bf16.gmra.mrb[0].mxu0 %v1349
  %v4075 = vpop.f32.mrb[0].mxu0
  %v4076 = vadd.f32 %v3953, %v4075
  %v4077 = vpop.f32.mrb[0].mxu0
  %v4078 = vadd.f32 %v3955, %v4077
  %v4079 = vpop.f32.mrb[0].mxu0
  %v4080 = vadd.f32 %v3957, %v4079
  %v4081 = vpop.f32.mrb[0].mxu0
  %v4082 = vadd.f32 %v3959, %v4081
  %4083 = vmatprep.mubr.bf16.mxu0 %v1375
  %4084 = vmatmul.mubr.bf16.gmra.mrb[0].mxu0 %v1374
  %v4085 = vpop.f32.mrb[0].mxu0
  %v4086 = vadd.f32 %v3963, %v4085
  %v4087 = vpop.f32.mrb[0].mxu0
  %v4088 = vadd.f32 %v3965, %v4087
  %v4089 = vpop.f32.mrb[0].mxu0
  %v4090 = vadd.f32 %v3967, %v4089
  %v4091 = vpop.f32.mrb[0].mxu0
  %v4092 = vadd.f32 %v3969, %v4091
  %4093 = vmatprep.mubr.bf16.mxu0 %v1400
  %4094 = vmatmul.mubr.bf16.gmra.mrb[0].mxu0 %v1399
  %v4095 = vpop.f32.mrb[0].mxu0
  %v4096 = vadd.f32 %v3973, %v4095
  %v4097 = vpop.f32.mrb[0].mxu0
  %v4098 = vadd.f32 %v3975, %v4097
  %v4099 = vpop.f32.mrb[0].mxu0
  %v4100 = vadd.f32 %v3977, %v4099
  %v4101 = vpop.f32.mrb[0].mxu0
  %v4102 = vadd.f32 %v3979, %v4101
  %4103 = vmatprep.mubr.bf16.mxu0 %v1425
  %4104 = vmatmul.mubr.bf16.gmra.mrb[0].mxu0 %v1424
  %v4105 = vpop.f32.mrb[0].mxu0
  %v4106 = vadd.f32 %v3983, %v4105
  %v4107 = vpop.f32.mrb[0].mxu0
  %v4108 = vadd.f32 %v3985, %v4107
  %v4109 = vpop.f32.mrb[0].mxu0
  %v4110 = vadd.f32 %v3987, %v4109
  %v4111 = vpop.f32.mrb[0].mxu0
  %v4112 = vadd.f32 %v3989, %v4111
  %4113 = vmatprep.mubr.bf16.mxu0 %v1450
  %4114 = vmatmul.mubr.bf16.gmra.mrb[0].mxu0 %v1449
  %v4115 = vpop.f32.mrb[0].mxu0
  %v4116 = vadd.f32 %v3993, %v4115
  %v4117 = vpop.f32.mrb[0].mxu0
  %v4118 = vadd.f32 %v3995, %v4117
  %v4119 = vpop.f32.mrb[0].mxu0
  %v4120 = vadd.f32 %v3997, %v4119
  %v4121 = vpop.f32.mrb[0].mxu0
  %v4122 = vadd.f32 %v3999, %v4121
  %4123 = vmatprep.mubr.bf16.mxu0 %v1475
  %4124 = vmatmul.mubr.bf16.gmra.mrb[0].mxu0 %v1474
  %v4125 = vpop.f32.mrb[0].mxu0
  %v4126 = vadd.f32 %v4003, %v4125
  %v4127 = vpop.f32.mrb[0].mxu0
  %v4128 = vadd.f32 %v4005, %v4127
  %v4129 = vpop.f32.mrb[0].mxu0
  %v4130 = vadd.f32 %v4007, %v4129
  %v4131 = vpop.f32.mrb[0].mxu0
  %v4132 = vadd.f32 %v4009, %v4131
  %4133 = vmatprep.mubr.bf16.mxu0 %v1500
  %4134 = vmatmul.mubr.bf16.gmra.mrb[0].mxu0 %v1499
  %v4135 = vpop.f32.mrb[0].mxu0
  %v4136 = vadd.f32 %v4013, %v4135
  %v4137 = vpop.f32.mrb[0].mxu0
  %v4138 = vadd.f32 %v4015, %v4137
  %v4139 = vpop.f32.mrb[0].mxu0
  %v4140 = vadd.f32 %v4017, %v4139
  %v4141 = vpop.f32.mrb[0].mxu0
  %v4142 = vadd.f32 %v4019, %v4141
  %4143 = vmatprep.mubr.bf16.mxu0 %v1525
  %4144 = vmatmul.mubr.bf16.gmra.mrb[0].mxu0 %v1524
  %v4145 = vpop.f32.mrb[0].mxu0
  %v4146 = vadd.f32 %v4023, %v4145
  %v4147 = vpop.f32.mrb[0].mxu0
  %v4148 = vadd.f32 %v4025, %v4147
  %v4149 = vpop.f32.mrb[0].mxu0
  %v4150 = vadd.f32 %v4027, %v4149
  %v4151 = vpop.f32.mrb[0].mxu0
  %v4152 = vadd.f32 %v4029, %v4151
  %4153 = vmatprep.mubr.bf16.mxu0 %v1550
  %4154 = vmatmul.mubr.bf16.gmra.mrb[0].mxu0 %v1549
  %v4155 = vpop.f32.mrb[0].mxu0
  %v4156 = vadd.f32 %v4033, %v4155
  %v4157 = vpop.f32.mrb[0].mxu0
  %v4158 = vadd.f32 %v4035, %v4157
  %v4159 = vpop.f32.mrb[0].mxu0
  %v4160 = vadd.f32 %v4037, %v4159
  %v4161 = vpop.f32.mrb[0].mxu0
  %v4162 = vadd.f32 %v4039, %v4161
  %4163 = vdwg.mxu0
  %4164 = vmatprep.subr.bf16.mxu0 %v3092
  %4165 = vmatpush1.bf16.msra.mxu0 %v3091
  %4166 = vmatprep.subr.bf16.mxu0 %v3094
  %4167 = vmatpush1.bf16.msra.mxu0 %v3093
  %4168 = vmatprep.subr.bf16.mxu0 %v3096
  %4169 = vmatpush1.bf16.msra.mxu0 %v3095
  %4170 = vmatprep.subr.bf16.mxu0 %v3098
  %4171 = vmatpush1.bf16.msra.mxu0 %v3097
  %4172 = vmatprep.subr.bf16.mxu0 %v3100
  %4173 = vmatpush1.bf16.msra.mxu0 %v3099
  %4174 = vmatprep.subr.bf16.mxu0 %v3102
  %4175 = vmatpush1.bf16.msra.mxu0 %v3101
  %4176 = vmatprep.subr.bf16.mxu0 %v3104
  %4177 = vmatpush1.bf16.msra.mxu0 %v3103
  %4178 = vmatprep.subr.bf16.mxu0 %v3106
  %4179 = vmatpush1.bf16.msra.mxu0 %v3105
  %4180 = vmatprep.subr.bf16.mxu0 %v3108
  %4181 = vmatpush1.bf16.msra.mxu0 %v3107
  %4182 = vmatprep.subr.bf16.mxu0 %v3110
  %4183 = vmatpush1.bf16.msra.mxu0 %v3109
  %4184 = vmatprep.subr.bf16.mxu0 %v3112
  %4185 = vmatpush1.bf16.msra.mxu0 %v3111
  %4186 = vmatprep.subr.bf16.mxu0 %v3114
  %4187 = vmatpush1.bf16.msra.mxu0 %v3113
  %4188 = vmatprep.subr.bf16.mxu0 %v3116
  %4189 = vmatpush1.bf16.msra.mxu0 %v3115
  %4190 = vmatprep.subr.bf16.mxu0 %v3118
  %4191 = vmatpush1.bf16.msra.mxu0 %v3117
  %4192 = vmatprep.subr.bf16.mxu0 %v3120
  %4193 = vmatpush1.bf16.msra.mxu0 %v3119
  %4194 = vmatprep.subr.bf16.mxu0 %v3122
  %4195 = vmatpush1.bf16.msra.mxu0 %v3121
  %4196 = vmatprep.mubr.bf16.mxu0 %v1352
  %4197 = vmatmul.mubr.bf16.gmra.mrb[0].mxu0 %v1351
  %v4198 = vpop.f32.mrb[0].mxu0
  %v4199 = vadd.f32 %v4076, %v4198
  %v4200 = vpop.f32.mrb[0].mxu0
  %v4201 = vadd.f32 %v4078, %v4200
  %v4202 = vpop.f32.mrb[0].mxu0
  %v4203 = vadd.f32 %v4080, %v4202
  %v4204 = vpop.f32.mrb[0].mxu0
  %v4205 = vadd.f32 %v4082, %v4204
  %4206 = vmatprep.mubr.bf16.mxu0 %v1377
  %4207 = vmatmul.mubr.bf16.gmra.mrb[0].mxu0 %v1376
  %v4208 = vpop.f32.mrb[0].mxu0
  %v4209 = vadd.f32 %v4086, %v4208
  %v4210 = vpop.f32.mrb[0].mxu0
  %v4211 = vadd.f32 %v4088, %v4210
  %v4212 = vpop.f32.mrb[0].mxu0
  %v4213 = vadd.f32 %v4090, %v4212
  %v4214 = vpop.f32.mrb[0].mxu0
  %v4215 = vadd.f32 %v4092, %v4214
  %4216 = vmatprep.mubr.bf16.mxu0 %v1402
  %4217 = vmatmul.mubr.bf16.gmra.mrb[0].mxu0 %v1401
  %v4218 = vpop.f32.mrb[0].mxu0
  %v4219 = vadd.f32 %v4096, %v4218
  %v4220 = vpop.f32.mrb[0].mxu0
  %v4221 = vadd.f32 %v4098, %v4220
  %v4222 = vpop.f32.mrb[0].mxu0
  %v4223 = vadd.f32 %v4100, %v4222
  %v4224 = vpop.f32.mrb[0].mxu0
  %v4225 = vadd.f32 %v4102, %v4224
  %4226 = vmatprep.mubr.bf16.mxu0 %v1427
  %4227 = vmatmul.mubr.bf16.gmra.mrb[0].mxu0 %v1426
  %v4228 = vpop.f32.mrb[0].mxu0
  %v4229 = vadd.f32 %v4106, %v4228
  %v4230 = vpop.f32.mrb[0].mxu0
  %v4231 = vadd.f32 %v4108, %v4230
  %v4232 = vpop.f32.mrb[0].mxu0
  %v4233 = vadd.f32 %v4110, %v4232
  %v4234 = vpop.f32.mrb[0].mxu0
  %v4235 = vadd.f32 %v4112, %v4234
  %4236 = vmatprep.mubr.bf16.mxu0 %v1452
  %4237 = vmatmul.mubr.bf16.gmra.mrb[0].mxu0 %v1451
  %v4238 = vpop.f32.mrb[0].mxu0
  %v4239 = vadd.f32 %v4116, %v4238
  %v4240 = vpop.f32.mrb[0].mxu0
  %v4241 = vadd.f32 %v4118, %v4240
  %v4242 = vpop.f32.mrb[0].mxu0
  %v4243 = vadd.f32 %v4120, %v4242
  %v4244 = vpop.f32.mrb[0].mxu0
  %v4245 = vadd.f32 %v4122, %v4244
  %4246 = vmatprep.mubr.bf16.mxu0 %v1477
  %4247 = vmatmul.mubr.bf16.gmra.mrb[0].mxu0 %v1476
  %v4248 = vpop.f32.mrb[0].mxu0
  %v4249 = vadd.f32 %v4126, %v4248
  %v4250 = vpop.f32.mrb[0].mxu0
  %v4251 = vadd.f32 %v4128, %v4250
  %v4252 = vpop.f32.mrb[0].mxu0
  %v4253 = vadd.f32 %v4130, %v4252
  %v4254 = vpop.f32.mrb[0].mxu0
  %v4255 = vadd.f32 %v4132, %v4254
  %4256 = vmatprep.mubr.bf16.mxu0 %v1502
  %4257 = vmatmul.mubr.bf16.gmra.mrb[0].mxu0 %v1501
  %v4258 = vpop.f32.mrb[0].mxu0
  %v4259 = vadd.f32 %v4136, %v4258
  %v4260 = vpop.f32.mrb[0].mxu0
  %v4261 = vadd.f32 %v4138, %v4260
  %v4262 = vpop.f32.mrb[0].mxu0
  %v4263 = vadd.f32 %v4140, %v4262
  %v4264 = vpop.f32.mrb[0].mxu0
  %v4265 = vadd.f32 %v4142, %v4264
  %4266 = vmatprep.mubr.bf16.mxu0 %v1527
  %4267 = vmatmul.mubr.bf16.gmra.mrb[0].mxu0 %v1526
  %v4268 = vpop.f32.mrb[0].mxu0
  %v4269 = vadd.f32 %v4146, %v4268
  %v4270 = vpop.f32.mrb[0].mxu0
  %v4271 = vadd.f32 %v4148, %v4270
  %v4272 = vpop.f32.mrb[0].mxu0
  %v4273 = vadd.f32 %v4150, %v4272
  %v4274 = vpop.f32.mrb[0].mxu0
  %v4275 = vadd.f32 %v4152, %v4274
  %4276 = vmatprep.mubr.bf16.mxu0 %v1552
  %4277 = vmatmul.mubr.bf16.gmra.mrb[0].mxu0 %v1551
  %v4278 = vpop.f32.mrb[0].mxu0
  %v4279 = vadd.f32 %v4156, %v4278
  %v4280 = vpop.f32.mrb[0].mxu0
  %v4281 = vadd.f32 %v4158, %v4280
  %v4282 = vpop.f32.mrb[0].mxu0
  %v4283 = vadd.f32 %v4160, %v4282
  %v4284 = vpop.f32.mrb[0].mxu0
  %v4285 = vadd.f32 %v4162, %v4284
  %4286 = vdwg.mxu0
  %4287 = vmatprep.subr.bf16.mxu0 %v3124
  %4288 = vmatpush1.bf16.msra.mxu0 %v3123
  %4289 = vmatprep.subr.bf16.mxu0 %v3126
  %4290 = vmatpush1.bf16.msra.mxu0 %v3125
  %4291 = vmatprep.subr.bf16.mxu0 %v3128
  %4292 = vmatpush1.bf16.msra.mxu0 %v3127
  %4293 = vmatprep.subr.bf16.mxu0 %v3130
  %4294 = vmatpush1.bf16.msra.mxu0 %v3129
  %4295 = vmatprep.subr.bf16.mxu0 %v3132
  %4296 = vmatpush1.bf16.msra.mxu0 %v3131
  %4297 = vmatprep.subr.bf16.mxu0 %v3134
  %4298 = vmatpush1.bf16.msra.mxu0 %v3133
  %4299 = vmatprep.subr.bf16.mxu0 %v3136
  %4300 = vmatpush1.bf16.msra.mxu0 %v3135
  %4301 = vmatprep.subr.bf16.mxu0 %v3138
  %4302 = vmatpush1.bf16.msra.mxu0 %v3137
  %4303 = vmatprep.subr.bf16.mxu0 %v3140
  %4304 = vmatpush1.bf16.msra.mxu0 %v3139
  %4305 = vmatprep.subr.bf16.mxu0 %v3142
  %4306 = vmatpush1.bf16.msra.mxu0 %v3141
  %4307 = vmatprep.subr.bf16.mxu0 %v3144
  %4308 = vmatpush1.bf16.msra.mxu0 %v3143
  %4309 = vmatprep.subr.bf16.mxu0 %v3146
  %4310 = vmatpush1.bf16.msra.mxu0 %v3145
  %4311 = vmatprep.subr.bf16.mxu0 %v3148
  %4312 = vmatpush1.bf16.msra.mxu0 %v3147
  %4313 = vmatprep.subr.bf16.mxu0 %v3150
  %4314 = vmatpush1.bf16.msra.mxu0 %v3149
  %4315 = vmatprep.subr.bf16.mxu0 %v3152
  %4316 = vmatpush1.bf16.msra.mxu0 %v3151
  %4317 = vmatprep.subr.bf16.mxu0 %v3154
  %4318 = vmatpush1.bf16.msra.mxu0 %v3153
  %4319 = vmatprep.mubr.bf16.mxu0 %v1354
  %4320 = vmatmul.mubr.bf16.gmra.mrb[0].mxu0 %v1353
  %v4321 = vpop.f32.mrb[0].mxu0
  %v4322 = vadd.f32 %v4199, %v4321
  %v4323 = vpop.f32.mrb[0].mxu0
  %v4324 = vadd.f32 %v4201, %v4323
  %v4325 = vpop.f32.mrb[0].mxu0
  %v4326 = vadd.f32 %v4203, %v4325
  %v4327 = vpop.f32.mrb[0].mxu0
  %v4328 = vadd.f32 %v4205, %v4327
  %4329 = vmatprep.mubr.bf16.mxu0 %v1379
  %4330 = vmatmul.mubr.bf16.gmra.mrb[0].mxu0 %v1378
  %v4331 = vpop.f32.mrb[0].mxu0
  %v4332 = vadd.f32 %v4209, %v4331
  %v4333 = vpop.f32.mrb[0].mxu0
  %v4334 = vadd.f32 %v4211, %v4333
  %v4335 = vpop.f32.mrb[0].mxu0
  %v4336 = vadd.f32 %v4213, %v4335
  %v4337 = vpop.f32.mrb[0].mxu0
  %v4338 = vadd.f32 %v4215, %v4337
  %4339 = vmatprep.mubr.bf16.mxu0 %v1404
  %4340 = vmatmul.mubr.bf16.gmra.mrb[0].mxu0 %v1403
  %v4341 = vpop.f32.mrb[0].mxu0
  %v4342 = vadd.f32 %v4219, %v4341
  %v4343 = vpop.f32.mrb[0].mxu0
  %v4344 = vadd.f32 %v4221, %v4343
  %v4345 = vpop.f32.mrb[0].mxu0
  %v4346 = vadd.f32 %v4223, %v4345
  %v4347 = vpop.f32.mrb[0].mxu0
  %v4348 = vadd.f32 %v4225, %v4347
  %4349 = vmatprep.mubr.bf16.mxu0 %v1429
  %4350 = vmatmul.mubr.bf16.gmra.mrb[0].mxu0 %v1428
  %v4351 = vpop.f32.mrb[0].mxu0
  %v4352 = vadd.f32 %v4229, %v4351
  %v4353 = vpop.f32.mrb[0].mxu0
  %v4354 = vadd.f32 %v4231, %v4353
  %v4355 = vpop.f32.mrb[0].mxu0
  %v4356 = vadd.f32 %v4233, %v4355
  %v4357 = vpop.f32.mrb[0].mxu0
  %v4358 = vadd.f32 %v4235, %v4357
  %4359 = vmatprep.mubr.bf16.mxu0 %v1454
  %4360 = vmatmul.mubr.bf16.gmra.mrb[0].mxu0 %v1453
  %v4361 = vpop.f32.mrb[0].mxu0
  %v4362 = vadd.f32 %v4239, %v4361
  %v4363 = vpop.f32.mrb[0].mxu0
  %v4364 = vadd.f32 %v4241, %v4363
  %v4365 = vpop.f32.mrb[0].mxu0
  %v4366 = vadd.f32 %v4243, %v4365
  %v4367 = vpop.f32.mrb[0].mxu0
  %v4368 = vadd.f32 %v4245, %v4367
  %4369 = vmatprep.mubr.bf16.mxu0 %v1479
  %4370 = vmatmul.mubr.bf16.gmra.mrb[0].mxu0 %v1478
  %v4371 = vpop.f32.mrb[0].mxu0
  %v4372 = vadd.f32 %v4249, %v4371
  %v4373 = vpop.f32.mrb[0].mxu0
  %v4374 = vadd.f32 %v4251, %v4373
  %v4375 = vpop.f32.mrb[0].mxu0
  %v4376 = vadd.f32 %v4253, %v4375
  %v4377 = vpop.f32.mrb[0].mxu0
  %v4378 = vadd.f32 %v4255, %v4377
  %4379 = vmatprep.mubr.bf16.mxu0 %v1504
  %4380 = vmatmul.mubr.bf16.gmra.mrb[0].mxu0 %v1503
  %v4381 = vpop.f32.mrb[0].mxu0
  %v4382 = vadd.f32 %v4259, %v4381
  %v4383 = vpop.f32.mrb[0].mxu0
  %v4384 = vadd.f32 %v4261, %v4383
  %v4385 = vpop.f32.mrb[0].mxu0
  %v4386 = vadd.f32 %v4263, %v4385
  %v4387 = vpop.f32.mrb[0].mxu0
  %v4388 = vadd.f32 %v4265, %v4387
  %4389 = vmatprep.mubr.bf16.mxu0 %v1529
  %4390 = vmatmul.mubr.bf16.gmra.mrb[0].mxu0 %v1528
  %v4391 = vpop.f32.mrb[0].mxu0
  %v4392 = vadd.f32 %v4269, %v4391
  %v4393 = vpop.f32.mrb[0].mxu0
  %v4394 = vadd.f32 %v4271, %v4393
  %v4395 = vpop.f32.mrb[0].mxu0
  %v4396 = vadd.f32 %v4273, %v4395
  %v4397 = vpop.f32.mrb[0].mxu0
  %v4398 = vadd.f32 %v4275, %v4397
  %4399 = vmatprep.mubr.bf16.mxu0 %v1554
  %4400 = vmatmul.mubr.bf16.gmra.mrb[0].mxu0 %v1553
  %v4401 = vpop.f32.mrb[0].mxu0
  %v4402 = vadd.f32 %v4279, %v4401
  %v4403 = vpop.f32.mrb[0].mxu0
  %v4404 = vadd.f32 %v4281, %v4403
  %v4405 = vpop.f32.mrb[0].mxu0
  %v4406 = vadd.f32 %v4283, %v4405
  %v4407 = vpop.f32.mrb[0].mxu0
  %v4408 = vadd.f32 %v4285, %v4407
  %4409 = vdwg.mxu0
  %4410 = vmatprep.subr.bf16.mxu0 %v3156
  %4411 = vmatpush1.bf16.msra.mxu0 %v3155
  %4412 = vmatprep.subr.bf16.mxu0 %v3158
  %4413 = vmatpush1.bf16.msra.mxu0 %v3157
  %4414 = vmatprep.subr.bf16.mxu0 %v3160
  %4415 = vmatpush1.bf16.msra.mxu0 %v3159
  %4416 = vmatprep.subr.bf16.mxu0 %v3162
  %4417 = vmatpush1.bf16.msra.mxu0 %v3161
  %4418 = vmatprep.subr.bf16.mxu0 %v3164
  %4419 = vmatpush1.bf16.msra.mxu0 %v3163
  %4420 = vmatprep.subr.bf16.mxu0 %v3166
  %4421 = vmatpush1.bf16.msra.mxu0 %v3165
  %4422 = vmatprep.subr.bf16.mxu0 %v3168
  %4423 = vmatpush1.bf16.msra.mxu0 %v3167
  %4424 = vmatprep.subr.bf16.mxu0 %v3170
  %4425 = vmatpush1.bf16.msra.mxu0 %v3169
  %4426 = vmatprep.subr.bf16.mxu0 %v3172
  %4427 = vmatpush1.bf16.msra.mxu0 %v3171
  %4428 = vmatprep.subr.bf16.mxu0 %v3174
  %4429 = vmatpush1.bf16.msra.mxu0 %v3173
  %4430 = vmatprep.subr.bf16.mxu0 %v3176
  %4431 = vmatpush1.bf16.msra.mxu0 %v3175
  %4432 = vmatprep.subr.bf16.mxu0 %v3178
  %4433 = vmatpush1.bf16.msra.mxu0 %v3177
  %4434 = vmatprep.subr.bf16.mxu0 %v3180
  %4435 = vmatpush1.bf16.msra.mxu0 %v3179
  %4436 = vmatprep.subr.bf16.mxu0 %v3182
  %4437 = vmatpush1.bf16.msra.mxu0 %v3181
  %4438 = vmatprep.subr.bf16.mxu0 %v3184
  %4439 = vmatpush1.bf16.msra.mxu0 %v3183
  %4440 = vmatprep.subr.bf16.mxu0 %v3186
  %4441 = vmatpush1.bf16.msra.mxu0 %v3185
  %4442 = vmatprep.mubr.bf16.mxu0 %v1356
  %4443 = vmatmul.mubr.bf16.gmra.mrb[0].mxu0 %v1355
  %v4444 = vpop.f32.mrb[0].mxu0
  %v4445 = vadd.f32 %v4322, %v4444
  %v4446 = vpop.f32.mrb[0].mxu0
  %v4447 = vadd.f32 %v4324, %v4446
  %v4448 = vpop.f32.mrb[0].mxu0
  %v4449 = vadd.f32 %v4326, %v4448
  %v4450 = vpop.f32.mrb[0].mxu0
  %v4451 = vadd.f32 %v4328, %v4450
  %4452 = vmatprep.mubr.bf16.mxu0 %v1381
  %4453 = vmatmul.mubr.bf16.gmra.mrb[0].mxu0 %v1380
  %v4454 = vpop.f32.mrb[0].mxu0
  %v4455 = vadd.f32 %v4332, %v4454
  %v4456 = vpop.f32.mrb[0].mxu0
  %v4457 = vadd.f32 %v4334, %v4456
  %v4458 = vpop.f32.mrb[0].mxu0
  %v4459 = vadd.f32 %v4336, %v4458
  %v4460 = vpop.f32.mrb[0].mxu0
  %v4461 = vadd.f32 %v4338, %v4460
  %4462 = vmatprep.mubr.bf16.mxu0 %v1406
  %4463 = vmatmul.mubr.bf16.gmra.mrb[0].mxu0 %v1405
  %v4464 = vpop.f32.mrb[0].mxu0
  %v4465 = vadd.f32 %v4342, %v4464
  %v4466 = vpop.f32.mrb[0].mxu0
  %v4467 = vadd.f32 %v4344, %v4466
  %v4468 = vpop.f32.mrb[0].mxu0
  %v4469 = vadd.f32 %v4346, %v4468
  %v4470 = vpop.f32.mrb[0].mxu0
  %v4471 = vadd.f32 %v4348, %v4470
  %4472 = vmatprep.mubr.bf16.mxu0 %v1431
  %4473 = vmatmul.mubr.bf16.gmra.mrb[0].mxu0 %v1430
  %v4474 = vpop.f32.mrb[0].mxu0
  %v4475 = vadd.f32 %v4352, %v4474
  %v4476 = vpop.f32.mrb[0].mxu0
  %v4477 = vadd.f32 %v4354, %v4476
  %v4478 = vpop.f32.mrb[0].mxu0
  %v4479 = vadd.f32 %v4356, %v4478
  %v4480 = vpop.f32.mrb[0].mxu0
  %v4481 = vadd.f32 %v4358, %v4480
  %4482 = vmatprep.mubr.bf16.mxu0 %v1456
  %4483 = vmatmul.mubr.bf16.gmra.mrb[0].mxu0 %v1455
  %v4484 = vpop.f32.mrb[0].mxu0
  %v4485 = vadd.f32 %v4362, %v4484
  %v4486 = vpop.f32.mrb[0].mxu0
  %v4487 = vadd.f32 %v4364, %v4486
  %v4488 = vpop.f32.mrb[0].mxu0
  %v4489 = vadd.f32 %v4366, %v4488
  %v4490 = vpop.f32.mrb[0].mxu0
  %v4491 = vadd.f32 %v4368, %v4490
  %4492 = vmatprep.mubr.bf16.mxu0 %v1481
  %4493 = vmatmul.mubr.bf16.gmra.mrb[0].mxu0 %v1480
  %v4494 = vpop.f32.mrb[0].mxu0
  %v4495 = vadd.f32 %v4372, %v4494
  %v4496 = vpop.f32.mrb[0].mxu0
  %v4497 = vadd.f32 %v4374, %v4496
  %v4498 = vpop.f32.mrb[0].mxu0
  %v4499 = vadd.f32 %v4376, %v4498
  %v4500 = vpop.f32.mrb[0].mxu0
  %v4501 = vadd.f32 %v4378, %v4500
  %4502 = vmatprep.mubr.bf16.mxu0 %v1506
  %4503 = vmatmul.mubr.bf16.gmra.mrb[0].mxu0 %v1505
  %v4504 = vpop.f32.mrb[0].mxu0
  %v4505 = vadd.f32 %v4382, %v4504
  %v4506 = vpop.f32.mrb[0].mxu0
  %v4507 = vadd.f32 %v4384, %v4506
  %v4508 = vpop.f32.mrb[0].mxu0
  %v4509 = vadd.f32 %v4386, %v4508
  %v4510 = vpop.f32.mrb[0].mxu0
  %v4511 = vadd.f32 %v4388, %v4510
  %4512 = vmatprep.mubr.bf16.mxu0 %v1531
  %4513 = vmatmul.mubr.bf16.gmra.mrb[0].mxu0 %v1530
  %v4514 = vpop.f32.mrb[0].mxu0
  %v4515 = vadd.f32 %v4392, %v4514
  %v4516 = vpop.f32.mrb[0].mxu0
  %v4517 = vadd.f32 %v4394, %v4516
  %v4518 = vpop.f32.mrb[0].mxu0
  %v4519 = vadd.f32 %v4396, %v4518
  %v4520 = vpop.f32.mrb[0].mxu0
  %v4521 = vadd.f32 %v4398, %v4520
  %4522 = vmatprep.mubr.bf16.mxu0 %v1556
  %4523 = vmatmul.mubr.bf16.gmra.mrb[0].mxu0 %v1555
  %v4524 = vpop.f32.mrb[0].mxu0
  %v4525 = vadd.f32 %v4402, %v4524
  %v4526 = vpop.f32.mrb[0].mxu0
  %v4527 = vadd.f32 %v4404, %v4526
  %v4528 = vpop.f32.mrb[0].mxu0
  %v4529 = vadd.f32 %v4406, %v4528
  %v4530 = vpop.f32.mrb[0].mxu0
  %v4531 = vadd.f32 %v4408, %v4530
  %4532 = vdwg.mxu0
  %4533 = vmatprep.subr.bf16.mxu0 %v3188
  %4534 = vmatpush1.bf16.msra.mxu0 %v3187
  %4535 = vmatprep.subr.bf16.mxu0 %v3190
  %4536 = vmatpush1.bf16.msra.mxu0 %v3189
  %4537 = vmatprep.subr.bf16.mxu0 %v3192
  %4538 = vmatpush1.bf16.msra.mxu0 %v3191
  %4539 = vmatprep.subr.bf16.mxu0 %v3194
  %4540 = vmatpush1.bf16.msra.mxu0 %v3193
  %4541 = vmatprep.subr.bf16.mxu0 %v3196
  %4542 = vmatpush1.bf16.msra.mxu0 %v3195
  %4543 = vmatprep.subr.bf16.mxu0 %v3198
  %4544 = vmatpush1.bf16.msra.mxu0 %v3197
  %4545 = vmatprep.subr.bf16.mxu0 %v3200
  %4546 = vmatpush1.bf16.msra.mxu0 %v3199
  %4547 = vmatprep.subr.bf16.mxu0 %v3202
  %4548 = vmatpush1.bf16.msra.mxu0 %v3201
  %4549 = vmatprep.subr.bf16.mxu0 %v3204
  %4550 = vmatpush1.bf16.msra.mxu0 %v3203
  %4551 = vmatprep.subr.bf16.mxu0 %v3206
  %4552 = vmatpush1.bf16.msra.mxu0 %v3205
  %4553 = vmatprep.subr.bf16.mxu0 %v3208
  %4554 = vmatpush1.bf16.msra.mxu0 %v3207
  %4555 = vmatprep.subr.bf16.mxu0 %v3210
  %4556 = vmatpush1.bf16.msra.mxu0 %v3209
  %4557 = vmatprep.subr.bf16.mxu0 %v3212
  %4558 = vmatpush1.bf16.msra.mxu0 %v3211
  %4559 = vmatprep.subr.bf16.mxu0 %v3214
  %4560 = vmatpush1.bf16.msra.mxu0 %v3213
  %4561 = vmatprep.subr.bf16.mxu0 %v3216
  %4562 = vmatpush1.bf16.msra.mxu0 %v3215
  %4563 = vmatprep.subr.bf16.mxu0 %v3218
  %4564 = vmatpush1.bf16.msra.mxu0 %v3217
  %4565 = vmatprep.mubr.bf16.mxu0 %v1358
  %4566 = vmatmul.mubr.bf16.gmra.mrb[0].mxu0 %v1357
  %v4567 = vpop.f32.mrb[0].mxu0
  %v4568 = vadd.f32 %v4445, %v4567
  %v4569 = vpop.f32.mrb[0].mxu0
  %v4570 = vadd.f32 %v4447, %v4569
  %v4571 = vpop.f32.mrb[0].mxu0
  %v4572 = vadd.f32 %v4449, %v4571
  %v4573 = vpop.f32.mrb[0].mxu0
  %v4574 = vadd.f32 %v4451, %v4573
  %4575 = vmatprep.mubr.bf16.mxu0 %v1383
  %4576 = vmatmul.mubr.bf16.gmra.mrb[0].mxu0 %v1382
  %v4577 = vpop.f32.mrb[0].mxu0
  %v4578 = vadd.f32 %v4455, %v4577
  %v4579 = vpop.f32.mrb[0].mxu0
  %v4580 = vadd.f32 %v4457, %v4579
  %v4581 = vpop.f32.mrb[0].mxu0
  %v4582 = vadd.f32 %v4459, %v4581
  %v4583 = vpop.f32.mrb[0].mxu0
  %v4584 = vadd.f32 %v4461, %v4583
  %4585 = vmatprep.mubr.bf16.mxu0 %v1408
  %4586 = vmatmul.mubr.bf16.gmra.mrb[0].mxu0 %v1407
  %v4587 = vpop.f32.mrb[0].mxu0
  %v4588 = vadd.f32 %v4465, %v4587
  %v4589 = vpop.f32.mrb[0].mxu0
  %v4590 = vadd.f32 %v4467, %v4589
  %v4591 = vpop.f32.mrb[0].mxu0
  %v4592 = vadd.f32 %v4469, %v4591
  %v4593 = vpop.f32.mrb[0].mxu0
  %v4594 = vadd.f32 %v4471, %v4593
  %4595 = vmatprep.mubr.bf16.mxu0 %v1433
  %4596 = vmatmul.mubr.bf16.gmra.mrb[0].mxu0 %v1432
  %v4597 = vpop.f32.mrb[0].mxu0
  %v4598 = vadd.f32 %v4475, %v4597
  %v4599 = vpop.f32.mrb[0].mxu0
  %v4600 = vadd.f32 %v4477, %v4599
  %v4601 = vpop.f32.mrb[0].mxu0
  %v4602 = vadd.f32 %v4479, %v4601
  %v4603 = vpop.f32.mrb[0].mxu0
  %v4604 = vadd.f32 %v4481, %v4603
  %4605 = vmatprep.mubr.bf16.mxu0 %v1458
  %4606 = vmatmul.mubr.bf16.gmra.mrb[0].mxu0 %v1457
  %v4607 = vpop.f32.mrb[0].mxu0
  %v4608 = vadd.f32 %v4485, %v4607
  %v4609 = vpop.f32.mrb[0].mxu0
  %v4610 = vadd.f32 %v4487, %v4609
  %v4611 = vpop.f32.mrb[0].mxu0
  %v4612 = vadd.f32 %v4489, %v4611
  %v4613 = vpop.f32.mrb[0].mxu0
  %v4614 = vadd.f32 %v4491, %v4613
  %4615 = vmatprep.mubr.bf16.mxu0 %v1483
  %4616 = vmatmul.mubr.bf16.gmra.mrb[0].mxu0 %v1482
  %v4617 = vpop.f32.mrb[0].mxu0
  %v4618 = vadd.f32 %v4495, %v4617
  %v4619 = vpop.f32.mrb[0].mxu0
  %v4620 = vadd.f32 %v4497, %v4619
  %v4621 = vpop.f32.mrb[0].mxu0
  %v4622 = vadd.f32 %v4499, %v4621
  %v4623 = vpop.f32.mrb[0].mxu0
  %v4624 = vadd.f32 %v4501, %v4623
  %4625 = vmatprep.mubr.bf16.mxu0 %v1508
  %4626 = vmatmul.mubr.bf16.gmra.mrb[0].mxu0 %v1507
  %v4627 = vpop.f32.mrb[0].mxu0
  %v4628 = vadd.f32 %v4505, %v4627
  %v4629 = vpop.f32.mrb[0].mxu0
  %v4630 = vadd.f32 %v4507, %v4629
  %v4631 = vpop.f32.mrb[0].mxu0
  %v4632 = vadd.f32 %v4509, %v4631
  %v4633 = vpop.f32.mrb[0].mxu0
  %v4634 = vadd.f32 %v4511, %v4633
  %4635 = vmatprep.mubr.bf16.mxu0 %v1533
  %4636 = vmatmul.mubr.bf16.gmra.mrb[0].mxu0 %v1532
  %v4637 = vpop.f32.mrb[0].mxu0
  %v4638 = vadd.f32 %v4515, %v4637
  %v4639 = vpop.f32.mrb[0].mxu0
  %v4640 = vadd.f32 %v4517, %v4639
  %v4641 = vpop.f32.mrb[0].mxu0
  %v4642 = vadd.f32 %v4519, %v4641
  %v4643 = vpop.f32.mrb[0].mxu0
  %v4644 = vadd.f32 %v4521, %v4643
  %4645 = vmatprep.mubr.bf16.mxu0 %v1558
  %4646 = vmatmul.mubr.bf16.gmra.mrb[0].mxu0 %v1557
  %v4647 = vpop.f32.mrb[0].mxu0
  %v4648 = vadd.f32 %v4525, %v4647
  %v4649 = vpop.f32.mrb[0].mxu0
  %v4650 = vadd.f32 %v4527, %v4649
  %v4651 = vpop.f32.mrb[0].mxu0
  %v4652 = vadd.f32 %v4529, %v4651
  %v4653 = vpop.f32.mrb[0].mxu0
  %v4654 = vadd.f32 %v4531, %v4653
  %4655 = vdwg.mxu0
  %4656 = vmatprep.subr.bf16.mxu0 %v3220
  %4657 = vmatpush1.bf16.msra.mxu0 %v3219
  %4658 = vmatprep.subr.bf16.mxu0 %v3222
  %4659 = vmatpush1.bf16.msra.mxu0 %v3221
  %4660 = vmatprep.subr.bf16.mxu0 %v3224
  %4661 = vmatpush1.bf16.msra.mxu0 %v3223
  %4662 = vmatprep.subr.bf16.mxu0 %v3226
  %4663 = vmatpush1.bf16.msra.mxu0 %v3225
  %4664 = vmatprep.subr.bf16.mxu0 %v3228
  %4665 = vmatpush1.bf16.msra.mxu0 %v3227
  %4666 = vmatprep.subr.bf16.mxu0 %v3230
  %4667 = vmatpush1.bf16.msra.mxu0 %v3229
  %4668 = vmatprep.subr.bf16.mxu0 %v3232
  %4669 = vmatpush1.bf16.msra.mxu0 %v3231
  %4670 = vmatprep.subr.bf16.mxu0 %v3234
  %4671 = vmatpush1.bf16.msra.mxu0 %v3233
  %4672 = vmatprep.subr.bf16.mxu0 %v3236
  %4673 = vmatpush1.bf16.msra.mxu0 %v3235
  %4674 = vmatprep.subr.bf16.mxu0 %v3238
  %4675 = vmatpush1.bf16.msra.mxu0 %v3237
  %4676 = vmatprep.subr.bf16.mxu0 %v3240
  %4677 = vmatpush1.bf16.msra.mxu0 %v3239
  %4678 = vmatprep.subr.bf16.mxu0 %v3242
  %4679 = vmatpush1.bf16.msra.mxu0 %v3241
  %4680 = vmatprep.subr.bf16.mxu0 %v3244
  %4681 = vmatpush1.bf16.msra.mxu0 %v3243
  %4682 = vmatprep.subr.bf16.mxu0 %v3246
  %4683 = vmatpush1.bf16.msra.mxu0 %v3245
  %4684 = vmatprep.subr.bf16.mxu0 %v3248
  %4685 = vmatpush1.bf16.msra.mxu0 %v3247
  %4686 = vmatprep.subr.bf16.mxu0 %v3250
  %4687 = vmatpush1.bf16.msra.mxu0 %v3249
  %4688 = vmatprep.mubr.bf16.mxu0 %v1360
  %4689 = vmatmul.mubr.bf16.gmra.mrb[0].mxu0 %v1359
  %v4690 = vpop.f32.mrb[0].mxu0
  %v4691 = vadd.f32 %v4568, %v4690
  %v4692 = vpop.f32.mrb[0].mxu0
  %v4693 = vadd.f32 %v4570, %v4692
  %v4694 = vpop.f32.mrb[0].mxu0
  %v4695 = vadd.f32 %v4572, %v4694
  %v4696 = vpop.f32.mrb[0].mxu0
  %v4697 = vadd.f32 %v4574, %v4696
  %4698 = vmatprep.mubr.bf16.mxu0 %v1385
  %4699 = vmatmul.mubr.bf16.gmra.mrb[0].mxu0 %v1384
  %v4700 = vpop.f32.mrb[0].mxu0
  %v4701 = vadd.f32 %v4578, %v4700
  %v4702 = vpop.f32.mrb[0].mxu0
  %v4703 = vadd.f32 %v4580, %v4702
  %v4704 = vpop.f32.mrb[0].mxu0
  %v4705 = vadd.f32 %v4582, %v4704
  %v4706 = vpop.f32.mrb[0].mxu0
  %v4707 = vadd.f32 %v4584, %v4706
  %4708 = vmatprep.mubr.bf16.mxu0 %v1410
  %4709 = vmatmul.mubr.bf16.gmra.mrb[0].mxu0 %v1409
  %v4710 = vpop.f32.mrb[0].mxu0
  %v4711 = vadd.f32 %v4588, %v4710
  %v4712 = vpop.f32.mrb[0].mxu0
  %v4713 = vadd.f32 %v4590, %v4712
  %v4714 = vpop.f32.mrb[0].mxu0
  %v4715 = vadd.f32 %v4592, %v4714
  %v4716 = vpop.f32.mrb[0].mxu0
  %v4717 = vadd.f32 %v4594, %v4716
  %4718 = vmatprep.mubr.bf16.mxu0 %v1435
  %4719 = vmatmul.mubr.bf16.gmra.mrb[0].mxu0 %v1434
  %v4720 = vpop.f32.mrb[0].mxu0
  %v4721 = vadd.f32 %v4598, %v4720
  %v4722 = vpop.f32.mrb[0].mxu0
  %v4723 = vadd.f32 %v4600, %v4722
  %v4724 = vpop.f32.mrb[0].mxu0
  %v4725 = vadd.f32 %v4602, %v4724
  %v4726 = vpop.f32.mrb[0].mxu0
  %v4727 = vadd.f32 %v4604, %v4726
  %4728 = vmatprep.mubr.bf16.mxu0 %v1460
  %4729 = vmatmul.mubr.bf16.gmra.mrb[0].mxu0 %v1459
  %v4730 = vpop.f32.mrb[0].mxu0
  %v4731 = vadd.f32 %v4608, %v4730
  %v4732 = vpop.f32.mrb[0].mxu0
  %v4733 = vadd.f32 %v4610, %v4732
  %v4734 = vpop.f32.mrb[0].mxu0
  %v4735 = vadd.f32 %v4612, %v4734
  %v4736 = vpop.f32.mrb[0].mxu0
  %v4737 = vadd.f32 %v4614, %v4736
  %4738 = vmatprep.mubr.bf16.mxu0 %v1485
  %4739 = vmatmul.mubr.bf16.gmra.mrb[0].mxu0 %v1484
  %v4740 = vpop.f32.mrb[0].mxu0
  %v4741 = vadd.f32 %v4618, %v4740
  %v4742 = vpop.f32.mrb[0].mxu0
  %v4743 = vadd.f32 %v4620, %v4742
  %v4744 = vpop.f32.mrb[0].mxu0
  %v4745 = vadd.f32 %v4622, %v4744
  %v4746 = vpop.f32.mrb[0].mxu0
  %v4747 = vadd.f32 %v4624, %v4746
  %4748 = vmatprep.mubr.bf16.mxu0 %v1510
  %4749 = vmatmul.mubr.bf16.gmra.mrb[0].mxu0 %v1509
  %v4750 = vpop.f32.mrb[0].mxu0
  %v4751 = vadd.f32 %v4628, %v4750
  %v4752 = vpop.f32.mrb[0].mxu0
  %v4753 = vadd.f32 %v4630, %v4752
  %v4754 = vpop.f32.mrb[0].mxu0
  %v4755 = vadd.f32 %v4632, %v4754
  %v4756 = vpop.f32.mrb[0].mxu0
  %v4757 = vadd.f32 %v4634, %v4756
  %4758 = vmatprep.mubr.bf16.mxu0 %v1535
  %4759 = vmatmul.mubr.bf16.gmra.mrb[0].mxu0 %v1534
  %v4760 = vpop.f32.mrb[0].mxu0
  %v4761 = vadd.f32 %v4638, %v4760
  %v4762 = vpop.f32.mrb[0].mxu0
  %v4763 = vadd.f32 %v4640, %v4762
  %v4764 = vpop.f32.mrb[0].mxu0
  %v4765 = vadd.f32 %v4642, %v4764
  %v4766 = vpop.f32.mrb[0].mxu0
  %v4767 = vadd.f32 %v4644, %v4766
  %4768 = vmatprep.mubr.bf16.mxu0 %v1560
  %4769 = vmatmul.mubr.bf16.gmra.mrb[0].mxu0 %v1559
  %v4770 = vpop.f32.mrb[0].mxu0
  %v4771 = vadd.f32 %v4648, %v4770
  %v4772 = vpop.f32.mrb[0].mxu0
  %v4773 = vadd.f32 %v4650, %v4772
  %v4774 = vpop.f32.mrb[0].mxu0
  %v4775 = vadd.f32 %v4652, %v4774
  %v4776 = vpop.f32.mrb[0].mxu0
  %v4777 = vadd.f32 %v4654, %v4776
  %4778 = vdwg.mxu0
  %4779 = vmatprep.subr.bf16.mxu0 %v3252
  %4780 = vmatpush1.bf16.msra.mxu0 %v3251
  %4781 = vmatprep.subr.bf16.mxu0 %v3254
  %4782 = vmatpush1.bf16.msra.mxu0 %v3253
  %4783 = vmatprep.subr.bf16.mxu0 %v3256
  %4784 = vmatpush1.bf16.msra.mxu0 %v3255
  %4785 = vmatprep.subr.bf16.mxu0 %v3258
  %4786 = vmatpush1.bf16.msra.mxu0 %v3257
  %4787 = vmatprep.subr.bf16.mxu0 %v3260
  %4788 = vmatpush1.bf16.msra.mxu0 %v3259
  %4789 = vmatprep.subr.bf16.mxu0 %v3262
  %4790 = vmatpush1.bf16.msra.mxu0 %v3261
  %4791 = vmatprep.subr.bf16.mxu0 %v3264
  %4792 = vmatpush1.bf16.msra.mxu0 %v3263
  %4793 = vmatprep.subr.bf16.mxu0 %v3266
  %4794 = vmatpush1.bf16.msra.mxu0 %v3265
  %4795 = vmatprep.subr.bf16.mxu0 %v3268
  %4796 = vmatpush1.bf16.msra.mxu0 %v3267
  %4797 = vmatprep.subr.bf16.mxu0 %v3270
  %4798 = vmatpush1.bf16.msra.mxu0 %v3269
  %4799 = vmatprep.subr.bf16.mxu0 %v3272
  %4800 = vmatpush1.bf16.msra.mxu0 %v3271
  %4801 = vmatprep.subr.bf16.mxu0 %v3274
  %4802 = vmatpush1.bf16.msra.mxu0 %v3273
  %4803 = vmatprep.subr.bf16.mxu0 %v3276
  %4804 = vmatpush1.bf16.msra.mxu0 %v3275
  %4805 = vmatprep.subr.bf16.mxu0 %v3278
  %4806 = vmatpush1.bf16.msra.mxu0 %v3277
  %4807 = vmatprep.subr.bf16.mxu0 %v3280
  %4808 = vmatpush1.bf16.msra.mxu0 %v3279
  %4809 = vmatprep.subr.bf16.mxu0 %v3282
  %4810 = vmatpush1.bf16.msra.mxu0 %v3281
  %4811 = vmatprep.mubr.bf16.mxu0 %v1362
  %4812 = vmatmul.mubr.bf16.gmra.mrb[0].mxu0 %v1361
  %v4813 = vpop.f32.mrb[0].mxu0
  %v4814 = vadd.f32 %v4691, %v4813
  %v4815 = vpop.f32.mrb[0].mxu0
  %v4816 = vadd.f32 %v4693, %v4815
  %v4817 = vpop.f32.mrb[0].mxu0
  %v4818 = vadd.f32 %v4695, %v4817
  %v4819 = vpop.f32.mrb[0].mxu0
  %v4820 = vadd.f32 %v4697, %v4819
  %4821 = vmatprep.mubr.bf16.mxu0 %v1387
  %4822 = vmatmul.mubr.bf16.gmra.mrb[0].mxu0 %v1386
  %v4823 = vpop.f32.mrb[0].mxu0
  %v4824 = vadd.f32 %v4701, %v4823
  %v4825 = vpop.f32.mrb[0].mxu0
  %v4826 = vadd.f32 %v4703, %v4825
  %v4827 = vpop.f32.mrb[0].mxu0
  %v4828 = vadd.f32 %v4705, %v4827
  %v4829 = vpop.f32.mrb[0].mxu0
  %v4830 = vadd.f32 %v4707, %v4829
  %4831 = vmatprep.mubr.bf16.mxu0 %v1412
  %4832 = vmatmul.mubr.bf16.gmra.mrb[0].mxu0 %v1411
  %v4833 = vpop.f32.mrb[0].mxu0
  %v4834 = vadd.f32 %v4711, %v4833
  %v4835 = vpop.f32.mrb[0].mxu0
  %v4836 = vadd.f32 %v4713, %v4835
  %v4837 = vpop.f32.mrb[0].mxu0
  %v4838 = vadd.f32 %v4715, %v4837
  %v4839 = vpop.f32.mrb[0].mxu0
  %v4840 = vadd.f32 %v4717, %v4839
  %4841 = vmatprep.mubr.bf16.mxu0 %v1437
  %4842 = vmatmul.mubr.bf16.gmra.mrb[0].mxu0 %v1436
  %v4843 = vpop.f32.mrb[0].mxu0
  %v4844 = vadd.f32 %v4721, %v4843
  %v4845 = vpop.f32.mrb[0].mxu0
  %v4846 = vadd.f32 %v4723, %v4845
  %v4847 = vpop.f32.mrb[0].mxu0
  %v4848 = vadd.f32 %v4725, %v4847
  %v4849 = vpop.f32.mrb[0].mxu0
  %v4850 = vadd.f32 %v4727, %v4849
  %4851 = vmatprep.mubr.bf16.mxu0 %v1462
  %4852 = vmatmul.mubr.bf16.gmra.mrb[0].mxu0 %v1461
  %v4853 = vpop.f32.mrb[0].mxu0
  %v4854 = vadd.f32 %v4731, %v4853
  %v4855 = vpop.f32.mrb[0].mxu0
  %v4856 = vadd.f32 %v4733, %v4855
  %v4857 = vpop.f32.mrb[0].mxu0
  %v4858 = vadd.f32 %v4735, %v4857
  %v4859 = vpop.f32.mrb[0].mxu0
  %v4860 = vadd.f32 %v4737, %v4859
  %4861 = vmatprep.mubr.bf16.mxu0 %v1487
  %4862 = vmatmul.mubr.bf16.gmra.mrb[0].mxu0 %v1486
  %v4863 = vpop.f32.mrb[0].mxu0
  %v4864 = vadd.f32 %v4741, %v4863
  %v4865 = vpop.f32.mrb[0].mxu0
  %v4866 = vadd.f32 %v4743, %v4865
  %v4867 = vpop.f32.mrb[0].mxu0
  %v4868 = vadd.f32 %v4745, %v4867
  %v4869 = vpop.f32.mrb[0].mxu0
  %v4870 = vadd.f32 %v4747, %v4869
  %4871 = vmatprep.mubr.bf16.mxu0 %v1512
  %4872 = vmatmul.mubr.bf16.gmra.mrb[0].mxu0 %v1511
  %v4873 = vpop.f32.mrb[0].mxu0
  %v4874 = vadd.f32 %v4751, %v4873
  %v4875 = vpop.f32.mrb[0].mxu0
  %v4876 = vadd.f32 %v4753, %v4875
  %v4877 = vpop.f32.mrb[0].mxu0
  %v4878 = vadd.f32 %v4755, %v4877
  %v4879 = vpop.f32.mrb[0].mxu0
  %v4880 = vadd.f32 %v4757, %v4879
  %4881 = vmatprep.mubr.bf16.mxu0 %v1537
  %4882 = vmatmul.mubr.bf16.gmra.mrb[0].mxu0 %v1536
  %v4883 = vpop.f32.mrb[0].mxu0
  %v4884 = vadd.f32 %v4761, %v4883
  %v4885 = vpop.f32.mrb[0].mxu0
  %v4886 = vadd.f32 %v4763, %v4885
  %v4887 = vpop.f32.mrb[0].mxu0
  %v4888 = vadd.f32 %v4765, %v4887
  %v4889 = vpop.f32.mrb[0].mxu0
  %v4890 = vadd.f32 %v4767, %v4889
  %4891 = vmatprep.mubr.bf16.mxu0 %v1562
  %4892 = vmatmul.mubr.bf16.gmra.mrb[0].mxu0 %v1561
  %v4893 = vpop.f32.mrb[0].mxu0
  %v4894 = vadd.f32 %v4771, %v4893
  %v4895 = vpop.f32.mrb[0].mxu0
  %v4896 = vadd.f32 %v4773, %v4895
  %v4897 = vpop.f32.mrb[0].mxu0
  %v4898 = vadd.f32 %v4775, %v4897
  %v4899 = vpop.f32.mrb[0].mxu0
  %v4900 = vadd.f32 %v4777, %v4899
  %4901 = vdwg.mxu0
  %4902 = vmatprep.subr.bf16.mxu0 %v3284
  %4903 = vmatpush1.bf16.msra.mxu0 %v3283
  %4904 = vmatprep.subr.bf16.mxu0 %v3286
  %4905 = vmatpush1.bf16.msra.mxu0 %v3285
  %4906 = vmatprep.subr.bf16.mxu0 %v3288
  %4907 = vmatpush1.bf16.msra.mxu0 %v3287
  %4908 = vmatprep.subr.bf16.mxu0 %v3290
  %4909 = vmatpush1.bf16.msra.mxu0 %v3289
  %4910 = vmatprep.subr.bf16.mxu0 %v3292
  %4911 = vmatpush1.bf16.msra.mxu0 %v3291
  %4912 = vmatprep.subr.bf16.mxu0 %v3294
  %4913 = vmatpush1.bf16.msra.mxu0 %v3293
  %4914 = vmatprep.subr.bf16.mxu0 %v3296
  %4915 = vmatpush1.bf16.msra.mxu0 %v3295
  %4916 = vmatprep.subr.bf16.mxu0 %v3298
  %4917 = vmatpush1.bf16.msra.mxu0 %v3297
  %4918 = vmatprep.subr.bf16.mxu0 %v3300
  %4919 = vmatpush1.bf16.msra.mxu0 %v3299
  %4920 = vmatprep.subr.bf16.mxu0 %v3302
  %4921 = vmatpush1.bf16.msra.mxu0 %v3301
  %4922 = vmatprep.subr.bf16.mxu0 %v3304
  %4923 = vmatpush1.bf16.msra.mxu0 %v3303
  %4924 = vmatprep.subr.bf16.mxu0 %v3306
  %4925 = vmatpush1.bf16.msra.mxu0 %v3305
  %4926 = vmatprep.subr.bf16.mxu0 %v3308
  %4927 = vmatpush1.bf16.msra.mxu0 %v3307
  %4928 = vmatprep.subr.bf16.mxu0 %v3310
  %4929 = vmatpush1.bf16.msra.mxu0 %v3309
  %4930 = vmatprep.subr.bf16.mxu0 %v3312
  %4931 = vmatpush1.bf16.msra.mxu0 %v3311
  %4932 = vmatprep.subr.bf16.mxu0 %v3314
  %4933 = vmatpush1.bf16.msra.mxu0 %v3313
  %4934 = vmatprep.mubr.bf16.mxu0 %v1364
  %4935 = vmatmul.mubr.bf16.gmra.mrb[0].mxu0 %v1363
  %v4936 = vpop.f32.mrb[0].mxu0
  %v4937 = vadd.f32 %v4814, %v4936
  %v4938 = vpop.f32.mrb[0].mxu0
  %v4939 = vadd.f32 %v4816, %v4938
  %v4940 = vpop.f32.mrb[0].mxu0
  %v4941 = vadd.f32 %v4818, %v4940
  %v4942 = vpop.f32.mrb[0].mxu0
  %v4943 = vadd.f32 %v4820, %v4942
  %4944 = vmatprep.mubr.bf16.mxu0 %v1389
  %4945 = vmatmul.mubr.bf16.gmra.mrb[0].mxu0 %v1388
  %v4946 = vpop.f32.mrb[0].mxu0
  %v4947 = vadd.f32 %v4824, %v4946
  %v4948 = vpop.f32.mrb[0].mxu0
  %v4949 = vadd.f32 %v4826, %v4948
  %v4950 = vpop.f32.mrb[0].mxu0
  %v4951 = vadd.f32 %v4828, %v4950
  %v4952 = vpop.f32.mrb[0].mxu0
  %v4953 = vadd.f32 %v4830, %v4952
  %4954 = vmatprep.mubr.bf16.mxu0 %v1414
  %4955 = vmatmul.mubr.bf16.gmra.mrb[0].mxu0 %v1413
  %v4956 = vpop.f32.mrb[0].mxu0
  %v4957 = vadd.f32 %v4834, %v4956
  %v4958 = vpop.f32.mrb[0].mxu0
  %v4959 = vadd.f32 %v4836, %v4958
  %v4960 = vpop.f32.mrb[0].mxu0
  %v4961 = vadd.f32 %v4838, %v4960
  %v4962 = vpop.f32.mrb[0].mxu0
  %v4963 = vadd.f32 %v4840, %v4962
  %4964 = vmatprep.mubr.bf16.mxu0 %v1439
  %4965 = vmatmul.mubr.bf16.gmra.mrb[0].mxu0 %v1438
  %v4966 = vpop.f32.mrb[0].mxu0
  %v4967 = vadd.f32 %v4844, %v4966
  %v4968 = vpop.f32.mrb[0].mxu0
  %v4969 = vadd.f32 %v4846, %v4968
  %v4970 = vpop.f32.mrb[0].mxu0
  %v4971 = vadd.f32 %v4848, %v4970
  %v4972 = vpop.f32.mrb[0].mxu0
  %v4973 = vadd.f32 %v4850, %v4972
  %4974 = vmatprep.mubr.bf16.mxu0 %v1464
  %4975 = vmatmul.mubr.bf16.gmra.mrb[0].mxu0 %v1463
  %v4976 = vpop.f32.mrb[0].mxu0
  %v4977 = vadd.f32 %v4854, %v4976
  %v4978 = vpop.f32.mrb[0].mxu0
  %v4979 = vadd.f32 %v4856, %v4978
  %v4980 = vpop.f32.mrb[0].mxu0
  %v4981 = vadd.f32 %v4858, %v4980
  %v4982 = vpop.f32.mrb[0].mxu0
  %v4983 = vadd.f32 %v4860, %v4982
  %4984 = vmatprep.mubr.bf16.mxu0 %v1489
  %4985 = vmatmul.mubr.bf16.gmra.mrb[0].mxu0 %v1488
  %v4986 = vpop.f32.mrb[0].mxu0
  %v4987 = vadd.f32 %v4864, %v4986
  %v4988 = vpop.f32.mrb[0].mxu0
  %v4989 = vadd.f32 %v4866, %v4988
  %v4990 = vpop.f32.mrb[0].mxu0
  %v4991 = vadd.f32 %v4868, %v4990
  %v4992 = vpop.f32.mrb[0].mxu0
  %v4993 = vadd.f32 %v4870, %v4992
  %4994 = vmatprep.mubr.bf16.mxu0 %v1514
  %4995 = vmatmul.mubr.bf16.gmra.mrb[0].mxu0 %v1513
  %v4996 = vpop.f32.mrb[0].mxu0
  %v4997 = vadd.f32 %v4874, %v4996
  %v4998 = vpop.f32.mrb[0].mxu0
  %v4999 = vadd.f32 %v4876, %v4998
  %v5000 = vpop.f32.mrb[0].mxu0
  %v5001 = vadd.f32 %v4878, %v5000
  %v5002 = vpop.f32.mrb[0].mxu0
  %v5003 = vadd.f32 %v4880, %v5002
  %5004 = vmatprep.mubr.bf16.mxu0 %v1539
  %5005 = vmatmul.mubr.bf16.gmra.mrb[0].mxu0 %v1538
  %v5006 = vpop.f32.mrb[0].mxu0
  %v5007 = vadd.f32 %v4884, %v5006
  %v5008 = vpop.f32.mrb[0].mxu0
  %v5009 = vadd.f32 %v4886, %v5008
  %v5010 = vpop.f32.mrb[0].mxu0
  %v5011 = vadd.f32 %v4888, %v5010
  %v5012 = vpop.f32.mrb[0].mxu0
  %v5013 = vadd.f32 %v4890, %v5012
  %5014 = vmatprep.mubr.bf16.mxu0 %v1564
  %5015 = vmatmul.mubr.bf16.gmra.mrb[0].mxu0 %v1563
  %v5016 = vpop.f32.mrb[0].mxu0
  %v5017 = vadd.f32 %v4894, %v5016
  %v5018 = vpop.f32.mrb[0].mxu0
  %v5019 = vadd.f32 %v4896, %v5018
  %v5020 = vpop.f32.mrb[0].mxu0
  %v5021 = vadd.f32 %v4898, %v5020
  %v5022 = vpop.f32.mrb[0].mxu0
  %v5023 = vadd.f32 %v4900, %v5022
  %5024 = vdwg.mxu0
  %5025 = vmatprep.subr.bf16.mxu0 %v3316
  %5026 = vmatpush1.bf16.msra.mxu0 %v3315
  %5027 = vmatprep.subr.bf16.mxu0 %v3318
  %5028 = vmatpush1.bf16.msra.mxu0 %v3317
  %5029 = vmatprep.subr.bf16.mxu0 %v3320
  %5030 = vmatpush1.bf16.msra.mxu0 %v3319
  %5031 = vmatprep.subr.bf16.mxu0 %v3322
  %5032 = vmatpush1.bf16.msra.mxu0 %v3321
  %5033 = vmatprep.subr.bf16.mxu0 %v3324
  %5034 = vmatpush1.bf16.msra.mxu0 %v3323
  %5035 = vmatprep.subr.bf16.mxu0 %v3326
  %5036 = vmatpush1.bf16.msra.mxu0 %v3325
  %5037 = vmatprep.subr.bf16.mxu0 %v3328
  %5038 = vmatpush1.bf16.msra.mxu0 %v3327
  %5039 = vmatprep.subr.bf16.mxu0 %v3330
  %5040 = vmatpush1.bf16.msra.mxu0 %v3329
  %5041 = vmatprep.subr.bf16.mxu0 %v3332
  %5042 = vmatpush1.bf16.msra.mxu0 %v3331
  %5043 = vmatprep.subr.bf16.mxu0 %v3334
  %5044 = vmatpush1.bf16.msra.mxu0 %v3333
  %5045 = vmatprep.subr.bf16.mxu0 %v3336
  %5046 = vmatpush1.bf16.msra.mxu0 %v3335
  %5047 = vmatprep.subr.bf16.mxu0 %v3338
  %5048 = vmatpush1.bf16.msra.mxu0 %v3337
  %5049 = vmatprep.subr.bf16.mxu0 %v3340
  %5050 = vmatpush1.bf16.msra.mxu0 %v3339
  %5051 = vmatprep.subr.bf16.mxu0 %v3342
  %5052 = vmatpush1.bf16.msra.mxu0 %v3341
  %5053 = vmatprep.subr.bf16.mxu0 %v3344
  %5054 = vmatpush1.bf16.msra.mxu0 %v3343
  %5055 = vmatprep.subr.bf16.mxu0 %v3346
  %5056 = vmatpush1.bf16.msra.mxu0 %v3345
  %5057 = vmatprep.mubr.bf16.mxu0 %v1366
  %5058 = vmatmul.mubr.bf16.gmra.mrb[0].mxu0 %v1365
  %v5059 = vpop.f32.mrb[0].mxu0
  %v5060 = vadd.f32 %v4937, %v5059
  %v5061 = vpop.f32.mrb[0].mxu0
  %v5062 = vadd.f32 %v4939, %v5061
  %v5063 = vpop.f32.mrb[0].mxu0
  %v5064 = vadd.f32 %v4941, %v5063
  %v5065 = vpop.f32.mrb[0].mxu0
  %v5066 = vadd.f32 %v4943, %v5065
  %5067 = vmatprep.mubr.bf16.mxu0 %v1391
  %5068 = vmatmul.mubr.bf16.gmra.mrb[0].mxu0 %v1390
  %v5069 = vpop.f32.mrb[0].mxu0
  %v5070 = vadd.f32 %v4947, %v5069
  %v5071 = vpop.f32.mrb[0].mxu0
  %v5072 = vadd.f32 %v4949, %v5071
  %v5073 = vpop.f32.mrb[0].mxu0
  %v5074 = vadd.f32 %v4951, %v5073
  %v5075 = vpop.f32.mrb[0].mxu0
  %v5076 = vadd.f32 %v4953, %v5075
  %5077 = vmatprep.mubr.bf16.mxu0 %v1416
  %5078 = vmatmul.mubr.bf16.gmra.mrb[0].mxu0 %v1415
  %v5079 = vpop.f32.mrb[0].mxu0
  %v5080 = vadd.f32 %v4957, %v5079
  %v5081 = vpop.f32.mrb[0].mxu0
  %v5082 = vadd.f32 %v4959, %v5081
  %v5083 = vpop.f32.mrb[0].mxu0
  %v5084 = vadd.f32 %v4961, %v5083
  %v5085 = vpop.f32.mrb[0].mxu0
  %v5086 = vadd.f32 %v4963, %v5085
  %5087 = vmatprep.mubr.bf16.mxu0 %v1441
  %5088 = vmatmul.mubr.bf16.gmra.mrb[0].mxu0 %v1440
  %v5089 = vpop.f32.mrb[0].mxu0
  %v5090 = vadd.f32 %v4967, %v5089
  %v5091 = vpop.f32.mrb[0].mxu0
  %v5092 = vadd.f32 %v4969, %v5091
  %v5093 = vpop.f32.mrb[0].mxu0
  %v5094 = vadd.f32 %v4971, %v5093
  %v5095 = vpop.f32.mrb[0].mxu0
  %v5096 = vadd.f32 %v4973, %v5095
  %5097 = vmatprep.mubr.bf16.mxu0 %v1466
  %5098 = vmatmul.mubr.bf16.gmra.mrb[0].mxu0 %v1465
  %v5099 = vpop.f32.mrb[0].mxu0
  %v5100 = vadd.f32 %v4977, %v5099
  %v5101 = vpop.f32.mrb[0].mxu0
  %v5102 = vadd.f32 %v4979, %v5101
  %v5103 = vpop.f32.mrb[0].mxu0
  %v5104 = vadd.f32 %v4981, %v5103
  %v5105 = vpop.f32.mrb[0].mxu0
  %v5106 = vadd.f32 %v4983, %v5105
  %5107 = vmatprep.mubr.bf16.mxu0 %v1491
  %5108 = vmatmul.mubr.bf16.gmra.mrb[0].mxu0 %v1490
  %v5109 = vpop.f32.mrb[0].mxu0
  %v5110 = vadd.f32 %v4987, %v5109
  %v5111 = vpop.f32.mrb[0].mxu0
  %v5112 = vadd.f32 %v4989, %v5111
  %v5113 = vpop.f32.mrb[0].mxu0
  %v5114 = vadd.f32 %v4991, %v5113
  %v5115 = vpop.f32.mrb[0].mxu0
  %v5116 = vadd.f32 %v4993, %v5115
  %5117 = vmatprep.mubr.bf16.mxu0 %v1516
  %5118 = vmatmul.mubr.bf16.gmra.mrb[0].mxu0 %v1515
  %v5119 = vpop.f32.mrb[0].mxu0
  %v5120 = vadd.f32 %v4997, %v5119
  %v5121 = vpop.f32.mrb[0].mxu0
  %v5122 = vadd.f32 %v4999, %v5121
  %v5123 = vpop.f32.mrb[0].mxu0
  %v5124 = vadd.f32 %v5001, %v5123
  %v5125 = vpop.f32.mrb[0].mxu0
  %v5126 = vadd.f32 %v5003, %v5125
  %5127 = vmatprep.mubr.bf16.mxu0 %v1541
  %5128 = vmatmul.mubr.bf16.gmra.mrb[0].mxu0 %v1540
  %v5129 = vpop.f32.mrb[0].mxu0
  %v5130 = vadd.f32 %v5007, %v5129
  %v5131 = vpop.f32.mrb[0].mxu0
  %v5132 = vadd.f32 %v5009, %v5131
  %v5133 = vpop.f32.mrb[0].mxu0
  %v5134 = vadd.f32 %v5011, %v5133
  %v5135 = vpop.f32.mrb[0].mxu0
  %v5136 = vadd.f32 %v5013, %v5135
  %5137 = vmatprep.mubr.bf16.mxu0 %v1566
  %5138 = vmatmul.mubr.bf16.gmra.mrb[0].mxu0 %v1565
  %v5139 = vpop.f32.mrb[0].mxu0
  %v5140 = vadd.f32 %v5017, %v5139
  %v5141 = vpop.f32.mrb[0].mxu0
  %v5142 = vadd.f32 %v5019, %v5141
  %v5143 = vpop.f32.mrb[0].mxu0
  %v5144 = vadd.f32 %v5021, %v5143
  %v5145 = vpop.f32.mrb[0].mxu0
  %v5146 = vadd.f32 %v5023, %v5145
  %5147 = vdwg.mxu0
  %5148 = vmatprep.subr.bf16.mxu0 %v3348
  %5149 = vmatpush1.bf16.msra.mxu0 %v3347
  %5150 = vmatprep.subr.bf16.mxu0 %v3350
  %5151 = vmatpush1.bf16.msra.mxu0 %v3349
  %5152 = vmatprep.subr.bf16.mxu0 %v3352
  %5153 = vmatpush1.bf16.msra.mxu0 %v3351
  %5154 = vmatprep.subr.bf16.mxu0 %v3354
  %5155 = vmatpush1.bf16.msra.mxu0 %v3353
  %5156 = vmatprep.subr.bf16.mxu0 %v3356
  %5157 = vmatpush1.bf16.msra.mxu0 %v3355
  %5158 = vmatprep.subr.bf16.mxu0 %v3358
  %5159 = vmatpush1.bf16.msra.mxu0 %v3357
  %5160 = vmatprep.subr.bf16.mxu0 %v3360
  %5161 = vmatpush1.bf16.msra.mxu0 %v3359
  %5162 = vmatprep.subr.bf16.mxu0 %v3362
  %5163 = vmatpush1.bf16.msra.mxu0 %v3361
  %5164 = vmatprep.subr.bf16.mxu0 %v3364
  %5165 = vmatpush1.bf16.msra.mxu0 %v3363
  %5166 = vmatprep.subr.bf16.mxu0 %v3366
  %5167 = vmatpush1.bf16.msra.mxu0 %v3365
  %5168 = vmatprep.subr.bf16.mxu0 %v3368
  %5169 = vmatpush1.bf16.msra.mxu0 %v3367
  %5170 = vmatprep.subr.bf16.mxu0 %v3370
  %5171 = vmatpush1.bf16.msra.mxu0 %v3369
  %5172 = vmatprep.subr.bf16.mxu0 %v3372
  %5173 = vmatpush1.bf16.msra.mxu0 %v3371
  %5174 = vmatprep.subr.bf16.mxu0 %v3374
  %5175 = vmatpush1.bf16.msra.mxu0 %v3373
  %5176 = vmatprep.subr.bf16.mxu0 %v3376
  %5177 = vmatpush1.bf16.msra.mxu0 %v3375
  %5178 = vmatprep.subr.bf16.mxu0 %v3378
  %5179 = vmatpush1.bf16.msra.mxu0 %v3377
  %5180 = vmatprep.mubr.bf16.mxu0 %v1368
  %5181 = vmatmul.mubr.bf16.gmra.mrb[0].mxu0 %v1367
  %v5182 = vpop.f32.mrb[0].mxu0
  %v5183 = vadd.f32 %v5060, %v5182
  %v5184 = vpop.f32.mrb[0].mxu0
  %v5185 = vadd.f32 %v5062, %v5184
  %v5186 = vpop.f32.mrb[0].mxu0
  %v5187 = vadd.f32 %v5064, %v5186
  %v5188 = vpop.f32.mrb[0].mxu0
  %v5189 = vadd.f32 %v5066, %v5188
  %5190 = vmatprep.mubr.bf16.mxu0 %v1393
  %5191 = vmatmul.mubr.bf16.gmra.mrb[0].mxu0 %v1392
  %v5192 = vpop.f32.mrb[0].mxu0
  %v5193 = vadd.f32 %v5070, %v5192
  %v5194 = vpop.f32.mrb[0].mxu0
  %v5195 = vadd.f32 %v5072, %v5194
  %v5196 = vpop.f32.mrb[0].mxu0
  %v5197 = vadd.f32 %v5074, %v5196
  %v5198 = vpop.f32.mrb[0].mxu0
  %v5199 = vadd.f32 %v5076, %v5198
  %5200 = vmatprep.mubr.bf16.mxu0 %v1418
  %5201 = vmatmul.mubr.bf16.gmra.mrb[0].mxu0 %v1417
  %v5202 = vpop.f32.mrb[0].mxu0
  %v5203 = vadd.f32 %v5080, %v5202
  %v5204 = vpop.f32.mrb[0].mxu0
  %v5205 = vadd.f32 %v5082, %v5204
  %v5206 = vpop.f32.mrb[0].mxu0
  %v5207 = vadd.f32 %v5084, %v5206
  %v5208 = vpop.f32.mrb[0].mxu0
  %v5209 = vadd.f32 %v5086, %v5208
  %5210 = vmatprep.mubr.bf16.mxu0 %v1443
  %5211 = vmatmul.mubr.bf16.gmra.mrb[0].mxu0 %v1442
  %v5212 = vpop.f32.mrb[0].mxu0
  %v5213 = vadd.f32 %v5090, %v5212
  %v5214 = vpop.f32.mrb[0].mxu0
  %v5215 = vadd.f32 %v5092, %v5214
  %v5216 = vpop.f32.mrb[0].mxu0
  %v5217 = vadd.f32 %v5094, %v5216
  %v5218 = vpop.f32.mrb[0].mxu0
  %v5219 = vadd.f32 %v5096, %v5218
  %5220 = vmatprep.mubr.bf16.mxu0 %v1468
  %5221 = vmatmul.mubr.bf16.gmra.mrb[0].mxu0 %v1467
  %v5222 = vpop.f32.mrb[0].mxu0
  %v5223 = vadd.f32 %v5100, %v5222
  %v5224 = vpop.f32.mrb[0].mxu0
  %v5225 = vadd.f32 %v5102, %v5224
  %v5226 = vpop.f32.mrb[0].mxu0
  %v5227 = vadd.f32 %v5104, %v5226
  %v5228 = vpop.f32.mrb[0].mxu0
  %v5229 = vadd.f32 %v5106, %v5228
  %5230 = vmatprep.mubr.bf16.mxu0 %v1493
  %5231 = vmatmul.mubr.bf16.gmra.mrb[0].mxu0 %v1492
  %v5232 = vpop.f32.mrb[0].mxu0
  %v5233 = vadd.f32 %v5110, %v5232
  %v5234 = vpop.f32.mrb[0].mxu0
  %v5235 = vadd.f32 %v5112, %v5234
  %v5236 = vpop.f32.mrb[0].mxu0
  %v5237 = vadd.f32 %v5114, %v5236
  %v5238 = vpop.f32.mrb[0].mxu0
  %v5239 = vadd.f32 %v5116, %v5238
  %5240 = vmatprep.mubr.bf16.mxu0 %v1518
  %5241 = vmatmul.mubr.bf16.gmra.mrb[0].mxu0 %v1517
  %v5242 = vpop.f32.mrb[0].mxu0
  %v5243 = vadd.f32 %v5120, %v5242
  %v5244 = vpop.f32.mrb[0].mxu0
  %v5245 = vadd.f32 %v5122, %v5244
  %v5246 = vpop.f32.mrb[0].mxu0
  %v5247 = vadd.f32 %v5124, %v5246
  %v5248 = vpop.f32.mrb[0].mxu0
  %v5249 = vadd.f32 %v5126, %v5248
  %5250 = vmatprep.mubr.bf16.mxu0 %v1543
  %5251 = vmatmul.mubr.bf16.gmra.mrb[0].mxu0 %v1542
  %v5252 = vpop.f32.mrb[0].mxu0
  %v5253 = vadd.f32 %v5130, %v5252
  %v5254 = vpop.f32.mrb[0].mxu0
  %v5255 = vadd.f32 %v5132, %v5254
  %v5256 = vpop.f32.mrb[0].mxu0
  %v5257 = vadd.f32 %v5134, %v5256
  %v5258 = vpop.f32.mrb[0].mxu0
  %v5259 = vadd.f32 %v5136, %v5258
  %5260 = vmatprep.mubr.bf16.mxu0 %v1568
  %5261 = vmatmul.mubr.bf16.gmra.mrb[0].mxu0 %v1567
  %v5262 = vpop.f32.mrb[0].mxu0
  %v5263 = vadd.f32 %v5140, %v5262
  %v5264 = vpop.f32.mrb[0].mxu0
  %v5265 = vadd.f32 %v5142, %v5264
  %v5266 = vpop.f32.mrb[0].mxu0
  %v5267 = vadd.f32 %v5144, %v5266
  %v5268 = vpop.f32.mrb[0].mxu0
  %v5269 = vadd.f32 %v5146, %v5268
  %5270 = vdwg.mxu0
  %5271 = vmatprep.subr.bf16.mxu0 %v3380
  %5272 = vmatpush1.bf16.msra.mxu0 %v3379
  %5273 = vmatprep.subr.bf16.mxu0 %v3382
  %5274 = vmatpush1.bf16.msra.mxu0 %v3381
  %5275 = vmatprep.subr.bf16.mxu0 %v3384
  %5276 = vmatpush1.bf16.msra.mxu0 %v3383
  %5277 = vmatprep.subr.bf16.mxu0 %v3386
  %5278 = vmatpush1.bf16.msra.mxu0 %v3385
  %5279 = vmatprep.subr.bf16.mxu0 %v3388
  %5280 = vmatpush1.bf16.msra.mxu0 %v3387
  %5281 = vmatprep.subr.bf16.mxu0 %v3390
  %5282 = vmatpush1.bf16.msra.mxu0 %v3389
  %5283 = vmatprep.subr.bf16.mxu0 %v3392
  %5284 = vmatpush1.bf16.msra.mxu0 %v3391
  %5285 = vmatprep.subr.bf16.mxu0 %v3394
  %5286 = vmatpush1.bf16.msra.mxu0 %v3393
  %5287 = vmatprep.subr.bf16.mxu0 0
  %5288 = vmatpush1.bf16.msra.mxu0 0
  %5289 = vmatprep.subr.bf16.mxu0 0
  %5290 = vmatpush1.bf16.msra.mxu0 0
  %5291 = vmatprep.subr.bf16.mxu0 0
  %5292 = vmatpush1.bf16.msra.mxu0 0
  %5293 = vmatprep.subr.bf16.mxu0 0
  %5294 = vmatpush1.bf16.msra.mxu0 0
  %5295 = vmatprep.subr.bf16.mxu0 0
  %5296 = vmatpush1.bf16.msra.mxu0 0
  %5297 = vmatprep.subr.bf16.mxu0 0
  %5298 = vmatpush1.bf16.msra.mxu0 0
  %5299 = vmatprep.subr.bf16.mxu0 0
  %5300 = vmatpush1.bf16.msra.mxu0 0
  %5301 = vmatprep.subr.bf16.mxu0 0
  %5302 = vmatpush1.bf16.msra.mxu0 0
  %5303 = vmatprep.mubr.bf16.mxu0 0
  %5304 = vmatmul.mubr.bf16.gmra.mrb[0].mxu0 %v1369
  %v5305 = vpop.f32.mrb[0].mxu0
  %v5306 = vadd.f32 %v5183, %v5305
  %v5307 = vpop.f32.mrb[0].mxu0
  %v5308 = vadd.f32 %v5185, %v5307
  %v5309 = vpop.f32.mrb[0].mxu0
  %v5310 = vadd.f32 %v5187, %v5309
  %v5311 = vpop.f32.mrb[0].mxu0
  %v5312 = vadd.f32 %v5189, %v5311
  %5313 = vmatprep.mubr.bf16.mxu0 0
  %5314 = vmatmul.mubr.bf16.gmra.mrb[0].mxu0 %v1394
  %v5315 = vpop.f32.mrb[0].mxu0
  %v5316 = vadd.f32 %v5193, %v5315
  %v5317 = vpop.f32.mrb[0].mxu0
  %v5318 = vadd.f32 %v5195, %v5317
  %v5319 = vpop.f32.mrb[0].mxu0
  %v5320 = vadd.f32 %v5197, %v5319
  %v5321 = vpop.f32.mrb[0].mxu0
  %v5322 = vadd.f32 %v5199, %v5321
  %5323 = vmatprep.mubr.bf16.mxu0 0
  %5324 = vmatmul.mubr.bf16.gmra.mrb[0].mxu0 %v1419
  %v5325 = vpop.f32.mrb[0].mxu0
  %v5326 = vadd.f32 %v5203, %v5325
  %v5327 = vpop.f32.mrb[0].mxu0
  %v5328 = vadd.f32 %v5205, %v5327
  %v5329 = vpop.f32.mrb[0].mxu0
  %v5330 = vadd.f32 %v5207, %v5329
  %v5331 = vpop.f32.mrb[0].mxu0
  %v5332 = vadd.f32 %v5209, %v5331
  %5333 = vmatprep.mubr.bf16.mxu0 0
  %5334 = vmatmul.mubr.bf16.gmra.mrb[0].mxu0 %v1444
  %v5335 = vpop.f32.mrb[0].mxu0
  %v5336 = vadd.f32 %v5213, %v5335
  %v5337 = vpop.f32.mrb[0].mxu0
  %v5338 = vadd.f32 %v5215, %v5337
  %v5339 = vpop.f32.mrb[0].mxu0
  %v5340 = vadd.f32 %v5217, %v5339
  %v5341 = vpop.f32.mrb[0].mxu0
  %v5342 = vadd.f32 %v5219, %v5341
  %5343 = vmatprep.mubr.bf16.mxu0 0
  %5344 = vmatmul.mubr.bf16.gmra.mrb[0].mxu0 %v1469
  %v5345 = vpop.f32.mrb[0].mxu0
  %v5346 = vadd.f32 %v5223, %v5345
  %v5347 = vpop.f32.mrb[0].mxu0
  %v5348 = vadd.f32 %v5225, %v5347
  %v5349 = vpop.f32.mrb[0].mxu0
  %v5350 = vadd.f32 %v5227, %v5349
  %v5351 = vpop.f32.mrb[0].mxu0
  %v5352 = vadd.f32 %v5229, %v5351
  %5353 = vmatprep.mubr.bf16.mxu0 0
  %5354 = vmatmul.mubr.bf16.gmra.mrb[0].mxu0 %v1494
  %v5355 = vpop.f32.mrb[0].mxu0
  %v5356 = vadd.f32 %v5233, %v5355
  %v5357 = vpop.f32.mrb[0].mxu0
  %v5358 = vadd.f32 %v5235, %v5357
  %v5359 = vpop.f32.mrb[0].mxu0
  %v5360 = vadd.f32 %v5237, %v5359
  %v5361 = vpop.f32.mrb[0].mxu0
  %v5362 = vadd.f32 %v5239, %v5361
  %5363 = vmatprep.mubr.bf16.mxu0 0
  %5364 = vmatmul.mubr.bf16.gmra.mrb[0].mxu0 %v1519
  %v5365 = vpop.f32.mrb[0].mxu0
  %v5366 = vadd.f32 %v5243, %v5365
  %v5367 = vpop.f32.mrb[0].mxu0
  %v5368 = vadd.f32 %v5245, %v5367
  %v5369 = vpop.f32.mrb[0].mxu0
  %v5370 = vadd.f32 %v5247, %v5369
  %v5371 = vpop.f32.mrb[0].mxu0
  %v5372 = vadd.f32 %v5249, %v5371
  %5373 = vmatprep.mubr.bf16.mxu0 0
  %5374 = vmatmul.mubr.bf16.gmra.mrb[0].mxu0 %v1544
  %v5375 = vpop.f32.mrb[0].mxu0
  %v5376 = vadd.f32 %v5253, %v5375
  %v5377 = vpop.f32.mrb[0].mxu0
  %v5378 = vadd.f32 %v5255, %v5377
  %v5379 = vpop.f32.mrb[0].mxu0
  %v5380 = vadd.f32 %v5257, %v5379
  %v5381 = vpop.f32.mrb[0].mxu0
  %v5382 = vadd.f32 %v5259, %v5381
  %5383 = vmatprep.mubr.bf16.mxu0 0
  %5384 = vmatmul.mubr.bf16.gmra.mrb[0].mxu0 %v1569
  %v5385 = vpop.f32.mrb[0].mxu0
  %v5386 = vadd.f32 %v5263, %v5385
  %v5387 = vpop.f32.mrb[0].mxu0
  %v5388 = vadd.f32 %v5265, %v5387
  %v5389 = vpop.f32.mrb[0].mxu0
  %v5390 = vadd.f32 %v5267, %v5389
  %v5391 = vpop.f32.mrb[0].mxu0
  %v5392 = vadd.f32 %v5269, %v5391
  %5393 = vdwg.mxu0
  %v5394 = vmax.f32 %v5306, 0.0
  %v5395 = vmax.f32 %v5308, 0.0
  %v5396 = vmax.f32 %v5310, 0.0
  %v5397 = vmax.f32 %v5312, 0.0
  %v5398 = vmax.f32 %v5316, 0.0
  %v5399 = vmax.f32 %v5318, 0.0
  %v5400 = vmax.f32 %v5320, 0.0
  %v5401 = vmax.f32 %v5322, 0.0
  %v5402 = vmax.f32 %v5326, 0.0
  %v5403 = vmax.f32 %v5328, 0.0
  %v5404 = vmax.f32 %v5330, 0.0
  %v5405 = vmax.f32 %v5332, 0.0
  %v5406 = vmax.f32 %v5336, 0.0
  %v5407 = vmax.f32 %v5338, 0.0
  %v5408 = vmax.f32 %v5340, 0.0
  %v5409 = vmax.f32 %v5342, 0.0
  %v5410 = vmax.f32 %v5346, 0.0
  %v5411 = vmax.f32 %v5348, 0.0
  %v5412 = vmax.f32 %v5350, 0.0
  %v5413 = vmax.f32 %v5352, 0.0
  %v5414 = vmax.f32 %v5356, 0.0
  %v5415 = vmax.f32 %v5358, 0.0
  %v5416 = vmax.f32 %v5360, 0.0
  %v5417 = vmax.f32 %v5362, 0.0
  %v5418 = vmax.f32 %v5366, 0.0
  %v5419 = vmax.f32 %v5368, 0.0
  %v5420 = vmax.f32 %v5370, 0.0
  %v5421 = vmax.f32 %v5372, 0.0
  %v5422 = vmax.f32 %v5376, 0.0
  %v5423 = vmax.f32 %v5378, 0.0
  %v5424 = vmax.f32 %v5380, 0.0
  %v5425 = vmax.f32 %v5382, 0.0
  %v5426 = vmax.f32 %v5386, 0.0
  %v5427 = vmax.f32 %v5388, 0.0
  %v5428 = vmax.f32 %v5390, 0.0
  %v5429 = vmax.f32 %v5392, 0.0
  %v5430 = vpack.c.bf16 %v5396, %v5394
  %v5431 = vpack.c.bf16 %v5397, %v5395
  %v5432 = vpack.c.bf16 %v5400, %v5398
  %v5433 = vpack.c.bf16 %v5401, %v5399
  %v5434 = vpack.c.bf16 %v5404, %v5402
  %v5435 = vpack.c.bf16 %v5405, %v5403
  %v5436 = vpack.c.bf16 %v5408, %v5406
  %v5437 = vpack.c.bf16 %v5409, %v5407
  %v5438 = vpack.c.bf16 %v5412, %v5410
  %v5439 = vpack.c.bf16 %v5413, %v5411
  %v5440 = vpack.c.bf16 %v5416, %v5414
  %v5441 = vpack.c.bf16 %v5417, %v5415
  %v5442 = vpack.c.bf16 %v5420, %v5418
  %v5443 = vpack.c.bf16 %v5421, %v5419
  %v5444 = vpack.c.bf16 %v5424, %v5422
  %v5445 = vpack.c.bf16 %v5425, %v5423
  %v5446 = vpack.c.bf16 %v5428, %v5426
  %v5447 = vpack.c.bf16 %v5429, %v5427
  %v5466 = vunpack.c.l.b16 %v5430
  %v5467 = vunpack.c.l.b16 %v5431
  %v5468 = vunpack.c.h.b16 %v5430
  %v5469 = vunpack.c.h.b16 %v5431
  %v5470 = vunpack.c.l.b16 %v5432
  %v5471 = vunpack.c.l.b16 %v5433
  %v5472 = vunpack.c.h.b16 %v5432
  %v5473 = vunpack.c.h.b16 %v5433
  %v5474 = vunpack.c.l.b16 %v5434
  %v5475 = vunpack.c.l.b16 %v5435
  %v5476 = vunpack.c.h.b16 %v5434
  %v5477 = vunpack.c.h.b16 %v5435
  %v5478 = vunpack.c.l.b16 %v5436
  %v5479 = vunpack.c.l.b16 %v5437
  %v5480 = vunpack.c.h.b16 %v5436
  %v5481 = vunpack.c.h.b16 %v5437
  %v5482 = vunpack.c.l.b16 %v5438
  %v5483 = vunpack.c.l.b16 %v5439
  %v5484 = vunpack.c.h.b16 %v5438
  %v5485 = vunpack.c.h.b16 %v5439
  %v5486 = vunpack.c.l.b16 %v5440
  %v5487 = vunpack.c.l.b16 %v5441
  %v5488 = vunpack.c.h.b16 %v5440
  %v5489 = vunpack.c.h.b16 %v5441
  %v5490 = vunpack.c.l.b16 %v5442
  %v5491 = vunpack.c.l.b16 %v5443
  %v5492 = vunpack.c.h.b16 %v5442
  %v5493 = vunpack.c.h.b16 %v5443
  %v5494 = vunpack.c.l.b16 %v5444
  %v5495 = vunpack.c.l.b16 %v5445
  %v5496 = vunpack.c.h.b16 %v5444
  %v5497 = vunpack.c.h.b16 %v5445
  %v5498 = vunpack.c.l.b16 %v5446
  %v5499 = vunpack.c.l.b16 %v5447
  %v5500 = vunpack.c.h.b16 %v5446
  %v5501 = vunpack.c.h.b16 %v5447
  %v5502 = vpack.c.b16 %v5467, %v5466
  %v5503 = vpack.c.b16 %v5469, %v5468
  %v5504 = vpack.c.b16 %v5471, %v5470
  %v5505 = vpack.c.b16 %v5473, %v5472
  %v5506 = vpack.c.b16 %v5475, %v5474
  %v5507 = vpack.c.b16 %v5477, %v5476
  %v5508 = vpack.c.b16 %v5479, %v5478
  %v5509 = vpack.c.b16 %v5481, %v5480
  %v5510 = vpack.c.b16 %v5483, %v5482
  %v5511 = vpack.c.b16 %v5485, %v5484
  %v5512 = vpack.c.b16 %v5487, %v5486
  %v5513 = vpack.c.b16 %v5489, %v5488
  %v5514 = vpack.c.b16 %v5491, %v5490
  %v5515 = vpack.c.b16 %v5493, %v5492
  %v5516 = vpack.c.b16 %v5495, %v5494
  %v5517 = vpack.c.b16 %v5497, %v5496
  %v5518 = vpack.c.b16 %v5499, %v5498
  %v5519 = vpack.c.b16 %v5501, %v5500
  %5538 = vst [vmem:[%s3] sm:$0xff] %v5502
  %5539 = vst [vmem:[%s3 + $0x8] sm:$0xff] %v5503
  %5540 = vst [vmem:[%s3 + $0x10] sm:$0xff] %v5504
  %5541 = vst [vmem:[%s3 + $0x18] sm:$0xff] %v5505
  %5542 = vst [vmem:[%s3 + $0x20] sm:$0xff] %v5506
  %5543 = vst [vmem:[%s3 + $0x28] sm:$0xff] %v5507
  %5544 = vst [vmem:[%s3 + $0x30] sm:$0xff] %v5508
  %5545 = vst [vmem:[%s3 + $0x38] sm:$0xff] %v5509
  %5546 = vst [vmem:[%s3 + $0x40] sm:$0xff] %v5510
  %5547 = vst [vmem:[%s3 + $0x48] sm:$0xff] %v5511
  %5548 = vst [vmem:[%s3 + $0x50] sm:$0xff] %v5512
  %5549 = vst [vmem:[%s3 + $0x58] sm:$0xff] %v5513
  %5550 = vst [vmem:[%s3 + $0x60] sm:$0xff] %v5514
  %5551 = vst [vmem:[%s3 + $0x68] sm:$0xff] %v5515
  %5552 = vst [vmem:[%s3 + $0x70] sm:$0xff] %v5516
  %5553 = vst [vmem:[%s3 + $0x78] sm:$0xff] %v5517
  %5554 = vst [vmem:[%s3 + $0x80] sm:$0xff] %v5518
  %5555 = vst [vmem:[%s3 + $0x88] sm:$0xff] %v5519
  // Predicated region
  $region14: #{siamese_forward.4} parent=0 // pred_check
    _
  $region15: #{siamese_forward.4} parent=0 // pred_check_branch
    %5557 = sbr.rel (0) target = $region17
  $region16: #{siamese_forward.4} parent=0 // pred_region
    _
  $region17: #{siamese_forward.4} parent=0 // pred_fallthru
    _
  // Predicated region
  $region18: #{siamese_forward.4} parent=0 // pred_check
    _
  $region19: #{siamese_forward.4} parent=0 // pred_check_branch
    %5559 = sbr.rel (0) target = $region21
  $region20: #{siamese_forward.4} parent=0 // pred_region
    _
  $region21: #{siamese_forward.4} parent=0 // pred_fallthru
    _

// kernel: siamese_forward.5
$region0: #{siamese_forward.5}
  #allocation0 [shape = 'u32[]', space=smem, size = 0x4, offset = 0x4, fixed_abs, tag = 'smem constant byte address 0x4 - core index']
  #allocation1 [shape = 'u32[144,128]{1,0:T(1,128)}', space=vmem, size = 0x12000, scoped, tag = 'internal scratch']
  %s0 = inlined_call_operand.vmem [shape: bf16[8,2304], index: 0, kind: input, shape index: {}]
  %s1 = inlined_call_operand.vmem [shape: bf16[2304,384], index: 1, kind: input, shape index: {}]
  %s2 = inlined_call_operand.vmem [shape: f32[1,384], index: 2, kind: input, shape index: {}]
  %s3 = inlined_call_operand.vmem [shape: bf16[384,1024], index: 3, kind: input, shape index: {}]
  %s4 = inlined_call_operand.vmem [shape: f32[1,1024], index: 4, kind: input, shape index: {}]
  %s5 = inlined_call_operand.vmem [shape: bf16[1024,256], index: 5, kind: input, shape index: {}]
  %s6 = inlined_call_operand.vmem [shape: f32[1,256], index: 6, kind: input, shape index: {}]
  %s7 = inlined_call_operand.vmem [shape: bf16[256,128], index: 7, kind: input, shape index: {}]
  %s8 = inlined_call_operand.vmem [shape: f32[1,128], index: 8, kind: input, shape index: {}]
  %s9 = inlined_call_operand.vmem [shape: f32[8,128], index: 9, kind: output, shape index: {}]
  %s10 = sld [smem:[#allocation0]]
  $region46: #{siamese_forward.5} parent=0
    _
  %s12 = ssub.s32 1, %s10
  %s13 = scalar_select 0, %s12, %s10
  // Predicated region
  $region2: #{siamese_forward.5} parent=0 // pred_check
    _
  $region3: #{siamese_forward.5} parent=0 // pred_check_branch
    %15 = sbr.rel (0) target = $region5
  $region4: #{siamese_forward.5} parent=0 // pred_region
    _
  $region5: #{siamese_forward.5} parent=0 // pred_fallthru
    _
  // Predicated region
  $region6: #{siamese_forward.5} parent=0 // pred_check
    _
  $region7: #{siamese_forward.5} parent=0 // pred_check_branch
    %17 = sbr.rel (0) target = $region9
  $region8: #{siamese_forward.5} parent=0 // pred_region
    _
  $region9: #{siamese_forward.5} parent=0 // pred_fallthru
    _
  // Predicated region
  $region10: #{siamese_forward.5} parent=0 // pred_check
    _
  $region11: #{siamese_forward.5} parent=0 // pred_check_branch
    %19 = sbr.rel (0) target = $region13
  $region12: #{siamese_forward.5} parent=0 // pred_region
    _
  $region13: #{siamese_forward.5} parent=0 // pred_fallthru
    _
  // Predicated region
  $region14: #{siamese_forward.5} parent=0 // pred_check
    _
  $region15: #{siamese_forward.5} parent=0 // pred_check_branch
    %21 = sbr.rel (0) target = $region17
  $region16: #{siamese_forward.5} parent=0 // pred_region
    _
  $region17: #{siamese_forward.5} parent=0 // pred_fallthru
    _
  // Predicated region
  $region18: #{siamese_forward.5} parent=0 // pred_check
    _
  $region19: #{siamese_forward.5} parent=0 // pred_check_branch
    %23 = sbr.rel (0) target = $region21
  $region20: #{siamese_forward.5} parent=0 // pred_region
    _
  $region21: #{siamese_forward.5} parent=0 // pred_fallthru
    _
  // Predicated region
  $region22: #{siamese_forward.5} parent=0 // pred_check
    _
  $region23: #{siamese_forward.5} parent=0 // pred_check_branch
    %25 = sbr.rel (0) target = $region25
  $region24: #{siamese_forward.5} parent=0 // pred_region
    _
  $region25: #{siamese_forward.5} parent=0 // pred_fallthru
    _
  // Predicated region
  $region26: #{siamese_forward.5} parent=0 // pred_check
    _
  $region27: #{siamese_forward.5} parent=0 // pred_check_branch
    %27 = sbr.rel (0) target = $region29
  $region28: #{siamese_forward.5} parent=0 // pred_region
    _
  $region29: #{siamese_forward.5} parent=0 // pred_fallthru
    _
  // Predicated region
  $region30: #{siamese_forward.5} parent=0 // pred_check
    _
  $region31: #{siamese_forward.5} parent=0 // pred_check_branch
    %29 = sbr.rel (0) target = $region33
  $region32: #{siamese_forward.5} parent=0 // pred_region
    _
  $region33: #{siamese_forward.5} parent=0 // pred_fallthru
    _
  // Predicated region
  $region34: #{siamese_forward.5} parent=0 // pred_check
    _
  $region35: #{siamese_forward.5} parent=0 // pred_check_branch
    %31 = sbr.rel (0) target = $region37
  $region36: #{siamese_forward.5} parent=0 // pred_region
    _
  $region37: #{siamese_forward.5} parent=0 // pred_fallthru
    _
  %v33 = vld [vmem:[%s0] sm:$0xff]
  %v34 = vld [vmem:[%s0 + $0x8] sm:$0xff]
  %v35 = vld [vmem:[%s0 + $0x10] sm:$0xff]
  %v36 = vld [vmem:[%s0 + $0x18] sm:$0xff]
  %v37 = vld [vmem:[%s0 + $0x20] sm:$0xff]
  %v38 = vld [vmem:[%s0 + $0x28] sm:$0xff]
  %v39 = vld [vmem:[%s0 + $0x30] sm:$0xff]
  %v40 = vld [vmem:[%s0 + $0x38] sm:$0xff]
  %v41 = vld [vmem:[%s0 + $0x40] sm:$0xff]
  %v42 = vld [vmem:[%s1] sm:$0xff]
  %v43 = vld [vmem:[%s1 + $0x8] sm:$0xf]
  %v44 = vld [vmem:[%s1 + $0xc] sm:$0xff]
  %v45 = vld [vmem:[%s1 + $0x14] sm:$0xf]
  %v46 = vld [vmem:[%s1 + $0x18] sm:$0xff]
  %v47 = vld [vmem:[%s1 + $0x20] sm:$0xf]
  %v48 = vld [vmem:[%s1 + $0x24] sm:$0xff]
  %v49 = vld [vmem:[%s1 + $0x2c] sm:$0xf]
  %v50 = vld [vmem:[%s1 + $0x30] sm:$0xff]
  %v51 = vld [vmem:[%s1 + $0x38] sm:$0xf]
  %v52 = vld [vmem:[%s1 + $0x3c] sm:$0xff]
  %v53 = vld [vmem:[%s1 + $0x44] sm:$0xf]
  %v54 = vld [vmem:[%s1 + $0x48] sm:$0xff]
  %v55 = vld [vmem:[%s1 + $0x50] sm:$0xf]
  %v56 = vld [vmem:[%s1 + $0x54] sm:$0xff]
  %v57 = vld [vmem:[%s1 + $0x5c] sm:$0xf]
  %v58 = vld [vmem:[%s1 + $0x60] sm:$0xff]
  %v59 = vld [vmem:[%s1 + $0x68] sm:$0xf]
  %v60 = vld [vmem:[%s1 + $0x6c] sm:$0xff]
  %v61 = vld [vmem:[%s1 + $0x74] sm:$0xf]
  %v62 = vld [vmem:[%s1 + $0x78] sm:$0xff]
  %v63 = vld [vmem:[%s1 + $0x80] sm:$0xf]
  %v64 = vld [vmem:[%s1 + $0x84] sm:$0xff]
  %v65 = vld [vmem:[%s1 + $0x8c] sm:$0xf]
  %v66 = vld [vmem:[%s1 + $0x90] sm:$0xff]
  %v67 = vld [vmem:[%s1 + $0x98] sm:$0xf]
  %v68 = vld [vmem:[%s1 + $0x9c] sm:$0xff]
  %v69 = vld [vmem:[%s1 + $0xa4] sm:$0xf]
  %v70 = vld [vmem:[%s1 + $0xa8] sm:$0xff]
  %v71 = vld [vmem:[%s1 + $0xb0] sm:$0xf]
  %v72 = vld [vmem:[%s1 + $0xb4] sm:$0xff]
  %v73 = vld [vmem:[%s1 + $0xbc] sm:$0xf]
  %v74 = vld [vmem:[%s1 + $0xc0] sm:$0xff]
  %v75 = vld [vmem:[%s1 + $0xc8] sm:$0xf]
  %v76 = vld [vmem:[%s1 + $0xcc] sm:$0xff]
  %v77 = vld [vmem:[%s1 + $0xd4] sm:$0xf]
  %v78 = vld [vmem:[%s1 + $0xd8] sm:$0xff]
  %v79 = vld [vmem:[%s1 + $0xe0] sm:$0xf]
  %v80 = vld [vmem:[%s1 + $0xe4] sm:$0xff]
  %v81 = vld [vmem:[%s1 + $0xec] sm:$0xf]
  %v82 = vld [vmem:[%s1 + $0xf0] sm:$0xff]
  %v83 = vld [vmem:[%s1 + $0xf8] sm:$0xf]
  %v84 = vld [vmem:[%s1 + $0xfc] sm:$0xff]
  %v85 = vld [vmem:[%s1 + $0x104] sm:$0xf]
  %v86 = vld [vmem:[%s1 + $0x108] sm:$0xff]
  %v87 = vld [vmem:[%s1 + $0x110] sm:$0xf]
  %v88 = vld [vmem:[%s1 + $0x114] sm:$0xff]
  %v89 = vld [vmem:[%s1 + $0x11c] sm:$0xf]
  %v90 = vld [vmem:[%s1 + $0x120] sm:$0xff]
  %v91 = vld [vmem:[%s1 + $0x128] sm:$0xf]
  %v92 = vld [vmem:[%s1 + $0x12c] sm:$0xff]
  %v93 = vld [vmem:[%s1 + $0x134] sm:$0xf]
  %v94 = vld [vmem:[%s1 + $0x138] sm:$0xff]
  %v95 = vld [vmem:[%s1 + $0x140] sm:$0xf]
  %v96 = vld [vmem:[%s1 + $0x144] sm:$0xff]
  %v97 = vld [vmem:[%s1 + $0x14c] sm:$0xf]
  %v98 = vld [vmem:[%s1 + $0x150] sm:$0xff]
  %v99 = vld [vmem:[%s1 + $0x158] sm:$0xf]
  %v100 = vld [vmem:[%s1 + $0x15c] sm:$0xff]
  %v101 = vld [vmem:[%s1 + $0x164] sm:$0xf]
  %v102 = vld [vmem:[%s1 + $0x168] sm:$0xff]
  %v103 = vld [vmem:[%s1 + $0x170] sm:$0xf]
  %v104 = vld [vmem:[%s1 + $0x174] sm:$0xff]
  %v105 = vld [vmem:[%s1 + $0x17c] sm:$0xf]
  %v106 = vld [vmem:[%s1 + $0x180] sm:$0xff]
  %v107 = vld [vmem:[%s1 + $0x188] sm:$0xf]
  %v108 = vld [vmem:[%s1 + $0x18c] sm:$0xff]
  %v109 = vld [vmem:[%s1 + $0x194] sm:$0xf]
  %v110 = vld [vmem:[%s1 + $0x198] sm:$0xff]
  %v111 = vld [vmem:[%s1 + $0x1a0] sm:$0xf]
  %v112 = vld [vmem:[%s1 + $0x1a4] sm:$0xff]
  %v113 = vld [vmem:[%s1 + $0x1ac] sm:$0xf]
  %v114 = vld [vmem:[%s1 + $0x1b0] sm:$0xff]
  %v115 = vld [vmem:[%s1 + $0x1b8] sm:$0xf]
  %v116 = vld [vmem:[%s1 + $0x1bc] sm:$0xff]
  %v117 = vld [vmem:[%s1 + $0x1c4] sm:$0xf]
  %v118 = vld [vmem:[%s1 + $0x1c8] sm:$0xff]
  %v119 = vld [vmem:[%s1 + $0x1d0] sm:$0xf]
  %v120 = vld [vmem:[%s1 + $0x1d4] sm:$0xff]
  %v121 = vld [vmem:[%s1 + $0x1dc] sm:$0xf]
  %v122 = vld [vmem:[%s1 + $0x1e0] sm:$0xff]
  %v123 = vld [vmem:[%s1 + $0x1e8] sm:$0xf]
  %v124 = vld [vmem:[%s1 + $0x1ec] sm:$0xff]
  %v125 = vld [vmem:[%s1 + $0x1f4] sm:$0xf]
  %v126 = vld [vmem:[%s1 + $0x1f8] sm:$0xff]
  %v127 = vld [vmem:[%s1 + $0x200] sm:$0xf]
  %v128 = vld [vmem:[%s1 + $0x204] sm:$0xff]
  %v129 = vld [vmem:[%s1 + $0x20c] sm:$0xf]
  %v130 = vld [vmem:[%s1 + $0x210] sm:$0xff]
  %v131 = vld [vmem:[%s1 + $0x218] sm:$0xf]
  %v132 = vld [vmem:[%s1 + $0x21c] sm:$0xff]
  %v133 = vld [vmem:[%s1 + $0x224] sm:$0xf]
  %v134 = vld [vmem:[%s1 + $0x228] sm:$0xff]
  %v135 = vld [vmem:[%s1 + $0x230] sm:$0xf]
  %v136 = vld [vmem:[%s1 + $0x234] sm:$0xff]
  %v137 = vld [vmem:[%s1 + $0x23c] sm:$0xf]
  %v138 = vld [vmem:[%s1 + $0x240] sm:$0xff]
  %v139 = vld [vmem:[%s1 + $0x248] sm:$0xf]
  %v140 = vld [vmem:[%s1 + $0x24c] sm:$0xff]
  %v141 = vld [vmem:[%s1 + $0x254] sm:$0xf]
  %v142 = vld [vmem:[%s1 + $0x258] sm:$0xff]
  %v143 = vld [vmem:[%s1 + $0x260] sm:$0xf]
  %v144 = vld [vmem:[%s1 + $0x264] sm:$0xff]
  %v145 = vld [vmem:[%s1 + $0x26c] sm:$0xf]
  %v146 = vld [vmem:[%s1 + $0x270] sm:$0xff]
  %v147 = vld [vmem:[%s1 + $0x278] sm:$0xf]
  %v148 = vld [vmem:[%s1 + $0x27c] sm:$0xff]
  %v149 = vld [vmem:[%s1 + $0x284] sm:$0xf]
  %v150 = vld [vmem:[%s1 + $0x288] sm:$0xff]
  %v151 = vld [vmem:[%s1 + $0x290] sm:$0xf]
  %v152 = vld [vmem:[%s1 + $0x294] sm:$0xff]
  %v153 = vld [vmem:[%s1 + $0x29c] sm:$0xf]
  %v154 = vld [vmem:[%s1 + $0x2a0] sm:$0xff]
  %v155 = vld [vmem:[%s1 + $0x2a8] sm:$0xf]
  %v156 = vld [vmem:[%s1 + $0x2ac] sm:$0xff]
  %v157 = vld [vmem:[%s1 + $0x2b4] sm:$0xf]
  %v158 = vld [vmem:[%s1 + $0x2b8] sm:$0xff]
  %v159 = vld [vmem:[%s1 + $0x2c0] sm:$0xf]
  %v160 = vld [vmem:[%s1 + $0x2c4] sm:$0xff]
  %v161 = vld [vmem:[%s1 + $0x2cc] sm:$0xf]
  %v162 = vld [vmem:[%s1 + $0x2d0] sm:$0xff]
  %v163 = vld [vmem:[%s1 + $0x2d8] sm:$0xf]
  %v164 = vld [vmem:[%s1 + $0x2dc] sm:$0xff]
  %v165 = vld [vmem:[%s1 + $0x2e4] sm:$0xf]
  %v166 = vld [vmem:[%s1 + $0x2e8] sm:$0xff]
  %v167 = vld [vmem:[%s1 + $0x2f0] sm:$0xf]
  %v168 = vld [vmem:[%s1 + $0x2f4] sm:$0xff]
  %v169 = vld [vmem:[%s1 + $0x2fc] sm:$0xf]
  %v170 = vld [vmem:[%s1 + $0x300] sm:$0xff]
  %v171 = vld [vmem:[%s1 + $0x308] sm:$0xf]
  %v172 = vld [vmem:[%s1 + $0x30c] sm:$0xff]
  %v173 = vld [vmem:[%s1 + $0x314] sm:$0xf]
  %v174 = vld [vmem:[%s1 + $0x318] sm:$0xff]
  %v175 = vld [vmem:[%s1 + $0x320] sm:$0xf]
  %v176 = vld [vmem:[%s1 + $0x324] sm:$0xff]
  %v177 = vld [vmem:[%s1 + $0x32c] sm:$0xf]
  %v178 = vld [vmem:[%s1 + $0x330] sm:$0xff]
  %v179 = vld [vmem:[%s1 + $0x338] sm:$0xf]
  %v180 = vld [vmem:[%s1 + $0x33c] sm:$0xff]
  %v181 = vld [vmem:[%s1 + $0x344] sm:$0xf]
  %v182 = vld [vmem:[%s1 + $0x348] sm:$0xff]
  %v183 = vld [vmem:[%s1 + $0x350] sm:$0xf]
  %v184 = vld [vmem:[%s1 + $0x354] sm:$0xff]
  %v185 = vld [vmem:[%s1 + $0x35c] sm:$0xf]
  %v186 = vld [vmem:[%s1 + $0x360] sm:$0xff]
  %v187 = vld [vmem:[%s1 + $0x368] sm:$0xf]
  %v188 = vld [vmem:[%s1 + $0x36c] sm:$0xff]
  %v189 = vld [vmem:[%s1 + $0x374] sm:$0xf]
  %v190 = vld [vmem:[%s1 + $0x378] sm:$0xff]
  %v191 = vld [vmem:[%s1 + $0x380] sm:$0xf]
  %v192 = vld [vmem:[%s1 + $0x384] sm:$0xff]
  %v193 = vld [vmem:[%s1 + $0x38c] sm:$0xf]
  %v194 = vld [vmem:[%s1 + $0x390] sm:$0xff]
  %v195 = vld [vmem:[%s1 + $0x398] sm:$0xf]
  %v196 = vld [vmem:[%s1 + $0x39c] sm:$0xff]
  %v197 = vld [vmem:[%s1 + $0x3a4] sm:$0xf]
  %v198 = vld [vmem:[%s1 + $0x3a8] sm:$0xff]
  %v199 = vld [vmem:[%s1 + $0x3b0] sm:$0xf]
  %v200 = vld [vmem:[%s1 + $0x3b4] sm:$0xff]
  %v201 = vld [vmem:[%s1 + $0x3bc] sm:$0xf]
  %v202 = vld [vmem:[%s1 + $0x3c0] sm:$0xff]
  %v203 = vld [vmem:[%s1 + $0x3c8] sm:$0xf]
  %v204 = vld [vmem:[%s1 + $0x3cc] sm:$0xff]
  %v205 = vld [vmem:[%s1 + $0x3d4] sm:$0xf]
  %v206 = vld [vmem:[%s1 + $0x3d8] sm:$0xff]
  %v207 = vld [vmem:[%s1 + $0x3e0] sm:$0xf]
  %v208 = vld [vmem:[%s1 + $0x3e4] sm:$0xff]
  %v209 = vld [vmem:[%s1 + $0x3ec] sm:$0xf]
  %v210 = vld [vmem:[%s1 + $0x3f0] sm:$0xff]
  %v211 = vld [vmem:[%s1 + $0x3f8] sm:$0xf]
  %v212 = vld [vmem:[%s1 + $0x3fc] sm:$0xff]
  %v213 = vld [vmem:[%s1 + $0x404] sm:$0xf]
  %v214 = vld [vmem:[%s1 + $0x408] sm:$0xff]
  %v215 = vld [vmem:[%s1 + $0x410] sm:$0xf]
  %v216 = vld [vmem:[%s1 + $0x414] sm:$0xff]
  %v217 = vld [vmem:[%s1 + $0x41c] sm:$0xf]
  %v218 = vld [vmem:[%s1 + $0x420] sm:$0xff]
  %v219 = vld [vmem:[%s1 + $0x428] sm:$0xf]
  %v220 = vld [vmem:[%s1 + $0x42c] sm:$0xff]
  %v221 = vld [vmem:[%s1 + $0x434] sm:$0xf]
  %v222 = vld [vmem:[%s1 + $0x438] sm:$0xff]
  %v223 = vld [vmem:[%s1 + $0x440] sm:$0xf]
  %v224 = vld [vmem:[%s1 + $0x444] sm:$0xff]
  %v225 = vld [vmem:[%s1 + $0x44c] sm:$0xf]
  %v226 = vld [vmem:[%s1 + $0x450] sm:$0xff]
  %v227 = vld [vmem:[%s1 + $0x458] sm:$0xf]
  %v228 = vld [vmem:[%s1 + $0x45c] sm:$0xff]
  %v229 = vld [vmem:[%s1 + $0x464] sm:$0xf]
  %v230 = vld [vmem:[%s1 + $0x468] sm:$0xff]
  %v231 = vld [vmem:[%s1 + $0x470] sm:$0xf]
  %v232 = vld [vmem:[%s1 + $0x474] sm:$0xff]
  %v233 = vld [vmem:[%s1 + $0x47c] sm:$0xf]
  %v234 = vld [vmem:[%s1 + $0x480] sm:$0xff]
  %v235 = vld [vmem:[%s1 + $0x488] sm:$0xf]
  %v236 = vld [vmem:[%s1 + $0x48c] sm:$0xff]
  %v237 = vld [vmem:[%s1 + $0x494] sm:$0xf]
  %v238 = vld [vmem:[%s1 + $0x498] sm:$0xff]
  %v239 = vld [vmem:[%s1 + $0x4a0] sm:$0xf]
  %v240 = vld [vmem:[%s1 + $0x4a4] sm:$0xff]
  %v241 = vld [vmem:[%s1 + $0x4ac] sm:$0xf]
  %v242 = vld [vmem:[%s1 + $0x4b0] sm:$0xff]
  %v243 = vld [vmem:[%s1 + $0x4b8] sm:$0xf]
  %v244 = vld [vmem:[%s1 + $0x4bc] sm:$0xff]
  %v245 = vld [vmem:[%s1 + $0x4c4] sm:$0xf]
  %v246 = vld [vmem:[%s1 + $0x4c8] sm:$0xff]
  %v247 = vld [vmem:[%s1 + $0x4d0] sm:$0xf]
  %v248 = vld [vmem:[%s1 + $0x4d4] sm:$0xff]
  %v249 = vld [vmem:[%s1 + $0x4dc] sm:$0xf]
  %v250 = vld [vmem:[%s1 + $0x4e0] sm:$0xff]
  %v251 = vld [vmem:[%s1 + $0x4e8] sm:$0xf]
  %v252 = vld [vmem:[%s1 + $0x4ec] sm:$0xff]
  %v253 = vld [vmem:[%s1 + $0x4f4] sm:$0xf]
  %v254 = vld [vmem:[%s1 + $0x4f8] sm:$0xff]
  %v255 = vld [vmem:[%s1 + $0x500] sm:$0xf]
  %v256 = vld [vmem:[%s1 + $0x504] sm:$0xff]
  %v257 = vld [vmem:[%s1 + $0x50c] sm:$0xf]
  %v258 = vld [vmem:[%s1 + $0x510] sm:$0xff]
  %v259 = vld [vmem:[%s1 + $0x518] sm:$0xf]
  %v260 = vld [vmem:[%s1 + $0x51c] sm:$0xff]
  %v261 = vld [vmem:[%s1 + $0x524] sm:$0xf]
  %v262 = vld [vmem:[%s1 + $0x528] sm:$0xff]
  %v263 = vld [vmem:[%s1 + $0x530] sm:$0xf]
  %v264 = vld [vmem:[%s1 + $0x534] sm:$0xff]
  %v265 = vld [vmem:[%s1 + $0x53c] sm:$0xf]
  %v266 = vld [vmem:[%s1 + $0x540] sm:$0xff]
  %v267 = vld [vmem:[%s1 + $0x548] sm:$0xf]
  %v268 = vld [vmem:[%s1 + $0x54c] sm:$0xff]
  %v269 = vld [vmem:[%s1 + $0x554] sm:$0xf]
  %v270 = vld [vmem:[%s1 + $0x558] sm:$0xff]
  %v271 = vld [vmem:[%s1 + $0x560] sm:$0xf]
  %v272 = vld [vmem:[%s1 + $0x564] sm:$0xff]
  %v273 = vld [vmem:[%s1 + $0x56c] sm:$0xf]
  %v274 = vld [vmem:[%s1 + $0x570] sm:$0xff]
  %v275 = vld [vmem:[%s1 + $0x578] sm:$0xf]
  %v276 = vld [vmem:[%s1 + $0x57c] sm:$0xff]
  %v277 = vld [vmem:[%s1 + $0x584] sm:$0xf]
  %v278 = vld [vmem:[%s1 + $0x588] sm:$0xff]
  %v279 = vld [vmem:[%s1 + $0x590] sm:$0xf]
  %v280 = vld [vmem:[%s1 + $0x594] sm:$0xff]
  %v281 = vld [vmem:[%s1 + $0x59c] sm:$0xf]
  %v282 = vld [vmem:[%s1 + $0x5a0] sm:$0xff]
  %v283 = vld [vmem:[%s1 + $0x5a8] sm:$0xf]
  %v284 = vld [vmem:[%s1 + $0x5ac] sm:$0xff]
  %v285 = vld [vmem:[%s1 + $0x5b4] sm:$0xf]
  %v286 = vld [vmem:[%s1 + $0x5b8] sm:$0xff]
  %v287 = vld [vmem:[%s1 + $0x5c0] sm:$0xf]
  %v288 = vld [vmem:[%s1 + $0x5c4] sm:$0xff]
  %v289 = vld [vmem:[%s1 + $0x5cc] sm:$0xf]
  %v290 = vld [vmem:[%s1 + $0x5d0] sm:$0xff]
  %v291 = vld [vmem:[%s1 + $0x5d8] sm:$0xf]
  %v292 = vld [vmem:[%s1 + $0x5dc] sm:$0xff]
  %v293 = vld [vmem:[%s1 + $0x5e4] sm:$0xf]
  %v294 = vld [vmem:[%s1 + $0x5e8] sm:$0xff]
  %v295 = vld [vmem:[%s1 + $0x5f0] sm:$0xf]
  %v296 = vld [vmem:[%s1 + $0x5f4] sm:$0xff]
  %v297 = vld [vmem:[%s1 + $0x5fc] sm:$0xf]
  %v298 = vld [vmem:[%s1 + $0x600] sm:$0xff]
  %v299 = vld [vmem:[%s1 + $0x608] sm:$0xf]
  %v300 = vld [vmem:[%s1 + $0x60c] sm:$0xff]
  %v301 = vld [vmem:[%s1 + $0x614] sm:$0xf]
  %v302 = vld [vmem:[%s1 + $0x618] sm:$0xff]
  %v303 = vld [vmem:[%s1 + $0x620] sm:$0xf]
  %v304 = vld [vmem:[%s1 + $0x624] sm:$0xff]
  %v305 = vld [vmem:[%s1 + $0x62c] sm:$0xf]
  %v306 = vld [vmem:[%s1 + $0x630] sm:$0xff]
  %v307 = vld [vmem:[%s1 + $0x638] sm:$0xf]
  %v308 = vld [vmem:[%s1 + $0x63c] sm:$0xff]
  %v309 = vld [vmem:[%s1 + $0x644] sm:$0xf]
  %v310 = vld [vmem:[%s1 + $0x648] sm:$0xff]
  %v311 = vld [vmem:[%s1 + $0x650] sm:$0xf]
  %v312 = vld [vmem:[%s1 + $0x654] sm:$0xff]
  %v313 = vld [vmem:[%s1 + $0x65c] sm:$0xf]
  %v314 = vld [vmem:[%s1 + $0x660] sm:$0xff]
  %v315 = vld [vmem:[%s1 + $0x668] sm:$0xf]
  %v316 = vld [vmem:[%s1 + $0x66c] sm:$0xff]
  %v317 = vld [vmem:[%s1 + $0x674] sm:$0xf]
  %v318 = vld [vmem:[%s1 + $0x678] sm:$0xff]
  %v319 = vld [vmem:[%s1 + $0x680] sm:$0xf]
  %v320 = vld [vmem:[%s1 + $0x684] sm:$0xff]
  %v321 = vld [vmem:[%s1 + $0x68c] sm:$0xf]
  %v322 = vld [vmem:[%s1 + $0x690] sm:$0xff]
  %v323 = vld [vmem:[%s1 + $0x698] sm:$0xf]
  %v324 = vld [vmem:[%s1 + $0x69c] sm:$0xff]
  %v325 = vld [vmem:[%s1 + $0x6a4] sm:$0xf]
  %v326 = vld [vmem:[%s1 + $0x6a8] sm:$0xff]
  %v327 = vld [vmem:[%s1 + $0x6b0] sm:$0xf]
  %v328 = vld [vmem:[%s1 + $0x6b4] sm:$0xff]
  %v329 = vld [vmem:[%s1 + $0x6bc] sm:$0xf]
  %v330 = vld [vmem:[%s1 + $0x6c0] sm:$0xff]
  %v331 = vld [vmem:[%s1 + $0x6c8] sm:$0xf]
  %v332 = vld [vmem:[%s1 + $0x6cc] sm:$0xff]
  %v333 = vld [vmem:[%s1 + $0x6d4] sm:$0xf]
  %v334 = vld [vmem:[%s1 + $0x6d8] sm:$0xff]
  %v335 = vld [vmem:[%s1 + $0x6e0] sm:$0xf]
  %v336 = vld [vmem:[%s1 + $0x6e4] sm:$0xff]
  %v337 = vld [vmem:[%s1 + $0x6ec] sm:$0xf]
  %v338 = vld [vmem:[%s1 + $0x6f0] sm:$0xff]
  %v339 = vld [vmem:[%s1 + $0x6f8] sm:$0xf]
  %v340 = vld [vmem:[%s1 + $0x6fc] sm:$0xff]
  %v341 = vld [vmem:[%s1 + $0x704] sm:$0xf]
  %v342 = vld [vmem:[%s1 + $0x708] sm:$0xff]
  %v343 = vld [vmem:[%s1 + $0x710] sm:$0xf]
  %v344 = vld [vmem:[%s1 + $0x714] sm:$0xff]
  %v345 = vld [vmem:[%s1 + $0x71c] sm:$0xf]
  %v346 = vld [vmem:[%s1 + $0x720] sm:$0xff]
  %v347 = vld [vmem:[%s1 + $0x728] sm:$0xf]
  %v348 = vld [vmem:[%s1 + $0x72c] sm:$0xff]
  %v349 = vld [vmem:[%s1 + $0x734] sm:$0xf]
  %v350 = vld [vmem:[%s1 + $0x738] sm:$0xff]
  %v351 = vld [vmem:[%s1 + $0x740] sm:$0xf]
  %v352 = vld [vmem:[%s1 + $0x744] sm:$0xff]
  %v353 = vld [vmem:[%s1 + $0x74c] sm:$0xf]
  %v354 = vld [vmem:[%s1 + $0x750] sm:$0xff]
  %v355 = vld [vmem:[%s1 + $0x758] sm:$0xf]
  %v356 = vld [vmem:[%s1 + $0x75c] sm:$0xff]
  %v357 = vld [vmem:[%s1 + $0x764] sm:$0xf]
  %v358 = vld [vmem:[%s1 + $0x768] sm:$0xff]
  %v359 = vld [vmem:[%s1 + $0x770] sm:$0xf]
  %v360 = vld [vmem:[%s1 + $0x774] sm:$0xff]
  %v361 = vld [vmem:[%s1 + $0x77c] sm:$0xf]
  %v362 = vld [vmem:[%s1 + $0x780] sm:$0xff]
  %v363 = vld [vmem:[%s1 + $0x788] sm:$0xf]
  %v364 = vld [vmem:[%s1 + $0x78c] sm:$0xff]
  %v365 = vld [vmem:[%s1 + $0x794] sm:$0xf]
  %v366 = vld [vmem:[%s1 + $0x798] sm:$0xff]
  %v367 = vld [vmem:[%s1 + $0x7a0] sm:$0xf]
  %v368 = vld [vmem:[%s1 + $0x7a4] sm:$0xff]
  %v369 = vld [vmem:[%s1 + $0x7ac] sm:$0xf]
  %v370 = vld [vmem:[%s1 + $0x7b0] sm:$0xff]
  %v371 = vld [vmem:[%s1 + $0x7b8] sm:$0xf]
  %v372 = vld [vmem:[%s1 + $0x7bc] sm:$0xff]
  %v373 = vld [vmem:[%s1 + $0x7c4] sm:$0xf]
  %v374 = vld [vmem:[%s1 + $0x7c8] sm:$0xff]
  %v375 = vld [vmem:[%s1 + $0x7d0] sm:$0xf]
  %v376 = vld [vmem:[%s1 + $0x7d4] sm:$0xff]
  %v377 = vld [vmem:[%s1 + $0x7dc] sm:$0xf]
  %v378 = vld [vmem:[%s1 + $0x7e0] sm:$0xff]
  %v379 = vld [vmem:[%s1 + $0x7e8] sm:$0xf]
  %v380 = vld [vmem:[%s1 + $0x7ec] sm:$0xff]
  %v381 = vld [vmem:[%s1 + $0x7f4] sm:$0xf]
  %v382 = vld [vmem:[%s1 + $0x7f8] sm:$0xff]
  %v383 = vld [vmem:[%s1 + $0x800] sm:$0xf]
  %v384 = vld [vmem:[%s1 + $0x804] sm:$0xff]
  %v385 = vld [vmem:[%s1 + $0x80c] sm:$0xf]
  %v386 = vld [vmem:[%s1 + $0x810] sm:$0xff]
  %v387 = vld [vmem:[%s1 + $0x818] sm:$0xf]
  %v388 = vld [vmem:[%s1 + $0x81c] sm:$0xff]
  %v389 = vld [vmem:[%s1 + $0x824] sm:$0xf]
  %v390 = vld [vmem:[%s1 + $0x828] sm:$0xff]
  %v391 = vld [vmem:[%s1 + $0x830] sm:$0xf]
  %v392 = vld [vmem:[%s1 + $0x834] sm:$0xff]
  %v393 = vld [vmem:[%s1 + $0x83c] sm:$0xf]
  %v394 = vld [vmem:[%s1 + $0x840] sm:$0xff]
  %v395 = vld [vmem:[%s1 + $0x848] sm:$0xf]
  %v396 = vld [vmem:[%s1 + $0x84c] sm:$0xff]
  %v397 = vld [vmem:[%s1 + $0x854] sm:$0xf]
  %v398 = vld [vmem:[%s1 + $0x858] sm:$0xff]
  %v399 = vld [vmem:[%s1 + $0x860] sm:$0xf]
  %v400 = vld [vmem:[%s1 + $0x864] sm:$0xff]
  %v401 = vld [vmem:[%s1 + $0x86c] sm:$0xf]
  %v402 = vld [vmem:[%s1 + $0x870] sm:$0xff]
  %v403 = vld [vmem:[%s1 + $0x878] sm:$0xf]
  %v404 = vld [vmem:[%s1 + $0x87c] sm:$0xff]
  %v405 = vld [vmem:[%s1 + $0x884] sm:$0xf]
  %v406 = vld [vmem:[%s1 + $0x888] sm:$0xff]
  %v407 = vld [vmem:[%s1 + $0x890] sm:$0xf]
  %v408 = vld [vmem:[%s1 + $0x894] sm:$0xff]
  %v409 = vld [vmem:[%s1 + $0x89c] sm:$0xf]
  %v410 = vld [vmem:[%s1 + $0x8a0] sm:$0xff]
  %v411 = vld [vmem:[%s1 + $0x8a8] sm:$0xf]
  %v412 = vld [vmem:[%s1 + $0x8ac] sm:$0xff]
  %v413 = vld [vmem:[%s1 + $0x8b4] sm:$0xf]
  %v414 = vld [vmem:[%s1 + $0x8b8] sm:$0xff]
  %v415 = vld [vmem:[%s1 + $0x8c0] sm:$0xf]
  %v416 = vld [vmem:[%s1 + $0x8c4] sm:$0xff]
  %v417 = vld [vmem:[%s1 + $0x8cc] sm:$0xf]
  %v418 = vld [vmem:[%s1 + $0x8d0] sm:$0xff]
  %v419 = vld [vmem:[%s1 + $0x8d8] sm:$0xf]
  %v420 = vld [vmem:[%s1 + $0x8dc] sm:$0xff]
  %v421 = vld [vmem:[%s1 + $0x8e4] sm:$0xf]
  %v422 = vld [vmem:[%s1 + $0x8e8] sm:$0xff]
  %v423 = vld [vmem:[%s1 + $0x8f0] sm:$0xf]
  %v424 = vld [vmem:[%s1 + $0x8f4] sm:$0xff]
  %v425 = vld [vmem:[%s1 + $0x8fc] sm:$0xf]
  %v426 = vld [vmem:[%s1 + $0x900] sm:$0xff]
  %v427 = vld [vmem:[%s1 + $0x908] sm:$0xf]
  %v428 = vld [vmem:[%s1 + $0x90c] sm:$0xff]
  %v429 = vld [vmem:[%s1 + $0x914] sm:$0xf]
  %v430 = vld [vmem:[%s1 + $0x918] sm:$0xff]
  %v431 = vld [vmem:[%s1 + $0x920] sm:$0xf]
  %v432 = vld [vmem:[%s1 + $0x924] sm:$0xff]
  %v433 = vld [vmem:[%s1 + $0x92c] sm:$0xf]
  %v434 = vld [vmem:[%s1 + $0x930] sm:$0xff]
  %v435 = vld [vmem:[%s1 + $0x938] sm:$0xf]
  %v436 = vld [vmem:[%s1 + $0x93c] sm:$0xff]
  %v437 = vld [vmem:[%s1 + $0x944] sm:$0xf]
  %v438 = vld [vmem:[%s1 + $0x948] sm:$0xff]
  %v439 = vld [vmem:[%s1 + $0x950] sm:$0xf]
  %v440 = vld [vmem:[%s1 + $0x954] sm:$0xff]
  %v441 = vld [vmem:[%s1 + $0x95c] sm:$0xf]
  %v442 = vld [vmem:[%s1 + $0x960] sm:$0xff]
  %v443 = vld [vmem:[%s1 + $0x968] sm:$0xf]
  %v444 = vld [vmem:[%s1 + $0x96c] sm:$0xff]
  %v445 = vld [vmem:[%s1 + $0x974] sm:$0xf]
  %v446 = vld [vmem:[%s1 + $0x978] sm:$0xff]
  %v447 = vld [vmem:[%s1 + $0x980] sm:$0xf]
  %v448 = vld [vmem:[%s1 + $0x984] sm:$0xff]
  %v449 = vld [vmem:[%s1 + $0x98c] sm:$0xf]
  %v450 = vld [vmem:[%s1 + $0x990] sm:$0xff]
  %v451 = vld [vmem:[%s1 + $0x998] sm:$0xf]
  %v452 = vld [vmem:[%s1 + $0x99c] sm:$0xff]
  %v453 = vld [vmem:[%s1 + $0x9a4] sm:$0xf]
  %v454 = vld [vmem:[%s1 + $0x9a8] sm:$0xff]
  %v455 = vld [vmem:[%s1 + $0x9b0] sm:$0xf]
  %v456 = vld [vmem:[%s1 + $0x9b4] sm:$0xff]
  %v457 = vld [vmem:[%s1 + $0x9bc] sm:$0xf]
  %v458 = vld [vmem:[%s1 + $0x9c0] sm:$0xff]
  %v459 = vld [vmem:[%s1 + $0x9c8] sm:$0xf]
  %v460 = vld [vmem:[%s1 + $0x9cc] sm:$0xff]
  %v461 = vld [vmem:[%s1 + $0x9d4] sm:$0xf]
  %v462 = vld [vmem:[%s1 + $0x9d8] sm:$0xff]
  %v463 = vld [vmem:[%s1 + $0x9e0] sm:$0xf]
  %v464 = vld [vmem:[%s1 + $0x9e4] sm:$0xff]
  %v465 = vld [vmem:[%s1 + $0x9ec] sm:$0xf]
  %v466 = vld [vmem:[%s1 + $0x9f0] sm:$0xff]
  %v467 = vld [vmem:[%s1 + $0x9f8] sm:$0xf]
  %v468 = vld [vmem:[%s1 + $0x9fc] sm:$0xff]
  %v469 = vld [vmem:[%s1 + $0xa04] sm:$0xf]
  %v470 = vld [vmem:[%s1 + $0xa08] sm:$0xff]
  %v471 = vld [vmem:[%s1 + $0xa10] sm:$0xf]
  %v472 = vld [vmem:[%s1 + $0xa14] sm:$0xff]
  %v473 = vld [vmem:[%s1 + $0xa1c] sm:$0xf]
  %v474 = vld [vmem:[%s1 + $0xa20] sm:$0xff]
  %v475 = vld [vmem:[%s1 + $0xa28] sm:$0xf]
  %v476 = vld [vmem:[%s1 + $0xa2c] sm:$0xff]
  %v477 = vld [vmem:[%s1 + $0xa34] sm:$0xf]
  %v478 = vld [vmem:[%s1 + $0xa38] sm:$0xff]
  %v479 = vld [vmem:[%s1 + $0xa40] sm:$0xf]
  %v480 = vld [vmem:[%s1 + $0xa44] sm:$0xff]
  %v481 = vld [vmem:[%s1 + $0xa4c] sm:$0xf]
  %v482 = vld [vmem:[%s1 + $0xa50] sm:$0xff]
  %v483 = vld [vmem:[%s1 + $0xa58] sm:$0xf]
  %v484 = vld [vmem:[%s1 + $0xa5c] sm:$0xff]
  %v485 = vld [vmem:[%s1 + $0xa64] sm:$0xf]
  %v486 = vld [vmem:[%s1 + $0xa68] sm:$0xff]
  %v487 = vld [vmem:[%s1 + $0xa70] sm:$0xf]
  %v488 = vld [vmem:[%s1 + $0xa74] sm:$0xff]
  %v489 = vld [vmem:[%s1 + $0xa7c] sm:$0xf]
  %v490 = vld [vmem:[%s1 + $0xa80] sm:$0xff]
  %v491 = vld [vmem:[%s1 + $0xa88] sm:$0xf]
  %v492 = vld [vmem:[%s1 + $0xa8c] sm:$0xff]
  %v493 = vld [vmem:[%s1 + $0xa94] sm:$0xf]
  %v494 = vld [vmem:[%s1 + $0xa98] sm:$0xff]
  %v495 = vld [vmem:[%s1 + $0xaa0] sm:$0xf]
  %v496 = vld [vmem:[%s1 + $0xaa4] sm:$0xff]
  %v497 = vld [vmem:[%s1 + $0xaac] sm:$0xf]
  %v498 = vld [vmem:[%s1 + $0xab0] sm:$0xff]
  %v499 = vld [vmem:[%s1 + $0xab8] sm:$0xf]
  %v500 = vld [vmem:[%s1 + $0xabc] sm:$0xff]
  %v501 = vld [vmem:[%s1 + $0xac4] sm:$0xf]
  %v502 = vld [vmem:[%s1 + $0xac8] sm:$0xff]
  %v503 = vld [vmem:[%s1 + $0xad0] sm:$0xf]
  %v504 = vld [vmem:[%s1 + $0xad4] sm:$0xff]
  %v505 = vld [vmem:[%s1 + $0xadc] sm:$0xf]
  %v506 = vld [vmem:[%s1 + $0xae0] sm:$0xff]
  %v507 = vld [vmem:[%s1 + $0xae8] sm:$0xf]
  %v508 = vld [vmem:[%s1 + $0xaec] sm:$0xff]
  %v509 = vld [vmem:[%s1 + $0xaf4] sm:$0xf]
  %v510 = vld [vmem:[%s1 + $0xaf8] sm:$0xff]
  %v511 = vld [vmem:[%s1 + $0xb00] sm:$0xf]
  %v512 = vld [vmem:[%s1 + $0xb04] sm:$0xff]
  %v513 = vld [vmem:[%s1 + $0xb0c] sm:$0xf]
  %v514 = vld [vmem:[%s1 + $0xb10] sm:$0xff]
  %v515 = vld [vmem:[%s1 + $0xb18] sm:$0xf]
  %v516 = vld [vmem:[%s1 + $0xb1c] sm:$0xff]
  %v517 = vld [vmem:[%s1 + $0xb24] sm:$0xf]
  %v518 = vld [vmem:[%s1 + $0xb28] sm:$0xff]
  %v519 = vld [vmem:[%s1 + $0xb30] sm:$0xf]
  %v520 = vld [vmem:[%s1 + $0xb34] sm:$0xff]
  %v521 = vld [vmem:[%s1 + $0xb3c] sm:$0xf]
  %v522 = vld [vmem:[%s1 + $0xb40] sm:$0xff]
  %v523 = vld [vmem:[%s1 + $0xb48] sm:$0xf]
  %v524 = vld [vmem:[%s1 + $0xb4c] sm:$0xff]
  %v525 = vld [vmem:[%s1 + $0xb54] sm:$0xf]
  %v526 = vld [vmem:[%s1 + $0xb58] sm:$0xff]
  %v527 = vld [vmem:[%s1 + $0xb60] sm:$0xf]
  %v528 = vld [vmem:[%s1 + $0xb64] sm:$0xff]
  %v529 = vld [vmem:[%s1 + $0xb6c] sm:$0xf]
  %v530 = vld [vmem:[%s1 + $0xb70] sm:$0xff]
  %v531 = vld [vmem:[%s1 + $0xb78] sm:$0xf]
  %v532 = vld [vmem:[%s1 + $0xb7c] sm:$0xff]
  %v533 = vld [vmem:[%s1 + $0xb84] sm:$0xf]
  %v534 = vld [vmem:[%s1 + $0xb88] sm:$0xff]
  %v535 = vld [vmem:[%s1 + $0xb90] sm:$0xf]
  %v536 = vld [vmem:[%s1 + $0xb94] sm:$0xff]
  %v537 = vld [vmem:[%s1 + $0xb9c] sm:$0xf]
  %v538 = vld [vmem:[%s1 + $0xba0] sm:$0xff]
  %v539 = vld [vmem:[%s1 + $0xba8] sm:$0xf]
  %v540 = vld [vmem:[%s1 + $0xbac] sm:$0xff]
  %v541 = vld [vmem:[%s1 + $0xbb4] sm:$0xf]
  %v542 = vld [vmem:[%s1 + $0xbb8] sm:$0xff]
  %v543 = vld [vmem:[%s1 + $0xbc0] sm:$0xf]
  %v544 = vld [vmem:[%s1 + $0xbc4] sm:$0xff]
  %v545 = vld [vmem:[%s1 + $0xbcc] sm:$0xf]
  %v546 = vld [vmem:[%s1 + $0xbd0] sm:$0xff]
  %v547 = vld [vmem:[%s1 + $0xbd8] sm:$0xf]
  %v548 = vld [vmem:[%s1 + $0xbdc] sm:$0xff]
  %v549 = vld [vmem:[%s1 + $0xbe4] sm:$0xf]
  %v550 = vld [vmem:[%s1 + $0xbe8] sm:$0xff]
  %v551 = vld [vmem:[%s1 + $0xbf0] sm:$0xf]
  %v552 = vld [vmem:[%s1 + $0xbf4] sm:$0xff]
  %v553 = vld [vmem:[%s1 + $0xbfc] sm:$0xf]
  %v554 = vld [vmem:[%s1 + $0xc00] sm:$0xff]
  %v555 = vld [vmem:[%s1 + $0xc08] sm:$0xf]
  %v556 = vld [vmem:[%s1 + $0xc0c] sm:$0xff]
  %v557 = vld [vmem:[%s1 + $0xc14] sm:$0xf]
  %v558 = vld [vmem:[%s1 + $0xc18] sm:$0xff]
  %v559 = vld [vmem:[%s1 + $0xc20] sm:$0xf]
  %v560 = vld [vmem:[%s1 + $0xc24] sm:$0xff]
  %v561 = vld [vmem:[%s1 + $0xc2c] sm:$0xf]
  %v562 = vld [vmem:[%s1 + $0xc30] sm:$0xff]
  %v563 = vld [vmem:[%s1 + $0xc38] sm:$0xf]
  %v564 = vld [vmem:[%s1 + $0xc3c] sm:$0xff]
  %v565 = vld [vmem:[%s1 + $0xc44] sm:$0xf]
  %v566 = vld [vmem:[%s1 + $0xc48] sm:$0xff]
  %v567 = vld [vmem:[%s1 + $0xc50] sm:$0xf]
  %v568 = vld [vmem:[%s1 + $0xc54] sm:$0xff]
  %v569 = vld [vmem:[%s1 + $0xc5c] sm:$0xf]
  %v570 = vld [vmem:[%s1 + $0xc60] sm:$0xff]
  %v571 = vld [vmem:[%s1 + $0xc68] sm:$0xf]
  %v572 = vld [vmem:[%s1 + $0xc6c] sm:$0xff]
  %v573 = vld [vmem:[%s1 + $0xc74] sm:$0xf]
  %v574 = vld [vmem:[%s1 + $0xc78] sm:$0xff]
  %v575 = vld [vmem:[%s1 + $0xc80] sm:$0xf]
  %v576 = vld [vmem:[%s1 + $0xc84] sm:$0xff]
  %v577 = vld [vmem:[%s1 + $0xc8c] sm:$0xf]
  %v578 = vld [vmem:[%s1 + $0xc90] sm:$0xff]
  %v579 = vld [vmem:[%s1 + $0xc98] sm:$0xf]
  %v580 = vld [vmem:[%s1 + $0xc9c] sm:$0xff]
  %v581 = vld [vmem:[%s1 + $0xca4] sm:$0xf]
  %v582 = vld [vmem:[%s1 + $0xca8] sm:$0xff]
  %v583 = vld [vmem:[%s1 + $0xcb0] sm:$0xf]
  %v584 = vld [vmem:[%s1 + $0xcb4] sm:$0xff]
  %v585 = vld [vmem:[%s1 + $0xcbc] sm:$0xf]
  %v586 = vld [vmem:[%s1 + $0xcc0] sm:$0xff]
  %v587 = vld [vmem:[%s1 + $0xcc8] sm:$0xf]
  %v588 = vld [vmem:[%s1 + $0xccc] sm:$0xff]
  %v589 = vld [vmem:[%s1 + $0xcd4] sm:$0xf]
  %v590 = vld [vmem:[%s1 + $0xcd8] sm:$0xff]
  %v591 = vld [vmem:[%s1 + $0xce0] sm:$0xf]
  %v592 = vld [vmem:[%s1 + $0xce4] sm:$0xff]
  %v593 = vld [vmem:[%s1 + $0xcec] sm:$0xf]
  %v594 = vld [vmem:[%s1 + $0xcf0] sm:$0xff]
  %v595 = vld [vmem:[%s1 + $0xcf8] sm:$0xf]
  %v596 = vld [vmem:[%s1 + $0xcfc] sm:$0xff]
  %v597 = vld [vmem:[%s1 + $0xd04] sm:$0xf]
  %v598 = vld [vmem:[%s1 + $0xd08] sm:$0xff]
  %v599 = vld [vmem:[%s1 + $0xd10] sm:$0xf]
  %v600 = vld [vmem:[%s1 + $0xd14] sm:$0xff]
  %v601 = vld [vmem:[%s1 + $0xd1c] sm:$0xf]
  %v602 = vld [vmem:[%s1 + $0xd20] sm:$0xff]
  %v603 = vld [vmem:[%s1 + $0xd28] sm:$0xf]
  %v604 = vld [vmem:[%s1 + $0xd2c] sm:$0xff]
  %v605 = vld [vmem:[%s1 + $0xd34] sm:$0xf]
  %v606 = vld [vmem:[%s1 + $0xd38] sm:$0xff]
  %v607 = vld [vmem:[%s1 + $0xd40] sm:$0xf]
  %v608 = vld [vmem:[%s1 + $0xd44] sm:$0xff]
  %v609 = vld [vmem:[%s1 + $0xd4c] sm:$0xf]
  %v610 = vld [vmem:[%s1 + $0xd50] sm:$0xff]
  %v611 = vld [vmem:[%s1 + $0xd58] sm:$0xf]
  %v612 = vld [vmem:[%s1 + $0xd5c] sm:$0xff]
  %v613 = vld [vmem:[%s1 + $0xd64] sm:$0xf]
  %v614 = vld [vmem:[%s1 + $0xd68] sm:$0xff]
  %v615 = vld [vmem:[%s1 + $0xd70] sm:$0xf]
  %v616 = vld [vmem:[%s1 + $0xd74] sm:$0xff]
  %v617 = vld [vmem:[%s1 + $0xd7c] sm:$0xf]
  %v618 = vld [vmem:[%s2] sm:$0x7]
  %v620 = vlaneseq
  %v621 = vshrl.u32 %v620, 7
  %v622 = vsub.s32 0, %v621
  %v623 = vrot.slane %v618, %v622
  %v624 = vlaneseq
  %v625 = vshrl.u32 %v624, 7
  %v626 = vsub.s32 1, %v625
  %v627 = vrot.slane %v618, %v626
  %v628 = vlaneseq
  %v629 = vshrl.u32 %v628, 7
  %v630 = vsub.s32 2, %v629
  %v631 = vrot.slane %v618, %v630
  %v644 = vunpack.c.l.b16 %v33
  %v645 = vunpack.c.h.b16 %v33
  %v646 = vunpack.c.l.b16 %v34
  %v647 = vunpack.c.h.b16 %v34
  %v648 = vunpack.c.l.b16 %v35
  %v649 = vunpack.c.h.b16 %v35
  %v650 = vunpack.c.l.b16 %v36
  %v651 = vunpack.c.h.b16 %v36
  %v652 = vunpack.c.l.b16 %v37
  %v653 = vunpack.c.h.b16 %v37
  %v654 = vunpack.c.l.b16 %v38
  %v655 = vunpack.c.h.b16 %v38
  %v656 = vunpack.c.l.b16 %v39
  %v657 = vunpack.c.h.b16 %v39
  %v658 = vunpack.c.l.b16 %v40
  %v659 = vunpack.c.h.b16 %v40
  %v660 = vunpack.c.l.b16 %v41
  %v661 = vunpack.c.h.b16 %v41
  %v662 = vpack.c.b16 %v644, %v644
  %v663 = vpack.c.b16 %v645, %v645
  %v664 = vpack.c.b16 %v646, %v646
  %v665 = vpack.c.b16 %v647, %v647
  %v666 = vpack.c.b16 %v648, %v648
  %v667 = vpack.c.b16 %v649, %v649
  %v668 = vpack.c.b16 %v650, %v650
  %v669 = vpack.c.b16 %v651, %v651
  %v670 = vpack.c.b16 %v652, %v652
  %v671 = vpack.c.b16 %v653, %v653
  %v672 = vpack.c.b16 %v654, %v654
  %v673 = vpack.c.b16 %v655, %v655
  %v674 = vpack.c.b16 %v656, %v656
  %v675 = vpack.c.b16 %v657, %v657
  %v676 = vpack.c.b16 %v658, %v658
  %v677 = vpack.c.b16 %v659, %v659
  %v678 = vpack.c.b16 %v660, %v660
  %v679 = vpack.c.b16 %v661, %v661
  %v1274 = vunpack.c.l.b16 %v42
  %v1275 = vunpack.c.h.b16 %v42
  %v1276 = vunpack.c.l.b16 %v43
  %v1277 = vunpack.c.l.b16 %v44
  %v1278 = vunpack.c.h.b16 %v44
  %v1279 = vunpack.c.l.b16 %v45
  %v1280 = vunpack.c.l.b16 %v46
  %v1281 = vunpack.c.h.b16 %v46
  %v1282 = vunpack.c.l.b16 %v47
  %v1283 = vunpack.c.l.b16 %v48
  %v1284 = vunpack.c.h.b16 %v48
  %v1285 = vunpack.c.l.b16 %v49
  %v1286 = vunpack.c.l.b16 %v50
  %v1287 = vunpack.c.h.b16 %v50
  %v1288 = vunpack.c.l.b16 %v51
  %v1289 = vunpack.c.l.b16 %v52
  %v1290 = vunpack.c.h.b16 %v52
  %v1291 = vunpack.c.l.b16 %v53
  %v1292 = vunpack.c.l.b16 %v54
  %v1293 = vunpack.c.h.b16 %v54
  %v1294 = vunpack.c.l.b16 %v55
  %v1295 = vunpack.c.l.b16 %v56
  %v1296 = vunpack.c.h.b16 %v56
  %v1297 = vunpack.c.l.b16 %v57
  %v1298 = vunpack.c.l.b16 %v58
  %v1299 = vunpack.c.h.b16 %v58
  %v1300 = vunpack.c.l.b16 %v59
  %v1301 = vunpack.c.l.b16 %v60
  %v1302 = vunpack.c.h.b16 %v60
  %v1303 = vunpack.c.l.b16 %v61
  %v1304 = vunpack.c.l.b16 %v62
  %v1305 = vunpack.c.h.b16 %v62
  %v1306 = vunpack.c.l.b16 %v63
  %v1307 = vunpack.c.l.b16 %v64
  %v1308 = vunpack.c.h.b16 %v64
  %v1309 = vunpack.c.l.b16 %v65
  %v1310 = vunpack.c.l.b16 %v66
  %v1311 = vunpack.c.h.b16 %v66
  %v1312 = vunpack.c.l.b16 %v67
  %v1313 = vunpack.c.l.b16 %v68
  %v1314 = vunpack.c.h.b16 %v68
  %v1315 = vunpack.c.l.b16 %v69
  %v1316 = vunpack.c.l.b16 %v70
  %v1317 = vunpack.c.h.b16 %v70
  %v1318 = vunpack.c.l.b16 %v71
  %v1319 = vunpack.c.l.b16 %v72
  %v1320 = vunpack.c.h.b16 %v72
  %v1321 = vunpack.c.l.b16 %v73
  %v1322 = vunpack.c.l.b16 %v74
  %v1323 = vunpack.c.h.b16 %v74
  %v1324 = vunpack.c.l.b16 %v75
  %v1325 = vunpack.c.l.b16 %v76
  %v1326 = vunpack.c.h.b16 %v76
  %v1327 = vunpack.c.l.b16 %v77
  %v1328 = vunpack.c.l.b16 %v78
  %v1329 = vunpack.c.h.b16 %v78
  %v1330 = vunpack.c.l.b16 %v79
  %v1331 = vunpack.c.l.b16 %v80
  %v1332 = vunpack.c.h.b16 %v80
  %v1333 = vunpack.c.l.b16 %v81
  %v1334 = vunpack.c.l.b16 %v82
  %v1335 = vunpack.c.h.b16 %v82
  %v1336 = vunpack.c.l.b16 %v83
  %v1337 = vunpack.c.l.b16 %v84
  %v1338 = vunpack.c.h.b16 %v84
  %v1339 = vunpack.c.l.b16 %v85
  %v1340 = vunpack.c.l.b16 %v86
  %v1341 = vunpack.c.h.b16 %v86
  %v1342 = vunpack.c.l.b16 %v87
  %v1343 = vunpack.c.l.b16 %v88
  %v1344 = vunpack.c.h.b16 %v88
  %v1345 = vunpack.c.l.b16 %v89
  %v1346 = vunpack.c.l.b16 %v90
  %v1347 = vunpack.c.h.b16 %v90
  %v1348 = vunpack.c.l.b16 %v91
  %v1349 = vunpack.c.l.b16 %v92
  %v1350 = vunpack.c.h.b16 %v92
  %v1351 = vunpack.c.l.b16 %v93
  %v1352 = vunpack.c.l.b16 %v94
  %v1353 = vunpack.c.h.b16 %v94
  %v1354 = vunpack.c.l.b16 %v95
  %v1355 = vunpack.c.l.b16 %v96
  %v1356 = vunpack.c.h.b16 %v96
  %v1357 = vunpack.c.l.b16 %v97
  %v1358 = vunpack.c.l.b16 %v98
  %v1359 = vunpack.c.h.b16 %v98
  %v1360 = vunpack.c.l.b16 %v99
  %v1361 = vunpack.c.l.b16 %v100
  %v1362 = vunpack.c.h.b16 %v100
  %v1363 = vunpack.c.l.b16 %v101
  %v1364 = vunpack.c.l.b16 %v102
  %v1365 = vunpack.c.h.b16 %v102
  %v1366 = vunpack.c.l.b16 %v103
  %v1367 = vunpack.c.l.b16 %v104
  %v1368 = vunpack.c.h.b16 %v104
  %v1369 = vunpack.c.l.b16 %v105
  %v1370 = vunpack.c.l.b16 %v106
  %v1371 = vunpack.c.h.b16 %v106
  %v1372 = vunpack.c.l.b16 %v107
  %v1373 = vunpack.c.l.b16 %v108
  %v1374 = vunpack.c.h.b16 %v108
  %v1375 = vunpack.c.l.b16 %v109
  %v1376 = vunpack.c.l.b16 %v110
  %v1377 = vunpack.c.h.b16 %v110
  %v1378 = vunpack.c.l.b16 %v111
  %v1379 = vunpack.c.l.b16 %v112
  %v1380 = vunpack.c.h.b16 %v112
  %v1381 = vunpack.c.l.b16 %v113
  %v1382 = vunpack.c.l.b16 %v114
  %v1383 = vunpack.c.h.b16 %v114
  %v1384 = vunpack.c.l.b16 %v115
  %v1385 = vunpack.c.l.b16 %v116
  %v1386 = vunpack.c.h.b16 %v116
  %v1387 = vunpack.c.l.b16 %v117
  %v1388 = vunpack.c.l.b16 %v118
  %v1389 = vunpack.c.h.b16 %v118
  %v1390 = vunpack.c.l.b16 %v119
  %v1391 = vunpack.c.l.b16 %v120
  %v1392 = vunpack.c.h.b16 %v120
  %v1393 = vunpack.c.l.b16 %v121
  %v1394 = vunpack.c.l.b16 %v122
  %v1395 = vunpack.c.h.b16 %v122
  %v1396 = vunpack.c.l.b16 %v123
  %v1397 = vunpack.c.l.b16 %v124
  %v1398 = vunpack.c.h.b16 %v124
  %v1399 = vunpack.c.l.b16 %v125
  %v1400 = vunpack.c.l.b16 %v126
  %v1401 = vunpack.c.h.b16 %v126
  %v1402 = vunpack.c.l.b16 %v127
  %v1403 = vunpack.c.l.b16 %v128
  %v1404 = vunpack.c.h.b16 %v128
  %v1405 = vunpack.c.l.b16 %v129
  %v1406 = vunpack.c.l.b16 %v130
  %v1407 = vunpack.c.h.b16 %v130
  %v1408 = vunpack.c.l.b16 %v131
  %v1409 = vunpack.c.l.b16 %v132
  %v1410 = vunpack.c.h.b16 %v132
  %v1411 = vunpack.c.l.b16 %v133
  %v1412 = vunpack.c.l.b16 %v134
  %v1413 = vunpack.c.h.b16 %v134
  %v1414 = vunpack.c.l.b16 %v135
  %v1415 = vunpack.c.l.b16 %v136
  %v1416 = vunpack.c.h.b16 %v136
  %v1417 = vunpack.c.l.b16 %v137
  %v1418 = vunpack.c.l.b16 %v138
  %v1419 = vunpack.c.h.b16 %v138
  %v1420 = vunpack.c.l.b16 %v139
  %v1421 = vunpack.c.l.b16 %v140
  %v1422 = vunpack.c.h.b16 %v140
  %v1423 = vunpack.c.l.b16 %v141
  %v1424 = vunpack.c.l.b16 %v142
  %v1425 = vunpack.c.h.b16 %v142
  %v1426 = vunpack.c.l.b16 %v143
  %v1427 = vunpack.c.l.b16 %v144
  %v1428 = vunpack.c.h.b16 %v144
  %v1429 = vunpack.c.l.b16 %v145
  %v1430 = vunpack.c.l.b16 %v146
  %v1431 = vunpack.c.h.b16 %v146
  %v1432 = vunpack.c.l.b16 %v147
  %v1433 = vunpack.c.l.b16 %v148
  %v1434 = vunpack.c.h.b16 %v148
  %v1435 = vunpack.c.l.b16 %v149
  %v1436 = vunpack.c.l.b16 %v150
  %v1437 = vunpack.c.h.b16 %v150
  %v1438 = vunpack.c.l.b16 %v151
  %v1439 = vunpack.c.l.b16 %v152
  %v1440 = vunpack.c.h.b16 %v152
  %v1441 = vunpack.c.l.b16 %v153
  %v1442 = vunpack.c.l.b16 %v154
  %v1443 = vunpack.c.h.b16 %v154
  %v1444 = vunpack.c.l.b16 %v155
  %v1445 = vunpack.c.l.b16 %v156
  %v1446 = vunpack.c.h.b16 %v156
  %v1447 = vunpack.c.l.b16 %v157
  %v1448 = vunpack.c.l.b16 %v158
  %v1449 = vunpack.c.h.b16 %v158
  %v1450 = vunpack.c.l.b16 %v159
  %v1451 = vunpack.c.l.b16 %v160
  %v1452 = vunpack.c.h.b16 %v160
  %v1453 = vunpack.c.l.b16 %v161
  %v1454 = vunpack.c.l.b16 %v162
  %v1455 = vunpack.c.h.b16 %v162
  %v1456 = vunpack.c.l.b16 %v163
  %v1457 = vunpack.c.l.b16 %v164
  %v1458 = vunpack.c.h.b16 %v164
  %v1459 = vunpack.c.l.b16 %v165
  %v1460 = vunpack.c.l.b16 %v166
  %v1461 = vunpack.c.h.b16 %v166
  %v1462 = vunpack.c.l.b16 %v167
  %v1463 = vunpack.c.l.b16 %v168
  %v1464 = vunpack.c.h.b16 %v168
  %v1465 = vunpack.c.l.b16 %v169
  %v1466 = vunpack.c.l.b16 %v170
  %v1467 = vunpack.c.h.b16 %v170
  %v1468 = vunpack.c.l.b16 %v171
  %v1469 = vunpack.c.l.b16 %v172
  %v1470 = vunpack.c.h.b16 %v172
  %v1471 = vunpack.c.l.b16 %v173
  %v1472 = vunpack.c.l.b16 %v174
  %v1473 = vunpack.c.h.b16 %v174
  %v1474 = vunpack.c.l.b16 %v175
  %v1475 = vunpack.c.l.b16 %v176
  %v1476 = vunpack.c.h.b16 %v176
  %v1477 = vunpack.c.l.b16 %v177
  %v1478 = vunpack.c.l.b16 %v178
  %v1479 = vunpack.c.h.b16 %v178
  %v1480 = vunpack.c.l.b16 %v179
  %v1481 = vunpack.c.l.b16 %v180
  %v1482 = vunpack.c.h.b16 %v180
  %v1483 = vunpack.c.l.b16 %v181
  %v1484 = vunpack.c.l.b16 %v182
  %v1485 = vunpack.c.h.b16 %v182
  %v1486 = vunpack.c.l.b16 %v183
  %v1487 = vunpack.c.l.b16 %v184
  %v1488 = vunpack.c.h.b16 %v184
  %v1489 = vunpack.c.l.b16 %v185
  %v1490 = vunpack.c.l.b16 %v186
  %v1491 = vunpack.c.h.b16 %v186
  %v1492 = vunpack.c.l.b16 %v187
  %v1493 = vunpack.c.l.b16 %v188
  %v1494 = vunpack.c.h.b16 %v188
  %v1495 = vunpack.c.l.b16 %v189
  %v1496 = vunpack.c.l.b16 %v190
  %v1497 = vunpack.c.h.b16 %v190
  %v1498 = vunpack.c.l.b16 %v191
  %v1499 = vunpack.c.l.b16 %v192
  %v1500 = vunpack.c.h.b16 %v192
  %v1501 = vunpack.c.l.b16 %v193
  %v1502 = vunpack.c.l.b16 %v194
  %v1503 = vunpack.c.h.b16 %v194
  %v1504 = vunpack.c.l.b16 %v195
  %v1505 = vunpack.c.l.b16 %v196
  %v1506 = vunpack.c.h.b16 %v196
  %v1507 = vunpack.c.l.b16 %v197
  %v1508 = vunpack.c.l.b16 %v198
  %v1509 = vunpack.c.h.b16 %v198
  %v1510 = vunpack.c.l.b16 %v199
  %v1511 = vunpack.c.l.b16 %v200
  %v1512 = vunpack.c.h.b16 %v200
  %v1513 = vunpack.c.l.b16 %v201
  %v1514 = vunpack.c.l.b16 %v202
  %v1515 = vunpack.c.h.b16 %v202
  %v1516 = vunpack.c.l.b16 %v203
  %v1517 = vunpack.c.l.b16 %v204
  %v1518 = vunpack.c.h.b16 %v204
  %v1519 = vunpack.c.l.b16 %v205
  %v1520 = vunpack.c.l.b16 %v206
  %v1521 = vunpack.c.h.b16 %v206
  %v1522 = vunpack.c.l.b16 %v207
  %v1523 = vunpack.c.l.b16 %v208
  %v1524 = vunpack.c.h.b16 %v208
  %v1525 = vunpack.c.l.b16 %v209
  %v1526 = vunpack.c.l.b16 %v210
  %v1527 = vunpack.c.h.b16 %v210
  %v1528 = vunpack.c.l.b16 %v211
  %v1529 = vunpack.c.l.b16 %v212
  %v1530 = vunpack.c.h.b16 %v212
  %v1531 = vunpack.c.l.b16 %v213
  %v1532 = vunpack.c.l.b16 %v214
  %v1533 = vunpack.c.h.b16 %v214
  %v1534 = vunpack.c.l.b16 %v215
  %v1535 = vunpack.c.l.b16 %v216
  %v1536 = vunpack.c.h.b16 %v216
  %v1537 = vunpack.c.l.b16 %v217
  %v1538 = vunpack.c.l.b16 %v218
  %v1539 = vunpack.c.h.b16 %v218
  %v1540 = vunpack.c.l.b16 %v219
  %v1541 = vunpack.c.l.b16 %v220
  %v1542 = vunpack.c.h.b16 %v220
  %v1543 = vunpack.c.l.b16 %v221
  %v1544 = vunpack.c.l.b16 %v222
  %v1545 = vunpack.c.h.b16 %v222
  %v1546 = vunpack.c.l.b16 %v223
  %v1547 = vunpack.c.l.b16 %v224
  %v1548 = vunpack.c.h.b16 %v224
  %v1549 = vunpack.c.l.b16 %v225
  %v1550 = vunpack.c.l.b16 %v226
  %v1551 = vunpack.c.h.b16 %v226
  %v1552 = vunpack.c.l.b16 %v227
  %v1553 = vunpack.c.l.b16 %v228
  %v1554 = vunpack.c.h.b16 %v228
  %v1555 = vunpack.c.l.b16 %v229
  %v1556 = vunpack.c.l.b16 %v230
  %v1557 = vunpack.c.h.b16 %v230
  %v1558 = vunpack.c.l.b16 %v231
  %v1559 = vunpack.c.l.b16 %v232
  %v1560 = vunpack.c.h.b16 %v232
  %v1561 = vunpack.c.l.b16 %v233
  %v1562 = vunpack.c.l.b16 %v234
  %v1563 = vunpack.c.h.b16 %v234
  %v1564 = vunpack.c.l.b16 %v235
  %v1565 = vunpack.c.l.b16 %v236
  %v1566 = vunpack.c.h.b16 %v236
  %v1567 = vunpack.c.l.b16 %v237
  %v1568 = vunpack.c.l.b16 %v238
  %v1569 = vunpack.c.h.b16 %v238
  %v1570 = vunpack.c.l.b16 %v239
  %v1571 = vunpack.c.l.b16 %v240
  %v1572 = vunpack.c.h.b16 %v240
  %v1573 = vunpack.c.l.b16 %v241
  %v1574 = vunpack.c.l.b16 %v242
  %v1575 = vunpack.c.h.b16 %v242
  %v1576 = vunpack.c.l.b16 %v243
  %v1577 = vunpack.c.l.b16 %v244
  %v1578 = vunpack.c.h.b16 %v244
  %v1579 = vunpack.c.l.b16 %v245
  %v1580 = vunpack.c.l.b16 %v246
  %v1581 = vunpack.c.h.b16 %v246
  %v1582 = vunpack.c.l.b16 %v247
  %v1583 = vunpack.c.l.b16 %v248
  %v1584 = vunpack.c.h.b16 %v248
  %v1585 = vunpack.c.l.b16 %v249
  %v1586 = vunpack.c.l.b16 %v250
  %v1587 = vunpack.c.h.b16 %v250
  %v1588 = vunpack.c.l.b16 %v251
  %v1589 = vunpack.c.l.b16 %v252
  %v1590 = vunpack.c.h.b16 %v252
  %v1591 = vunpack.c.l.b16 %v253
  %v1592 = vunpack.c.l.b16 %v254
  %v1593 = vunpack.c.h.b16 %v254
  %v1594 = vunpack.c.l.b16 %v255
  %v1595 = vunpack.c.l.b16 %v256
  %v1596 = vunpack.c.h.b16 %v256
  %v1597 = vunpack.c.l.b16 %v257
  %v1598 = vunpack.c.l.b16 %v258
  %v1599 = vunpack.c.h.b16 %v258
  %v1600 = vunpack.c.l.b16 %v259
  %v1601 = vunpack.c.l.b16 %v260
  %v1602 = vunpack.c.h.b16 %v260
  %v1603 = vunpack.c.l.b16 %v261
  %v1604 = vunpack.c.l.b16 %v262
  %v1605 = vunpack.c.h.b16 %v262
  %v1606 = vunpack.c.l.b16 %v263
  %v1607 = vunpack.c.l.b16 %v264
  %v1608 = vunpack.c.h.b16 %v264
  %v1609 = vunpack.c.l.b16 %v265
  %v1610 = vunpack.c.l.b16 %v266
  %v1611 = vunpack.c.h.b16 %v266
  %v1612 = vunpack.c.l.b16 %v267
  %v1613 = vunpack.c.l.b16 %v268
  %v1614 = vunpack.c.h.b16 %v268
  %v1615 = vunpack.c.l.b16 %v269
  %v1616 = vunpack.c.l.b16 %v270
  %v1617 = vunpack.c.h.b16 %v270
  %v1618 = vunpack.c.l.b16 %v271
  %v1619 = vunpack.c.l.b16 %v272
  %v1620 = vunpack.c.h.b16 %v272
  %v1621 = vunpack.c.l.b16 %v273
  %v1622 = vunpack.c.l.b16 %v274
  %v1623 = vunpack.c.h.b16 %v274
  %v1624 = vunpack.c.l.b16 %v275
  %v1625 = vunpack.c.l.b16 %v276
  %v1626 = vunpack.c.h.b16 %v276
  %v1627 = vunpack.c.l.b16 %v277
  %v1628 = vunpack.c.l.b16 %v278
  %v1629 = vunpack.c.h.b16 %v278
  %v1630 = vunpack.c.l.b16 %v279
  %v1631 = vunpack.c.l.b16 %v280
  %v1632 = vunpack.c.h.b16 %v280
  %v1633 = vunpack.c.l.b16 %v281
  %v1634 = vunpack.c.l.b16 %v282
  %v1635 = vunpack.c.h.b16 %v282
  %v1636 = vunpack.c.l.b16 %v283
  %v1637 = vunpack.c.l.b16 %v284
  %v1638 = vunpack.c.h.b16 %v284
  %v1639 = vunpack.c.l.b16 %v285
  %v1640 = vunpack.c.l.b16 %v286
  %v1641 = vunpack.c.h.b16 %v286
  %v1642 = vunpack.c.l.b16 %v287
  %v1643 = vunpack.c.l.b16 %v288
  %v1644 = vunpack.c.h.b16 %v288
  %v1645 = vunpack.c.l.b16 %v289
  %v1646 = vunpack.c.l.b16 %v290
  %v1647 = vunpack.c.h.b16 %v290
  %v1648 = vunpack.c.l.b16 %v291
  %v1649 = vunpack.c.l.b16 %v292
  %v1650 = vunpack.c.h.b16 %v292
  %v1651 = vunpack.c.l.b16 %v293
  %v1652 = vunpack.c.l.b16 %v294
  %v1653 = vunpack.c.h.b16 %v294
  %v1654 = vunpack.c.l.b16 %v295
  %v1655 = vunpack.c.l.b16 %v296
  %v1656 = vunpack.c.h.b16 %v296
  %v1657 = vunpack.c.l.b16 %v297
  %v1658 = vunpack.c.l.b16 %v298
  %v1659 = vunpack.c.h.b16 %v298
  %v1660 = vunpack.c.l.b16 %v299
  %v1661 = vunpack.c.l.b16 %v300
  %v1662 = vunpack.c.h.b16 %v300
  %v1663 = vunpack.c.l.b16 %v301
  %v1664 = vunpack.c.l.b16 %v302
  %v1665 = vunpack.c.h.b16 %v302
  %v1666 = vunpack.c.l.b16 %v303
  %v1667 = vunpack.c.l.b16 %v304
  %v1668 = vunpack.c.h.b16 %v304
  %v1669 = vunpack.c.l.b16 %v305
  %v1670 = vunpack.c.l.b16 %v306
  %v1671 = vunpack.c.h.b16 %v306
  %v1672 = vunpack.c.l.b16 %v307
  %v1673 = vunpack.c.l.b16 %v308
  %v1674 = vunpack.c.h.b16 %v308
  %v1675 = vunpack.c.l.b16 %v309
  %v1676 = vunpack.c.l.b16 %v310
  %v1677 = vunpack.c.h.b16 %v310
  %v1678 = vunpack.c.l.b16 %v311
  %v1679 = vunpack.c.l.b16 %v312
  %v1680 = vunpack.c.h.b16 %v312
  %v1681 = vunpack.c.l.b16 %v313
  %v1682 = vunpack.c.l.b16 %v314
  %v1683 = vunpack.c.h.b16 %v314
  %v1684 = vunpack.c.l.b16 %v315
  %v1685 = vunpack.c.l.b16 %v316
  %v1686 = vunpack.c.h.b16 %v316
  %v1687 = vunpack.c.l.b16 %v317
  %v1688 = vunpack.c.l.b16 %v318
  %v1689 = vunpack.c.h.b16 %v318
  %v1690 = vunpack.c.l.b16 %v319
  %v1691 = vunpack.c.l.b16 %v320
  %v1692 = vunpack.c.h.b16 %v320
  %v1693 = vunpack.c.l.b16 %v321
  %v1694 = vunpack.c.l.b16 %v322
  %v1695 = vunpack.c.h.b16 %v322
  %v1696 = vunpack.c.l.b16 %v323
  %v1697 = vunpack.c.l.b16 %v324
  %v1698 = vunpack.c.h.b16 %v324
  %v1699 = vunpack.c.l.b16 %v325
  %v1700 = vunpack.c.l.b16 %v326
  %v1701 = vunpack.c.h.b16 %v326
  %v1702 = vunpack.c.l.b16 %v327
  %v1703 = vunpack.c.l.b16 %v328
  %v1704 = vunpack.c.h.b16 %v328
  %v1705 = vunpack.c.l.b16 %v329
  %v1706 = vunpack.c.l.b16 %v330
  %v1707 = vunpack.c.h.b16 %v330
  %v1708 = vunpack.c.l.b16 %v331
  %v1709 = vunpack.c.l.b16 %v332
  %v1710 = vunpack.c.h.b16 %v332
  %v1711 = vunpack.c.l.b16 %v333
  %v1712 = vunpack.c.l.b16 %v334
  %v1713 = vunpack.c.h.b16 %v334
  %v1714 = vunpack.c.l.b16 %v335
  %v1715 = vunpack.c.l.b16 %v336
  %v1716 = vunpack.c.h.b16 %v336
  %v1717 = vunpack.c.l.b16 %v337
  %v1718 = vunpack.c.l.b16 %v338
  %v1719 = vunpack.c.h.b16 %v338
  %v1720 = vunpack.c.l.b16 %v339
  %v1721 = vunpack.c.l.b16 %v340
  %v1722 = vunpack.c.h.b16 %v340
  %v1723 = vunpack.c.l.b16 %v341
  %v1724 = vunpack.c.l.b16 %v342
  %v1725 = vunpack.c.h.b16 %v342
  %v1726 = vunpack.c.l.b16 %v343
  %v1727 = vunpack.c.l.b16 %v344
  %v1728 = vunpack.c.h.b16 %v344
  %v1729 = vunpack.c.l.b16 %v345
  %v1730 = vunpack.c.l.b16 %v346
  %v1731 = vunpack.c.h.b16 %v346
  %v1732 = vunpack.c.l.b16 %v347
  %v1733 = vunpack.c.l.b16 %v348
  %v1734 = vunpack.c.h.b16 %v348
  %v1735 = vunpack.c.l.b16 %v349
  %v1736 = vunpack.c.l.b16 %v350
  %v1737 = vunpack.c.h.b16 %v350
  %v1738 = vunpack.c.l.b16 %v351
  %v1739 = vunpack.c.l.b16 %v352
  %v1740 = vunpack.c.h.b16 %v352
  %v1741 = vunpack.c.l.b16 %v353
  %v1742 = vunpack.c.l.b16 %v354
  %v1743 = vunpack.c.h.b16 %v354
  %v1744 = vunpack.c.l.b16 %v355
  %v1745 = vunpack.c.l.b16 %v356
  %v1746 = vunpack.c.h.b16 %v356
  %v1747 = vunpack.c.l.b16 %v357
  %v1748 = vunpack.c.l.b16 %v358
  %v1749 = vunpack.c.h.b16 %v358
  %v1750 = vunpack.c.l.b16 %v359
  %v1751 = vunpack.c.l.b16 %v360
  %v1752 = vunpack.c.h.b16 %v360
  %v1753 = vunpack.c.l.b16 %v361
  %v1754 = vunpack.c.l.b16 %v362
  %v1755 = vunpack.c.h.b16 %v362
  %v1756 = vunpack.c.l.b16 %v363
  %v1757 = vunpack.c.l.b16 %v364
  %v1758 = vunpack.c.h.b16 %v364
  %v1759 = vunpack.c.l.b16 %v365
  %v1760 = vunpack.c.l.b16 %v366
  %v1761 = vunpack.c.h.b16 %v366
  %v1762 = vunpack.c.l.b16 %v367
  %v1763 = vunpack.c.l.b16 %v368
  %v1764 = vunpack.c.h.b16 %v368
  %v1765 = vunpack.c.l.b16 %v369
  %v1766 = vunpack.c.l.b16 %v370
  %v1767 = vunpack.c.h.b16 %v370
  %v1768 = vunpack.c.l.b16 %v371
  %v1769 = vunpack.c.l.b16 %v372
  %v1770 = vunpack.c.h.b16 %v372
  %v1771 = vunpack.c.l.b16 %v373
  %v1772 = vunpack.c.l.b16 %v374
  %v1773 = vunpack.c.h.b16 %v374
  %v1774 = vunpack.c.l.b16 %v375
  %v1775 = vunpack.c.l.b16 %v376
  %v1776 = vunpack.c.h.b16 %v376
  %v1777 = vunpack.c.l.b16 %v377
  %v1778 = vunpack.c.l.b16 %v378
  %v1779 = vunpack.c.h.b16 %v378
  %v1780 = vunpack.c.l.b16 %v379
  %v1781 = vunpack.c.l.b16 %v380
  %v1782 = vunpack.c.h.b16 %v380
  %v1783 = vunpack.c.l.b16 %v381
  %v1784 = vunpack.c.l.b16 %v382
  %v1785 = vunpack.c.h.b16 %v382
  %v1786 = vunpack.c.l.b16 %v383
  %v1787 = vunpack.c.l.b16 %v384
  %v1788 = vunpack.c.h.b16 %v384
  %v1789 = vunpack.c.l.b16 %v385
  %v1790 = vunpack.c.l.b16 %v386
  %v1791 = vunpack.c.h.b16 %v386
  %v1792 = vunpack.c.l.b16 %v387
  %v1793 = vunpack.c.l.b16 %v388
  %v1794 = vunpack.c.h.b16 %v388
  %v1795 = vunpack.c.l.b16 %v389
  %v1796 = vunpack.c.l.b16 %v390
  %v1797 = vunpack.c.h.b16 %v390
  %v1798 = vunpack.c.l.b16 %v391
  %v1799 = vunpack.c.l.b16 %v392
  %v1800 = vunpack.c.h.b16 %v392
  %v1801 = vunpack.c.l.b16 %v393
  %v1802 = vunpack.c.l.b16 %v394
  %v1803 = vunpack.c.h.b16 %v394
  %v1804 = vunpack.c.l.b16 %v395
  %v1805 = vunpack.c.l.b16 %v396
  %v1806 = vunpack.c.h.b16 %v396
  %v1807 = vunpack.c.l.b16 %v397
  %v1808 = vunpack.c.l.b16 %v398
  %v1809 = vunpack.c.h.b16 %v398
  %v1810 = vunpack.c.l.b16 %v399
  %v1811 = vunpack.c.l.b16 %v400
  %v1812 = vunpack.c.h.b16 %v400
  %v1813 = vunpack.c.l.b16 %v401
  %v1814 = vunpack.c.l.b16 %v402
  %v1815 = vunpack.c.h.b16 %v402
  %v1816 = vunpack.c.l.b16 %v403
  %v1817 = vunpack.c.l.b16 %v404
  %v1818 = vunpack.c.h.b16 %v404
  %v1819 = vunpack.c.l.b16 %v405
  %v1820 = vunpack.c.l.b16 %v406
  %v1821 = vunpack.c.h.b16 %v406
  %v1822 = vunpack.c.l.b16 %v407
  %v1823 = vunpack.c.l.b16 %v408
  %v1824 = vunpack.c.h.b16 %v408
  %v1825 = vunpack.c.l.b16 %v409
  %v1826 = vunpack.c.l.b16 %v410
  %v1827 = vunpack.c.h.b16 %v410
  %v1828 = vunpack.c.l.b16 %v411
  %v1829 = vunpack.c.l.b16 %v412
  %v1830 = vunpack.c.h.b16 %v412
  %v1831 = vunpack.c.l.b16 %v413
  %v1832 = vunpack.c.l.b16 %v414
  %v1833 = vunpack.c.h.b16 %v414
  %v1834 = vunpack.c.l.b16 %v415
  %v1835 = vunpack.c.l.b16 %v416
  %v1836 = vunpack.c.h.b16 %v416
  %v1837 = vunpack.c.l.b16 %v417
  %v1838 = vunpack.c.l.b16 %v418
  %v1839 = vunpack.c.h.b16 %v418
  %v1840 = vunpack.c.l.b16 %v419
  %v1841 = vunpack.c.l.b16 %v420
  %v1842 = vunpack.c.h.b16 %v420
  %v1843 = vunpack.c.l.b16 %v421
  %v1844 = vunpack.c.l.b16 %v422
  %v1845 = vunpack.c.h.b16 %v422
  %v1846 = vunpack.c.l.b16 %v423
  %v1847 = vunpack.c.l.b16 %v424
  %v1848 = vunpack.c.h.b16 %v424
  %v1849 = vunpack.c.l.b16 %v425
  %v1850 = vunpack.c.l.b16 %v426
  %v1851 = vunpack.c.h.b16 %v426
  %v1852 = vunpack.c.l.b16 %v427
  %v1853 = vunpack.c.l.b16 %v428
  %v1854 = vunpack.c.h.b16 %v428
  %v1855 = vunpack.c.l.b16 %v429
  %v1856 = vunpack.c.l.b16 %v430
  %v1857 = vunpack.c.h.b16 %v430
  %v1858 = vunpack.c.l.b16 %v431
  %v1859 = vunpack.c.l.b16 %v432
  %v1860 = vunpack.c.h.b16 %v432
  %v1861 = vunpack.c.l.b16 %v433
  %v1862 = vunpack.c.l.b16 %v434
  %v1863 = vunpack.c.h.b16 %v434
  %v1864 = vunpack.c.l.b16 %v435
  %v1865 = vunpack.c.l.b16 %v436
  %v1866 = vunpack.c.h.b16 %v436
  %v1867 = vunpack.c.l.b16 %v437
  %v1868 = vunpack.c.l.b16 %v438
  %v1869 = vunpack.c.h.b16 %v438
  %v1870 = vunpack.c.l.b16 %v439
  %v1871 = vunpack.c.l.b16 %v440
  %v1872 = vunpack.c.h.b16 %v440
  %v1873 = vunpack.c.l.b16 %v441
  %v1874 = vunpack.c.l.b16 %v442
  %v1875 = vunpack.c.h.b16 %v442
  %v1876 = vunpack.c.l.b16 %v443
  %v1877 = vunpack.c.l.b16 %v444
  %v1878 = vunpack.c.h.b16 %v444
  %v1879 = vunpack.c.l.b16 %v445
  %v1880 = vunpack.c.l.b16 %v446
  %v1881 = vunpack.c.h.b16 %v446
  %v1882 = vunpack.c.l.b16 %v447
  %v1883 = vunpack.c.l.b16 %v448
  %v1884 = vunpack.c.h.b16 %v448
  %v1885 = vunpack.c.l.b16 %v449
  %v1886 = vunpack.c.l.b16 %v450
  %v1887 = vunpack.c.h.b16 %v450
  %v1888 = vunpack.c.l.b16 %v451
  %v1889 = vunpack.c.l.b16 %v452
  %v1890 = vunpack.c.h.b16 %v452
  %v1891 = vunpack.c.l.b16 %v453
  %v1892 = vunpack.c.l.b16 %v454
  %v1893 = vunpack.c.h.b16 %v454
  %v1894 = vunpack.c.l.b16 %v455
  %v1895 = vunpack.c.l.b16 %v456
  %v1896 = vunpack.c.h.b16 %v456
  %v1897 = vunpack.c.l.b16 %v457
  %v1898 = vunpack.c.l.b16 %v458
  %v1899 = vunpack.c.h.b16 %v458
  %v1900 = vunpack.c.l.b16 %v459
  %v1901 = vunpack.c.l.b16 %v460
  %v1902 = vunpack.c.h.b16 %v460
  %v1903 = vunpack.c.l.b16 %v461
  %v1904 = vunpack.c.l.b16 %v462
  %v1905 = vunpack.c.h.b16 %v462
  %v1906 = vunpack.c.l.b16 %v463
  %v1907 = vunpack.c.l.b16 %v464
  %v1908 = vunpack.c.h.b16 %v464
  %v1909 = vunpack.c.l.b16 %v465
  %v1910 = vunpack.c.l.b16 %v466
  %v1911 = vunpack.c.h.b16 %v466
  %v1912 = vunpack.c.l.b16 %v467
  %v1913 = vunpack.c.l.b16 %v468
  %v1914 = vunpack.c.h.b16 %v468
  %v1915 = vunpack.c.l.b16 %v469
  %v1916 = vunpack.c.l.b16 %v470
  %v1917 = vunpack.c.h.b16 %v470
  %v1918 = vunpack.c.l.b16 %v471
  %v1919 = vunpack.c.l.b16 %v472
  %v1920 = vunpack.c.h.b16 %v472
  %v1921 = vunpack.c.l.b16 %v473
  %v1922 = vunpack.c.l.b16 %v474
  %v1923 = vunpack.c.h.b16 %v474
  %v1924 = vunpack.c.l.b16 %v475
  %v1925 = vunpack.c.l.b16 %v476
  %v1926 = vunpack.c.h.b16 %v476
  %v1927 = vunpack.c.l.b16 %v477
  %v1928 = vunpack.c.l.b16 %v478
  %v1929 = vunpack.c.h.b16 %v478
  %v1930 = vunpack.c.l.b16 %v479
  %v1931 = vunpack.c.l.b16 %v480
  %v1932 = vunpack.c.h.b16 %v480
  %v1933 = vunpack.c.l.b16 %v481
  %v1934 = vunpack.c.l.b16 %v482
  %v1935 = vunpack.c.h.b16 %v482
  %v1936 = vunpack.c.l.b16 %v483
  %v1937 = vunpack.c.l.b16 %v484
  %v1938 = vunpack.c.h.b16 %v484
  %v1939 = vunpack.c.l.b16 %v485
  %v1940 = vunpack.c.l.b16 %v486
  %v1941 = vunpack.c.h.b16 %v486
  %v1942 = vunpack.c.l.b16 %v487
  %v1943 = vunpack.c.l.b16 %v488
  %v1944 = vunpack.c.h.b16 %v488
  %v1945 = vunpack.c.l.b16 %v489
  %v1946 = vunpack.c.l.b16 %v490
  %v1947 = vunpack.c.h.b16 %v490
  %v1948 = vunpack.c.l.b16 %v491
  %v1949 = vunpack.c.l.b16 %v492
  %v1950 = vunpack.c.h.b16 %v492
  %v1951 = vunpack.c.l.b16 %v493
  %v1952 = vunpack.c.l.b16 %v494
  %v1953 = vunpack.c.h.b16 %v494
  %v1954 = vunpack.c.l.b16 %v495
  %v1955 = vunpack.c.l.b16 %v496
  %v1956 = vunpack.c.h.b16 %v496
  %v1957 = vunpack.c.l.b16 %v497
  %v1958 = vunpack.c.l.b16 %v498
  %v1959 = vunpack.c.h.b16 %v498
  %v1960 = vunpack.c.l.b16 %v499
  %v1961 = vunpack.c.l.b16 %v500
  %v1962 = vunpack.c.h.b16 %v500
  %v1963 = vunpack.c.l.b16 %v501
  %v1964 = vunpack.c.l.b16 %v502
  %v1965 = vunpack.c.h.b16 %v502
  %v1966 = vunpack.c.l.b16 %v503
  %v1967 = vunpack.c.l.b16 %v504
  %v1968 = vunpack.c.h.b16 %v504
  %v1969 = vunpack.c.l.b16 %v505
  %v1970 = vunpack.c.l.b16 %v506
  %v1971 = vunpack.c.h.b16 %v506
  %v1972 = vunpack.c.l.b16 %v507
  %v1973 = vunpack.c.l.b16 %v508
  %v1974 = vunpack.c.h.b16 %v508
  %v1975 = vunpack.c.l.b16 %v509
  %v1976 = vunpack.c.l.b16 %v510
  %v1977 = vunpack.c.h.b16 %v510
  %v1978 = vunpack.c.l.b16 %v511
  %v1979 = vunpack.c.l.b16 %v512
  %v1980 = vunpack.c.h.b16 %v512
  %v1981 = vunpack.c.l.b16 %v513
  %v1982 = vunpack.c.l.b16 %v514
  %v1983 = vunpack.c.h.b16 %v514
  %v1984 = vunpack.c.l.b16 %v515
  %v1985 = vunpack.c.l.b16 %v516
  %v1986 = vunpack.c.h.b16 %v516
  %v1987 = vunpack.c.l.b16 %v517
  %v1988 = vunpack.c.l.b16 %v518
  %v1989 = vunpack.c.h.b16 %v518
  %v1990 = vunpack.c.l.b16 %v519
  %v1991 = vunpack.c.l.b16 %v520
  %v1992 = vunpack.c.h.b16 %v520
  %v1993 = vunpack.c.l.b16 %v521
  %v1994 = vunpack.c.l.b16 %v522
  %v1995 = vunpack.c.h.b16 %v522
  %v1996 = vunpack.c.l.b16 %v523
  %v1997 = vunpack.c.l.b16 %v524
  %v1998 = vunpack.c.h.b16 %v524
  %v1999 = vunpack.c.l.b16 %v525
  %v2000 = vunpack.c.l.b16 %v526
  %v2001 = vunpack.c.h.b16 %v526
  %v2002 = vunpack.c.l.b16 %v527
  %v2003 = vunpack.c.l.b16 %v528
  %v2004 = vunpack.c.h.b16 %v528
  %v2005 = vunpack.c.l.b16 %v529
  %v2006 = vunpack.c.l.b16 %v530
  %v2007 = vunpack.c.h.b16 %v530
  %v2008 = vunpack.c.l.b16 %v531
  %v2009 = vunpack.c.l.b16 %v532
  %v2010 = vunpack.c.h.b16 %v532
  %v2011 = vunpack.c.l.b16 %v533
  %v2012 = vunpack.c.l.b16 %v534
  %v2013 = vunpack.c.h.b16 %v534
  %v2014 = vunpack.c.l.b16 %v535
  %v2015 = vunpack.c.l.b16 %v536
  %v2016 = vunpack.c.h.b16 %v536
  %v2017 = vunpack.c.l.b16 %v537
  %v2018 = vunpack.c.l.b16 %v538
  %v2019 = vunpack.c.h.b16 %v538
  %v2020 = vunpack.c.l.b16 %v539
  %v2021 = vunpack.c.l.b16 %v540
  %v2022 = vunpack.c.h.b16 %v540
  %v2023 = vunpack.c.l.b16 %v541
  %v2024 = vunpack.c.l.b16 %v542
  %v2025 = vunpack.c.h.b16 %v542
  %v2026 = vunpack.c.l.b16 %v543
  %v2027 = vunpack.c.l.b16 %v544
  %v2028 = vunpack.c.h.b16 %v544
  %v2029 = vunpack.c.l.b16 %v545
  %v2030 = vunpack.c.l.b16 %v546
  %v2031 = vunpack.c.h.b16 %v546
  %v2032 = vunpack.c.l.b16 %v547
  %v2033 = vunpack.c.l.b16 %v548
  %v2034 = vunpack.c.h.b16 %v548
  %v2035 = vunpack.c.l.b16 %v549
  %v2036 = vunpack.c.l.b16 %v550
  %v2037 = vunpack.c.h.b16 %v550
  %v2038 = vunpack.c.l.b16 %v551
  %v2039 = vunpack.c.l.b16 %v552
  %v2040 = vunpack.c.h.b16 %v552
  %v2041 = vunpack.c.l.b16 %v553
  %v2042 = vunpack.c.l.b16 %v554
  %v2043 = vunpack.c.h.b16 %v554
  %v2044 = vunpack.c.l.b16 %v555
  %v2045 = vunpack.c.l.b16 %v556
  %v2046 = vunpack.c.h.b16 %v556
  %v2047 = vunpack.c.l.b16 %v557
  %v2048 = vunpack.c.l.b16 %v558
  %v2049 = vunpack.c.h.b16 %v558
  %v2050 = vunpack.c.l.b16 %v559
  %v2051 = vunpack.c.l.b16 %v560
  %v2052 = vunpack.c.h.b16 %v560
  %v2053 = vunpack.c.l.b16 %v561
  %v2054 = vunpack.c.l.b16 %v562
  %v2055 = vunpack.c.h.b16 %v562
  %v2056 = vunpack.c.l.b16 %v563
  %v2057 = vunpack.c.l.b16 %v564
  %v2058 = vunpack.c.h.b16 %v564
  %v2059 = vunpack.c.l.b16 %v565
  %v2060 = vunpack.c.l.b16 %v566
  %v2061 = vunpack.c.h.b16 %v566
  %v2062 = vunpack.c.l.b16 %v567
  %v2063 = vunpack.c.l.b16 %v568
  %v2064 = vunpack.c.h.b16 %v568
  %v2065 = vunpack.c.l.b16 %v569
  %v2066 = vunpack.c.l.b16 %v570
  %v2067 = vunpack.c.h.b16 %v570
  %v2068 = vunpack.c.l.b16 %v571
  %v2069 = vunpack.c.l.b16 %v572
  %v2070 = vunpack.c.h.b16 %v572
  %v2071 = vunpack.c.l.b16 %v573
  %v2072 = vunpack.c.l.b16 %v574
  %v2073 = vunpack.c.h.b16 %v574
  %v2074 = vunpack.c.l.b16 %v575
  %v2075 = vunpack.c.l.b16 %v576
  %v2076 = vunpack.c.h.b16 %v576
  %v2077 = vunpack.c.l.b16 %v577
  %v2078 = vunpack.c.l.b16 %v578
  %v2079 = vunpack.c.h.b16 %v578
  %v2080 = vunpack.c.l.b16 %v579
  %v2081 = vunpack.c.l.b16 %v580
  %v2082 = vunpack.c.h.b16 %v580
  %v2083 = vunpack.c.l.b16 %v581
  %v2084 = vunpack.c.l.b16 %v582
  %v2085 = vunpack.c.h.b16 %v582
  %v2086 = vunpack.c.l.b16 %v583
  %v2087 = vunpack.c.l.b16 %v584
  %v2088 = vunpack.c.h.b16 %v584
  %v2089 = vunpack.c.l.b16 %v585
  %v2090 = vunpack.c.l.b16 %v586
  %v2091 = vunpack.c.h.b16 %v586
  %v2092 = vunpack.c.l.b16 %v587
  %v2093 = vunpack.c.l.b16 %v588
  %v2094 = vunpack.c.h.b16 %v588
  %v2095 = vunpack.c.l.b16 %v589
  %v2096 = vunpack.c.l.b16 %v590
  %v2097 = vunpack.c.h.b16 %v590
  %v2098 = vunpack.c.l.b16 %v591
  %v2099 = vunpack.c.l.b16 %v592
  %v2100 = vunpack.c.h.b16 %v592
  %v2101 = vunpack.c.l.b16 %v593
  %v2102 = vunpack.c.l.b16 %v594
  %v2103 = vunpack.c.h.b16 %v594
  %v2104 = vunpack.c.l.b16 %v595
  %v2105 = vunpack.c.l.b16 %v596
  %v2106 = vunpack.c.h.b16 %v596
  %v2107 = vunpack.c.l.b16 %v597
  %v2108 = vunpack.c.l.b16 %v598
  %v2109 = vunpack.c.h.b16 %v598
  %v2110 = vunpack.c.l.b16 %v599
  %v2111 = vunpack.c.l.b16 %v600
  %v2112 = vunpack.c.h.b16 %v600
  %v2113 = vunpack.c.l.b16 %v601
  %v2114 = vunpack.c.l.b16 %v602
  %v2115 = vunpack.c.h.b16 %v602
  %v2116 = vunpack.c.l.b16 %v603
  %v2117 = vunpack.c.l.b16 %v604
  %v2118 = vunpack.c.h.b16 %v604
  %v2119 = vunpack.c.l.b16 %v605
  %v2120 = vunpack.c.l.b16 %v606
  %v2121 = vunpack.c.h.b16 %v606
  %v2122 = vunpack.c.l.b16 %v607
  %v2123 = vunpack.c.l.b16 %v608
  %v2124 = vunpack.c.h.b16 %v608
  %v2125 = vunpack.c.l.b16 %v609
  %v2126 = vunpack.c.l.b16 %v610
  %v2127 = vunpack.c.h.b16 %v610
  %v2128 = vunpack.c.l.b16 %v611
  %v2129 = vunpack.c.l.b16 %v612
  %v2130 = vunpack.c.h.b16 %v612
  %v2131 = vunpack.c.l.b16 %v613
  %v2132 = vunpack.c.l.b16 %v614
  %v2133 = vunpack.c.h.b16 %v614
  %v2134 = vunpack.c.l.b16 %v615
  %v2135 = vunpack.c.l.b16 %v616
  %v2136 = vunpack.c.h.b16 %v616
  %v2137 = vunpack.c.l.b16 %v617
  %v2138 = vpack.c.b16 %v1277, %v1274
  %v2139 = vpack.c.b16 %v1278, %v1275
  %v2140 = vpack.c.b16 %v1279, %v1276
  %v2141 = vpack.c.b16 %v1283, %v1280
  %v2142 = vpack.c.b16 %v1284, %v1281
  %v2143 = vpack.c.b16 %v1285, %v1282
  %v2144 = vpack.c.b16 %v1289, %v1286
  %v2145 = vpack.c.b16 %v1290, %v1287
  %v2146 = vpack.c.b16 %v1291, %v1288
  %v2147 = vpack.c.b16 %v1295, %v1292
  %v2148 = vpack.c.b16 %v1296, %v1293
  %v2149 = vpack.c.b16 %v1297, %v1294
  %v2150 = vpack.c.b16 %v1301, %v1298
  %v2151 = vpack.c.b16 %v1302, %v1299
  %v2152 = vpack.c.b16 %v1303, %v1300
  %v2153 = vpack.c.b16 %v1307, %v1304
  %v2154 = vpack.c.b16 %v1308, %v1305
  %v2155 = vpack.c.b16 %v1309, %v1306
  %v2156 = vpack.c.b16 %v1313, %v1310
  %v2157 = vpack.c.b16 %v1314, %v1311
  %v2158 = vpack.c.b16 %v1315, %v1312
  %v2159 = vpack.c.b16 %v1319, %v1316
  %v2160 = vpack.c.b16 %v1320, %v1317
  %v2161 = vpack.c.b16 %v1321, %v1318
  %v2162 = vpack.c.b16 %v1325, %v1322
  %v2163 = vpack.c.b16 %v1326, %v1323
  %v2164 = vpack.c.b16 %v1327, %v1324
  %v2165 = vpack.c.b16 %v1331, %v1328
  %v2166 = vpack.c.b16 %v1332, %v1329
  %v2167 = vpack.c.b16 %v1333, %v1330
  %v2168 = vpack.c.b16 %v1337, %v1334
  %v2169 = vpack.c.b16 %v1338, %v1335
  %v2170 = vpack.c.b16 %v1339, %v1336
  %v2171 = vpack.c.b16 %v1343, %v1340
  %v2172 = vpack.c.b16 %v1344, %v1341
  %v2173 = vpack.c.b16 %v1345, %v1342
  %v2174 = vpack.c.b16 %v1349, %v1346
  %v2175 = vpack.c.b16 %v1350, %v1347
  %v2176 = vpack.c.b16 %v1351, %v1348
  %v2177 = vpack.c.b16 %v1355, %v1352
  %v2178 = vpack.c.b16 %v1356, %v1353
  %v2179 = vpack.c.b16 %v1357, %v1354
  %v2180 = vpack.c.b16 %v1361, %v1358
  %v2181 = vpack.c.b16 %v1362, %v1359
  %v2182 = vpack.c.b16 %v1363, %v1360
  %v2183 = vpack.c.b16 %v1367, %v1364
  %v2184 = vpack.c.b16 %v1368, %v1365
  %v2185 = vpack.c.b16 %v1369, %v1366
  %v2186 = vpack.c.b16 %v1373, %v1370
  %v2187 = vpack.c.b16 %v1374, %v1371
  %v2188 = vpack.c.b16 %v1375, %v1372
  %v2189 = vpack.c.b16 %v1379, %v1376
  %v2190 = vpack.c.b16 %v1380, %v1377
  %v2191 = vpack.c.b16 %v1381, %v1378
  %v2192 = vpack.c.b16 %v1385, %v1382
  %v2193 = vpack.c.b16 %v1386, %v1383
  %v2194 = vpack.c.b16 %v1387, %v1384
  %v2195 = vpack.c.b16 %v1391, %v1388
  %v2196 = vpack.c.b16 %v1392, %v1389
  %v2197 = vpack.c.b16 %v1393, %v1390
  %v2198 = vpack.c.b16 %v1397, %v1394
  %v2199 = vpack.c.b16 %v1398, %v1395
  %v2200 = vpack.c.b16 %v1399, %v1396
  %v2201 = vpack.c.b16 %v1403, %v1400
  %v2202 = vpack.c.b16 %v1404, %v1401
  %v2203 = vpack.c.b16 %v1405, %v1402
  %v2204 = vpack.c.b16 %v1409, %v1406
  %v2205 = vpack.c.b16 %v1410, %v1407
  %v2206 = vpack.c.b16 %v1411, %v1408
  %v2207 = vpack.c.b16 %v1415, %v1412
  %v2208 = vpack.c.b16 %v1416, %v1413
  %v2209 = vpack.c.b16 %v1417, %v1414
  %v2210 = vpack.c.b16 %v1421, %v1418
  %v2211 = vpack.c.b16 %v1422, %v1419
  %v2212 = vpack.c.b16 %v1423, %v1420
  %v2213 = vpack.c.b16 %v1427, %v1424
  %v2214 = vpack.c.b16 %v1428, %v1425
  %v2215 = vpack.c.b16 %v1429, %v1426
  %v2216 = vpack.c.b16 %v1433, %v1430
  %v2217 = vpack.c.b16 %v1434, %v1431
  %v2218 = vpack.c.b16 %v1435, %v1432
  %v2219 = vpack.c.b16 %v1439, %v1436
  %v2220 = vpack.c.b16 %v1440, %v1437
  %v2221 = vpack.c.b16 %v1441, %v1438
  %v2222 = vpack.c.b16 %v1445, %v1442
  %v2223 = vpack.c.b16 %v1446, %v1443
  %v2224 = vpack.c.b16 %v1447, %v1444
  %v2225 = vpack.c.b16 %v1451, %v1448
  %v2226 = vpack.c.b16 %v1452, %v1449
  %v2227 = vpack.c.b16 %v1453, %v1450
  %v2228 = vpack.c.b16 %v1457, %v1454
  %v2229 = vpack.c.b16 %v1458, %v1455
  %v2230 = vpack.c.b16 %v1459, %v1456
  %v2231 = vpack.c.b16 %v1463, %v1460
  %v2232 = vpack.c.b16 %v1464, %v1461
  %v2233 = vpack.c.b16 %v1465, %v1462
  %v2234 = vpack.c.b16 %v1469, %v1466
  %v2235 = vpack.c.b16 %v1470, %v1467
  %v2236 = vpack.c.b16 %v1471, %v1468
  %v2237 = vpack.c.b16 %v1475, %v1472
  %v2238 = vpack.c.b16 %v1476, %v1473
  %v2239 = vpack.c.b16 %v1477, %v1474
  %v2240 = vpack.c.b16 %v1481, %v1478
  %v2241 = vpack.c.b16 %v1482, %v1479
  %v2242 = vpack.c.b16 %v1483, %v1480
  %v2243 = vpack.c.b16 %v1487, %v1484
  %v2244 = vpack.c.b16 %v1488, %v1485
  %v2245 = vpack.c.b16 %v1489, %v1486
  %v2246 = vpack.c.b16 %v1493, %v1490
  %v2247 = vpack.c.b16 %v1494, %v1491
  %v2248 = vpack.c.b16 %v1495, %v1492
  %v2249 = vpack.c.b16 %v1499, %v1496
  %v2250 = vpack.c.b16 %v1500, %v1497
  %v2251 = vpack.c.b16 %v1501, %v1498
  %v2252 = vpack.c.b16 %v1505, %v1502
  %v2253 = vpack.c.b16 %v1506, %v1503
  %v2254 = vpack.c.b16 %v1507, %v1504
  %v2255 = vpack.c.b16 %v1511, %v1508
  %v2256 = vpack.c.b16 %v1512, %v1509
  %v2257 = vpack.c.b16 %v1513, %v1510
  %v2258 = vpack.c.b16 %v1517, %v1514
  %v2259 = vpack.c.b16 %v1518, %v1515
  %v2260 = vpack.c.b16 %v1519, %v1516
  %v2261 = vpack.c.b16 %v1523, %v1520
  %v2262 = vpack.c.b16 %v1524, %v1521
  %v2263 = vpack.c.b16 %v1525, %v1522
  %v2264 = vpack.c.b16 %v1529, %v1526
  %v2265 = vpack.c.b16 %v1530, %v1527
  %v2266 = vpack.c.b16 %v1531, %v1528
  %v2267 = vpack.c.b16 %v1535, %v1532
  %v2268 = vpack.c.b16 %v1536, %v1533
  %v2269 = vpack.c.b16 %v1537, %v1534
  %v2270 = vpack.c.b16 %v1541, %v1538
  %v2271 = vpack.c.b16 %v1542, %v1539
  %v2272 = vpack.c.b16 %v1543, %v1540
  %v2273 = vpack.c.b16 %v1547, %v1544
  %v2274 = vpack.c.b16 %v1548, %v1545
  %v2275 = vpack.c.b16 %v1549, %v1546
  %v2276 = vpack.c.b16 %v1553, %v1550
  %v2277 = vpack.c.b16 %v1554, %v1551
  %v2278 = vpack.c.b16 %v1555, %v1552
  %v2279 = vpack.c.b16 %v1559, %v1556
  %v2280 = vpack.c.b16 %v1560, %v1557
  %v2281 = vpack.c.b16 %v1561, %v1558
  %v2282 = vpack.c.b16 %v1565, %v1562
  %v2283 = vpack.c.b16 %v1566, %v1563
  %v2284 = vpack.c.b16 %v1567, %v1564
  %v2285 = vpack.c.b16 %v1571, %v1568
  %v2286 = vpack.c.b16 %v1572, %v1569
  %v2287 = vpack.c.b16 %v1573, %v1570
  %v2288 = vpack.c.b16 %v1577, %v1574
  %v2289 = vpack.c.b16 %v1578, %v1575
  %v2290 = vpack.c.b16 %v1579, %v1576
  %v2291 = vpack.c.b16 %v1583, %v1580
  %v2292 = vpack.c.b16 %v1584, %v1581
  %v2293 = vpack.c.b16 %v1585, %v1582
  %v2294 = vpack.c.b16 %v1589, %v1586
  %v2295 = vpack.c.b16 %v1590, %v1587
  %v2296 = vpack.c.b16 %v1591, %v1588
  %v2297 = vpack.c.b16 %v1595, %v1592
  %v2298 = vpack.c.b16 %v1596, %v1593
  %v2299 = vpack.c.b16 %v1597, %v1594
  %v2300 = vpack.c.b16 %v1601, %v1598
  %v2301 = vpack.c.b16 %v1602, %v1599
  %v2302 = vpack.c.b16 %v1603, %v1600
  %v2303 = vpack.c.b16 %v1607, %v1604
  %v2304 = vpack.c.b16 %v1608, %v1605
  %v2305 = vpack.c.b16 %v1609, %v1606
  %v2306 = vpack.c.b16 %v1613, %v1610
  %v2307 = vpack.c.b16 %v1614, %v1611
  %v2308 = vpack.c.b16 %v1615, %v1612
  %v2309 = vpack.c.b16 %v1619, %v1616
  %v2310 = vpack.c.b16 %v1620, %v1617
  %v2311 = vpack.c.b16 %v1621, %v1618
  %v2312 = vpack.c.b16 %v1625, %v1622
  %v2313 = vpack.c.b16 %v1626, %v1623
  %v2314 = vpack.c.b16 %v1627, %v1624
  %v2315 = vpack.c.b16 %v1631, %v1628
  %v2316 = vpack.c.b16 %v1632, %v1629
  %v2317 = vpack.c.b16 %v1633, %v1630
  %v2318 = vpack.c.b16 %v1637, %v1634
  %v2319 = vpack.c.b16 %v1638, %v1635
  %v2320 = vpack.c.b16 %v1639, %v1636
  %v2321 = vpack.c.b16 %v1643, %v1640
  %v2322 = vpack.c.b16 %v1644, %v1641
  %v2323 = vpack.c.b16 %v1645, %v1642
  %v2324 = vpack.c.b16 %v1649, %v1646
  %v2325 = vpack.c.b16 %v1650, %v1647
  %v2326 = vpack.c.b16 %v1651, %v1648
  %v2327 = vpack.c.b16 %v1655, %v1652
  %v2328 = vpack.c.b16 %v1656, %v1653
  %v2329 = vpack.c.b16 %v1657, %v1654
  %v2330 = vpack.c.b16 %v1661, %v1658
  %v2331 = vpack.c.b16 %v1662, %v1659
  %v2332 = vpack.c.b16 %v1663, %v1660
  %v2333 = vpack.c.b16 %v1667, %v1664
  %v2334 = vpack.c.b16 %v1668, %v1665
  %v2335 = vpack.c.b16 %v1669, %v1666
  %v2336 = vpack.c.b16 %v1673, %v1670
  %v2337 = vpack.c.b16 %v1674, %v1671
  %v2338 = vpack.c.b16 %v1675, %v1672
  %v2339 = vpack.c.b16 %v1679, %v1676
  %v2340 = vpack.c.b16 %v1680, %v1677
  %v2341 = vpack.c.b16 %v1681, %v1678
  %v2342 = vpack.c.b16 %v1685, %v1682
  %v2343 = vpack.c.b16 %v1686, %v1683
  %v2344 = vpack.c.b16 %v1687, %v1684
  %v2345 = vpack.c.b16 %v1691, %v1688
  %v2346 = vpack.c.b16 %v1692, %v1689
  %v2347 = vpack.c.b16 %v1693, %v1690
  %v2348 = vpack.c.b16 %v1697, %v1694
  %v2349 = vpack.c.b16 %v1698, %v1695
  %v2350 = vpack.c.b16 %v1699, %v1696
  %v2351 = vpack.c.b16 %v1703, %v1700
  %v2352 = vpack.c.b16 %v1704, %v1701
  %v2353 = vpack.c.b16 %v1705, %v1702
  %v2354 = vpack.c.b16 %v1709, %v1706
  %v2355 = vpack.c.b16 %v1710, %v1707
  %v2356 = vpack.c.b16 %v1711, %v1708
  %v2357 = vpack.c.b16 %v1715, %v1712
  %v2358 = vpack.c.b16 %v1716, %v1713
  %v2359 = vpack.c.b16 %v1717, %v1714
  %v2360 = vpack.c.b16 %v1721, %v1718
  %v2361 = vpack.c.b16 %v1722, %v1719
  %v2362 = vpack.c.b16 %v1723, %v1720
  %v2363 = vpack.c.b16 %v1727, %v1724
  %v2364 = vpack.c.b16 %v1728, %v1725
  %v2365 = vpack.c.b16 %v1729, %v1726
  %v2366 = vpack.c.b16 %v1733, %v1730
  %v2367 = vpack.c.b16 %v1734, %v1731
  %v2368 = vpack.c.b16 %v1735, %v1732
  %v2369 = vpack.c.b16 %v1739, %v1736
  %v2370 = vpack.c.b16 %v1740, %v1737
  %v2371 = vpack.c.b16 %v1741, %v1738
  %v2372 = vpack.c.b16 %v1745, %v1742
  %v2373 = vpack.c.b16 %v1746, %v1743
  %v2374 = vpack.c.b16 %v1747, %v1744
  %v2375 = vpack.c.b16 %v1751, %v1748
  %v2376 = vpack.c.b16 %v1752, %v1749
  %v2377 = vpack.c.b16 %v1753, %v1750
  %v2378 = vpack.c.b16 %v1757, %v1754
  %v2379 = vpack.c.b16 %v1758, %v1755
  %v2380 = vpack.c.b16 %v1759, %v1756
  %v2381 = vpack.c.b16 %v1763, %v1760
  %v2382 = vpack.c.b16 %v1764, %v1761
  %v2383 = vpack.c.b16 %v1765, %v1762
  %v2384 = vpack.c.b16 %v1769, %v1766
  %v2385 = vpack.c.b16 %v1770, %v1767
  %v2386 = vpack.c.b16 %v1771, %v1768
  %v2387 = vpack.c.b16 %v1775, %v1772
  %v2388 = vpack.c.b16 %v1776, %v1773
  %v2389 = vpack.c.b16 %v1777, %v1774
  %v2390 = vpack.c.b16 %v1781, %v1778
  %v2391 = vpack.c.b16 %v1782, %v1779
  %v2392 = vpack.c.b16 %v1783, %v1780
  %v2393 = vpack.c.b16 %v1787, %v1784
  %v2394 = vpack.c.b16 %v1788, %v1785
  %v2395 = vpack.c.b16 %v1789, %v1786
  %v2396 = vpack.c.b16 %v1793, %v1790
  %v2397 = vpack.c.b16 %v1794, %v1791
  %v2398 = vpack.c.b16 %v1795, %v1792
  %v2399 = vpack.c.b16 %v1799, %v1796
  %v2400 = vpack.c.b16 %v1800, %v1797
  %v2401 = vpack.c.b16 %v1801, %v1798
  %v2402 = vpack.c.b16 %v1805, %v1802
  %v2403 = vpack.c.b16 %v1806, %v1803
  %v2404 = vpack.c.b16 %v1807, %v1804
  %v2405 = vpack.c.b16 %v1811, %v1808
  %v2406 = vpack.c.b16 %v1812, %v1809
  %v2407 = vpack.c.b16 %v1813, %v1810
  %v2408 = vpack.c.b16 %v1817, %v1814
  %v2409 = vpack.c.b16 %v1818, %v1815
  %v2410 = vpack.c.b16 %v1819, %v1816
  %v2411 = vpack.c.b16 %v1823, %v1820
  %v2412 = vpack.c.b16 %v1824, %v1821
  %v2413 = vpack.c.b16 %v1825, %v1822
  %v2414 = vpack.c.b16 %v1829, %v1826
  %v2415 = vpack.c.b16 %v1830, %v1827
  %v2416 = vpack.c.b16 %v1831, %v1828
  %v2417 = vpack.c.b16 %v1835, %v1832
  %v2418 = vpack.c.b16 %v1836, %v1833
  %v2419 = vpack.c.b16 %v1837, %v1834
  %v2420 = vpack.c.b16 %v1841, %v1838
  %v2421 = vpack.c.b16 %v1842, %v1839
  %v2422 = vpack.c.b16 %v1843, %v1840
  %v2423 = vpack.c.b16 %v1847, %v1844
  %v2424 = vpack.c.b16 %v1848, %v1845
  %v2425 = vpack.c.b16 %v1849, %v1846
  %v2426 = vpack.c.b16 %v1853, %v1850
  %v2427 = vpack.c.b16 %v1854, %v1851
  %v2428 = vpack.c.b16 %v1855, %v1852
  %v2429 = vpack.c.b16 %v1859, %v1856
  %v2430 = vpack.c.b16 %v1860, %v1857
  %v2431 = vpack.c.b16 %v1861, %v1858
  %v2432 = vpack.c.b16 %v1865, %v1862
  %v2433 = vpack.c.b16 %v1866, %v1863
  %v2434 = vpack.c.b16 %v1867, %v1864
  %v2435 = vpack.c.b16 %v1871, %v1868
  %v2436 = vpack.c.b16 %v1872, %v1869
  %v2437 = vpack.c.b16 %v1873, %v1870
  %v2438 = vpack.c.b16 %v1877, %v1874
  %v2439 = vpack.c.b16 %v1878, %v1875
  %v2440 = vpack.c.b16 %v1879, %v1876
  %v2441 = vpack.c.b16 %v1883, %v1880
  %v2442 = vpack.c.b16 %v1884, %v1881
  %v2443 = vpack.c.b16 %v1885, %v1882
  %v2444 = vpack.c.b16 %v1889, %v1886
  %v2445 = vpack.c.b16 %v1890, %v1887
  %v2446 = vpack.c.b16 %v1891, %v1888
  %v2447 = vpack.c.b16 %v1895, %v1892
  %v2448 = vpack.c.b16 %v1896, %v1893
  %v2449 = vpack.c.b16 %v1897, %v1894
  %v2450 = vpack.c.b16 %v1901, %v1898
  %v2451 = vpack.c.b16 %v1902, %v1899
  %v2452 = vpack.c.b16 %v1903, %v1900
  %v2453 = vpack.c.b16 %v1907, %v1904
  %v2454 = vpack.c.b16 %v1908, %v1905
  %v2455 = vpack.c.b16 %v1909, %v1906
  %v2456 = vpack.c.b16 %v1913, %v1910
  %v2457 = vpack.c.b16 %v1914, %v1911
  %v2458 = vpack.c.b16 %v1915, %v1912
  %v2459 = vpack.c.b16 %v1919, %v1916
  %v2460 = vpack.c.b16 %v1920, %v1917
  %v2461 = vpack.c.b16 %v1921, %v1918
  %v2462 = vpack.c.b16 %v1925, %v1922
  %v2463 = vpack.c.b16 %v1926, %v1923
  %v2464 = vpack.c.b16 %v1927, %v1924
  %v2465 = vpack.c.b16 %v1931, %v1928
  %v2466 = vpack.c.b16 %v1932, %v1929
  %v2467 = vpack.c.b16 %v1933, %v1930
  %v2468 = vpack.c.b16 %v1937, %v1934
  %v2469 = vpack.c.b16 %v1938, %v1935
  %v2470 = vpack.c.b16 %v1939, %v1936
  %v2471 = vpack.c.b16 %v1943, %v1940
  %v2472 = vpack.c.b16 %v1944, %v1941
  %v2473 = vpack.c.b16 %v1945, %v1942
  %v2474 = vpack.c.b16 %v1949, %v1946
  %v2475 = vpack.c.b16 %v1950, %v1947
  %v2476 = vpack.c.b16 %v1951, %v1948
  %v2477 = vpack.c.b16 %v1955, %v1952
  %v2478 = vpack.c.b16 %v1956, %v1953
  %v2479 = vpack.c.b16 %v1957, %v1954
  %v2480 = vpack.c.b16 %v1961, %v1958
  %v2481 = vpack.c.b16 %v1962, %v1959
  %v2482 = vpack.c.b16 %v1963, %v1960
  %v2483 = vpack.c.b16 %v1967, %v1964
  %v2484 = vpack.c.b16 %v1968, %v1965
  %v2485 = vpack.c.b16 %v1969, %v1966
  %v2486 = vpack.c.b16 %v1973, %v1970
  %v2487 = vpack.c.b16 %v1974, %v1971
  %v2488 = vpack.c.b16 %v1975, %v1972
  %v2489 = vpack.c.b16 %v1979, %v1976
  %v2490 = vpack.c.b16 %v1980, %v1977
  %v2491 = vpack.c.b16 %v1981, %v1978
  %v2492 = vpack.c.b16 %v1985, %v1982
  %v2493 = vpack.c.b16 %v1986, %v1983
  %v2494 = vpack.c.b16 %v1987, %v1984
  %v2495 = vpack.c.b16 %v1991, %v1988
  %v2496 = vpack.c.b16 %v1992, %v1989
  %v2497 = vpack.c.b16 %v1993, %v1990
  %v2498 = vpack.c.b16 %v1997, %v1994
  %v2499 = vpack.c.b16 %v1998, %v1995
  %v2500 = vpack.c.b16 %v1999, %v1996
  %v2501 = vpack.c.b16 %v2003, %v2000
  %v2502 = vpack.c.b16 %v2004, %v2001
  %v2503 = vpack.c.b16 %v2005, %v2002
  %v2504 = vpack.c.b16 %v2009, %v2006
  %v2505 = vpack.c.b16 %v2010, %v2007
  %v2506 = vpack.c.b16 %v2011, %v2008
  %v2507 = vpack.c.b16 %v2015, %v2012
  %v2508 = vpack.c.b16 %v2016, %v2013
  %v2509 = vpack.c.b16 %v2017, %v2014
  %v2510 = vpack.c.b16 %v2021, %v2018
  %v2511 = vpack.c.b16 %v2022, %v2019
  %v2512 = vpack.c.b16 %v2023, %v2020
  %v2513 = vpack.c.b16 %v2027, %v2024
  %v2514 = vpack.c.b16 %v2028, %v2025
  %v2515 = vpack.c.b16 %v2029, %v2026
  %v2516 = vpack.c.b16 %v2033, %v2030
  %v2517 = vpack.c.b16 %v2034, %v2031
  %v2518 = vpack.c.b16 %v2035, %v2032
  %v2519 = vpack.c.b16 %v2039, %v2036
  %v2520 = vpack.c.b16 %v2040, %v2037
  %v2521 = vpack.c.b16 %v2041, %v2038
  %v2522 = vpack.c.b16 %v2045, %v2042
  %v2523 = vpack.c.b16 %v2046, %v2043
  %v2524 = vpack.c.b16 %v2047, %v2044
  %v2525 = vpack.c.b16 %v2051, %v2048
  %v2526 = vpack.c.b16 %v2052, %v2049
  %v2527 = vpack.c.b16 %v2053, %v2050
  %v2528 = vpack.c.b16 %v2057, %v2054
  %v2529 = vpack.c.b16 %v2058, %v2055
  %v2530 = vpack.c.b16 %v2059, %v2056
  %v2531 = vpack.c.b16 %v2063, %v2060
  %v2532 = vpack.c.b16 %v2064, %v2061
  %v2533 = vpack.c.b16 %v2065, %v2062
  %v2534 = vpack.c.b16 %v2069, %v2066
  %v2535 = vpack.c.b16 %v2070, %v2067
  %v2536 = vpack.c.b16 %v2071, %v2068
  %v2537 = vpack.c.b16 %v2075, %v2072
  %v2538 = vpack.c.b16 %v2076, %v2073
  %v2539 = vpack.c.b16 %v2077, %v2074
  %v2540 = vpack.c.b16 %v2081, %v2078
  %v2541 = vpack.c.b16 %v2082, %v2079
  %v2542 = vpack.c.b16 %v2083, %v2080
  %v2543 = vpack.c.b16 %v2087, %v2084
  %v2544 = vpack.c.b16 %v2088, %v2085
  %v2545 = vpack.c.b16 %v2089, %v2086
  %v2546 = vpack.c.b16 %v2093, %v2090
  %v2547 = vpack.c.b16 %v2094, %v2091
  %v2548 = vpack.c.b16 %v2095, %v2092
  %v2549 = vpack.c.b16 %v2099, %v2096
  %v2550 = vpack.c.b16 %v2100, %v2097
  %v2551 = vpack.c.b16 %v2101, %v2098
  %v2552 = vpack.c.b16 %v2105, %v2102
  %v2553 = vpack.c.b16 %v2106, %v2103
  %v2554 = vpack.c.b16 %v2107, %v2104
  %v2555 = vpack.c.b16 %v2111, %v2108
  %v2556 = vpack.c.b16 %v2112, %v2109
  %v2557 = vpack.c.b16 %v2113, %v2110
  %v2558 = vpack.c.b16 %v2117, %v2114
  %v2559 = vpack.c.b16 %v2118, %v2115
  %v2560 = vpack.c.b16 %v2119, %v2116
  %v2561 = vpack.c.b16 %v2123, %v2120
  %v2562 = vpack.c.b16 %v2124, %v2121
  %v2563 = vpack.c.b16 %v2125, %v2122
  %v2564 = vpack.c.b16 %v2129, %v2126
  %v2565 = vpack.c.b16 %v2130, %v2127
  %v2566 = vpack.c.b16 %v2131, %v2128
  %v2567 = vpack.c.b16 %v2135, %v2132
  %v2568 = vpack.c.b16 %v2136, %v2133
  %v2569 = vpack.c.b16 %v2137, %v2134
  %3002 = vmatprep.subr.bf16.mxu0 %v2139
  %3003 = vmatpush1.bf16.msra.mxu0 %v2138
  %3004 = vmatprep.subr.bf16.mxu0 %v2142
  %3005 = vmatpush1.bf16.msra.mxu0 %v2141
  %3006 = vmatprep.subr.bf16.mxu0 %v2145
  %3007 = vmatpush1.bf16.msra.mxu0 %v2144
  %3008 = vmatprep.subr.bf16.mxu0 %v2148
  %3009 = vmatpush1.bf16.msra.mxu0 %v2147
  %3010 = vmatprep.subr.bf16.mxu0 %v2151
  %3011 = vmatpush1.bf16.msra.mxu0 %v2150
  %3012 = vmatprep.subr.bf16.mxu0 %v2154
  %3013 = vmatpush1.bf16.msra.mxu0 %v2153
  %3014 = vmatprep.subr.bf16.mxu0 %v2157
  %3015 = vmatpush1.bf16.msra.mxu0 %v2156
  %3016 = vmatprep.subr.bf16.mxu0 %v2160
  %3017 = vmatpush1.bf16.msra.mxu0 %v2159
  %3018 = vmatprep.subr.bf16.mxu0 %v2163
  %3019 = vmatpush1.bf16.msra.mxu0 %v2162
  %3020 = vmatprep.subr.bf16.mxu0 %v2166
  %3021 = vmatpush1.bf16.msra.mxu0 %v2165
  %3022 = vmatprep.subr.bf16.mxu0 %v2169
  %3023 = vmatpush1.bf16.msra.mxu0 %v2168
  %3024 = vmatprep.subr.bf16.mxu0 %v2172
  %3025 = vmatpush1.bf16.msra.mxu0 %v2171
  %3026 = vmatprep.subr.bf16.mxu0 %v2175
  %3027 = vmatpush1.bf16.msra.mxu0 %v2174
  %3028 = vmatprep.subr.bf16.mxu0 %v2178
  %3029 = vmatpush1.bf16.msra.mxu0 %v2177
  %3030 = vmatprep.subr.bf16.mxu0 %v2181
  %3031 = vmatpush1.bf16.msra.mxu0 %v2180
  %3032 = vmatprep.subr.bf16.mxu0 %v2184
  %3033 = vmatpush1.bf16.msra.mxu0 %v2183
  %3034 = vmatprep.mubr.bf16.mxu0 %v663
  %3035 = vmatmul.mubr.bf16.gmra.mrb[0].mxu0 %v662
  %v3036 = vpop.f32.mrb[0].mxu0
  %v3037 = vadd.f32 %v623, %v3036
  %v3038 = vpop.f32.mrb[0].mxu0
  %v3039 = vadd.f32 %v627, %v3038
  %v3040 = vpop.f32.mrb[0].mxu0
  %v3041 = vpop.f32.mrb[0].mxu0
  %3042 = vdwg.mxu0
  %3043 = vmatprep.subr.bf16.mxu0 %v2187
  %3044 = vmatpush1.bf16.msra.mxu0 %v2186
  %3045 = vmatprep.subr.bf16.mxu0 %v2190
  %3046 = vmatpush1.bf16.msra.mxu0 %v2189
  %3047 = vmatprep.subr.bf16.mxu0 %v2193
  %3048 = vmatpush1.bf16.msra.mxu0 %v2192
  %3049 = vmatprep.subr.bf16.mxu0 %v2196
  %3050 = vmatpush1.bf16.msra.mxu0 %v2195
  %3051 = vmatprep.subr.bf16.mxu0 %v2199
  %3052 = vmatpush1.bf16.msra.mxu0 %v2198
  %3053 = vmatprep.subr.bf16.mxu0 %v2202
  %3054 = vmatpush1.bf16.msra.mxu0 %v2201
  %3055 = vmatprep.subr.bf16.mxu0 %v2205
  %3056 = vmatpush1.bf16.msra.mxu0 %v2204
  %3057 = vmatprep.subr.bf16.mxu0 %v2208
  %3058 = vmatpush1.bf16.msra.mxu0 %v2207
  %3059 = vmatprep.subr.bf16.mxu0 %v2211
  %3060 = vmatpush1.bf16.msra.mxu0 %v2210
  %3061 = vmatprep.subr.bf16.mxu0 %v2214
  %3062 = vmatpush1.bf16.msra.mxu0 %v2213
  %3063 = vmatprep.subr.bf16.mxu0 %v2217
  %3064 = vmatpush1.bf16.msra.mxu0 %v2216
  %3065 = vmatprep.subr.bf16.mxu0 %v2220
  %3066 = vmatpush1.bf16.msra.mxu0 %v2219
  %3067 = vmatprep.subr.bf16.mxu0 %v2223
  %3068 = vmatpush1.bf16.msra.mxu0 %v2222
  %3069 = vmatprep.subr.bf16.mxu0 %v2226
  %3070 = vmatpush1.bf16.msra.mxu0 %v2225
  %3071 = vmatprep.subr.bf16.mxu0 %v2229
  %3072 = vmatpush1.bf16.msra.mxu0 %v2228
  %3073 = vmatprep.subr.bf16.mxu0 %v2232
  %3074 = vmatpush1.bf16.msra.mxu0 %v2231
  %3075 = vmatprep.mubr.bf16.mxu0 %v665
  %3076 = vmatmul.mubr.bf16.gmra.mrb[0].mxu0 %v664
  %v3077 = vpop.f32.mrb[0].mxu0
  %v3078 = vadd.f32 %v3037, %v3077
  %v3079 = vpop.f32.mrb[0].mxu0
  %v3080 = vadd.f32 %v3039, %v3079
  %v3081 = vpop.f32.mrb[0].mxu0
  %v3082 = vpop.f32.mrb[0].mxu0
  %3083 = vdwg.mxu0
  %3084 = vmatprep.subr.bf16.mxu0 %v2235
  %3085 = vmatpush1.bf16.msra.mxu0 %v2234
  %3086 = vmatprep.subr.bf16.mxu0 %v2238
  %3087 = vmatpush1.bf16.msra.mxu0 %v2237
  %3088 = vmatprep.subr.bf16.mxu0 %v2241
  %3089 = vmatpush1.bf16.msra.mxu0 %v2240
  %3090 = vmatprep.subr.bf16.mxu0 %v2244
  %3091 = vmatpush1.bf16.msra.mxu0 %v2243
  %3092 = vmatprep.subr.bf16.mxu0 %v2247
  %3093 = vmatpush1.bf16.msra.mxu0 %v2246
  %3094 = vmatprep.subr.bf16.mxu0 %v2250
  %3095 = vmatpush1.bf16.msra.mxu0 %v2249
  %3096 = vmatprep.subr.bf16.mxu0 %v2253
  %3097 = vmatpush1.bf16.msra.mxu0 %v2252
  %3098 = vmatprep.subr.bf16.mxu0 %v2256
  %3099 = vmatpush1.bf16.msra.mxu0 %v2255
  %3100 = vmatprep.subr.bf16.mxu0 %v2259
  %3101 = vmatpush1.bf16.msra.mxu0 %v2258
  %3102 = vmatprep.subr.bf16.mxu0 %v2262
  %3103 = vmatpush1.bf16.msra.mxu0 %v2261
  %3104 = vmatprep.subr.bf16.mxu0 %v2265
  %3105 = vmatpush1.bf16.msra.mxu0 %v2264
  %3106 = vmatprep.subr.bf16.mxu0 %v2268
  %3107 = vmatpush1.bf16.msra.mxu0 %v2267
  %3108 = vmatprep.subr.bf16.mxu0 %v2271
  %3109 = vmatpush1.bf16.msra.mxu0 %v2270
  %3110 = vmatprep.subr.bf16.mxu0 %v2274
  %3111 = vmatpush1.bf16.msra.mxu0 %v2273
  %3112 = vmatprep.subr.bf16.mxu0 %v2277
  %3113 = vmatpush1.bf16.msra.mxu0 %v2276
  %3114 = vmatprep.subr.bf16.mxu0 %v2280
  %3115 = vmatpush1.bf16.msra.mxu0 %v2279
  %3116 = vmatprep.mubr.bf16.mxu0 %v667
  %3117 = vmatmul.mubr.bf16.gmra.mrb[0].mxu0 %v666
  %v3118 = vpop.f32.mrb[0].mxu0
  %v3119 = vadd.f32 %v3078, %v3118
  %v3120 = vpop.f32.mrb[0].mxu0
  %v3121 = vadd.f32 %v3080, %v3120
  %v3122 = vpop.f32.mrb[0].mxu0
  %v3123 = vpop.f32.mrb[0].mxu0
  %3124 = vdwg.mxu0
  %3125 = vmatprep.subr.bf16.mxu0 %v2283
  %3126 = vmatpush1.bf16.msra.mxu0 %v2282
  %3127 = vmatprep.subr.bf16.mxu0 %v2286
  %3128 = vmatpush1.bf16.msra.mxu0 %v2285
  %3129 = vmatprep.subr.bf16.mxu0 %v2289
  %3130 = vmatpush1.bf16.msra.mxu0 %v2288
  %3131 = vmatprep.subr.bf16.mxu0 %v2292
  %3132 = vmatpush1.bf16.msra.mxu0 %v2291
  %3133 = vmatprep.subr.bf16.mxu0 %v2295
  %3134 = vmatpush1.bf16.msra.mxu0 %v2294
  %3135 = vmatprep.subr.bf16.mxu0 %v2298
  %3136 = vmatpush1.bf16.msra.mxu0 %v2297
  %3137 = vmatprep.subr.bf16.mxu0 %v2301
  %3138 = vmatpush1.bf16.msra.mxu0 %v2300
  %3139 = vmatprep.subr.bf16.mxu0 %v2304
  %3140 = vmatpush1.bf16.msra.mxu0 %v2303
  %3141 = vmatprep.subr.bf16.mxu0 %v2307
  %3142 = vmatpush1.bf16.msra.mxu0 %v2306
  %3143 = vmatprep.subr.bf16.mxu0 %v2310
  %3144 = vmatpush1.bf16.msra.mxu0 %v2309
  %3145 = vmatprep.subr.bf16.mxu0 %v2313
  %3146 = vmatpush1.bf16.msra.mxu0 %v2312
  %3147 = vmatprep.subr.bf16.mxu0 %v2316
  %3148 = vmatpush1.bf16.msra.mxu0 %v2315
  %3149 = vmatprep.subr.bf16.mxu0 %v2319
  %3150 = vmatpush1.bf16.msra.mxu0 %v2318
  %3151 = vmatprep.subr.bf16.mxu0 %v2322
  %3152 = vmatpush1.bf16.msra.mxu0 %v2321
  %3153 = vmatprep.subr.bf16.mxu0 %v2325
  %3154 = vmatpush1.bf16.msra.mxu0 %v2324
  %3155 = vmatprep.subr.bf16.mxu0 %v2328
  %3156 = vmatpush1.bf16.msra.mxu0 %v2327
  %3157 = vmatprep.mubr.bf16.mxu0 %v669
  %3158 = vmatmul.mubr.bf16.gmra.mrb[0].mxu0 %v668
  %v3159 = vpop.f32.mrb[0].mxu0
  %v3160 = vadd.f32 %v3119, %v3159
  %v3161 = vpop.f32.mrb[0].mxu0
  %v3162 = vadd.f32 %v3121, %v3161
  %v3163 = vpop.f32.mrb[0].mxu0
  %v3164 = vpop.f32.mrb[0].mxu0
  %3165 = vdwg.mxu0
  %3166 = vmatprep.subr.bf16.mxu0 %v2331
  %3167 = vmatpush1.bf16.msra.mxu0 %v2330
  %3168 = vmatprep.subr.bf16.mxu0 %v2334
  %3169 = vmatpush1.bf16.msra.mxu0 %v2333
  %3170 = vmatprep.subr.bf16.mxu0 %v2337
  %3171 = vmatpush1.bf16.msra.mxu0 %v2336
  %3172 = vmatprep.subr.bf16.mxu0 %v2340
  %3173 = vmatpush1.bf16.msra.mxu0 %v2339
  %3174 = vmatprep.subr.bf16.mxu0 %v2343
  %3175 = vmatpush1.bf16.msra.mxu0 %v2342
  %3176 = vmatprep.subr.bf16.mxu0 %v2346
  %3177 = vmatpush1.bf16.msra.mxu0 %v2345
  %3178 = vmatprep.subr.bf16.mxu0 %v2349
  %3179 = vmatpush1.bf16.msra.mxu0 %v2348
  %3180 = vmatprep.subr.bf16.mxu0 %v2352
  %3181 = vmatpush1.bf16.msra.mxu0 %v2351
  %3182 = vmatprep.subr.bf16.mxu0 %v2355
  %3183 = vmatpush1.bf16.msra.mxu0 %v2354
  %3184 = vmatprep.subr.bf16.mxu0 %v2358
  %3185 = vmatpush1.bf16.msra.mxu0 %v2357
  %3186 = vmatprep.subr.bf16.mxu0 %v2361
  %3187 = vmatpush1.bf16.msra.mxu0 %v2360
  %3188 = vmatprep.subr.bf16.mxu0 %v2364
  %3189 = vmatpush1.bf16.msra.mxu0 %v2363
  %3190 = vmatprep.subr.bf16.mxu0 %v2367
  %3191 = vmatpush1.bf16.msra.mxu0 %v2366
  %3192 = vmatprep.subr.bf16.mxu0 %v2370
  %3193 = vmatpush1.bf16.msra.mxu0 %v2369
  %3194 = vmatprep.subr.bf16.mxu0 %v2373
  %3195 = vmatpush1.bf16.msra.mxu0 %v2372
  %3196 = vmatprep.subr.bf16.mxu0 %v2376
  %3197 = vmatpush1.bf16.msra.mxu0 %v2375
  %3198 = vmatprep.mubr.bf16.mxu0 %v671
  %3199 = vmatmul.mubr.bf16.gmra.mrb[0].mxu0 %v670
  %v3200 = vpop.f32.mrb[0].mxu0
  %v3201 = vadd.f32 %v3160, %v3200
  %v3202 = vpop.f32.mrb[0].mxu0
  %v3203 = vadd.f32 %v3162, %v3202
  %v3204 = vpop.f32.mrb[0].mxu0
  %v3205 = vpop.f32.mrb[0].mxu0
  %3206 = vdwg.mxu0
  %3207 = vmatprep.subr.bf16.mxu0 %v2379
  %3208 = vmatpush1.bf16.msra.mxu0 %v2378
  %3209 = vmatprep.subr.bf16.mxu0 %v2382
  %3210 = vmatpush1.bf16.msra.mxu0 %v2381
  %3211 = vmatprep.subr.bf16.mxu0 %v2385
  %3212 = vmatpush1.bf16.msra.mxu0 %v2384
  %3213 = vmatprep.subr.bf16.mxu0 %v2388
  %3214 = vmatpush1.bf16.msra.mxu0 %v2387
  %3215 = vmatprep.subr.bf16.mxu0 %v2391
  %3216 = vmatpush1.bf16.msra.mxu0 %v2390
  %3217 = vmatprep.subr.bf16.mxu0 %v2394
  %3218 = vmatpush1.bf16.msra.mxu0 %v2393
  %3219 = vmatprep.subr.bf16.mxu0 %v2397
  %3220 = vmatpush1.bf16.msra.mxu0 %v2396
  %3221 = vmatprep.subr.bf16.mxu0 %v2400
  %3222 = vmatpush1.bf16.msra.mxu0 %v2399
  %3223 = vmatprep.subr.bf16.mxu0 %v2403
  %3224 = vmatpush1.bf16.msra.mxu0 %v2402
  %3225 = vmatprep.subr.bf16.mxu0 %v2406
  %3226 = vmatpush1.bf16.msra.mxu0 %v2405
  %3227 = vmatprep.subr.bf16.mxu0 %v2409
  %3228 = vmatpush1.bf16.msra.mxu0 %v2408
  %3229 = vmatprep.subr.bf16.mxu0 %v2412
  %3230 = vmatpush1.bf16.msra.mxu0 %v2411
  %3231 = vmatprep.subr.bf16.mxu0 %v2415
  %3232 = vmatpush1.bf16.msra.mxu0 %v2414
  %3233 = vmatprep.subr.bf16.mxu0 %v2418
  %3234 = vmatpush1.bf16.msra.mxu0 %v2417
  %3235 = vmatprep.subr.bf16.mxu0 %v2421
  %3236 = vmatpush1.bf16.msra.mxu0 %v2420
  %3237 = vmatprep.subr.bf16.mxu0 %v2424
  %3238 = vmatpush1.bf16.msra.mxu0 %v2423
  %3239 = vmatprep.mubr.bf16.mxu0 %v673
  %3240 = vmatmul.mubr.bf16.gmra.mrb[0].mxu0 %v672
  %v3241 = vpop.f32.mrb[0].mxu0
  %v3242 = vadd.f32 %v3201, %v3241
  %v3243 = vpop.f32.mrb[0].mxu0
  %v3244 = vadd.f32 %v3203, %v3243
  %v3245 = vpop.f32.mrb[0].mxu0
  %v3246 = vpop.f32.mrb[0].mxu0
  %3247 = vdwg.mxu0
  %3248 = vmatprep.subr.bf16.mxu0 %v2427
  %3249 = vmatpush1.bf16.msra.mxu0 %v2426
  %3250 = vmatprep.subr.bf16.mxu0 %v2430
  %3251 = vmatpush1.bf16.msra.mxu0 %v2429
  %3252 = vmatprep.subr.bf16.mxu0 %v2433
  %3253 = vmatpush1.bf16.msra.mxu0 %v2432
  %3254 = vmatprep.subr.bf16.mxu0 %v2436
  %3255 = vmatpush1.bf16.msra.mxu0 %v2435
  %3256 = vmatprep.subr.bf16.mxu0 %v2439
  %3257 = vmatpush1.bf16.msra.mxu0 %v2438
  %3258 = vmatprep.subr.bf16.mxu0 %v2442
  %3259 = vmatpush1.bf16.msra.mxu0 %v2441
  %3260 = vmatprep.subr.bf16.mxu0 %v2445
  %3261 = vmatpush1.bf16.msra.mxu0 %v2444
  %3262 = vmatprep.subr.bf16.mxu0 %v2448
  %3263 = vmatpush1.bf16.msra.mxu0 %v2447
  %3264 = vmatprep.subr.bf16.mxu0 %v2451
  %3265 = vmatpush1.bf16.msra.mxu0 %v2450
  %3266 = vmatprep.subr.bf16.mxu0 %v2454
  %3267 = vmatpush1.bf16.msra.mxu0 %v2453
  %3268 = vmatprep.subr.bf16.mxu0 %v2457
  %3269 = vmatpush1.bf16.msra.mxu0 %v2456
  %3270 = vmatprep.subr.bf16.mxu0 %v2460
  %3271 = vmatpush1.bf16.msra.mxu0 %v2459
  %3272 = vmatprep.subr.bf16.mxu0 %v2463
  %3273 = vmatpush1.bf16.msra.mxu0 %v2462
  %3274 = vmatprep.subr.bf16.mxu0 %v2466
  %3275 = vmatpush1.bf16.msra.mxu0 %v2465
  %3276 = vmatprep.subr.bf16.mxu0 %v2469
  %3277 = vmatpush1.bf16.msra.mxu0 %v2468
  %3278 = vmatprep.subr.bf16.mxu0 %v2472
  %3279 = vmatpush1.bf16.msra.mxu0 %v2471
  %3280 = vmatprep.mubr.bf16.mxu0 %v675
  %3281 = vmatmul.mubr.bf16.gmra.mrb[0].mxu0 %v674
  %v3282 = vpop.f32.mrb[0].mxu0
  %v3283 = vadd.f32 %v3242, %v3282
  %v3284 = vpop.f32.mrb[0].mxu0
  %v3285 = vadd.f32 %v3244, %v3284
  %v3286 = vpop.f32.mrb[0].mxu0
  %v3287 = vpop.f32.mrb[0].mxu0
  %3288 = vdwg.mxu0
  %3289 = vmatprep.subr.bf16.mxu0 %v2475
  %3290 = vmatpush1.bf16.msra.mxu0 %v2474
  %3291 = vmatprep.subr.bf16.mxu0 %v2478
  %3292 = vmatpush1.bf16.msra.mxu0 %v2477
  %3293 = vmatprep.subr.bf16.mxu0 %v2481
  %3294 = vmatpush1.bf16.msra.mxu0 %v2480
  %3295 = vmatprep.subr.bf16.mxu0 %v2484
  %3296 = vmatpush1.bf16.msra.mxu0 %v2483
  %3297 = vmatprep.subr.bf16.mxu0 %v2487
  %3298 = vmatpush1.bf16.msra.mxu0 %v2486
  %3299 = vmatprep.subr.bf16.mxu0 %v2490
  %3300 = vmatpush1.bf16.msra.mxu0 %v2489
  %3301 = vmatprep.subr.bf16.mxu0 %v2493
  %3302 = vmatpush1.bf16.msra.mxu0 %v2492
  %3303 = vmatprep.subr.bf16.mxu0 %v2496
  %3304 = vmatpush1.bf16.msra.mxu0 %v2495
  %3305 = vmatprep.subr.bf16.mxu0 %v2499
  %3306 = vmatpush1.bf16.msra.mxu0 %v2498
  %3307 = vmatprep.subr.bf16.mxu0 %v2502
  %3308 = vmatpush1.bf16.msra.mxu0 %v2501
  %3309 = vmatprep.subr.bf16.mxu0 %v2505
  %3310 = vmatpush1.bf16.msra.mxu0 %v2504
  %3311 = vmatprep.subr.bf16.mxu0 %v2508
  %3312 = vmatpush1.bf16.msra.mxu0 %v2507
  %3313 = vmatprep.subr.bf16.mxu0 %v2511
  %3314 = vmatpush1.bf16.msra.mxu0 %v2510
  %3315 = vmatprep.subr.bf16.mxu0 %v2514
  %3316 = vmatpush1.bf16.msra.mxu0 %v2513
  %3317 = vmatprep.subr.bf16.mxu0 %v2517
  %3318 = vmatpush1.bf16.msra.mxu0 %v2516
  %3319 = vmatprep.subr.bf16.mxu0 %v2520
  %3320 = vmatpush1.bf16.msra.mxu0 %v2519
  %3321 = vmatprep.mubr.bf16.mxu0 %v677
  %3322 = vmatmul.mubr.bf16.gmra.mrb[0].mxu0 %v676
  %v3323 = vpop.f32.mrb[0].mxu0
  %v3324 = vadd.f32 %v3283, %v3323
  %v3325 = vpop.f32.mrb[0].mxu0
  %v3326 = vadd.f32 %v3285, %v3325
  %v3327 = vpop.f32.mrb[0].mxu0
  %v3328 = vpop.f32.mrb[0].mxu0
  %3329 = vdwg.mxu0
  %3330 = vmatprep.subr.bf16.mxu0 %v2523
  %3331 = vmatpush1.bf16.msra.mxu0 %v2522
  %3332 = vmatprep.subr.bf16.mxu0 %v2526
  %3333 = vmatpush1.bf16.msra.mxu0 %v2525
  %3334 = vmatprep.subr.bf16.mxu0 %v2529
  %3335 = vmatpush1.bf16.msra.mxu0 %v2528
  %3336 = vmatprep.subr.bf16.mxu0 %v2532
  %3337 = vmatpush1.bf16.msra.mxu0 %v2531
  %3338 = vmatprep.subr.bf16.mxu0 %v2535
  %3339 = vmatpush1.bf16.msra.mxu0 %v2534
  %3340 = vmatprep.subr.bf16.mxu0 %v2538
  %3341 = vmatpush1.bf16.msra.mxu0 %v2537
  %3342 = vmatprep.subr.bf16.mxu0 %v2541
  %3343 = vmatpush1.bf16.msra.mxu0 %v2540
  %3344 = vmatprep.subr.bf16.mxu0 %v2544
  %3345 = vmatpush1.bf16.msra.mxu0 %v2543
  %3346 = vmatprep.subr.bf16.mxu0 %v2547
  %3347 = vmatpush1.bf16.msra.mxu0 %v2546
  %3348 = vmatprep.subr.bf16.mxu0 %v2550
  %3349 = vmatpush1.bf16.msra.mxu0 %v2549
  %3350 = vmatprep.subr.bf16.mxu0 %v2553
  %3351 = vmatpush1.bf16.msra.mxu0 %v2552
  %3352 = vmatprep.subr.bf16.mxu0 %v2556
  %3353 = vmatpush1.bf16.msra.mxu0 %v2555
  %3354 = vmatprep.subr.bf16.mxu0 %v2559
  %3355 = vmatpush1.bf16.msra.mxu0 %v2558
  %3356 = vmatprep.subr.bf16.mxu0 %v2562
  %3357 = vmatpush1.bf16.msra.mxu0 %v2561
  %3358 = vmatprep.subr.bf16.mxu0 %v2565
  %3359 = vmatpush1.bf16.msra.mxu0 %v2564
  %3360 = vmatprep.subr.bf16.mxu0 %v2568
  %3361 = vmatpush1.bf16.msra.mxu0 %v2567
  %3362 = vmatprep.mubr.bf16.mxu0 %v679
  %3363 = vmatmul.mubr.bf16.gmra.mrb[0].mxu0 %v678
  %v3364 = vpop.f32.mrb[0].mxu0
  %v3365 = vadd.f32 %v3324, %v3364
  %v3366 = vpop.f32.mrb[0].mxu0
  %v3367 = vadd.f32 %v3326, %v3366
  %v3368 = vpop.f32.mrb[0].mxu0
  %v3369 = vpop.f32.mrb[0].mxu0
  %3370 = vdwg.mxu0
  %3371 = vmatprep.subr.bf16.mxu0 0
  %3372 = vmatpush1.bf16.msra.mxu0 %v2140
  %3373 = vmatprep.subr.bf16.mxu0 0
  %3374 = vmatpush1.bf16.msra.mxu0 %v2143
  %3375 = vmatprep.subr.bf16.mxu0 0
  %3376 = vmatpush1.bf16.msra.mxu0 %v2146
  %3377 = vmatprep.subr.bf16.mxu0 0
  %3378 = vmatpush1.bf16.msra.mxu0 %v2149
  %3379 = vmatprep.subr.bf16.mxu0 0
  %3380 = vmatpush1.bf16.msra.mxu0 %v2152
  %3381 = vmatprep.subr.bf16.mxu0 0
  %3382 = vmatpush1.bf16.msra.mxu0 %v2155
  %3383 = vmatprep.subr.bf16.mxu0 0
  %3384 = vmatpush1.bf16.msra.mxu0 %v2158
  %3385 = vmatprep.subr.bf16.mxu0 0
  %3386 = vmatpush1.bf16.msra.mxu0 %v2161
  %3387 = vmatprep.subr.bf16.mxu0 0
  %3388 = vmatpush1.bf16.msra.mxu0 %v2164
  %3389 = vmatprep.subr.bf16.mxu0 0
  %3390 = vmatpush1.bf16.msra.mxu0 %v2167
  %3391 = vmatprep.subr.bf16.mxu0 0
  %3392 = vmatpush1.bf16.msra.mxu0 %v2170
  %3393 = vmatprep.subr.bf16.mxu0 0
  %3394 = vmatpush1.bf16.msra.mxu0 %v2173
  %3395 = vmatprep.subr.bf16.mxu0 0
  %3396 = vmatpush1.bf16.msra.mxu0 %v2176
  %3397 = vmatprep.subr.bf16.mxu0 0
  %3398 = vmatpush1.bf16.msra.mxu0 %v2179
  %3399 = vmatprep.subr.bf16.mxu0 0
  %3400 = vmatpush1.bf16.msra.mxu0 %v2182
  %3401 = vmatprep.subr.bf16.mxu0 0
  %3402 = vmatpush1.bf16.msra.mxu0 %v2185
  %3403 = vmatprep.mubr.bf16.mxu0 %v663
  %3404 = vmatmul.mubr.bf16.gmra.mrb[0].mxu0 %v662
  %v3405 = vpop.f32.mrb[0].mxu0
  %v3406 = vadd.f32 %v631, %v3405
  %v3407 = vpop.f32.mrb[0].mxu0
  %v3408 = vpop.f32.mrb[0].mxu0
  %v3409 = vpop.f32.mrb[0].mxu0
  %3410 = vdwg.mxu0
  %3411 = vmatprep.subr.bf16.mxu0 0
  %3412 = vmatpush1.bf16.msra.mxu0 %v2188
  %3413 = vmatprep.subr.bf16.mxu0 0
  %3414 = vmatpush1.bf16.msra.mxu0 %v2191
  %3415 = vmatprep.subr.bf16.mxu0 0
  %3416 = vmatpush1.bf16.msra.mxu0 %v2194
  %3417 = vmatprep.subr.bf16.mxu0 0
  %3418 = vmatpush1.bf16.msra.mxu0 %v2197
  %3419 = vmatprep.subr.bf16.mxu0 0
  %3420 = vmatpush1.bf16.msra.mxu0 %v2200
  %3421 = vmatprep.subr.bf16.mxu0 0
  %3422 = vmatpush1.bf16.msra.mxu0 %v2203
  %3423 = vmatprep.subr.bf16.mxu0 0
  %3424 = vmatpush1.bf16.msra.mxu0 %v2206
  %3425 = vmatprep.subr.bf16.mxu0 0
  %3426 = vmatpush1.bf16.msra.mxu0 %v2209
  %3427 = vmatprep.subr.bf16.mxu0 0
  %3428 = vmatpush1.bf16.msra.mxu0 %v2212
  %3429 = vmatprep.subr.bf16.mxu0 0
  %3430 = vmatpush1.bf16.msra.mxu0 %v2215
  %3431 = vmatprep.subr.bf16.mxu0 0
  %3432 = vmatpush1.bf16.msra.mxu0 %v2218
  %3433 = vmatprep.subr.bf16.mxu0 0
  %3434 = vmatpush1.bf16.msra.mxu0 %v2221
  %3435 = vmatprep.subr.bf16.mxu0 0
  %3436 = vmatpush1.bf16.msra.mxu0 %v2224
  %3437 = vmatprep.subr.bf16.mxu0 0
  %3438 = vmatpush1.bf16.msra.mxu0 %v2227
  %3439 = vmatprep.subr.bf16.mxu0 0
  %3440 = vmatpush1.bf16.msra.mxu0 %v2230
  %3441 = vmatprep.subr.bf16.mxu0 0
  %3442 = vmatpush1.bf16.msra.mxu0 %v2233
  %3443 = vmatprep.mubr.bf16.mxu0 %v665
  %3444 = vmatmul.mubr.bf16.gmra.mrb[0].mxu0 %v664
  %v3445 = vpop.f32.mrb[0].mxu0
  %v3446 = vadd.f32 %v3406, %v3445
  %v3447 = vpop.f32.mrb[0].mxu0
  %v3448 = vpop.f32.mrb[0].mxu0
  %v3449 = vpop.f32.mrb[0].mxu0
  %3450 = vdwg.mxu0
  %3451 = vmatprep.subr.bf16.mxu0 0
  %3452 = vmatpush1.bf16.msra.mxu0 %v2236
  %3453 = vmatprep.subr.bf16.mxu0 0
  %3454 = vmatpush1.bf16.msra.mxu0 %v2239
  %3455 = vmatprep.subr.bf16.mxu0 0
  %3456 = vmatpush1.bf16.msra.mxu0 %v2242
  %3457 = vmatprep.subr.bf16.mxu0 0
  %3458 = vmatpush1.bf16.msra.mxu0 %v2245
  %3459 = vmatprep.subr.bf16.mxu0 0
  %3460 = vmatpush1.bf16.msra.mxu0 %v2248
  %3461 = vmatprep.subr.bf16.mxu0 0
  %3462 = vmatpush1.bf16.msra.mxu0 %v2251
  %3463 = vmatprep.subr.bf16.mxu0 0
  %3464 = vmatpush1.bf16.msra.mxu0 %v2254
  %3465 = vmatprep.subr.bf16.mxu0 0
  %3466 = vmatpush1.bf16.msra.mxu0 %v2257
  %3467 = vmatprep.subr.bf16.mxu0 0
  %3468 = vmatpush1.bf16.msra.mxu0 %v2260
  %3469 = vmatprep.subr.bf16.mxu0 0
  %3470 = vmatpush1.bf16.msra.mxu0 %v2263
  %3471 = vmatprep.subr.bf16.mxu0 0
  %3472 = vmatpush1.bf16.msra.mxu0 %v2266
  %3473 = vmatprep.subr.bf16.mxu0 0
  %3474 = vmatpush1.bf16.msra.mxu0 %v2269
  %3475 = vmatprep.subr.bf16.mxu0 0
  %3476 = vmatpush1.bf16.msra.mxu0 %v2272
  %3477 = vmatprep.subr.bf16.mxu0 0
  %3478 = vmatpush1.bf16.msra.mxu0 %v2275
  %3479 = vmatprep.subr.bf16.mxu0 0
  %3480 = vmatpush1.bf16.msra.mxu0 %v2278
  %3481 = vmatprep.subr.bf16.mxu0 0
  %3482 = vmatpush1.bf16.msra.mxu0 %v2281
  %3483 = vmatprep.mubr.bf16.mxu0 %v667
  %3484 = vmatmul.mubr.bf16.gmra.mrb[0].mxu0 %v666
  %v3485 = vpop.f32.mrb[0].mxu0
  %v3486 = vadd.f32 %v3446, %v3485
  %v3487 = vpop.f32.mrb[0].mxu0
  %v3488 = vpop.f32.mrb[0].mxu0
  %v3489 = vpop.f32.mrb[0].mxu0
  %3490 = vdwg.mxu0
  %3491 = vmatprep.subr.bf16.mxu0 0
  %3492 = vmatpush1.bf16.msra.mxu0 %v2284
  %3493 = vmatprep.subr.bf16.mxu0 0
  %3494 = vmatpush1.bf16.msra.mxu0 %v2287
  %3495 = vmatprep.subr.bf16.mxu0 0
  %3496 = vmatpush1.bf16.msra.mxu0 %v2290
  %3497 = vmatprep.subr.bf16.mxu0 0
  %3498 = vmatpush1.bf16.msra.mxu0 %v2293
  %3499 = vmatprep.subr.bf16.mxu0 0
  %3500 = vmatpush1.bf16.msra.mxu0 %v2296
  %3501 = vmatprep.subr.bf16.mxu0 0
  %3502 = vmatpush1.bf16.msra.mxu0 %v2299
  %3503 = vmatprep.subr.bf16.mxu0 0
  %3504 = vmatpush1.bf16.msra.mxu0 %v2302
  %3505 = vmatprep.subr.bf16.mxu0 0
  %3506 = vmatpush1.bf16.msra.mxu0 %v2305
  %3507 = vmatprep.subr.bf16.mxu0 0
  %3508 = vmatpush1.bf16.msra.mxu0 %v2308
  %3509 = vmatprep.subr.bf16.mxu0 0
  %3510 = vmatpush1.bf16.msra.mxu0 %v2311
  %3511 = vmatprep.subr.bf16.mxu0 0
  %3512 = vmatpush1.bf16.msra.mxu0 %v2314
  %3513 = vmatprep.subr.bf16.mxu0 0
  %3514 = vmatpush1.bf16.msra.mxu0 %v2317
  %3515 = vmatprep.subr.bf16.mxu0 0
  %3516 = vmatpush1.bf16.msra.mxu0 %v2320
  %3517 = vmatprep.subr.bf16.mxu0 0
  %3518 = vmatpush1.bf16.msra.mxu0 %v2323
  %3519 = vmatprep.subr.bf16.mxu0 0
  %3520 = vmatpush1.bf16.msra.mxu0 %v2326
  %3521 = vmatprep.subr.bf16.mxu0 0
  %3522 = vmatpush1.bf16.msra.mxu0 %v2329
  %3523 = vmatprep.mubr.bf16.mxu0 %v669
  %3524 = vmatmul.mubr.bf16.gmra.mrb[0].mxu0 %v668
  %v3525 = vpop.f32.mrb[0].mxu0
  %v3526 = vadd.f32 %v3486, %v3525
  %v3527 = vpop.f32.mrb[0].mxu0
  %v3528 = vpop.f32.mrb[0].mxu0
  %v3529 = vpop.f32.mrb[0].mxu0
  %3530 = vdwg.mxu0
  %3531 = vmatprep.subr.bf16.mxu0 0
  %3532 = vmatpush1.bf16.msra.mxu0 %v2332
  %3533 = vmatprep.subr.bf16.mxu0 0
  %3534 = vmatpush1.bf16.msra.mxu0 %v2335
  %3535 = vmatprep.subr.bf16.mxu0 0
  %3536 = vmatpush1.bf16.msra.mxu0 %v2338
  %3537 = vmatprep.subr.bf16.mxu0 0
  %3538 = vmatpush1.bf16.msra.mxu0 %v2341
  %3539 = vmatprep.subr.bf16.mxu0 0
  %3540 = vmatpush1.bf16.msra.mxu0 %v2344
  %3541 = vmatprep.subr.bf16.mxu0 0
  %3542 = vmatpush1.bf16.msra.mxu0 %v2347
  %3543 = vmatprep.subr.bf16.mxu0 0
  %3544 = vmatpush1.bf16.msra.mxu0 %v2350
  %3545 = vmatprep.subr.bf16.mxu0 0
  %3546 = vmatpush1.bf16.msra.mxu0 %v2353
  %3547 = vmatprep.subr.bf16.mxu0 0
  %3548 = vmatpush1.bf16.msra.mxu0 %v2356
  %3549 = vmatprep.subr.bf16.mxu0 0
  %3550 = vmatpush1.bf16.msra.mxu0 %v2359
  %3551 = vmatprep.subr.bf16.mxu0 0
  %3552 = vmatpush1.bf16.msra.mxu0 %v2362
  %3553 = vmatprep.subr.bf16.mxu0 0
  %3554 = vmatpush1.bf16.msra.mxu0 %v2365
  %3555 = vmatprep.subr.bf16.mxu0 0
  %3556 = vmatpush1.bf16.msra.mxu0 %v2368
  %3557 = vmatprep.subr.bf16.mxu0 0
  %3558 = vmatpush1.bf16.msra.mxu0 %v2371
  %3559 = vmatprep.subr.bf16.mxu0 0
  %3560 = vmatpush1.bf16.msra.mxu0 %v2374
  %3561 = vmatprep.subr.bf16.mxu0 0
  %3562 = vmatpush1.bf16.msra.mxu0 %v2377
  %3563 = vmatprep.mubr.bf16.mxu0 %v671
  %3564 = vmatmul.mubr.bf16.gmra.mrb[0].mxu0 %v670
  %v3565 = vpop.f32.mrb[0].mxu0
  %v3566 = vadd.f32 %v3526, %v3565
  %v3567 = vpop.f32.mrb[0].mxu0
  %v3568 = vpop.f32.mrb[0].mxu0
  %v3569 = vpop.f32.mrb[0].mxu0
  %3570 = vdwg.mxu0
  %3571 = vmatprep.subr.bf16.mxu0 0
  %3572 = vmatpush1.bf16.msra.mxu0 %v2380
  %3573 = vmatprep.subr.bf16.mxu0 0
  %3574 = vmatpush1.bf16.msra.mxu0 %v2383
  %3575 = vmatprep.subr.bf16.mxu0 0
  %3576 = vmatpush1.bf16.msra.mxu0 %v2386
  %3577 = vmatprep.subr.bf16.mxu0 0
  %3578 = vmatpush1.bf16.msra.mxu0 %v2389
  %3579 = vmatprep.subr.bf16.mxu0 0
  %3580 = vmatpush1.bf16.msra.mxu0 %v2392
  %3581 = vmatprep.subr.bf16.mxu0 0
  %3582 = vmatpush1.bf16.msra.mxu0 %v2395
  %3583 = vmatprep.subr.bf16.mxu0 0
  %3584 = vmatpush1.bf16.msra.mxu0 %v2398
  %3585 = vmatprep.subr.bf16.mxu0 0
  %3586 = vmatpush1.bf16.msra.mxu0 %v2401
  %3587 = vmatprep.subr.bf16.mxu0 0
  %3588 = vmatpush1.bf16.msra.mxu0 %v2404
  %3589 = vmatprep.subr.bf16.mxu0 0
  %3590 = vmatpush1.bf16.msra.mxu0 %v2407
  %3591 = vmatprep.subr.bf16.mxu0 0
  %3592 = vmatpush1.bf16.msra.mxu0 %v2410
  %3593 = vmatprep.subr.bf16.mxu0 0
  %3594 = vmatpush1.bf16.msra.mxu0 %v2413
  %3595 = vmatprep.subr.bf16.mxu0 0
  %3596 = vmatpush1.bf16.msra.mxu0 %v2416
  %3597 = vmatprep.subr.bf16.mxu0 0
  %3598 = vmatpush1.bf16.msra.mxu0 %v2419
  %3599 = vmatprep.subr.bf16.mxu0 0
  %3600 = vmatpush1.bf16.msra.mxu0 %v2422
  %3601 = vmatprep.subr.bf16.mxu0 0
  %3602 = vmatpush1.bf16.msra.mxu0 %v2425
  %3603 = vmatprep.mubr.bf16.mxu0 %v673
  %3604 = vmatmul.mubr.bf16.gmra.mrb[0].mxu0 %v672
  %v3605 = vpop.f32.mrb[0].mxu0
  %v3606 = vadd.f32 %v3566, %v3605
  %v3607 = vpop.f32.mrb[0].mxu0
  %v3608 = vpop.f32.mrb[0].mxu0
  %v3609 = vpop.f32.mrb[0].mxu0
  %3610 = vdwg.mxu0
  %3611 = vmatprep.subr.bf16.mxu0 0
  %3612 = vmatpush1.bf16.msra.mxu0 %v2428
  %3613 = vmatprep.subr.bf16.mxu0 0
  %3614 = vmatpush1.bf16.msra.mxu0 %v2431
  %3615 = vmatprep.subr.bf16.mxu0 0
  %3616 = vmatpush1.bf16.msra.mxu0 %v2434
  %3617 = vmatprep.subr.bf16.mxu0 0
  %3618 = vmatpush1.bf16.msra.mxu0 %v2437
  %3619 = vmatprep.subr.bf16.mxu0 0
  %3620 = vmatpush1.bf16.msra.mxu0 %v2440
  %3621 = vmatprep.subr.bf16.mxu0 0
  %3622 = vmatpush1.bf16.msra.mxu0 %v2443
  %3623 = vmatprep.subr.bf16.mxu0 0
  %3624 = vmatpush1.bf16.msra.mxu0 %v2446
  %3625 = vmatprep.subr.bf16.mxu0 0
  %3626 = vmatpush1.bf16.msra.mxu0 %v2449
  %3627 = vmatprep.subr.bf16.mxu0 0
  %3628 = vmatpush1.bf16.msra.mxu0 %v2452
  %3629 = vmatprep.subr.bf16.mxu0 0
  %3630 = vmatpush1.bf16.msra.mxu0 %v2455
  %3631 = vmatprep.subr.bf16.mxu0 0
  %3632 = vmatpush1.bf16.msra.mxu0 %v2458
  %3633 = vmatprep.subr.bf16.mxu0 0
  %3634 = vmatpush1.bf16.msra.mxu0 %v2461
  %3635 = vmatprep.subr.bf16.mxu0 0
  %3636 = vmatpush1.bf16.msra.mxu0 %v2464
  %3637 = vmatprep.subr.bf16.mxu0 0
  %3638 = vmatpush1.bf16.msra.mxu0 %v2467
  %3639 = vmatprep.subr.bf16.mxu0 0
  %3640 = vmatpush1.bf16.msra.mxu0 %v2470
  %3641 = vmatprep.subr.bf16.mxu0 0
  %3642 = vmatpush1.bf16.msra.mxu0 %v2473
  %3643 = vmatprep.mubr.bf16.mxu0 %v675
  %3644 = vmatmul.mubr.bf16.gmra.mrb[0].mxu0 %v674
  %v3645 = vpop.f32.mrb[0].mxu0
  %v3646 = vadd.f32 %v3606, %v3645
  %v3647 = vpop.f32.mrb[0].mxu0
  %v3648 = vpop.f32.mrb[0].mxu0
  %v3649 = vpop.f32.mrb[0].mxu0
  %3650 = vdwg.mxu0
  %3651 = vmatprep.subr.bf16.mxu0 0
  %3652 = vmatpush1.bf16.msra.mxu0 %v2476
  %3653 = vmatprep.subr.bf16.mxu0 0
  %3654 = vmatpush1.bf16.msra.mxu0 %v2479
  %3655 = vmatprep.subr.bf16.mxu0 0
  %3656 = vmatpush1.bf16.msra.mxu0 %v2482
  %3657 = vmatprep.subr.bf16.mxu0 0
  %3658 = vmatpush1.bf16.msra.mxu0 %v2485
  %3659 = vmatprep.subr.bf16.mxu0 0
  %3660 = vmatpush1.bf16.msra.mxu0 %v2488
  %3661 = vmatprep.subr.bf16.mxu0 0
  %3662 = vmatpush1.bf16.msra.mxu0 %v2491
  %3663 = vmatprep.subr.bf16.mxu0 0
  %3664 = vmatpush1.bf16.msra.mxu0 %v2494
  %3665 = vmatprep.subr.bf16.mxu0 0
  %3666 = vmatpush1.bf16.msra.mxu0 %v2497
  %3667 = vmatprep.subr.bf16.mxu0 0
  %3668 = vmatpush1.bf16.msra.mxu0 %v2500
  %3669 = vmatprep.subr.bf16.mxu0 0
  %3670 = vmatpush1.bf16.msra.mxu0 %v2503
  %3671 = vmatprep.subr.bf16.mxu0 0
  %3672 = vmatpush1.bf16.msra.mxu0 %v2506
  %3673 = vmatprep.subr.bf16.mxu0 0
  %3674 = vmatpush1.bf16.msra.mxu0 %v2509
  %3675 = vmatprep.subr.bf16.mxu0 0
  %3676 = vmatpush1.bf16.msra.mxu0 %v2512
  %3677 = vmatprep.subr.bf16.mxu0 0
  %3678 = vmatpush1.bf16.msra.mxu0 %v2515
  %3679 = vmatprep.subr.bf16.mxu0 0
  %3680 = vmatpush1.bf16.msra.mxu0 %v2518
  %3681 = vmatprep.subr.bf16.mxu0 0
  %3682 = vmatpush1.bf16.msra.mxu0 %v2521
  %3683 = vmatprep.mubr.bf16.mxu0 %v677
  %3684 = vmatmul.mubr.bf16.gmra.mrb[0].mxu0 %v676
  %v3685 = vpop.f32.mrb[0].mxu0
  %v3686 = vadd.f32 %v3646, %v3685
  %v3687 = vpop.f32.mrb[0].mxu0
  %v3688 = vpop.f32.mrb[0].mxu0
  %v3689 = vpop.f32.mrb[0].mxu0
  %3690 = vdwg.mxu0
  %3691 = vmatprep.subr.bf16.mxu0 0
  %3692 = vmatpush1.bf16.msra.mxu0 %v2524
  %3693 = vmatprep.subr.bf16.mxu0 0
  %3694 = vmatpush1.bf16.msra.mxu0 %v2527
  %3695 = vmatprep.subr.bf16.mxu0 0
  %3696 = vmatpush1.bf16.msra.mxu0 %v2530
  %3697 = vmatprep.subr.bf16.mxu0 0
  %3698 = vmatpush1.bf16.msra.mxu0 %v2533
  %3699 = vmatprep.subr.bf16.mxu0 0
  %3700 = vmatpush1.bf16.msra.mxu0 %v2536
  %3701 = vmatprep.subr.bf16.mxu0 0
  %3702 = vmatpush1.bf16.msra.mxu0 %v2539
  %3703 = vmatprep.subr.bf16.mxu0 0
  %3704 = vmatpush1.bf16.msra.mxu0 %v2542
  %3705 = vmatprep.subr.bf16.mxu0 0
  %3706 = vmatpush1.bf16.msra.mxu0 %v2545
  %3707 = vmatprep.subr.bf16.mxu0 0
  %3708 = vmatpush1.bf16.msra.mxu0 %v2548
  %3709 = vmatprep.subr.bf16.mxu0 0
  %3710 = vmatpush1.bf16.msra.mxu0 %v2551
  %3711 = vmatprep.subr.bf16.mxu0 0
  %3712 = vmatpush1.bf16.msra.mxu0 %v2554
  %3713 = vmatprep.subr.bf16.mxu0 0
  %3714 = vmatpush1.bf16.msra.mxu0 %v2557
  %3715 = vmatprep.subr.bf16.mxu0 0
  %3716 = vmatpush1.bf16.msra.mxu0 %v2560
  %3717 = vmatprep.subr.bf16.mxu0 0
  %3718 = vmatpush1.bf16.msra.mxu0 %v2563
  %3719 = vmatprep.subr.bf16.mxu0 0
  %3720 = vmatpush1.bf16.msra.mxu0 %v2566
  %3721 = vmatprep.subr.bf16.mxu0 0
  %3722 = vmatpush1.bf16.msra.mxu0 %v2569
  %3723 = vmatprep.mubr.bf16.mxu0 %v679
  %3724 = vmatmul.mubr.bf16.gmra.mrb[0].mxu0 %v678
  %v3725 = vpop.f32.mrb[0].mxu0
  %v3726 = vadd.f32 %v3686, %v3725
  %v3727 = vpop.f32.mrb[0].mxu0
  %v3728 = vpop.f32.mrb[0].mxu0
  %v3729 = vpop.f32.mrb[0].mxu0
  %3730 = vdwg.mxu0
  %v3731 = vmax.f32 %v3365, 0.0
  %v3732 = vmax.f32 %v3367, 0.0
  %v3733 = vmax.f32 %v3726, 0.0
  %v3734 = vpack.c.bf16 %v3731, %v3731
  %v3735 = vpack.c.bf16 %v3732, %v3732
  %v3736 = vpack.c.bf16 %v3733, %v3733
  %v3737 = vld [vmem:[%s3] sm:$0xff]
  %v3738 = vld [vmem:[%s3 + $0x8] sm:$0xff]
  %v3739 = vld [vmem:[%s3 + $0x10] sm:$0xff]
  %v3740 = vld [vmem:[%s3 + $0x18] sm:$0xff]
  %v3741 = vld [vmem:[%s3 + $0x20] sm:$0xff]
  %v3742 = vld [vmem:[%s3 + $0x28] sm:$0xff]
  %v3743 = vld [vmem:[%s3 + $0x30] sm:$0xff]
  %v3744 = vld [vmem:[%s3 + $0x38] sm:$0xff]
  %v3745 = vld [vmem:[%s3 + $0x40] sm:$0xff]
  %v3746 = vld [vmem:[%s3 + $0x48] sm:$0xff]
  %v3747 = vld [vmem:[%s3 + $0x50] sm:$0xff]
  %v3748 = vld [vmem:[%s3 + $0x58] sm:$0xff]
  %v3749 = vld [vmem:[%s3 + $0x60] sm:$0xff]
  %v3750 = vld [vmem:[%s3 + $0x68] sm:$0xff]
  %v3751 = vld [vmem:[%s3 + $0x70] sm:$0xff]
  %v3752 = vld [vmem:[%s3 + $0x78] sm:$0xff]
  %v3753 = vld [vmem:[%s3 + $0x80] sm:$0xff]
  %v3754 = vld [vmem:[%s3 + $0x88] sm:$0xff]
  %v3755 = vld [vmem:[%s3 + $0x90] sm:$0xff]
  %v3756 = vld [vmem:[%s3 + $0x98] sm:$0xff]
  %v3757 = vld [vmem:[%s3 + $0xa0] sm:$0xff]
  %v3758 = vld [vmem:[%s3 + $0xa8] sm:$0xff]
  %v3759 = vld [vmem:[%s3 + $0xb0] sm:$0xff]
  %v3760 = vld [vmem:[%s3 + $0xb8] sm:$0xff]
  %v3761 = vld [vmem:[%s3 + $0xc0] sm:$0xff]
  %v3762 = vld [vmem:[%s3 + $0xc8] sm:$0xff]
  %v3763 = vld [vmem:[%s3 + $0xd0] sm:$0xff]
  %v3764 = vld [vmem:[%s3 + $0xd8] sm:$0xff]
  %v3765 = vld [vmem:[%s3 + $0xe0] sm:$0xff]
  %v3766 = vld [vmem:[%s3 + $0xe8] sm:$0xff]
  %v3767 = vld [vmem:[%s3 + $0xf0] sm:$0xff]
  %v3768 = vld [vmem:[%s3 + $0xf8] sm:$0xff]
  %v3769 = vld [vmem:[%s3 + $0x100] sm:$0xff]
  %v3770 = vld [vmem:[%s3 + $0x108] sm:$0xff]
  %v3771 = vld [vmem:[%s3 + $0x110] sm:$0xff]
  %v3772 = vld [vmem:[%s3 + $0x118] sm:$0xff]
  %v3773 = vld [vmem:[%s3 + $0x120] sm:$0xff]
  %v3774 = vld [vmem:[%s3 + $0x128] sm:$0xff]
  %v3775 = vld [vmem:[%s3 + $0x130] sm:$0xff]
  %v3776 = vld [vmem:[%s3 + $0x138] sm:$0xff]
  %v3777 = vld [vmem:[%s3 + $0x140] sm:$0xff]
  %v3778 = vld [vmem:[%s3 + $0x148] sm:$0xff]
  %v3779 = vld [vmem:[%s3 + $0x150] sm:$0xff]
  %v3780 = vld [vmem:[%s3 + $0x158] sm:$0xff]
  %v3781 = vld [vmem:[%s3 + $0x160] sm:$0xff]
  %v3782 = vld [vmem:[%s3 + $0x168] sm:$0xff]
  %v3783 = vld [vmem:[%s3 + $0x170] sm:$0xff]
  %v3784 = vld [vmem:[%s3 + $0x178] sm:$0xff]
  %v3785 = vld [vmem:[%s3 + $0x180] sm:$0xff]
  %v3786 = vld [vmem:[%s3 + $0x188] sm:$0xff]
  %v3787 = vld [vmem:[%s3 + $0x190] sm:$0xff]
  %v3788 = vld [vmem:[%s3 + $0x198] sm:$0xff]
  %v3789 = vld [vmem:[%s3 + $0x1a0] sm:$0xff]
  %v3790 = vld [vmem:[%s3 + $0x1a8] sm:$0xff]
  %v3791 = vld [vmem:[%s3 + $0x1b0] sm:$0xff]
  %v3792 = vld [vmem:[%s3 + $0x1b8] sm:$0xff]
  %v3793 = vld [vmem:[%s3 + $0x1c0] sm:$0xff]
  %v3794 = vld [vmem:[%s3 + $0x1c8] sm:$0xff]
  %v3795 = vld [vmem:[%s3 + $0x1d0] sm:$0xff]
  %v3796 = vld [vmem:[%s3 + $0x1d8] sm:$0xff]
  %v3797 = vld [vmem:[%s3 + $0x1e0] sm:$0xff]
  %v3798 = vld [vmem:[%s3 + $0x1e8] sm:$0xff]
  %v3799 = vld [vmem:[%s3 + $0x1f0] sm:$0xff]
  %v3800 = vld [vmem:[%s3 + $0x1f8] sm:$0xff]
  %v3801 = vld [vmem:[%s3 + $0x200] sm:$0xff]
  %v3802 = vld [vmem:[%s3 + $0x208] sm:$0xff]
  %v3803 = vld [vmem:[%s3 + $0x210] sm:$0xff]
  %v3804 = vld [vmem:[%s3 + $0x218] sm:$0xff]
  %v3805 = vld [vmem:[%s3 + $0x220] sm:$0xff]
  %v3806 = vld [vmem:[%s3 + $0x228] sm:$0xff]
  %v3807 = vld [vmem:[%s3 + $0x230] sm:$0xff]
  %v3808 = vld [vmem:[%s3 + $0x238] sm:$0xff]
  %v3809 = vld [vmem:[%s3 + $0x240] sm:$0xff]
  %v3810 = vld [vmem:[%s3 + $0x248] sm:$0xff]
  %v3811 = vld [vmem:[%s3 + $0x250] sm:$0xff]
  %v3812 = vld [vmem:[%s3 + $0x258] sm:$0xff]
  %v3813 = vld [vmem:[%s3 + $0x260] sm:$0xff]
  %v3814 = vld [vmem:[%s3 + $0x268] sm:$0xff]
  %v3815 = vld [vmem:[%s3 + $0x270] sm:$0xff]
  %v3816 = vld [vmem:[%s3 + $0x278] sm:$0xff]
  %v3817 = vld [vmem:[%s3 + $0x280] sm:$0xff]
  %v3818 = vld [vmem:[%s3 + $0x288] sm:$0xff]
  %v3819 = vld [vmem:[%s3 + $0x290] sm:$0xff]
  %v3820 = vld [vmem:[%s3 + $0x298] sm:$0xff]
  %v3821 = vld [vmem:[%s3 + $0x2a0] sm:$0xff]
  %v3822 = vld [vmem:[%s3 + $0x2a8] sm:$0xff]
  %v3823 = vld [vmem:[%s3 + $0x2b0] sm:$0xff]
  %v3824 = vld [vmem:[%s3 + $0x2b8] sm:$0xff]
  %v3825 = vld [vmem:[%s3 + $0x2c0] sm:$0xff]
  %v3826 = vld [vmem:[%s3 + $0x2c8] sm:$0xff]
  %v3827 = vld [vmem:[%s3 + $0x2d0] sm:$0xff]
  %v3828 = vld [vmem:[%s3 + $0x2d8] sm:$0xff]
  %v3829 = vld [vmem:[%s3 + $0x2e0] sm:$0xff]
  %v3830 = vld [vmem:[%s3 + $0x2e8] sm:$0xff]
  %v3831 = vld [vmem:[%s3 + $0x2f0] sm:$0xff]
  %v3832 = vld [vmem:[%s3 + $0x2f8] sm:$0xff]
  %v3833 = vld [vmem:[%s3 + $0x300] sm:$0xff]
  %v3834 = vld [vmem:[%s3 + $0x308] sm:$0xff]
  %v3835 = vld [vmem:[%s3 + $0x310] sm:$0xff]
  %v3836 = vld [vmem:[%s3 + $0x318] sm:$0xff]
  %v3837 = vld [vmem:[%s3 + $0x320] sm:$0xff]
  %v3838 = vld [vmem:[%s3 + $0x328] sm:$0xff]
  %v3839 = vld [vmem:[%s3 + $0x330] sm:$0xff]
  %v3840 = vld [vmem:[%s3 + $0x338] sm:$0xff]
  %v3841 = vld [vmem:[%s3 + $0x340] sm:$0xff]
  %v3842 = vld [vmem:[%s3 + $0x348] sm:$0xff]
  %v3843 = vld [vmem:[%s3 + $0x350] sm:$0xff]
  %v3844 = vld [vmem:[%s3 + $0x358] sm:$0xff]
  %v3845 = vld [vmem:[%s3 + $0x360] sm:$0xff]
  %v3846 = vld [vmem:[%s3 + $0x368] sm:$0xff]
  %v3847 = vld [vmem:[%s3 + $0x370] sm:$0xff]
  %v3848 = vld [vmem:[%s3 + $0x378] sm:$0xff]
  %v3849 = vld [vmem:[%s3 + $0x380] sm:$0xff]
  %v3850 = vld [vmem:[%s3 + $0x388] sm:$0xff]
  %v3851 = vld [vmem:[%s3 + $0x390] sm:$0xff]
  %v3852 = vld [vmem:[%s3 + $0x398] sm:$0xff]
  %v3853 = vld [vmem:[%s3 + $0x3a0] sm:$0xff]
  %v3854 = vld [vmem:[%s3 + $0x3a8] sm:$0xff]
  %v3855 = vld [vmem:[%s3 + $0x3b0] sm:$0xff]
  %v3856 = vld [vmem:[%s3 + $0x3b8] sm:$0xff]
  %v3857 = vld [vmem:[%s3 + $0x3c0] sm:$0xff]
  %v3858 = vld [vmem:[%s3 + $0x3c8] sm:$0xff]
  %v3859 = vld [vmem:[%s3 + $0x3d0] sm:$0xff]
  %v3860 = vld [vmem:[%s3 + $0x3d8] sm:$0xff]
  %v3861 = vld [vmem:[%s3 + $0x3e0] sm:$0xff]
  %v3862 = vld [vmem:[%s3 + $0x3e8] sm:$0xff]
  %v3863 = vld [vmem:[%s3 + $0x3f0] sm:$0xff]
  %v3864 = vld [vmem:[%s3 + $0x3f8] sm:$0xff]
  %v3865 = vld [vmem:[%s3 + $0x400] sm:$0xff]
  %v3866 = vld [vmem:[%s3 + $0x408] sm:$0xff]
  %v3867 = vld [vmem:[%s3 + $0x410] sm:$0xff]
  %v3868 = vld [vmem:[%s3 + $0x418] sm:$0xff]
  %v3869 = vld [vmem:[%s3 + $0x420] sm:$0xff]
  %v3870 = vld [vmem:[%s3 + $0x428] sm:$0xff]
  %v3871 = vld [vmem:[%s3 + $0x430] sm:$0xff]
  %v3872 = vld [vmem:[%s3 + $0x438] sm:$0xff]
  %v3873 = vld [vmem:[%s3 + $0x440] sm:$0xff]
  %v3874 = vld [vmem:[%s3 + $0x448] sm:$0xff]
  %v3875 = vld [vmem:[%s3 + $0x450] sm:$0xff]
  %v3876 = vld [vmem:[%s3 + $0x458] sm:$0xff]
  %v3877 = vld [vmem:[%s3 + $0x460] sm:$0xff]
  %v3878 = vld [vmem:[%s3 + $0x468] sm:$0xff]
  %v3879 = vld [vmem:[%s3 + $0x470] sm:$0xff]
  %v3880 = vld [vmem:[%s3 + $0x478] sm:$0xff]
  %v3881 = vld [vmem:[%s3 + $0x480] sm:$0xff]
  %v3882 = vld [vmem:[%s3 + $0x488] sm:$0xff]
  %v3883 = vld [vmem:[%s3 + $0x490] sm:$0xff]
  %v3884 = vld [vmem:[%s3 + $0x498] sm:$0xff]
  %v3885 = vld [vmem:[%s3 + $0x4a0] sm:$0xff]
  %v3886 = vld [vmem:[%s3 + $0x4a8] sm:$0xff]
  %v3887 = vld [vmem:[%s3 + $0x4b0] sm:$0xff]
  %v3888 = vld [vmem:[%s3 + $0x4b8] sm:$0xff]
  %v3889 = vld [vmem:[%s3 + $0x4c0] sm:$0xff]
  %v3890 = vld [vmem:[%s3 + $0x4c8] sm:$0xff]
  %v3891 = vld [vmem:[%s3 + $0x4d0] sm:$0xff]
  %v3892 = vld [vmem:[%s3 + $0x4d8] sm:$0xff]
  %v3893 = vld [vmem:[%s3 + $0x4e0] sm:$0xff]
  %v3894 = vld [vmem:[%s3 + $0x4e8] sm:$0xff]
  %v3895 = vld [vmem:[%s3 + $0x4f0] sm:$0xff]
  %v3896 = vld [vmem:[%s3 + $0x4f8] sm:$0xff]
  %v3897 = vld [vmem:[%s3 + $0x500] sm:$0xff]
  %v3898 = vld [vmem:[%s3 + $0x508] sm:$0xff]
  %v3899 = vld [vmem:[%s3 + $0x510] sm:$0xff]
  %v3900 = vld [vmem:[%s3 + $0x518] sm:$0xff]
  %v3901 = vld [vmem:[%s3 + $0x520] sm:$0xff]
  %v3902 = vld [vmem:[%s3 + $0x528] sm:$0xff]
  %v3903 = vld [vmem:[%s3 + $0x530] sm:$0xff]
  %v3904 = vld [vmem:[%s3 + $0x538] sm:$0xff]
  %v3905 = vld [vmem:[%s3 + $0x540] sm:$0xff]
  %v3906 = vld [vmem:[%s3 + $0x548] sm:$0xff]
  %v3907 = vld [vmem:[%s3 + $0x550] sm:$0xff]
  %v3908 = vld [vmem:[%s3 + $0x558] sm:$0xff]
  %v3909 = vld [vmem:[%s3 + $0x560] sm:$0xff]
  %v3910 = vld [vmem:[%s3 + $0x568] sm:$0xff]
  %v3911 = vld [vmem:[%s3 + $0x570] sm:$0xff]
  %v3912 = vld [vmem:[%s3 + $0x578] sm:$0xff]
  %v3913 = vld [vmem:[%s3 + $0x580] sm:$0xff]
  %v3914 = vld [vmem:[%s3 + $0x588] sm:$0xff]
  %v3915 = vld [vmem:[%s3 + $0x590] sm:$0xff]
  %v3916 = vld [vmem:[%s3 + $0x598] sm:$0xff]
  %v3917 = vld [vmem:[%s3 + $0x5a0] sm:$0xff]
  %v3918 = vld [vmem:[%s3 + $0x5a8] sm:$0xff]
  %v3919 = vld [vmem:[%s3 + $0x5b0] sm:$0xff]
  %v3920 = vld [vmem:[%s3 + $0x5b8] sm:$0xff]
  %v3921 = vld [vmem:[%s3 + $0x5c0] sm:$0xff]
  %v3922 = vld [vmem:[%s3 + $0x5c8] sm:$0xff]
  %v3923 = vld [vmem:[%s3 + $0x5d0] sm:$0xff]
  %v3924 = vld [vmem:[%s3 + $0x5d8] sm:$0xff]
  %v3925 = vld [vmem:[%s3 + $0x5e0] sm:$0xff]
  %v3926 = vld [vmem:[%s3 + $0x5e8] sm:$0xff]
  %v3927 = vld [vmem:[%s3 + $0x5f0] sm:$0xff]
  %v3928 = vld [vmem:[%s3 + $0x5f8] sm:$0xff]
  %v3929 = vld [vmem:[%s4] sm:$0xff]
  %v3931 = vlaneseq
  %v3932 = vshrl.u32 %v3931, 7
  %v3933 = vsub.s32 0, %v3932
  %v3934 = vrot.slane %v3929, %v3933
  %v3935 = vlaneseq
  %v3936 = vshrl.u32 %v3935, 7
  %v3937 = vsub.s32 1, %v3936
  %v3938 = vrot.slane %v3929, %v3937
  %v3939 = vlaneseq
  %v3940 = vshrl.u32 %v3939, 7
  %v3941 = vsub.s32 2, %v3940
  %v3942 = vrot.slane %v3929, %v3941
  %v3943 = vlaneseq
  %v3944 = vshrl.u32 %v3943, 7
  %v3945 = vsub.s32 3, %v3944
  %v3946 = vrot.slane %v3929, %v3945
  %v3947 = vlaneseq
  %v3948 = vshrl.u32 %v3947, 7
  %v3949 = vsub.s32 4, %v3948
  %v3950 = vrot.slane %v3929, %v3949
  %v3951 = vlaneseq
  %v3952 = vshrl.u32 %v3951, 7
  %v3953 = vsub.s32 5, %v3952
  %v3954 = vrot.slane %v3929, %v3953
  %v3955 = vlaneseq
  %v3956 = vshrl.u32 %v3955, 7
  %v3957 = vsub.s32 6, %v3956
  %v3958 = vrot.slane %v3929, %v3957
  %v3959 = vlaneseq
  %v3960 = vshrl.u32 %v3959, 7
  %v3961 = vsub.s32 7, %v3960
  %v3962 = vrot.slane %v3929, %v3961
  %v4163 = vunpack.c.l.b16 %v3737
  %v4164 = vunpack.c.h.b16 %v3737
  %v4165 = vunpack.c.l.b16 %v3738
  %v4166 = vunpack.c.h.b16 %v3738
  %v4167 = vunpack.c.l.b16 %v3739
  %v4168 = vunpack.c.h.b16 %v3739
  %v4169 = vunpack.c.l.b16 %v3740
  %v4170 = vunpack.c.h.b16 %v3740
  %v4171 = vunpack.c.l.b16 %v3741
  %v4172 = vunpack.c.h.b16 %v3741
  %v4173 = vunpack.c.l.b16 %v3742
  %v4174 = vunpack.c.h.b16 %v3742
  %v4175 = vunpack.c.l.b16 %v3743
  %v4176 = vunpack.c.h.b16 %v3743
  %v4177 = vunpack.c.l.b16 %v3744
  %v4178 = vunpack.c.h.b16 %v3744
  %v4179 = vunpack.c.l.b16 %v3745
  %v4180 = vunpack.c.h.b16 %v3745
  %v4181 = vunpack.c.l.b16 %v3746
  %v4182 = vunpack.c.h.b16 %v3746
  %v4183 = vunpack.c.l.b16 %v3747
  %v4184 = vunpack.c.h.b16 %v3747
  %v4185 = vunpack.c.l.b16 %v3748
  %v4186 = vunpack.c.h.b16 %v3748
  %v4187 = vunpack.c.l.b16 %v3749
  %v4188 = vunpack.c.h.b16 %v3749
  %v4189 = vunpack.c.l.b16 %v3750
  %v4190 = vunpack.c.h.b16 %v3750
  %v4191 = vunpack.c.l.b16 %v3751
  %v4192 = vunpack.c.h.b16 %v3751
  %v4193 = vunpack.c.l.b16 %v3752
  %v4194 = vunpack.c.h.b16 %v3752
  %v4195 = vunpack.c.l.b16 %v3753
  %v4196 = vunpack.c.h.b16 %v3753
  %v4197 = vunpack.c.l.b16 %v3754
  %v4198 = vunpack.c.h.b16 %v3754
  %v4199 = vunpack.c.l.b16 %v3755
  %v4200 = vunpack.c.h.b16 %v3755
  %v4201 = vunpack.c.l.b16 %v3756
  %v4202 = vunpack.c.h.b16 %v3756
  %v4203 = vunpack.c.l.b16 %v3757
  %v4204 = vunpack.c.h.b16 %v3757
  %v4205 = vunpack.c.l.b16 %v3758
  %v4206 = vunpack.c.h.b16 %v3758
  %v4207 = vunpack.c.l.b16 %v3759
  %v4208 = vunpack.c.h.b16 %v3759
  %v4209 = vunpack.c.l.b16 %v3760
  %v4210 = vunpack.c.h.b16 %v3760
  %v4211 = vunpack.c.l.b16 %v3761
  %v4212 = vunpack.c.h.b16 %v3761
  %v4213 = vunpack.c.l.b16 %v3762
  %v4214 = vunpack.c.h.b16 %v3762
  %v4215 = vunpack.c.l.b16 %v3763
  %v4216 = vunpack.c.h.b16 %v3763
  %v4217 = vunpack.c.l.b16 %v3764
  %v4218 = vunpack.c.h.b16 %v3764
  %v4219 = vunpack.c.l.b16 %v3765
  %v4220 = vunpack.c.h.b16 %v3765
  %v4221 = vunpack.c.l.b16 %v3766
  %v4222 = vunpack.c.h.b16 %v3766
  %v4223 = vunpack.c.l.b16 %v3767
  %v4224 = vunpack.c.h.b16 %v3767
  %v4225 = vunpack.c.l.b16 %v3768
  %v4226 = vunpack.c.h.b16 %v3768
  %v4227 = vunpack.c.l.b16 %v3769
  %v4228 = vunpack.c.h.b16 %v3769
  %v4229 = vunpack.c.l.b16 %v3770
  %v4230 = vunpack.c.h.b16 %v3770
  %v4231 = vunpack.c.l.b16 %v3771
  %v4232 = vunpack.c.h.b16 %v3771
  %v4233 = vunpack.c.l.b16 %v3772
  %v4234 = vunpack.c.h.b16 %v3772
  %v4235 = vunpack.c.l.b16 %v3773
  %v4236 = vunpack.c.h.b16 %v3773
  %v4237 = vunpack.c.l.b16 %v3774
  %v4238 = vunpack.c.h.b16 %v3774
  %v4239 = vunpack.c.l.b16 %v3775
  %v4240 = vunpack.c.h.b16 %v3775
  %v4241 = vunpack.c.l.b16 %v3776
  %v4242 = vunpack.c.h.b16 %v3776
  %v4243 = vunpack.c.l.b16 %v3777
  %v4244 = vunpack.c.h.b16 %v3777
  %v4245 = vunpack.c.l.b16 %v3778
  %v4246 = vunpack.c.h.b16 %v3778
  %v4247 = vunpack.c.l.b16 %v3779
  %v4248 = vunpack.c.h.b16 %v3779
  %v4249 = vunpack.c.l.b16 %v3780
  %v4250 = vunpack.c.h.b16 %v3780
  %v4251 = vunpack.c.l.b16 %v3781
  %v4252 = vunpack.c.h.b16 %v3781
  %v4253 = vunpack.c.l.b16 %v3782
  %v4254 = vunpack.c.h.b16 %v3782
  %v4255 = vunpack.c.l.b16 %v3783
  %v4256 = vunpack.c.h.b16 %v3783
  %v4257 = vunpack.c.l.b16 %v3784
  %v4258 = vunpack.c.h.b16 %v3784
  %v4259 = vunpack.c.l.b16 %v3785
  %v4260 = vunpack.c.h.b16 %v3785
  %v4261 = vunpack.c.l.b16 %v3786
  %v4262 = vunpack.c.h.b16 %v3786
  %v4263 = vunpack.c.l.b16 %v3787
  %v4264 = vunpack.c.h.b16 %v3787
  %v4265 = vunpack.c.l.b16 %v3788
  %v4266 = vunpack.c.h.b16 %v3788
  %v4267 = vunpack.c.l.b16 %v3789
  %v4268 = vunpack.c.h.b16 %v3789
  %v4269 = vunpack.c.l.b16 %v3790
  %v4270 = vunpack.c.h.b16 %v3790
  %v4271 = vunpack.c.l.b16 %v3791
  %v4272 = vunpack.c.h.b16 %v3791
  %v4273 = vunpack.c.l.b16 %v3792
  %v4274 = vunpack.c.h.b16 %v3792
  %v4275 = vunpack.c.l.b16 %v3793
  %v4276 = vunpack.c.h.b16 %v3793
  %v4277 = vunpack.c.l.b16 %v3794
  %v4278 = vunpack.c.h.b16 %v3794
  %v4279 = vunpack.c.l.b16 %v3795
  %v4280 = vunpack.c.h.b16 %v3795
  %v4281 = vunpack.c.l.b16 %v3796
  %v4282 = vunpack.c.h.b16 %v3796
  %v4283 = vunpack.c.l.b16 %v3797
  %v4284 = vunpack.c.h.b16 %v3797
  %v4285 = vunpack.c.l.b16 %v3798
  %v4286 = vunpack.c.h.b16 %v3798
  %v4287 = vunpack.c.l.b16 %v3799
  %v4288 = vunpack.c.h.b16 %v3799
  %v4289 = vunpack.c.l.b16 %v3800
  %v4290 = vunpack.c.h.b16 %v3800
  %v4291 = vunpack.c.l.b16 %v3801
  %v4292 = vunpack.c.h.b16 %v3801
  %v4293 = vunpack.c.l.b16 %v3802
  %v4294 = vunpack.c.h.b16 %v3802
  %v4295 = vunpack.c.l.b16 %v3803
  %v4296 = vunpack.c.h.b16 %v3803
  %v4297 = vunpack.c.l.b16 %v3804
  %v4298 = vunpack.c.h.b16 %v3804
  %v4299 = vunpack.c.l.b16 %v3805
  %v4300 = vunpack.c.h.b16 %v3805
  %v4301 = vunpack.c.l.b16 %v3806
  %v4302 = vunpack.c.h.b16 %v3806
  %v4303 = vunpack.c.l.b16 %v3807
  %v4304 = vunpack.c.h.b16 %v3807
  %v4305 = vunpack.c.l.b16 %v3808
  %v4306 = vunpack.c.h.b16 %v3808
  %v4307 = vunpack.c.l.b16 %v3809
  %v4308 = vunpack.c.h.b16 %v3809
  %v4309 = vunpack.c.l.b16 %v3810
  %v4310 = vunpack.c.h.b16 %v3810
  %v4311 = vunpack.c.l.b16 %v3811
  %v4312 = vunpack.c.h.b16 %v3811
  %v4313 = vunpack.c.l.b16 %v3812
  %v4314 = vunpack.c.h.b16 %v3812
  %v4315 = vunpack.c.l.b16 %v3813
  %v4316 = vunpack.c.h.b16 %v3813
  %v4317 = vunpack.c.l.b16 %v3814
  %v4318 = vunpack.c.h.b16 %v3814
  %v4319 = vunpack.c.l.b16 %v3815
  %v4320 = vunpack.c.h.b16 %v3815
  %v4321 = vunpack.c.l.b16 %v3816
  %v4322 = vunpack.c.h.b16 %v3816
  %v4323 = vunpack.c.l.b16 %v3817
  %v4324 = vunpack.c.h.b16 %v3817
  %v4325 = vunpack.c.l.b16 %v3818
  %v4326 = vunpack.c.h.b16 %v3818
  %v4327 = vunpack.c.l.b16 %v3819
  %v4328 = vunpack.c.h.b16 %v3819
  %v4329 = vunpack.c.l.b16 %v3820
  %v4330 = vunpack.c.h.b16 %v3820
  %v4331 = vunpack.c.l.b16 %v3821
  %v4332 = vunpack.c.h.b16 %v3821
  %v4333 = vunpack.c.l.b16 %v3822
  %v4334 = vunpack.c.h.b16 %v3822
  %v4335 = vunpack.c.l.b16 %v3823
  %v4336 = vunpack.c.h.b16 %v3823
  %v4337 = vunpack.c.l.b16 %v3824
  %v4338 = vunpack.c.h.b16 %v3824
  %v4339 = vunpack.c.l.b16 %v3825
  %v4340 = vunpack.c.h.b16 %v3825
  %v4341 = vunpack.c.l.b16 %v3826
  %v4342 = vunpack.c.h.b16 %v3826
  %v4343 = vunpack.c.l.b16 %v3827
  %v4344 = vunpack.c.h.b16 %v3827
  %v4345 = vunpack.c.l.b16 %v3828
  %v4346 = vunpack.c.h.b16 %v3828
  %v4347 = vunpack.c.l.b16 %v3829
  %v4348 = vunpack.c.h.b16 %v3829
  %v4349 = vunpack.c.l.b16 %v3830
  %v4350 = vunpack.c.h.b16 %v3830
  %v4351 = vunpack.c.l.b16 %v3831
  %v4352 = vunpack.c.h.b16 %v3831
  %v4353 = vunpack.c.l.b16 %v3832
  %v4354 = vunpack.c.h.b16 %v3832
  %v4355 = vunpack.c.l.b16 %v3833
  %v4356 = vunpack.c.h.b16 %v3833
  %v4357 = vunpack.c.l.b16 %v3834
  %v4358 = vunpack.c.h.b16 %v3834
  %v4359 = vunpack.c.l.b16 %v3835
  %v4360 = vunpack.c.h.b16 %v3835
  %v4361 = vunpack.c.l.b16 %v3836
  %v4362 = vunpack.c.h.b16 %v3836
  %v4363 = vunpack.c.l.b16 %v3837
  %v4364 = vunpack.c.h.b16 %v3837
  %v4365 = vunpack.c.l.b16 %v3838
  %v4366 = vunpack.c.h.b16 %v3838
  %v4367 = vunpack.c.l.b16 %v3839
  %v4368 = vunpack.c.h.b16 %v3839
  %v4369 = vunpack.c.l.b16 %v3840
  %v4370 = vunpack.c.h.b16 %v3840
  %v4371 = vunpack.c.l.b16 %v3841
  %v4372 = vunpack.c.h.b16 %v3841
  %v4373 = vunpack.c.l.b16 %v3842
  %v4374 = vunpack.c.h.b16 %v3842
  %v4375 = vunpack.c.l.b16 %v3843
  %v4376 = vunpack.c.h.b16 %v3843
  %v4377 = vunpack.c.l.b16 %v3844
  %v4378 = vunpack.c.h.b16 %v3844
  %v4379 = vunpack.c.l.b16 %v3845
  %v4380 = vunpack.c.h.b16 %v3845
  %v4381 = vunpack.c.l.b16 %v3846
  %v4382 = vunpack.c.h.b16 %v3846
  %v4383 = vunpack.c.l.b16 %v3847
  %v4384 = vunpack.c.h.b16 %v3847
  %v4385 = vunpack.c.l.b16 %v3848
  %v4386 = vunpack.c.h.b16 %v3848
  %v4387 = vunpack.c.l.b16 %v3849
  %v4388 = vunpack.c.h.b16 %v3849
  %v4389 = vunpack.c.l.b16 %v3850
  %v4390 = vunpack.c.h.b16 %v3850
  %v4391 = vunpack.c.l.b16 %v3851
  %v4392 = vunpack.c.h.b16 %v3851
  %v4393 = vunpack.c.l.b16 %v3852
  %v4394 = vunpack.c.h.b16 %v3852
  %v4395 = vunpack.c.l.b16 %v3853
  %v4396 = vunpack.c.h.b16 %v3853
  %v4397 = vunpack.c.l.b16 %v3854
  %v4398 = vunpack.c.h.b16 %v3854
  %v4399 = vunpack.c.l.b16 %v3855
  %v4400 = vunpack.c.h.b16 %v3855
  %v4401 = vunpack.c.l.b16 %v3856
  %v4402 = vunpack.c.h.b16 %v3856
  %v4403 = vunpack.c.l.b16 %v3857
  %v4404 = vunpack.c.h.b16 %v3857
  %v4405 = vunpack.c.l.b16 %v3858
  %v4406 = vunpack.c.h.b16 %v3858
  %v4407 = vunpack.c.l.b16 %v3859
  %v4408 = vunpack.c.h.b16 %v3859
  %v4409 = vunpack.c.l.b16 %v3860
  %v4410 = vunpack.c.h.b16 %v3860
  %v4411 = vunpack.c.l.b16 %v3861
  %v4412 = vunpack.c.h.b16 %v3861
  %v4413 = vunpack.c.l.b16 %v3862
  %v4414 = vunpack.c.h.b16 %v3862
  %v4415 = vunpack.c.l.b16 %v3863
  %v4416 = vunpack.c.h.b16 %v3863
  %v4417 = vunpack.c.l.b16 %v3864
  %v4418 = vunpack.c.h.b16 %v3864
  %v4419 = vunpack.c.l.b16 %v3865
  %v4420 = vunpack.c.h.b16 %v3865
  %v4421 = vunpack.c.l.b16 %v3866
  %v4422 = vunpack.c.h.b16 %v3866
  %v4423 = vunpack.c.l.b16 %v3867
  %v4424 = vunpack.c.h.b16 %v3867
  %v4425 = vunpack.c.l.b16 %v3868
  %v4426 = vunpack.c.h.b16 %v3868
  %v4427 = vunpack.c.l.b16 %v3869
  %v4428 = vunpack.c.h.b16 %v3869
  %v4429 = vunpack.c.l.b16 %v3870
  %v4430 = vunpack.c.h.b16 %v3870
  %v4431 = vunpack.c.l.b16 %v3871
  %v4432 = vunpack.c.h.b16 %v3871
  %v4433 = vunpack.c.l.b16 %v3872
  %v4434 = vunpack.c.h.b16 %v3872
  %v4435 = vunpack.c.l.b16 %v3873
  %v4436 = vunpack.c.h.b16 %v3873
  %v4437 = vunpack.c.l.b16 %v3874
  %v4438 = vunpack.c.h.b16 %v3874
  %v4439 = vunpack.c.l.b16 %v3875
  %v4440 = vunpack.c.h.b16 %v3875
  %v4441 = vunpack.c.l.b16 %v3876
  %v4442 = vunpack.c.h.b16 %v3876
  %v4443 = vunpack.c.l.b16 %v3877
  %v4444 = vunpack.c.h.b16 %v3877
  %v4445 = vunpack.c.l.b16 %v3878
  %v4446 = vunpack.c.h.b16 %v3878
  %v4447 = vunpack.c.l.b16 %v3879
  %v4448 = vunpack.c.h.b16 %v3879
  %v4449 = vunpack.c.l.b16 %v3880
  %v4450 = vunpack.c.h.b16 %v3880
  %v4451 = vunpack.c.l.b16 %v3881
  %v4452 = vunpack.c.h.b16 %v3881
  %v4453 = vunpack.c.l.b16 %v3882
  %v4454 = vunpack.c.h.b16 %v3882
  %v4455 = vunpack.c.l.b16 %v3883
  %v4456 = vunpack.c.h.b16 %v3883
  %v4457 = vunpack.c.l.b16 %v3884
  %v4458 = vunpack.c.h.b16 %v3884
  %v4459 = vunpack.c.l.b16 %v3885
  %v4460 = vunpack.c.h.b16 %v3885
  %v4461 = vunpack.c.l.b16 %v3886
  %v4462 = vunpack.c.h.b16 %v3886
  %v4463 = vunpack.c.l.b16 %v3887
  %v4464 = vunpack.c.h.b16 %v3887
  %v4465 = vunpack.c.l.b16 %v3888
  %v4466 = vunpack.c.h.b16 %v3888
  %v4467 = vunpack.c.l.b16 %v3889
  %v4468 = vunpack.c.h.b16 %v3889
  %v4469 = vunpack.c.l.b16 %v3890
  %v4470 = vunpack.c.h.b16 %v3890
  %v4471 = vunpack.c.l.b16 %v3891
  %v4472 = vunpack.c.h.b16 %v3891
  %v4473 = vunpack.c.l.b16 %v3892
  %v4474 = vunpack.c.h.b16 %v3892
  %v4475 = vunpack.c.l.b16 %v3893
  %v4476 = vunpack.c.h.b16 %v3893
  %v4477 = vunpack.c.l.b16 %v3894
  %v4478 = vunpack.c.h.b16 %v3894
  %v4479 = vunpack.c.l.b16 %v3895
  %v4480 = vunpack.c.h.b16 %v3895
  %v4481 = vunpack.c.l.b16 %v3896
  %v4482 = vunpack.c.h.b16 %v3896
  %v4483 = vunpack.c.l.b16 %v3897
  %v4484 = vunpack.c.h.b16 %v3897
  %v4485 = vunpack.c.l.b16 %v3898
  %v4486 = vunpack.c.h.b16 %v3898
  %v4487 = vunpack.c.l.b16 %v3899
  %v4488 = vunpack.c.h.b16 %v3899
  %v4489 = vunpack.c.l.b16 %v3900
  %v4490 = vunpack.c.h.b16 %v3900
  %v4491 = vunpack.c.l.b16 %v3901
  %v4492 = vunpack.c.h.b16 %v3901
  %v4493 = vunpack.c.l.b16 %v3902
  %v4494 = vunpack.c.h.b16 %v3902
  %v4495 = vunpack.c.l.b16 %v3903
  %v4496 = vunpack.c.h.b16 %v3903
  %v4497 = vunpack.c.l.b16 %v3904
  %v4498 = vunpack.c.h.b16 %v3904
  %v4499 = vunpack.c.l.b16 %v3905
  %v4500 = vunpack.c.h.b16 %v3905
  %v4501 = vunpack.c.l.b16 %v3906
  %v4502 = vunpack.c.h.b16 %v3906
  %v4503 = vunpack.c.l.b16 %v3907
  %v4504 = vunpack.c.h.b16 %v3907
  %v4505 = vunpack.c.l.b16 %v3908
  %v4506 = vunpack.c.h.b16 %v3908
  %v4507 = vunpack.c.l.b16 %v3909
  %v4508 = vunpack.c.h.b16 %v3909
  %v4509 = vunpack.c.l.b16 %v3910
  %v4510 = vunpack.c.h.b16 %v3910
  %v4511 = vunpack.c.l.b16 %v3911
  %v4512 = vunpack.c.h.b16 %v3911
  %v4513 = vunpack.c.l.b16 %v3912
  %v4514 = vunpack.c.h.b16 %v3912
  %v4515 = vunpack.c.l.b16 %v3913
  %v4516 = vunpack.c.h.b16 %v3913
  %v4517 = vunpack.c.l.b16 %v3914
  %v4518 = vunpack.c.h.b16 %v3914
  %v4519 = vunpack.c.l.b16 %v3915
  %v4520 = vunpack.c.h.b16 %v3915
  %v4521 = vunpack.c.l.b16 %v3916
  %v4522 = vunpack.c.h.b16 %v3916
  %v4523 = vunpack.c.l.b16 %v3917
  %v4524 = vunpack.c.h.b16 %v3917
  %v4525 = vunpack.c.l.b16 %v3918
  %v4526 = vunpack.c.h.b16 %v3918
  %v4527 = vunpack.c.l.b16 %v3919
  %v4528 = vunpack.c.h.b16 %v3919
  %v4529 = vunpack.c.l.b16 %v3920
  %v4530 = vunpack.c.h.b16 %v3920
  %v4531 = vunpack.c.l.b16 %v3921
  %v4532 = vunpack.c.h.b16 %v3921
  %v4533 = vunpack.c.l.b16 %v3922
  %v4534 = vunpack.c.h.b16 %v3922
  %v4535 = vunpack.c.l.b16 %v3923
  %v4536 = vunpack.c.h.b16 %v3923
  %v4537 = vunpack.c.l.b16 %v3924
  %v4538 = vunpack.c.h.b16 %v3924
  %v4539 = vunpack.c.l.b16 %v3925
  %v4540 = vunpack.c.h.b16 %v3925
  %v4541 = vunpack.c.l.b16 %v3926
  %v4542 = vunpack.c.h.b16 %v3926
  %v4543 = vunpack.c.l.b16 %v3927
  %v4544 = vunpack.c.h.b16 %v3927
  %v4545 = vunpack.c.l.b16 %v3928
  %v4546 = vunpack.c.h.b16 %v3928
  %v4547 = vpack.c.b16 %v4171, %v4163
  %v4548 = vpack.c.b16 %v4172, %v4164
  %v4549 = vpack.c.b16 %v4173, %v4165
  %v4550 = vpack.c.b16 %v4174, %v4166
  %v4551 = vpack.c.b16 %v4175, %v4167
  %v4552 = vpack.c.b16 %v4176, %v4168
  %v4553 = vpack.c.b16 %v4177, %v4169
  %v4554 = vpack.c.b16 %v4178, %v4170
  %v4555 = vpack.c.b16 %v4187, %v4179
  %v4556 = vpack.c.b16 %v4188, %v4180
  %v4557 = vpack.c.b16 %v4189, %v4181
  %v4558 = vpack.c.b16 %v4190, %v4182
  %v4559 = vpack.c.b16 %v4191, %v4183
  %v4560 = vpack.c.b16 %v4192, %v4184
  %v4561 = vpack.c.b16 %v4193, %v4185
  %v4562 = vpack.c.b16 %v4194, %v4186
  %v4563 = vpack.c.b16 %v4203, %v4195
  %v4564 = vpack.c.b16 %v4204, %v4196
  %v4565 = vpack.c.b16 %v4205, %v4197
  %v4566 = vpack.c.b16 %v4206, %v4198
  %v4567 = vpack.c.b16 %v4207, %v4199
  %v4568 = vpack.c.b16 %v4208, %v4200
  %v4569 = vpack.c.b16 %v4209, %v4201
  %v4570 = vpack.c.b16 %v4210, %v4202
  %v4571 = vpack.c.b16 %v4219, %v4211
  %v4572 = vpack.c.b16 %v4220, %v4212
  %v4573 = vpack.c.b16 %v4221, %v4213
  %v4574 = vpack.c.b16 %v4222, %v4214
  %v4575 = vpack.c.b16 %v4223, %v4215
  %v4576 = vpack.c.b16 %v4224, %v4216
  %v4577 = vpack.c.b16 %v4225, %v4217
  %v4578 = vpack.c.b16 %v4226, %v4218
  %v4579 = vpack.c.b16 %v4235, %v4227
  %v4580 = vpack.c.b16 %v4236, %v4228
  %v4581 = vpack.c.b16 %v4237, %v4229
  %v4582 = vpack.c.b16 %v4238, %v4230
  %v4583 = vpack.c.b16 %v4239, %v4231
  %v4584 = vpack.c.b16 %v4240, %v4232
  %v4585 = vpack.c.b16 %v4241, %v4233
  %v4586 = vpack.c.b16 %v4242, %v4234
  %v4587 = vpack.c.b16 %v4251, %v4243
  %v4588 = vpack.c.b16 %v4252, %v4244
  %v4589 = vpack.c.b16 %v4253, %v4245
  %v4590 = vpack.c.b16 %v4254, %v4246
  %v4591 = vpack.c.b16 %v4255, %v4247
  %v4592 = vpack.c.b16 %v4256, %v4248
  %v4593 = vpack.c.b16 %v4257, %v4249
  %v4594 = vpack.c.b16 %v4258, %v4250
  %v4595 = vpack.c.b16 %v4267, %v4259
  %v4596 = vpack.c.b16 %v4268, %v4260
  %v4597 = vpack.c.b16 %v4269, %v4261
  %v4598 = vpack.c.b16 %v4270, %v4262
  %v4599 = vpack.c.b16 %v4271, %v4263
  %v4600 = vpack.c.b16 %v4272, %v4264
  %v4601 = vpack.c.b16 %v4273, %v4265
  %v4602 = vpack.c.b16 %v4274, %v4266
  %v4603 = vpack.c.b16 %v4283, %v4275
  %v4604 = vpack.c.b16 %v4284, %v4276
  %v4605 = vpack.c.b16 %v4285, %v4277
  %v4606 = vpack.c.b16 %v4286, %v4278
  %v4607 = vpack.c.b16 %v4287, %v4279
  %v4608 = vpack.c.b16 %v4288, %v4280
  %v4609 = vpack.c.b16 %v4289, %v4281
  %v4610 = vpack.c.b16 %v4290, %v4282
  %v4611 = vpack.c.b16 %v4299, %v4291
  %v4612 = vpack.c.b16 %v4300, %v4292
  %v4613 = vpack.c.b16 %v4301, %v4293
  %v4614 = vpack.c.b16 %v4302, %v4294
  %v4615 = vpack.c.b16 %v4303, %v4295
  %v4616 = vpack.c.b16 %v4304, %v4296
  %v4617 = vpack.c.b16 %v4305, %v4297
  %v4618 = vpack.c.b16 %v4306, %v4298
  %v4619 = vpack.c.b16 %v4315, %v4307
  %v4620 = vpack.c.b16 %v4316, %v4308
  %v4621 = vpack.c.b16 %v4317, %v4309
  %v4622 = vpack.c.b16 %v4318, %v4310
  %v4623 = vpack.c.b16 %v4319, %v4311
  %v4624 = vpack.c.b16 %v4320, %v4312
  %v4625 = vpack.c.b16 %v4321, %v4313
  %v4626 = vpack.c.b16 %v4322, %v4314
  %v4627 = vpack.c.b16 %v4331, %v4323
  %v4628 = vpack.c.b16 %v4332, %v4324
  %v4629 = vpack.c.b16 %v4333, %v4325
  %v4630 = vpack.c.b16 %v4334, %v4326
  %v4631 = vpack.c.b16 %v4335, %v4327
  %v4632 = vpack.c.b16 %v4336, %v4328
  %v4633 = vpack.c.b16 %v4337, %v4329
  %v4634 = vpack.c.b16 %v4338, %v4330
  %v4635 = vpack.c.b16 %v4347, %v4339
  %v4636 = vpack.c.b16 %v4348, %v4340
  %v4637 = vpack.c.b16 %v4349, %v4341
  %v4638 = vpack.c.b16 %v4350, %v4342
  %v4639 = vpack.c.b16 %v4351, %v4343
  %v4640 = vpack.c.b16 %v4352, %v4344
  %v4641 = vpack.c.b16 %v4353, %v4345
  %v4642 = vpack.c.b16 %v4354, %v4346
  %v4643 = vpack.c.b16 %v4363, %v4355
  %v4644 = vpack.c.b16 %v4364, %v4356
  %v4645 = vpack.c.b16 %v4365, %v4357
  %v4646 = vpack.c.b16 %v4366, %v4358
  %v4647 = vpack.c.b16 %v4367, %v4359
  %v4648 = vpack.c.b16 %v4368, %v4360
  %v4649 = vpack.c.b16 %v4369, %v4361
  %v4650 = vpack.c.b16 %v4370, %v4362
  %v4651 = vpack.c.b16 %v4379, %v4371
  %v4652 = vpack.c.b16 %v4380, %v4372
  %v4653 = vpack.c.b16 %v4381, %v4373
  %v4654 = vpack.c.b16 %v4382, %v4374
  %v4655 = vpack.c.b16 %v4383, %v4375
  %v4656 = vpack.c.b16 %v4384, %v4376
  %v4657 = vpack.c.b16 %v4385, %v4377
  %v4658 = vpack.c.b16 %v4386, %v4378
  %v4659 = vpack.c.b16 %v4395, %v4387
  %v4660 = vpack.c.b16 %v4396, %v4388
  %v4661 = vpack.c.b16 %v4397, %v4389
  %v4662 = vpack.c.b16 %v4398, %v4390
  %v4663 = vpack.c.b16 %v4399, %v4391
  %v4664 = vpack.c.b16 %v4400, %v4392
  %v4665 = vpack.c.b16 %v4401, %v4393
  %v4666 = vpack.c.b16 %v4402, %v4394
  %v4667 = vpack.c.b16 %v4411, %v4403
  %v4668 = vpack.c.b16 %v4412, %v4404
  %v4669 = vpack.c.b16 %v4413, %v4405
  %v4670 = vpack.c.b16 %v4414, %v4406
  %v4671 = vpack.c.b16 %v4415, %v4407
  %v4672 = vpack.c.b16 %v4416, %v4408
  %v4673 = vpack.c.b16 %v4417, %v4409
  %v4674 = vpack.c.b16 %v4418, %v4410
  %v4675 = vpack.c.b16 %v4427, %v4419
  %v4676 = vpack.c.b16 %v4428, %v4420
  %v4677 = vpack.c.b16 %v4429, %v4421
  %v4678 = vpack.c.b16 %v4430, %v4422
  %v4679 = vpack.c.b16 %v4431, %v4423
  %v4680 = vpack.c.b16 %v4432, %v4424
  %v4681 = vpack.c.b16 %v4433, %v4425
  %v4682 = vpack.c.b16 %v4434, %v4426
  %v4683 = vpack.c.b16 %v4443, %v4435
  %v4684 = vpack.c.b16 %v4444, %v4436
  %v4685 = vpack.c.b16 %v4445, %v4437
  %v4686 = vpack.c.b16 %v4446, %v4438
  %v4687 = vpack.c.b16 %v4447, %v4439
  %v4688 = vpack.c.b16 %v4448, %v4440
  %v4689 = vpack.c.b16 %v4449, %v4441
  %v4690 = vpack.c.b16 %v4450, %v4442
  %v4691 = vpack.c.b16 %v4459, %v4451
  %v4692 = vpack.c.b16 %v4460, %v4452
  %v4693 = vpack.c.b16 %v4461, %v4453
  %v4694 = vpack.c.b16 %v4462, %v4454
  %v4695 = vpack.c.b16 %v4463, %v4455
  %v4696 = vpack.c.b16 %v4464, %v4456
  %v4697 = vpack.c.b16 %v4465, %v4457
  %v4698 = vpack.c.b16 %v4466, %v4458
  %v4699 = vpack.c.b16 %v4475, %v4467
  %v4700 = vpack.c.b16 %v4476, %v4468
  %v4701 = vpack.c.b16 %v4477, %v4469
  %v4702 = vpack.c.b16 %v4478, %v4470
  %v4703 = vpack.c.b16 %v4479, %v4471
  %v4704 = vpack.c.b16 %v4480, %v4472
  %v4705 = vpack.c.b16 %v4481, %v4473
  %v4706 = vpack.c.b16 %v4482, %v4474
  %v4707 = vpack.c.b16 %v4491, %v4483
  %v4708 = vpack.c.b16 %v4492, %v4484
  %v4709 = vpack.c.b16 %v4493, %v4485
  %v4710 = vpack.c.b16 %v4494, %v4486
  %v4711 = vpack.c.b16 %v4495, %v4487
  %v4712 = vpack.c.b16 %v4496, %v4488
  %v4713 = vpack.c.b16 %v4497, %v4489
  %v4714 = vpack.c.b16 %v4498, %v4490
  %v4715 = vpack.c.b16 %v4507, %v4499
  %v4716 = vpack.c.b16 %v4508, %v4500
  %v4717 = vpack.c.b16 %v4509, %v4501
  %v4718 = vpack.c.b16 %v4510, %v4502
  %v4719 = vpack.c.b16 %v4511, %v4503
  %v4720 = vpack.c.b16 %v4512, %v4504
  %v4721 = vpack.c.b16 %v4513, %v4505
  %v4722 = vpack.c.b16 %v4514, %v4506
  %v4723 = vpack.c.b16 %v4523, %v4515
  %v4724 = vpack.c.b16 %v4524, %v4516
  %v4725 = vpack.c.b16 %v4525, %v4517
  %v4726 = vpack.c.b16 %v4526, %v4518
  %v4727 = vpack.c.b16 %v4527, %v4519
  %v4728 = vpack.c.b16 %v4528, %v4520
  %v4729 = vpack.c.b16 %v4529, %v4521
  %v4730 = vpack.c.b16 %v4530, %v4522
  %v4731 = vpack.c.b16 %v4539, %v4531
  %v4732 = vpack.c.b16 %v4540, %v4532
  %v4733 = vpack.c.b16 %v4541, %v4533
  %v4734 = vpack.c.b16 %v4542, %v4534
  %v4735 = vpack.c.b16 %v4543, %v4535
  %v4736 = vpack.c.b16 %v4544, %v4536
  %v4737 = vpack.c.b16 %v4545, %v4537
  %v4738 = vpack.c.b16 %v4546, %v4538
  %4931 = vmatprep.subr.bf16.mxu0 %v4548
  %4932 = vmatpush1.bf16.msra.mxu0 %v4547
  %4933 = vmatprep.subr.bf16.mxu0 %v4556
  %4934 = vmatpush1.bf16.msra.mxu0 %v4555
  %4935 = vmatprep.subr.bf16.mxu0 %v4564
  %4936 = vmatpush1.bf16.msra.mxu0 %v4563
  %4937 = vmatprep.subr.bf16.mxu0 %v4572
  %4938 = vmatpush1.bf16.msra.mxu0 %v4571
  %4939 = vmatprep.subr.bf16.mxu0 %v4580
  %4940 = vmatpush1.bf16.msra.mxu0 %v4579
  %4941 = vmatprep.subr.bf16.mxu0 %v4588
  %4942 = vmatpush1.bf16.msra.mxu0 %v4587
  %4943 = vmatprep.subr.bf16.mxu0 %v4596
  %4944 = vmatpush1.bf16.msra.mxu0 %v4595
  %4945 = vmatprep.subr.bf16.mxu0 %v4604
  %4946 = vmatpush1.bf16.msra.mxu0 %v4603
  %4947 = vmatprep.subr.bf16.mxu0 %v4612
  %4948 = vmatpush1.bf16.msra.mxu0 %v4611
  %4949 = vmatprep.subr.bf16.mxu0 %v4620
  %4950 = vmatpush1.bf16.msra.mxu0 %v4619
  %4951 = vmatprep.subr.bf16.mxu0 %v4628
  %4952 = vmatpush1.bf16.msra.mxu0 %v4627
  %4953 = vmatprep.subr.bf16.mxu0 %v4636
  %4954 = vmatpush1.bf16.msra.mxu0 %v4635
  %4955 = vmatprep.subr.bf16.mxu0 %v4644
  %4956 = vmatpush1.bf16.msra.mxu0 %v4643
  %4957 = vmatprep.subr.bf16.mxu0 %v4652
  %4958 = vmatpush1.bf16.msra.mxu0 %v4651
  %4959 = vmatprep.subr.bf16.mxu0 %v4660
  %4960 = vmatpush1.bf16.msra.mxu0 %v4659
  %4961 = vmatprep.subr.bf16.mxu0 %v4668
  %4962 = vmatpush1.bf16.msra.mxu0 %v4667
  %4963 = vmatprep.mubr.bf16.mxu0 %v3735
  %4964 = vmatmul.mubr.bf16.gmra.mrb[0].mxu0 %v3734
  %v4965 = vpop.f32.mrb[0].mxu0
  %v4966 = vadd.f32 %v3934, %v4965
  %v4967 = vpop.f32.mrb[0].mxu0
  %v4968 = vadd.f32 %v3938, %v4967
  %v4969 = vpop.f32.mrb[0].mxu0
  %v4970 = vpop.f32.mrb[0].mxu0
  %4971 = vdwg.mxu0
  %4972 = vmatprep.subr.bf16.mxu0 %v4676
  %4973 = vmatpush1.bf16.msra.mxu0 %v4675
  %4974 = vmatprep.subr.bf16.mxu0 %v4684
  %4975 = vmatpush1.bf16.msra.mxu0 %v4683
  %4976 = vmatprep.subr.bf16.mxu0 %v4692
  %4977 = vmatpush1.bf16.msra.mxu0 %v4691
  %4978 = vmatprep.subr.bf16.mxu0 %v4700
  %4979 = vmatpush1.bf16.msra.mxu0 %v4699
  %4980 = vmatprep.subr.bf16.mxu0 %v4708
  %4981 = vmatpush1.bf16.msra.mxu0 %v4707
  %4982 = vmatprep.subr.bf16.mxu0 %v4716
  %4983 = vmatpush1.bf16.msra.mxu0 %v4715
  %4984 = vmatprep.subr.bf16.mxu0 %v4724
  %4985 = vmatpush1.bf16.msra.mxu0 %v4723
  %4986 = vmatprep.subr.bf16.mxu0 %v4732
  %4987 = vmatpush1.bf16.msra.mxu0 %v4731
  %4988 = vmatprep.subr.bf16.mxu0 0
  %4989 = vmatpush1.bf16.msra.mxu0 0
  %4990 = vmatprep.subr.bf16.mxu0 0
  %4991 = vmatpush1.bf16.msra.mxu0 0
  %4992 = vmatprep.subr.bf16.mxu0 0
  %4993 = vmatpush1.bf16.msra.mxu0 0
  %4994 = vmatprep.subr.bf16.mxu0 0
  %4995 = vmatpush1.bf16.msra.mxu0 0
  %4996 = vmatprep.subr.bf16.mxu0 0
  %4997 = vmatpush1.bf16.msra.mxu0 0
  %4998 = vmatprep.subr.bf16.mxu0 0
  %4999 = vmatpush1.bf16.msra.mxu0 0
  %5000 = vmatprep.subr.bf16.mxu0 0
  %5001 = vmatpush1.bf16.msra.mxu0 0
  %5002 = vmatprep.subr.bf16.mxu0 0
  %5003 = vmatpush1.bf16.msra.mxu0 0
  %5004 = vmatprep.mubr.bf16.mxu0 0
  %5005 = vmatmul.mubr.bf16.gmra.mrb[0].mxu0 %v3736
  %v5006 = vpop.f32.mrb[0].mxu0
  %v5007 = vadd.f32 %v4966, %v5006
  %v5008 = vpop.f32.mrb[0].mxu0
  %v5009 = vadd.f32 %v4968, %v5008
  %v5010 = vpop.f32.mrb[0].mxu0
  %v5011 = vpop.f32.mrb[0].mxu0
  %5012 = vdwg.mxu0
  %5013 = vmatprep.subr.bf16.mxu0 %v4550
  %5014 = vmatpush1.bf16.msra.mxu0 %v4549
  %5015 = vmatprep.subr.bf16.mxu0 %v4558
  %5016 = vmatpush1.bf16.msra.mxu0 %v4557
  %5017 = vmatprep.subr.bf16.mxu0 %v4566
  %5018 = vmatpush1.bf16.msra.mxu0 %v4565
  %5019 = vmatprep.subr.bf16.mxu0 %v4574
  %5020 = vmatpush1.bf16.msra.mxu0 %v4573
  %5021 = vmatprep.subr.bf16.mxu0 %v4582
  %5022 = vmatpush1.bf16.msra.mxu0 %v4581
  %5023 = vmatprep.subr.bf16.mxu0 %v4590
  %5024 = vmatpush1.bf16.msra.mxu0 %v4589
  %5025 = vmatprep.subr.bf16.mxu0 %v4598
  %5026 = vmatpush1.bf16.msra.mxu0 %v4597
  %5027 = vmatprep.subr.bf16.mxu0 %v4606
  %5028 = vmatpush1.bf16.msra.mxu0 %v4605
  %5029 = vmatprep.subr.bf16.mxu0 %v4614
  %5030 = vmatpush1.bf16.msra.mxu0 %v4613
  %5031 = vmatprep.subr.bf16.mxu0 %v4622
  %5032 = vmatpush1.bf16.msra.mxu0 %v4621
  %5033 = vmatprep.subr.bf16.mxu0 %v4630
  %5034 = vmatpush1.bf16.msra.mxu0 %v4629
  %5035 = vmatprep.subr.bf16.mxu0 %v4638
  %5036 = vmatpush1.bf16.msra.mxu0 %v4637
  %5037 = vmatprep.subr.bf16.mxu0 %v4646
  %5038 = vmatpush1.bf16.msra.mxu0 %v4645
  %5039 = vmatprep.subr.bf16.mxu0 %v4654
  %5040 = vmatpush1.bf16.msra.mxu0 %v4653
  %5041 = vmatprep.subr.bf16.mxu0 %v4662
  %5042 = vmatpush1.bf16.msra.mxu0 %v4661
  %5043 = vmatprep.subr.bf16.mxu0 %v4670
  %5044 = vmatpush1.bf16.msra.mxu0 %v4669
  %5045 = vmatprep.mubr.bf16.mxu0 %v3735
  %5046 = vmatmul.mubr.bf16.gmra.mrb[0].mxu0 %v3734
  %v5047 = vpop.f32.mrb[0].mxu0
  %v5048 = vadd.f32 %v3942, %v5047
  %v5049 = vpop.f32.mrb[0].mxu0
  %v5050 = vadd.f32 %v3946, %v5049
  %v5051 = vpop.f32.mrb[0].mxu0
  %v5052 = vpop.f32.mrb[0].mxu0
  %5053 = vdwg.mxu0
  %5054 = vmatprep.subr.bf16.mxu0 %v4678
  %5055 = vmatpush1.bf16.msra.mxu0 %v4677
  %5056 = vmatprep.subr.bf16.mxu0 %v4686
  %5057 = vmatpush1.bf16.msra.mxu0 %v4685
  %5058 = vmatprep.subr.bf16.mxu0 %v4694
  %5059 = vmatpush1.bf16.msra.mxu0 %v4693
  %5060 = vmatprep.subr.bf16.mxu0 %v4702
  %5061 = vmatpush1.bf16.msra.mxu0 %v4701
  %5062 = vmatprep.subr.bf16.mxu0 %v4710
  %5063 = vmatpush1.bf16.msra.mxu0 %v4709
  %5064 = vmatprep.subr.bf16.mxu0 %v4718
  %5065 = vmatpush1.bf16.msra.mxu0 %v4717
  %5066 = vmatprep.subr.bf16.mxu0 %v4726
  %5067 = vmatpush1.bf16.msra.mxu0 %v4725
  %5068 = vmatprep.subr.bf16.mxu0 %v4734
  %5069 = vmatpush1.bf16.msra.mxu0 %v4733
  %5070 = vmatprep.subr.bf16.mxu0 0
  %5071 = vmatpush1.bf16.msra.mxu0 0
  %5072 = vmatprep.subr.bf16.mxu0 0
  %5073 = vmatpush1.bf16.msra.mxu0 0
  %5074 = vmatprep.subr.bf16.mxu0 0
  %5075 = vmatpush1.bf16.msra.mxu0 0
  %5076 = vmatprep.subr.bf16.mxu0 0
  %5077 = vmatpush1.bf16.msra.mxu0 0
  %5078 = vmatprep.subr.bf16.mxu0 0
  %5079 = vmatpush1.bf16.msra.mxu0 0
  %5080 = vmatprep.subr.bf16.mxu0 0
  %5081 = vmatpush1.bf16.msra.mxu0 0
  %5082 = vmatprep.subr.bf16.mxu0 0
  %5083 = vmatpush1.bf16.msra.mxu0 0
  %5084 = vmatprep.subr.bf16.mxu0 0
  %5085 = vmatpush1.bf16.msra.mxu0 0
  %5086 = vmatprep.mubr.bf16.mxu0 0
  %5087 = vmatmul.mubr.bf16.gmra.mrb[0].mxu0 %v3736
  %v5088 = vpop.f32.mrb[0].mxu0
  %v5089 = vadd.f32 %v5048, %v5088
  %v5090 = vpop.f32.mrb[0].mxu0
  %v5091 = vadd.f32 %v5050, %v5090
  %v5092 = vpop.f32.mrb[0].mxu0
  %v5093 = vpop.f32.mrb[0].mxu0
  %5094 = vdwg.mxu0
  %5095 = vmatprep.subr.bf16.mxu0 %v4552
  %5096 = vmatpush1.bf16.msra.mxu0 %v4551
  %5097 = vmatprep.subr.bf16.mxu0 %v4560
  %5098 = vmatpush1.bf16.msra.mxu0 %v4559
  %5099 = vmatprep.subr.bf16.mxu0 %v4568
  %5100 = vmatpush1.bf16.msra.mxu0 %v4567
  %5101 = vmatprep.subr.bf16.mxu0 %v4576
  %5102 = vmatpush1.bf16.msra.mxu0 %v4575
  %5103 = vmatprep.subr.bf16.mxu0 %v4584
  %5104 = vmatpush1.bf16.msra.mxu0 %v4583
  %5105 = vmatprep.subr.bf16.mxu0 %v4592
  %5106 = vmatpush1.bf16.msra.mxu0 %v4591
  %5107 = vmatprep.subr.bf16.mxu0 %v4600
  %5108 = vmatpush1.bf16.msra.mxu0 %v4599
  %5109 = vmatprep.subr.bf16.mxu0 %v4608
  %5110 = vmatpush1.bf16.msra.mxu0 %v4607
  %5111 = vmatprep.subr.bf16.mxu0 %v4616
  %5112 = vmatpush1.bf16.msra.mxu0 %v4615
  %5113 = vmatprep.subr.bf16.mxu0 %v4624
  %5114 = vmatpush1.bf16.msra.mxu0 %v4623
  %5115 = vmatprep.subr.bf16.mxu0 %v4632
  %5116 = vmatpush1.bf16.msra.mxu0 %v4631
  %5117 = vmatprep.subr.bf16.mxu0 %v4640
  %5118 = vmatpush1.bf16.msra.mxu0 %v4639
  %5119 = vmatprep.subr.bf16.mxu0 %v4648
  %5120 = vmatpush1.bf16.msra.mxu0 %v4647
  %5121 = vmatprep.subr.bf16.mxu0 %v4656
  %5122 = vmatpush1.bf16.msra.mxu0 %v4655
  %5123 = vmatprep.subr.bf16.mxu0 %v4664
  %5124 = vmatpush1.bf16.msra.mxu0 %v4663
  %5125 = vmatprep.subr.bf16.mxu0 %v4672
  %5126 = vmatpush1.bf16.msra.mxu0 %v4671
  %5127 = vmatprep.mubr.bf16.mxu0 %v3735
  %5128 = vmatmul.mubr.bf16.gmra.mrb[0].mxu0 %v3734
  %v5129 = vpop.f32.mrb[0].mxu0
  %v5130 = vadd.f32 %v3950, %v5129
  %v5131 = vpop.f32.mrb[0].mxu0
  %v5132 = vadd.f32 %v3954, %v5131
  %v5133 = vpop.f32.mrb[0].mxu0
  %v5134 = vpop.f32.mrb[0].mxu0
  %5135 = vdwg.mxu0
  %5136 = vmatprep.subr.bf16.mxu0 %v4680
  %5137 = vmatpush1.bf16.msra.mxu0 %v4679
  %5138 = vmatprep.subr.bf16.mxu0 %v4688
  %5139 = vmatpush1.bf16.msra.mxu0 %v4687
  %5140 = vmatprep.subr.bf16.mxu0 %v4696
  %5141 = vmatpush1.bf16.msra.mxu0 %v4695
  %5142 = vmatprep.subr.bf16.mxu0 %v4704
  %5143 = vmatpush1.bf16.msra.mxu0 %v4703
  %5144 = vmatprep.subr.bf16.mxu0 %v4712
  %5145 = vmatpush1.bf16.msra.mxu0 %v4711
  %5146 = vmatprep.subr.bf16.mxu0 %v4720
  %5147 = vmatpush1.bf16.msra.mxu0 %v4719
  %5148 = vmatprep.subr.bf16.mxu0 %v4728
  %5149 = vmatpush1.bf16.msra.mxu0 %v4727
  %5150 = vmatprep.subr.bf16.mxu0 %v4736
  %5151 = vmatpush1.bf16.msra.mxu0 %v4735
  %5152 = vmatprep.subr.bf16.mxu0 0
  %5153 = vmatpush1.bf16.msra.mxu0 0
  %5154 = vmatprep.subr.bf16.mxu0 0
  %5155 = vmatpush1.bf16.msra.mxu0 0
  %5156 = vmatprep.subr.bf16.mxu0 0
  %5157 = vmatpush1.bf16.msra.mxu0 0
  %5158 = vmatprep.subr.bf16.mxu0 0
  %5159 = vmatpush1.bf16.msra.mxu0 0
  %5160 = vmatprep.subr.bf16.mxu0 0
  %5161 = vmatpush1.bf16.msra.mxu0 0
  %5162 = vmatprep.subr.bf16.mxu0 0
  %5163 = vmatpush1.bf16.msra.mxu0 0
  %5164 = vmatprep.subr.bf16.mxu0 0
  %5165 = vmatpush1.bf16.msra.mxu0 0
  %5166 = vmatprep.subr.bf16.mxu0 0
  %5167 = vmatpush1.bf16.msra.mxu0 0
  %5168 = vmatprep.mubr.bf16.mxu0 0
  %5169 = vmatmul.mubr.bf16.gmra.mrb[0].mxu0 %v3736
  %v5170 = vpop.f32.mrb[0].mxu0
  %v5171 = vadd.f32 %v5130, %v5170
  %v5172 = vpop.f32.mrb[0].mxu0
  %v5173 = vadd.f32 %v5132, %v5172
  %v5174 = vpop.f32.mrb[0].mxu0
  %v5175 = vpop.f32.mrb[0].mxu0
  %5176 = vdwg.mxu0
  %5177 = vmatprep.subr.bf16.mxu0 %v4554
  %5178 = vmatpush1.bf16.msra.mxu0 %v4553
  %5179 = vmatprep.subr.bf16.mxu0 %v4562
  %5180 = vmatpush1.bf16.msra.mxu0 %v4561
  %5181 = vmatprep.subr.bf16.mxu0 %v4570
  %5182 = vmatpush1.bf16.msra.mxu0 %v4569
  %5183 = vmatprep.subr.bf16.mxu0 %v4578
  %5184 = vmatpush1.bf16.msra.mxu0 %v4577
  %5185 = vmatprep.subr.bf16.mxu0 %v4586
  %5186 = vmatpush1.bf16.msra.mxu0 %v4585
  %5187 = vmatprep.subr.bf16.mxu0 %v4594
  %5188 = vmatpush1.bf16.msra.mxu0 %v4593
  %5189 = vmatprep.subr.bf16.mxu0 %v4602
  %5190 = vmatpush1.bf16.msra.mxu0 %v4601
  %5191 = vmatprep.subr.bf16.mxu0 %v4610
  %5192 = vmatpush1.bf16.msra.mxu0 %v4609
  %5193 = vmatprep.subr.bf16.mxu0 %v4618
  %5194 = vmatpush1.bf16.msra.mxu0 %v4617
  %5195 = vmatprep.subr.bf16.mxu0 %v4626
  %5196 = vmatpush1.bf16.msra.mxu0 %v4625
  %5197 = vmatprep.subr.bf16.mxu0 %v4634
  %5198 = vmatpush1.bf16.msra.mxu0 %v4633
  %5199 = vmatprep.subr.bf16.mxu0 %v4642
  %5200 = vmatpush1.bf16.msra.mxu0 %v4641
  %5201 = vmatprep.subr.bf16.mxu0 %v4650
  %5202 = vmatpush1.bf16.msra.mxu0 %v4649
  %5203 = vmatprep.subr.bf16.mxu0 %v4658
  %5204 = vmatpush1.bf16.msra.mxu0 %v4657
  %5205 = vmatprep.subr.bf16.mxu0 %v4666
  %5206 = vmatpush1.bf16.msra.mxu0 %v4665
  %5207 = vmatprep.subr.bf16.mxu0 %v4674
  %5208 = vmatpush1.bf16.msra.mxu0 %v4673
  %5209 = vmatprep.mubr.bf16.mxu0 %v3735
  %5210 = vmatmul.mubr.bf16.gmra.mrb[0].mxu0 %v3734
  %v5211 = vpop.f32.mrb[0].mxu0
  %v5212 = vadd.f32 %v3958, %v5211
  %v5213 = vpop.f32.mrb[0].mxu0
  %v5214 = vadd.f32 %v3962, %v5213
  %v5215 = vpop.f32.mrb[0].mxu0
  %v5216 = vpop.f32.mrb[0].mxu0
  %5217 = vdwg.mxu0
  %5218 = vmatprep.subr.bf16.mxu0 %v4682
  %5219 = vmatpush1.bf16.msra.mxu0 %v4681
  %5220 = vmatprep.subr.bf16.mxu0 %v4690
  %5221 = vmatpush1.bf16.msra.mxu0 %v4689
  %5222 = vmatprep.subr.bf16.mxu0 %v4698
  %5223 = vmatpush1.bf16.msra.mxu0 %v4697
  %5224 = vmatprep.subr.bf16.mxu0 %v4706
  %5225 = vmatpush1.bf16.msra.mxu0 %v4705
  %5226 = vmatprep.subr.bf16.mxu0 %v4714
  %5227 = vmatpush1.bf16.msra.mxu0 %v4713
  %5228 = vmatprep.subr.bf16.mxu0 %v4722
  %5229 = vmatpush1.bf16.msra.mxu0 %v4721
  %5230 = vmatprep.subr.bf16.mxu0 %v4730
  %5231 = vmatpush1.bf16.msra.mxu0 %v4729
  %5232 = vmatprep.subr.bf16.mxu0 %v4738
  %5233 = vmatpush1.bf16.msra.mxu0 %v4737
  %5234 = vmatprep.subr.bf16.mxu0 0
  %5235 = vmatpush1.bf16.msra.mxu0 0
  %5236 = vmatprep.subr.bf16.mxu0 0
  %5237 = vmatpush1.bf16.msra.mxu0 0
  %5238 = vmatprep.subr.bf16.mxu0 0
  %5239 = vmatpush1.bf16.msra.mxu0 0
  %5240 = vmatprep.subr.bf16.mxu0 0
  %5241 = vmatpush1.bf16.msra.mxu0 0
  %5242 = vmatprep.subr.bf16.mxu0 0
  %5243 = vmatpush1.bf16.msra.mxu0 0
  %5244 = vmatprep.subr.bf16.mxu0 0
  %5245 = vmatpush1.bf16.msra.mxu0 0
  %5246 = vmatprep.subr.bf16.mxu0 0
  %5247 = vmatpush1.bf16.msra.mxu0 0
  %5248 = vmatprep.subr.bf16.mxu0 0
  %5249 = vmatpush1.bf16.msra.mxu0 0
  %5250 = vmatprep.mubr.bf16.mxu0 0
  %5251 = vmatmul.mubr.bf16.gmra.mrb[0].mxu0 %v3736
  %v5252 = vpop.f32.mrb[0].mxu0
  %v5253 = vadd.f32 %v5212, %v5252
  %v5254 = vpop.f32.mrb[0].mxu0
  %v5255 = vadd.f32 %v5214, %v5254
  %v5256 = vpop.f32.mrb[0].mxu0
  %v5257 = vpop.f32.mrb[0].mxu0
  %5258 = vdwg.mxu0
  %v5259 = vmax.f32 %v5007, 0.0
  %v5260 = vmax.f32 %v5009, 0.0
  %v5261 = vmax.f32 %v5089, 0.0
  %v5262 = vmax.f32 %v5091, 0.0
  %v5263 = vmax.f32 %v5171, 0.0
  %v5264 = vmax.f32 %v5173, 0.0
  %v5265 = vmax.f32 %v5253, 0.0
  %v5266 = vmax.f32 %v5255, 0.0
  %v5267 = vpack.c.bf16 %v5259, %v5259
  %v5268 = vpack.c.bf16 %v5260, %v5260
  %v5269 = vpack.c.bf16 %v5261, %v5261
  %v5270 = vpack.c.bf16 %v5262, %v5262
  %v5271 = vpack.c.bf16 %v5263, %v5263
  %v5272 = vpack.c.bf16 %v5264, %v5264
  %v5273 = vpack.c.bf16 %v5265, %v5265
  %v5274 = vpack.c.bf16 %v5266, %v5266
  %v5275 = vld [vmem:[%s5] sm:$0xff]
  %v5276 = vld [vmem:[%s5 + $0x8] sm:$0xff]
  %v5277 = vld [vmem:[%s5 + $0x10] sm:$0xff]
  %v5278 = vld [vmem:[%s5 + $0x18] sm:$0xff]
  %v5279 = vld [vmem:[%s5 + $0x20] sm:$0xff]
  %v5280 = vld [vmem:[%s5 + $0x28] sm:$0xff]
  %v5281 = vld [vmem:[%s5 + $0x30] sm:$0xff]
  %v5282 = vld [vmem:[%s5 + $0x38] sm:$0xff]
  %v5283 = vld [vmem:[%s5 + $0x40] sm:$0xff]
  %v5284 = vld [vmem:[%s5 + $0x48] sm:$0xff]
  %v5285 = vld [vmem:[%s5 + $0x50] sm:$0xff]
  %v5286 = vld [vmem:[%s5 + $0x58] sm:$0xff]
  %v5287 = vld [vmem:[%s5 + $0x60] sm:$0xff]
  %v5288 = vld [vmem:[%s5 + $0x68] sm:$0xff]
  %v5289 = vld [vmem:[%s5 + $0x70] sm:$0xff]
  %v5290 = vld [vmem:[%s5 + $0x78] sm:$0xff]
  %v5291 = vld [vmem:[%s5 + $0x80] sm:$0xff]
  %v5292 = vld [vmem:[%s5 + $0x88] sm:$0xff]
  %v5293 = vld [vmem:[%s5 + $0x90] sm:$0xff]
  %v5294 = vld [vmem:[%s5 + $0x98] sm:$0xff]
  %v5295 = vld [vmem:[%s5 + $0xa0] sm:$0xff]
  %v5296 = vld [vmem:[%s5 + $0xa8] sm:$0xff]
  %v5297 = vld [vmem:[%s5 + $0xb0] sm:$0xff]
  %v5298 = vld [vmem:[%s5 + $0xb8] sm:$0xff]
  %v5299 = vld [vmem:[%s5 + $0xc0] sm:$0xff]
  %v5300 = vld [vmem:[%s5 + $0xc8] sm:$0xff]
  %v5301 = vld [vmem:[%s5 + $0xd0] sm:$0xff]
  %v5302 = vld [vmem:[%s5 + $0xd8] sm:$0xff]
  %v5303 = vld [vmem:[%s5 + $0xe0] sm:$0xff]
  %v5304 = vld [vmem:[%s5 + $0xe8] sm:$0xff]
  %v5305 = vld [vmem:[%s5 + $0xf0] sm:$0xff]
  %v5306 = vld [vmem:[%s5 + $0xf8] sm:$0xff]
  %v5307 = vld [vmem:[%s5 + $0x100] sm:$0xff]
  %v5308 = vld [vmem:[%s5 + $0x108] sm:$0xff]
  %v5309 = vld [vmem:[%s5 + $0x110] sm:$0xff]
  %v5310 = vld [vmem:[%s5 + $0x118] sm:$0xff]
  %v5311 = vld [vmem:[%s5 + $0x120] sm:$0xff]
  %v5312 = vld [vmem:[%s5 + $0x128] sm:$0xff]
  %v5313 = vld [vmem:[%s5 + $0x130] sm:$0xff]
  %v5314 = vld [vmem:[%s5 + $0x138] sm:$0xff]
  %v5315 = vld [vmem:[%s5 + $0x140] sm:$0xff]
  %v5316 = vld [vmem:[%s5 + $0x148] sm:$0xff]
  %v5317 = vld [vmem:[%s5 + $0x150] sm:$0xff]
  %v5318 = vld [vmem:[%s5 + $0x158] sm:$0xff]
  %v5319 = vld [vmem:[%s5 + $0x160] sm:$0xff]
  %v5320 = vld [vmem:[%s5 + $0x168] sm:$0xff]
  %v5321 = vld [vmem:[%s5 + $0x170] sm:$0xff]
  %v5322 = vld [vmem:[%s5 + $0x178] sm:$0xff]
  %v5323 = vld [vmem:[%s5 + $0x180] sm:$0xff]
  %v5324 = vld [vmem:[%s5 + $0x188] sm:$0xff]
  %v5325 = vld [vmem:[%s5 + $0x190] sm:$0xff]
  %v5326 = vld [vmem:[%s5 + $0x198] sm:$0xff]
  %v5327 = vld [vmem:[%s5 + $0x1a0] sm:$0xff]
  %v5328 = vld [vmem:[%s5 + $0x1a8] sm:$0xff]
  %v5329 = vld [vmem:[%s5 + $0x1b0] sm:$0xff]
  %v5330 = vld [vmem:[%s5 + $0x1b8] sm:$0xff]
  %v5331 = vld [vmem:[%s5 + $0x1c0] sm:$0xff]
  %v5332 = vld [vmem:[%s5 + $0x1c8] sm:$0xff]
  %v5333 = vld [vmem:[%s5 + $0x1d0] sm:$0xff]
  %v5334 = vld [vmem:[%s5 + $0x1d8] sm:$0xff]
  %v5335 = vld [vmem:[%s5 + $0x1e0] sm:$0xff]
  %v5336 = vld [vmem:[%s5 + $0x1e8] sm:$0xff]
  %v5337 = vld [vmem:[%s5 + $0x1f0] sm:$0xff]
  %v5338 = vld [vmem:[%s5 + $0x1f8] sm:$0xff]
  %v5339 = vld [vmem:[%s5 + $0x200] sm:$0xff]
  %v5340 = vld [vmem:[%s5 + $0x208] sm:$0xff]
  %v5341 = vld [vmem:[%s5 + $0x210] sm:$0xff]
  %v5342 = vld [vmem:[%s5 + $0x218] sm:$0xff]
  %v5343 = vld [vmem:[%s5 + $0x220] sm:$0xff]
  %v5344 = vld [vmem:[%s5 + $0x228] sm:$0xff]
  %v5345 = vld [vmem:[%s5 + $0x230] sm:$0xff]
  %v5346 = vld [vmem:[%s5 + $0x238] sm:$0xff]
  %v5347 = vld [vmem:[%s5 + $0x240] sm:$0xff]
  %v5348 = vld [vmem:[%s5 + $0x248] sm:$0xff]
  %v5349 = vld [vmem:[%s5 + $0x250] sm:$0xff]
  %v5350 = vld [vmem:[%s5 + $0x258] sm:$0xff]
  %v5351 = vld [vmem:[%s5 + $0x260] sm:$0xff]
  %v5352 = vld [vmem:[%s5 + $0x268] sm:$0xff]
  %v5353 = vld [vmem:[%s5 + $0x270] sm:$0xff]
  %v5354 = vld [vmem:[%s5 + $0x278] sm:$0xff]
  %v5355 = vld [vmem:[%s5 + $0x280] sm:$0xff]
  %v5356 = vld [vmem:[%s5 + $0x288] sm:$0xff]
  %v5357 = vld [vmem:[%s5 + $0x290] sm:$0xff]
  %v5358 = vld [vmem:[%s5 + $0x298] sm:$0xff]
  %v5359 = vld [vmem:[%s5 + $0x2a0] sm:$0xff]
  %v5360 = vld [vmem:[%s5 + $0x2a8] sm:$0xff]
  %v5361 = vld [vmem:[%s5 + $0x2b0] sm:$0xff]
  %v5362 = vld [vmem:[%s5 + $0x2b8] sm:$0xff]
  %v5363 = vld [vmem:[%s5 + $0x2c0] sm:$0xff]
  %v5364 = vld [vmem:[%s5 + $0x2c8] sm:$0xff]
  %v5365 = vld [vmem:[%s5 + $0x2d0] sm:$0xff]
  %v5366 = vld [vmem:[%s5 + $0x2d8] sm:$0xff]
  %v5367 = vld [vmem:[%s5 + $0x2e0] sm:$0xff]
  %v5368 = vld [vmem:[%s5 + $0x2e8] sm:$0xff]
  %v5369 = vld [vmem:[%s5 + $0x2f0] sm:$0xff]
  %v5370 = vld [vmem:[%s5 + $0x2f8] sm:$0xff]
  %v5371 = vld [vmem:[%s5 + $0x300] sm:$0xff]
  %v5372 = vld [vmem:[%s5 + $0x308] sm:$0xff]
  %v5373 = vld [vmem:[%s5 + $0x310] sm:$0xff]
  %v5374 = vld [vmem:[%s5 + $0x318] sm:$0xff]
  %v5375 = vld [vmem:[%s5 + $0x320] sm:$0xff]
  %v5376 = vld [vmem:[%s5 + $0x328] sm:$0xff]
  %v5377 = vld [vmem:[%s5 + $0x330] sm:$0xff]
  %v5378 = vld [vmem:[%s5 + $0x338] sm:$0xff]
  %v5379 = vld [vmem:[%s5 + $0x340] sm:$0xff]
  %v5380 = vld [vmem:[%s5 + $0x348] sm:$0xff]
  %v5381 = vld [vmem:[%s5 + $0x350] sm:$0xff]
  %v5382 = vld [vmem:[%s5 + $0x358] sm:$0xff]
  %v5383 = vld [vmem:[%s5 + $0x360] sm:$0xff]
  %v5384 = vld [vmem:[%s5 + $0x368] sm:$0xff]
  %v5385 = vld [vmem:[%s5 + $0x370] sm:$0xff]
  %v5386 = vld [vmem:[%s5 + $0x378] sm:$0xff]
  %v5387 = vld [vmem:[%s5 + $0x380] sm:$0xff]
  %v5388 = vld [vmem:[%s5 + $0x388] sm:$0xff]
  %v5389 = vld [vmem:[%s5 + $0x390] sm:$0xff]
  %v5390 = vld [vmem:[%s5 + $0x398] sm:$0xff]
  %v5391 = vld [vmem:[%s5 + $0x3a0] sm:$0xff]
  %v5392 = vld [vmem:[%s5 + $0x3a8] sm:$0xff]
  %v5393 = vld [vmem:[%s5 + $0x3b0] sm:$0xff]
  %v5394 = vld [vmem:[%s5 + $0x3b8] sm:$0xff]
  %v5395 = vld [vmem:[%s5 + $0x3c0] sm:$0xff]
  %v5396 = vld [vmem:[%s5 + $0x3c8] sm:$0xff]
  %v5397 = vld [vmem:[%s5 + $0x3d0] sm:$0xff]
  %v5398 = vld [vmem:[%s5 + $0x3d8] sm:$0xff]
  %v5399 = vld [vmem:[%s5 + $0x3e0] sm:$0xff]
  %v5400 = vld [vmem:[%s5 + $0x3e8] sm:$0xff]
  %v5401 = vld [vmem:[%s5 + $0x3f0] sm:$0xff]
  %v5402 = vld [vmem:[%s5 + $0x3f8] sm:$0xff]
  %v5403 = vld [vmem:[%s6] sm:$0x3]
  %v5405 = vlaneseq
  %v5406 = vshrl.u32 %v5405, 7
  %v5407 = vsub.s32 0, %v5406
  %v5408 = vrot.slane %v5403, %v5407
  %v5409 = vlaneseq
  %v5410 = vshrl.u32 %v5409, 7
  %v5411 = vsub.s32 1, %v5410
  %v5412 = vrot.slane %v5403, %v5411
  %v5543 = vunpack.c.l.b16 %v5275
  %v5544 = vunpack.c.h.b16 %v5275
  %v5545 = vunpack.c.l.b16 %v5276
  %v5546 = vunpack.c.h.b16 %v5276
  %v5547 = vunpack.c.l.b16 %v5277
  %v5548 = vunpack.c.h.b16 %v5277
  %v5549 = vunpack.c.l.b16 %v5278
  %v5550 = vunpack.c.h.b16 %v5278
  %v5551 = vunpack.c.l.b16 %v5279
  %v5552 = vunpack.c.h.b16 %v5279
  %v5553 = vunpack.c.l.b16 %v5280
  %v5554 = vunpack.c.h.b16 %v5280
  %v5555 = vunpack.c.l.b16 %v5281
  %v5556 = vunpack.c.h.b16 %v5281
  %v5557 = vunpack.c.l.b16 %v5282
  %v5558 = vunpack.c.h.b16 %v5282
  %v5559 = vunpack.c.l.b16 %v5283
  %v5560 = vunpack.c.h.b16 %v5283
  %v5561 = vunpack.c.l.b16 %v5284
  %v5562 = vunpack.c.h.b16 %v5284
  %v5563 = vunpack.c.l.b16 %v5285
  %v5564 = vunpack.c.h.b16 %v5285
  %v5565 = vunpack.c.l.b16 %v5286
  %v5566 = vunpack.c.h.b16 %v5286
  %v5567 = vunpack.c.l.b16 %v5287
  %v5568 = vunpack.c.h.b16 %v5287
  %v5569 = vunpack.c.l.b16 %v5288
  %v5570 = vunpack.c.h.b16 %v5288
  %v5571 = vunpack.c.l.b16 %v5289
  %v5572 = vunpack.c.h.b16 %v5289
  %v5573 = vunpack.c.l.b16 %v5290
  %v5574 = vunpack.c.h.b16 %v5290
  %v5575 = vunpack.c.l.b16 %v5291
  %v5576 = vunpack.c.h.b16 %v5291
  %v5577 = vunpack.c.l.b16 %v5292
  %v5578 = vunpack.c.h.b16 %v5292
  %v5579 = vunpack.c.l.b16 %v5293
  %v5580 = vunpack.c.h.b16 %v5293
  %v5581 = vunpack.c.l.b16 %v5294
  %v5582 = vunpack.c.h.b16 %v5294
  %v5583 = vunpack.c.l.b16 %v5295
  %v5584 = vunpack.c.h.b16 %v5295
  %v5585 = vunpack.c.l.b16 %v5296
  %v5586 = vunpack.c.h.b16 %v5296
  %v5587 = vunpack.c.l.b16 %v5297
  %v5588 = vunpack.c.h.b16 %v5297
  %v5589 = vunpack.c.l.b16 %v5298
  %v5590 = vunpack.c.h.b16 %v5298
  %v5591 = vunpack.c.l.b16 %v5299
  %v5592 = vunpack.c.h.b16 %v5299
  %v5593 = vunpack.c.l.b16 %v5300
  %v5594 = vunpack.c.h.b16 %v5300
  %v5595 = vunpack.c.l.b16 %v5301
  %v5596 = vunpack.c.h.b16 %v5301
  %v5597 = vunpack.c.l.b16 %v5302
  %v5598 = vunpack.c.h.b16 %v5302
  %v5599 = vunpack.c.l.b16 %v5303
  %v5600 = vunpack.c.h.b16 %v5303
  %v5601 = vunpack.c.l.b16 %v5304
  %v5602 = vunpack.c.h.b16 %v5304
  %v5603 = vunpack.c.l.b16 %v5305
  %v5604 = vunpack.c.h.b16 %v5305
  %v5605 = vunpack.c.l.b16 %v5306
  %v5606 = vunpack.c.h.b16 %v5306
  %v5607 = vunpack.c.l.b16 %v5307
  %v5608 = vunpack.c.h.b16 %v5307
  %v5609 = vunpack.c.l.b16 %v5308
  %v5610 = vunpack.c.h.b16 %v5308
  %v5611 = vunpack.c.l.b16 %v5309
  %v5612 = vunpack.c.h.b16 %v5309
  %v5613 = vunpack.c.l.b16 %v5310
  %v5614 = vunpack.c.h.b16 %v5310
  %v5615 = vunpack.c.l.b16 %v5311
  %v5616 = vunpack.c.h.b16 %v5311
  %v5617 = vunpack.c.l.b16 %v5312
  %v5618 = vunpack.c.h.b16 %v5312
  %v5619 = vunpack.c.l.b16 %v5313
  %v5620 = vunpack.c.h.b16 %v5313
  %v5621 = vunpack.c.l.b16 %v5314
  %v5622 = vunpack.c.h.b16 %v5314
  %v5623 = vunpack.c.l.b16 %v5315
  %v5624 = vunpack.c.h.b16 %v5315
  %v5625 = vunpack.c.l.b16 %v5316
  %v5626 = vunpack.c.h.b16 %v5316
  %v5627 = vunpack.c.l.b16 %v5317
  %v5628 = vunpack.c.h.b16 %v5317
  %v5629 = vunpack.c.l.b16 %v5318
  %v5630 = vunpack.c.h.b16 %v5318
  %v5631 = vunpack.c.l.b16 %v5319
  %v5632 = vunpack.c.h.b16 %v5319
  %v5633 = vunpack.c.l.b16 %v5320
  %v5634 = vunpack.c.h.b16 %v5320
  %v5635 = vunpack.c.l.b16 %v5321
  %v5636 = vunpack.c.h.b16 %v5321
  %v5637 = vunpack.c.l.b16 %v5322
  %v5638 = vunpack.c.h.b16 %v5322
  %v5639 = vunpack.c.l.b16 %v5323
  %v5640 = vunpack.c.h.b16 %v5323
  %v5641 = vunpack.c.l.b16 %v5324
  %v5642 = vunpack.c.h.b16 %v5324
  %v5643 = vunpack.c.l.b16 %v5325
  %v5644 = vunpack.c.h.b16 %v5325
  %v5645 = vunpack.c.l.b16 %v5326
  %v5646 = vunpack.c.h.b16 %v5326
  %v5647 = vunpack.c.l.b16 %v5327
  %v5648 = vunpack.c.h.b16 %v5327
  %v5649 = vunpack.c.l.b16 %v5328
  %v5650 = vunpack.c.h.b16 %v5328
  %v5651 = vunpack.c.l.b16 %v5329
  %v5652 = vunpack.c.h.b16 %v5329
  %v5653 = vunpack.c.l.b16 %v5330
  %v5654 = vunpack.c.h.b16 %v5330
  %v5655 = vunpack.c.l.b16 %v5331
  %v5656 = vunpack.c.h.b16 %v5331
  %v5657 = vunpack.c.l.b16 %v5332
  %v5658 = vunpack.c.h.b16 %v5332
  %v5659 = vunpack.c.l.b16 %v5333
  %v5660 = vunpack.c.h.b16 %v5333
  %v5661 = vunpack.c.l.b16 %v5334
  %v5662 = vunpack.c.h.b16 %v5334
  %v5663 = vunpack.c.l.b16 %v5335
  %v5664 = vunpack.c.h.b16 %v5335
  %v5665 = vunpack.c.l.b16 %v5336
  %v5666 = vunpack.c.h.b16 %v5336
  %v5667 = vunpack.c.l.b16 %v5337
  %v5668 = vunpack.c.h.b16 %v5337
  %v5669 = vunpack.c.l.b16 %v5338
  %v5670 = vunpack.c.h.b16 %v5338
  %v5671 = vunpack.c.l.b16 %v5339
  %v5672 = vunpack.c.h.b16 %v5339
  %v5673 = vunpack.c.l.b16 %v5340
  %v5674 = vunpack.c.h.b16 %v5340
  %v5675 = vunpack.c.l.b16 %v5341
  %v5676 = vunpack.c.h.b16 %v5341
  %v5677 = vunpack.c.l.b16 %v5342
  %v5678 = vunpack.c.h.b16 %v5342
  %v5679 = vunpack.c.l.b16 %v5343
  %v5680 = vunpack.c.h.b16 %v5343
  %v5681 = vunpack.c.l.b16 %v5344
  %v5682 = vunpack.c.h.b16 %v5344
  %v5683 = vunpack.c.l.b16 %v5345
  %v5684 = vunpack.c.h.b16 %v5345
  %v5685 = vunpack.c.l.b16 %v5346
  %v5686 = vunpack.c.h.b16 %v5346
  %v5687 = vunpack.c.l.b16 %v5347
  %v5688 = vunpack.c.h.b16 %v5347
  %v5689 = vunpack.c.l.b16 %v5348
  %v5690 = vunpack.c.h.b16 %v5348
  %v5691 = vunpack.c.l.b16 %v5349
  %v5692 = vunpack.c.h.b16 %v5349
  %v5693 = vunpack.c.l.b16 %v5350
  %v5694 = vunpack.c.h.b16 %v5350
  %v5695 = vunpack.c.l.b16 %v5351
  %v5696 = vunpack.c.h.b16 %v5351
  %v5697 = vunpack.c.l.b16 %v5352
  %v5698 = vunpack.c.h.b16 %v5352
  %v5699 = vunpack.c.l.b16 %v5353
  %v5700 = vunpack.c.h.b16 %v5353
  %v5701 = vunpack.c.l.b16 %v5354
  %v5702 = vunpack.c.h.b16 %v5354
  %v5703 = vunpack.c.l.b16 %v5355
  %v5704 = vunpack.c.h.b16 %v5355
  %v5705 = vunpack.c.l.b16 %v5356
  %v5706 = vunpack.c.h.b16 %v5356
  %v5707 = vunpack.c.l.b16 %v5357
  %v5708 = vunpack.c.h.b16 %v5357
  %v5709 = vunpack.c.l.b16 %v5358
  %v5710 = vunpack.c.h.b16 %v5358
  %v5711 = vunpack.c.l.b16 %v5359
  %v5712 = vunpack.c.h.b16 %v5359
  %v5713 = vunpack.c.l.b16 %v5360
  %v5714 = vunpack.c.h.b16 %v5360
  %v5715 = vunpack.c.l.b16 %v5361
  %v5716 = vunpack.c.h.b16 %v5361
  %v5717 = vunpack.c.l.b16 %v5362
  %v5718 = vunpack.c.h.b16 %v5362
  %v5719 = vunpack.c.l.b16 %v5363
  %v5720 = vunpack.c.h.b16 %v5363
  %v5721 = vunpack.c.l.b16 %v5364
  %v5722 = vunpack.c.h.b16 %v5364
  %v5723 = vunpack.c.l.b16 %v5365
  %v5724 = vunpack.c.h.b16 %v5365
  %v5725 = vunpack.c.l.b16 %v5366
  %v5726 = vunpack.c.h.b16 %v5366
  %v5727 = vunpack.c.l.b16 %v5367
  %v5728 = vunpack.c.h.b16 %v5367
  %v5729 = vunpack.c.l.b16 %v5368
  %v5730 = vunpack.c.h.b16 %v5368
  %v5731 = vunpack.c.l.b16 %v5369
  %v5732 = vunpack.c.h.b16 %v5369
  %v5733 = vunpack.c.l.b16 %v5370
  %v5734 = vunpack.c.h.b16 %v5370
  %v5735 = vunpack.c.l.b16 %v5371
  %v5736 = vunpack.c.h.b16 %v5371
  %v5737 = vunpack.c.l.b16 %v5372
  %v5738 = vunpack.c.h.b16 %v5372
  %v5739 = vunpack.c.l.b16 %v5373
  %v5740 = vunpack.c.h.b16 %v5373
  %v5741 = vunpack.c.l.b16 %v5374
  %v5742 = vunpack.c.h.b16 %v5374
  %v5743 = vunpack.c.l.b16 %v5375
  %v5744 = vunpack.c.h.b16 %v5375
  %v5745 = vunpack.c.l.b16 %v5376
  %v5746 = vunpack.c.h.b16 %v5376
  %v5747 = vunpack.c.l.b16 %v5377
  %v5748 = vunpack.c.h.b16 %v5377
  %v5749 = vunpack.c.l.b16 %v5378
  %v5750 = vunpack.c.h.b16 %v5378
  %v5751 = vunpack.c.l.b16 %v5379
  %v5752 = vunpack.c.h.b16 %v5379
  %v5753 = vunpack.c.l.b16 %v5380
  %v5754 = vunpack.c.h.b16 %v5380
  %v5755 = vunpack.c.l.b16 %v5381
  %v5756 = vunpack.c.h.b16 %v5381
  %v5757 = vunpack.c.l.b16 %v5382
  %v5758 = vunpack.c.h.b16 %v5382
  %v5759 = vunpack.c.l.b16 %v5383
  %v5760 = vunpack.c.h.b16 %v5383
  %v5761 = vunpack.c.l.b16 %v5384
  %v5762 = vunpack.c.h.b16 %v5384
  %v5763 = vunpack.c.l.b16 %v5385
  %v5764 = vunpack.c.h.b16 %v5385
  %v5765 = vunpack.c.l.b16 %v5386
  %v5766 = vunpack.c.h.b16 %v5386
  %v5767 = vunpack.c.l.b16 %v5387
  %v5768 = vunpack.c.h.b16 %v5387
  %v5769 = vunpack.c.l.b16 %v5388
  %v5770 = vunpack.c.h.b16 %v5388
  %v5771 = vunpack.c.l.b16 %v5389
  %v5772 = vunpack.c.h.b16 %v5389
  %v5773 = vunpack.c.l.b16 %v5390
  %v5774 = vunpack.c.h.b16 %v5390
  %v5775 = vunpack.c.l.b16 %v5391
  %v5776 = vunpack.c.h.b16 %v5391
  %v5777 = vunpack.c.l.b16 %v5392
  %v5778 = vunpack.c.h.b16 %v5392
  %v5779 = vunpack.c.l.b16 %v5393
  %v5780 = vunpack.c.h.b16 %v5393
  %v5781 = vunpack.c.l.b16 %v5394
  %v5782 = vunpack.c.h.b16 %v5394
  %v5783 = vunpack.c.l.b16 %v5395
  %v5784 = vunpack.c.h.b16 %v5395
  %v5785 = vunpack.c.l.b16 %v5396
  %v5786 = vunpack.c.h.b16 %v5396
  %v5787 = vunpack.c.l.b16 %v5397
  %v5788 = vunpack.c.h.b16 %v5397
  %v5789 = vunpack.c.l.b16 %v5398
  %v5790 = vunpack.c.h.b16 %v5398
  %v5791 = vunpack.c.l.b16 %v5399
  %v5792 = vunpack.c.h.b16 %v5399
  %v5793 = vunpack.c.l.b16 %v5400
  %v5794 = vunpack.c.h.b16 %v5400
  %v5795 = vunpack.c.l.b16 %v5401
  %v5796 = vunpack.c.h.b16 %v5401
  %v5797 = vunpack.c.l.b16 %v5402
  %v5798 = vunpack.c.h.b16 %v5402
  %v5799 = vpack.c.b16 %v5545, %v5543
  %v5800 = vpack.c.b16 %v5546, %v5544
  %v5801 = vpack.c.b16 %v5549, %v5547
  %v5802 = vpack.c.b16 %v5550, %v5548
  %v5803 = vpack.c.b16 %v5553, %v5551
  %v5804 = vpack.c.b16 %v5554, %v5552
  %v5805 = vpack.c.b16 %v5557, %v5555
  %v5806 = vpack.c.b16 %v5558, %v5556
  %v5807 = vpack.c.b16 %v5561, %v5559
  %v5808 = vpack.c.b16 %v5562, %v5560
  %v5809 = vpack.c.b16 %v5565, %v5563
  %v5810 = vpack.c.b16 %v5566, %v5564
  %v5811 = vpack.c.b16 %v5569, %v5567
  %v5812 = vpack.c.b16 %v5570, %v5568
  %v5813 = vpack.c.b16 %v5573, %v5571
  %v5814 = vpack.c.b16 %v5574, %v5572
  %v5815 = vpack.c.b16 %v5577, %v5575
  %v5816 = vpack.c.b16 %v5578, %v5576
  %v5817 = vpack.c.b16 %v5581, %v5579
  %v5818 = vpack.c.b16 %v5582, %v5580
  %v5819 = vpack.c.b16 %v5585, %v5583
  %v5820 = vpack.c.b16 %v5586, %v5584
  %v5821 = vpack.c.b16 %v5589, %v5587
  %v5822 = vpack.c.b16 %v5590, %v5588
  %v5823 = vpack.c.b16 %v5593, %v5591
  %v5824 = vpack.c.b16 %v5594, %v5592
  %v5825 = vpack.c.b16 %v5597, %v5595
  %v5826 = vpack.c.b16 %v5598, %v5596
  %v5827 = vpack.c.b16 %v5601, %v5599
  %v5828 = vpack.c.b16 %v5602, %v5600
  %v5829 = vpack.c.b16 %v5605, %v5603
  %v5830 = vpack.c.b16 %v5606, %v5604
  %v5831 = vpack.c.b16 %v5609, %v5607
  %v5832 = vpack.c.b16 %v5610, %v5608
  %v5833 = vpack.c.b16 %v5613, %v5611
  %v5834 = vpack.c.b16 %v5614, %v5612
  %v5835 = vpack.c.b16 %v5617, %v5615
  %v5836 = vpack.c.b16 %v5618, %v5616
  %v5837 = vpack.c.b16 %v5621, %v5619
  %v5838 = vpack.c.b16 %v5622, %v5620
  %v5839 = vpack.c.b16 %v5625, %v5623
  %v5840 = vpack.c.b16 %v5626, %v5624
  %v5841 = vpack.c.b16 %v5629, %v5627
  %v5842 = vpack.c.b16 %v5630, %v5628
  %v5843 = vpack.c.b16 %v5633, %v5631
  %v5844 = vpack.c.b16 %v5634, %v5632
  %v5845 = vpack.c.b16 %v5637, %v5635
  %v5846 = vpack.c.b16 %v5638, %v5636
  %v5847 = vpack.c.b16 %v5641, %v5639
  %v5848 = vpack.c.b16 %v5642, %v5640
  %v5849 = vpack.c.b16 %v5645, %v5643
  %v5850 = vpack.c.b16 %v5646, %v5644
  %v5851 = vpack.c.b16 %v5649, %v5647
  %v5852 = vpack.c.b16 %v5650, %v5648
  %v5853 = vpack.c.b16 %v5653, %v5651
  %v5854 = vpack.c.b16 %v5654, %v5652
  %v5855 = vpack.c.b16 %v5657, %v5655
  %v5856 = vpack.c.b16 %v5658, %v5656
  %v5857 = vpack.c.b16 %v5661, %v5659
  %v5858 = vpack.c.b16 %v5662, %v5660
  %v5859 = vpack.c.b16 %v5665, %v5663
  %v5860 = vpack.c.b16 %v5666, %v5664
  %v5861 = vpack.c.b16 %v5669, %v5667
  %v5862 = vpack.c.b16 %v5670, %v5668
  %v5863 = vpack.c.b16 %v5673, %v5671
  %v5864 = vpack.c.b16 %v5674, %v5672
  %v5865 = vpack.c.b16 %v5677, %v5675
  %v5866 = vpack.c.b16 %v5678, %v5676
  %v5867 = vpack.c.b16 %v5681, %v5679
  %v5868 = vpack.c.b16 %v5682, %v5680
  %v5869 = vpack.c.b16 %v5685, %v5683
  %v5870 = vpack.c.b16 %v5686, %v5684
  %v5871 = vpack.c.b16 %v5689, %v5687
  %v5872 = vpack.c.b16 %v5690, %v5688
  %v5873 = vpack.c.b16 %v5693, %v5691
  %v5874 = vpack.c.b16 %v5694, %v5692
  %v5875 = vpack.c.b16 %v5697, %v5695
  %v5876 = vpack.c.b16 %v5698, %v5696
  %v5877 = vpack.c.b16 %v5701, %v5699
  %v5878 = vpack.c.b16 %v5702, %v5700
  %v5879 = vpack.c.b16 %v5705, %v5703
  %v5880 = vpack.c.b16 %v5706, %v5704
  %v5881 = vpack.c.b16 %v5709, %v5707
  %v5882 = vpack.c.b16 %v5710, %v5708
  %v5883 = vpack.c.b16 %v5713, %v5711
  %v5884 = vpack.c.b16 %v5714, %v5712
  %v5885 = vpack.c.b16 %v5717, %v5715
  %v5886 = vpack.c.b16 %v5718, %v5716
  %v5887 = vpack.c.b16 %v5721, %v5719
  %v5888 = vpack.c.b16 %v5722, %v5720
  %v5889 = vpack.c.b16 %v5725, %v5723
  %v5890 = vpack.c.b16 %v5726, %v5724
  %v5891 = vpack.c.b16 %v5729, %v5727
  %v5892 = vpack.c.b16 %v5730, %v5728
  %v5893 = vpack.c.b16 %v5733, %v5731
  %v5894 = vpack.c.b16 %v5734, %v5732
  %v5895 = vpack.c.b16 %v5737, %v5735
  %v5896 = vpack.c.b16 %v5738, %v5736
  %v5897 = vpack.c.b16 %v5741, %v5739
  %v5898 = vpack.c.b16 %v5742, %v5740
  %v5899 = vpack.c.b16 %v5745, %v5743
  %v5900 = vpack.c.b16 %v5746, %v5744
  %v5901 = vpack.c.b16 %v5749, %v5747
  %v5902 = vpack.c.b16 %v5750, %v5748
  %v5903 = vpack.c.b16 %v5753, %v5751
  %v5904 = vpack.c.b16 %v5754, %v5752
  %v5905 = vpack.c.b16 %v5757, %v5755
  %v5906 = vpack.c.b16 %v5758, %v5756
  %v5907 = vpack.c.b16 %v5761, %v5759
  %v5908 = vpack.c.b16 %v5762, %v5760
  %v5909 = vpack.c.b16 %v5765, %v5763
  %v5910 = vpack.c.b16 %v5766, %v5764
  %v5911 = vpack.c.b16 %v5769, %v5767
  %v5912 = vpack.c.b16 %v5770, %v5768
  %v5913 = vpack.c.b16 %v5773, %v5771
  %v5914 = vpack.c.b16 %v5774, %v5772
  %v5915 = vpack.c.b16 %v5777, %v5775
  %v5916 = vpack.c.b16 %v5778, %v5776
  %v5917 = vpack.c.b16 %v5781, %v5779
  %v5918 = vpack.c.b16 %v5782, %v5780
  %v5919 = vpack.c.b16 %v5785, %v5783
  %v5920 = vpack.c.b16 %v5786, %v5784
  %v5921 = vpack.c.b16 %v5789, %v5787
  %v5922 = vpack.c.b16 %v5790, %v5788
  %v5923 = vpack.c.b16 %v5793, %v5791
  %v5924 = vpack.c.b16 %v5794, %v5792
  %v5925 = vpack.c.b16 %v5797, %v5795
  %v5926 = vpack.c.b16 %v5798, %v5796
  %6055 = vmatprep.subr.bf16.mxu0 %v5800
  %6056 = vmatpush1.bf16.msra.mxu0 %v5799
  %6057 = vmatprep.subr.bf16.mxu0 %v5802
  %6058 = vmatpush1.bf16.msra.mxu0 %v5801
  %6059 = vmatprep.subr.bf16.mxu0 %v5804
  %6060 = vmatpush1.bf16.msra.mxu0 %v5803
  %6061 = vmatprep.subr.bf16.mxu0 %v5806
  %6062 = vmatpush1.bf16.msra.mxu0 %v5805
  %6063 = vmatprep.subr.bf16.mxu0 %v5808
  %6064 = vmatpush1.bf16.msra.mxu0 %v5807
  %6065 = vmatprep.subr.bf16.mxu0 %v5810
  %6066 = vmatpush1.bf16.msra.mxu0 %v5809
  %6067 = vmatprep.subr.bf16.mxu0 %v5812
  %6068 = vmatpush1.bf16.msra.mxu0 %v5811
  %6069 = vmatprep.subr.bf16.mxu0 %v5814
  %6070 = vmatpush1.bf16.msra.mxu0 %v5813
  %6071 = vmatprep.subr.bf16.mxu0 %v5816
  %6072 = vmatpush1.bf16.msra.mxu0 %v5815
  %6073 = vmatprep.subr.bf16.mxu0 %v5818
  %6074 = vmatpush1.bf16.msra.mxu0 %v5817
  %6075 = vmatprep.subr.bf16.mxu0 %v5820
  %6076 = vmatpush1.bf16.msra.mxu0 %v5819
  %6077 = vmatprep.subr.bf16.mxu0 %v5822
  %6078 = vmatpush1.bf16.msra.mxu0 %v5821
  %6079 = vmatprep.subr.bf16.mxu0 %v5824
  %6080 = vmatpush1.bf16.msra.mxu0 %v5823
  %6081 = vmatprep.subr.bf16.mxu0 %v5826
  %6082 = vmatpush1.bf16.msra.mxu0 %v5825
  %6083 = vmatprep.subr.bf16.mxu0 %v5828
  %6084 = vmatpush1.bf16.msra.mxu0 %v5827
  %6085 = vmatprep.subr.bf16.mxu0 %v5830
  %6086 = vmatpush1.bf16.msra.mxu0 %v5829
  %6087 = vmatprep.mubr.bf16.mxu0 %v5268
  %6088 = vmatmul.mubr.bf16.gmra.mrb[0].mxu0 %v5267
  %v6089 = vpop.f32.mrb[0].mxu0
  %v6090 = vadd.f32 %v5408, %v6089
  %v6091 = vpop.f32.mrb[0].mxu0
  %v6092 = vadd.f32 %v5412, %v6091
  %v6093 = vpop.f32.mrb[0].mxu0
  %v6094 = vpop.f32.mrb[0].mxu0
  %6095 = vdwg.mxu0
  %6096 = vmatprep.subr.bf16.mxu0 %v5832
  %6097 = vmatpush1.bf16.msra.mxu0 %v5831
  %6098 = vmatprep.subr.bf16.mxu0 %v5834
  %6099 = vmatpush1.bf16.msra.mxu0 %v5833
  %6100 = vmatprep.subr.bf16.mxu0 %v5836
  %6101 = vmatpush1.bf16.msra.mxu0 %v5835
  %6102 = vmatprep.subr.bf16.mxu0 %v5838
  %6103 = vmatpush1.bf16.msra.mxu0 %v5837
  %6104 = vmatprep.subr.bf16.mxu0 %v5840
  %6105 = vmatpush1.bf16.msra.mxu0 %v5839
  %6106 = vmatprep.subr.bf16.mxu0 %v5842
  %6107 = vmatpush1.bf16.msra.mxu0 %v5841
  %6108 = vmatprep.subr.bf16.mxu0 %v5844
  %6109 = vmatpush1.bf16.msra.mxu0 %v5843
  %6110 = vmatprep.subr.bf16.mxu0 %v5846
  %6111 = vmatpush1.bf16.msra.mxu0 %v5845
  %6112 = vmatprep.subr.bf16.mxu0 %v5848
  %6113 = vmatpush1.bf16.msra.mxu0 %v5847
  %6114 = vmatprep.subr.bf16.mxu0 %v5850
  %6115 = vmatpush1.bf16.msra.mxu0 %v5849
  %6116 = vmatprep.subr.bf16.mxu0 %v5852
  %6117 = vmatpush1.bf16.msra.mxu0 %v5851
  %6118 = vmatprep.subr.bf16.mxu0 %v5854
  %6119 = vmatpush1.bf16.msra.mxu0 %v5853
  %6120 = vmatprep.subr.bf16.mxu0 %v5856
  %6121 = vmatpush1.bf16.msra.mxu0 %v5855
  %6122 = vmatprep.subr.bf16.mxu0 %v5858
  %6123 = vmatpush1.bf16.msra.mxu0 %v5857
  %6124 = vmatprep.subr.bf16.mxu0 %v5860
  %6125 = vmatpush1.bf16.msra.mxu0 %v5859
  %6126 = vmatprep.subr.bf16.mxu0 %v5862
  %6127 = vmatpush1.bf16.msra.mxu0 %v5861
  %6128 = vmatprep.mubr.bf16.mxu0 %v5270
  %6129 = vmatmul.mubr.bf16.gmra.mrb[0].mxu0 %v5269
  %v6130 = vpop.f32.mrb[0].mxu0
  %v6131 = vadd.f32 %v6090, %v6130
  %v6132 = vpop.f32.mrb[0].mxu0
  %v6133 = vadd.f32 %v6092, %v6132
  %v6134 = vpop.f32.mrb[0].mxu0
  %v6135 = vpop.f32.mrb[0].mxu0
  %6136 = vdwg.mxu0
  %6137 = vmatprep.subr.bf16.mxu0 %v5864
  %6138 = vmatpush1.bf16.msra.mxu0 %v5863
  %6139 = vmatprep.subr.bf16.mxu0 %v5866
  %6140 = vmatpush1.bf16.msra.mxu0 %v5865
  %6141 = vmatprep.subr.bf16.mxu0 %v5868
  %6142 = vmatpush1.bf16.msra.mxu0 %v5867
  %6143 = vmatprep.subr.bf16.mxu0 %v5870
  %6144 = vmatpush1.bf16.msra.mxu0 %v5869
  %6145 = vmatprep.subr.bf16.mxu0 %v5872
  %6146 = vmatpush1.bf16.msra.mxu0 %v5871
  %6147 = vmatprep.subr.bf16.mxu0 %v5874
  %6148 = vmatpush1.bf16.msra.mxu0 %v5873
  %6149 = vmatprep.subr.bf16.mxu0 %v5876
  %6150 = vmatpush1.bf16.msra.mxu0 %v5875
  %6151 = vmatprep.subr.bf16.mxu0 %v5878
  %6152 = vmatpush1.bf16.msra.mxu0 %v5877
  %6153 = vmatprep.subr.bf16.mxu0 %v5880
  %6154 = vmatpush1.bf16.msra.mxu0 %v5879
  %6155 = vmatprep.subr.bf16.mxu0 %v5882
  %6156 = vmatpush1.bf16.msra.mxu0 %v5881
  %6157 = vmatprep.subr.bf16.mxu0 %v5884
  %6158 = vmatpush1.bf16.msra.mxu0 %v5883
  %6159 = vmatprep.subr.bf16.mxu0 %v5886
  %6160 = vmatpush1.bf16.msra.mxu0 %v5885
  %6161 = vmatprep.subr.bf16.mxu0 %v5888
  %6162 = vmatpush1.bf16.msra.mxu0 %v5887
  %6163 = vmatprep.subr.bf16.mxu0 %v5890
  %6164 = vmatpush1.bf16.msra.mxu0 %v5889
  %6165 = vmatprep.subr.bf16.mxu0 %v5892
  %6166 = vmatpush1.bf16.msra.mxu0 %v5891
  %6167 = vmatprep.subr.bf16.mxu0 %v5894
  %6168 = vmatpush1.bf16.msra.mxu0 %v5893
  %6169 = vmatprep.mubr.bf16.mxu0 %v5272
  %6170 = vmatmul.mubr.bf16.gmra.mrb[0].mxu0 %v5271
  %v6171 = vpop.f32.mrb[0].mxu0
  %v6172 = vadd.f32 %v6131, %v6171
  %v6173 = vpop.f32.mrb[0].mxu0
  %v6174 = vadd.f32 %v6133, %v6173
  %v6175 = vpop.f32.mrb[0].mxu0
  %v6176 = vpop.f32.mrb[0].mxu0
  %6177 = vdwg.mxu0
  %6178 = vmatprep.subr.bf16.mxu0 %v5896
  %6179 = vmatpush1.bf16.msra.mxu0 %v5895
  %6180 = vmatprep.subr.bf16.mxu0 %v5898
  %6181 = vmatpush1.bf16.msra.mxu0 %v5897
  %6182 = vmatprep.subr.bf16.mxu0 %v5900
  %6183 = vmatpush1.bf16.msra.mxu0 %v5899
  %6184 = vmatprep.subr.bf16.mxu0 %v5902
  %6185 = vmatpush1.bf16.msra.mxu0 %v5901
  %6186 = vmatprep.subr.bf16.mxu0 %v5904
  %6187 = vmatpush1.bf16.msra.mxu0 %v5903
  %6188 = vmatprep.subr.bf16.mxu0 %v5906
  %6189 = vmatpush1.bf16.msra.mxu0 %v5905
  %6190 = vmatprep.subr.bf16.mxu0 %v5908
  %6191 = vmatpush1.bf16.msra.mxu0 %v5907
  %6192 = vmatprep.subr.bf16.mxu0 %v5910
  %6193 = vmatpush1.bf16.msra.mxu0 %v5909
  %6194 = vmatprep.subr.bf16.mxu0 %v5912
  %6195 = vmatpush1.bf16.msra.mxu0 %v5911
  %6196 = vmatprep.subr.bf16.mxu0 %v5914
  %6197 = vmatpush1.bf16.msra.mxu0 %v5913
  %6198 = vmatprep.subr.bf16.mxu0 %v5916
  %6199 = vmatpush1.bf16.msra.mxu0 %v5915
  %6200 = vmatprep.subr.bf16.mxu0 %v5918
  %6201 = vmatpush1.bf16.msra.mxu0 %v5917
  %6202 = vmatprep.subr.bf16.mxu0 %v5920
  %6203 = vmatpush1.bf16.msra.mxu0 %v5919
  %6204 = vmatprep.subr.bf16.mxu0 %v5922
  %6205 = vmatpush1.bf16.msra.mxu0 %v5921
  %6206 = vmatprep.subr.bf16.mxu0 %v5924
  %6207 = vmatpush1.bf16.msra.mxu0 %v5923
  %6208 = vmatprep.subr.bf16.mxu0 %v5926
  %6209 = vmatpush1.bf16.msra.mxu0 %v5925
  %6210 = vmatprep.mubr.bf16.mxu0 %v5274
  %6211 = vmatmul.mubr.bf16.gmra.mrb[0].mxu0 %v5273
  %v6212 = vpop.f32.mrb[0].mxu0
  %v6213 = vadd.f32 %v6172, %v6212
  %v6214 = vpop.f32.mrb[0].mxu0
  %v6215 = vadd.f32 %v6174, %v6214
  %v6216 = vpop.f32.mrb[0].mxu0
  %v6217 = vpop.f32.mrb[0].mxu0
  %6218 = vdwg.mxu0
  %v6219 = vmax.f32 %v6213, 0.0
  %v6220 = vmax.f32 %v6215, 0.0
  %v6221 = vpack.c.bf16 %v6219, %v6219
  %v6222 = vpack.c.bf16 %v6220, %v6220
  %v6223 = vld [vmem:[%s7] sm:$0xf]
  %v6224 = vld [vmem:[%s7 + $0x4] sm:$0xf]
  %v6225 = vld [vmem:[%s7 + $0x8] sm:$0xf]
  %v6226 = vld [vmem:[%s7 + $0xc] sm:$0xf]
  %v6227 = vld [vmem:[%s7 + $0x10] sm:$0xf]
  %v6228 = vld [vmem:[%s7 + $0x14] sm:$0xf]
  %v6229 = vld [vmem:[%s7 + $0x18] sm:$0xf]
  %v6230 = vld [vmem:[%s7 + $0x1c] sm:$0xf]
  %v6231 = vld [vmem:[%s7 + $0x20] sm:$0xf]
  %v6232 = vld [vmem:[%s7 + $0x24] sm:$0xf]
  %v6233 = vld [vmem:[%s7 + $0x28] sm:$0xf]
  %v6234 = vld [vmem:[%s7 + $0x2c] sm:$0xf]
  %v6235 = vld [vmem:[%s7 + $0x30] sm:$0xf]
  %v6236 = vld [vmem:[%s7 + $0x34] sm:$0xf]
  %v6237 = vld [vmem:[%s7 + $0x38] sm:$0xf]
  %v6238 = vld [vmem:[%s7 + $0x3c] sm:$0xf]
  %v6239 = vld [vmem:[%s7 + $0x40] sm:$0xf]
  %v6240 = vld [vmem:[%s7 + $0x44] sm:$0xf]
  %v6241 = vld [vmem:[%s7 + $0x48] sm:$0xf]
  %v6242 = vld [vmem:[%s7 + $0x4c] sm:$0xf]
  %v6243 = vld [vmem:[%s7 + $0x50] sm:$0xf]
  %v6244 = vld [vmem:[%s7 + $0x54] sm:$0xf]
  %v6245 = vld [vmem:[%s7 + $0x58] sm:$0xf]
  %v6246 = vld [vmem:[%s7 + $0x5c] sm:$0xf]
  %v6247 = vld [vmem:[%s7 + $0x60] sm:$0xf]
  %v6248 = vld [vmem:[%s7 + $0x64] sm:$0xf]
  %v6249 = vld [vmem:[%s7 + $0x68] sm:$0xf]
  %v6250 = vld [vmem:[%s7 + $0x6c] sm:$0xf]
  %v6251 = vld [vmem:[%s7 + $0x70] sm:$0xf]
  %v6252 = vld [vmem:[%s7 + $0x74] sm:$0xf]
  %v6253 = vld [vmem:[%s7 + $0x78] sm:$0xf]
  %v6254 = vld [vmem:[%s7 + $0x7c] sm:$0xf]
  %v6255 = vld [vmem:[%s8] sm:$0x1]
  %v6257 = vlaneseq
  %v6258 = vshrl.u32 %v6257, 7
  %v6259 = vsub.s32 0, %v6258
  %v6260 = vrot.slane %v6255, %v6259
  %v6294 = vunpack.c.l.b16 %v6223
  %v6295 = vunpack.c.l.b16 %v6224
  %v6296 = vunpack.c.l.b16 %v6225
  %v6297 = vunpack.c.l.b16 %v6226
  %v6298 = vunpack.c.l.b16 %v6227
  %v6299 = vunpack.c.l.b16 %v6228
  %v6300 = vunpack.c.l.b16 %v6229
  %v6301 = vunpack.c.l.b16 %v6230
  %v6302 = vunpack.c.l.b16 %v6231
  %v6303 = vunpack.c.l.b16 %v6232
  %v6304 = vunpack.c.l.b16 %v6233
  %v6305 = vunpack.c.l.b16 %v6234
  %v6306 = vunpack.c.l.b16 %v6235
  %v6307 = vunpack.c.l.b16 %v6236
  %v6308 = vunpack.c.l.b16 %v6237
  %v6309 = vunpack.c.l.b16 %v6238
  %v6310 = vunpack.c.l.b16 %v6239
  %v6311 = vunpack.c.l.b16 %v6240
  %v6312 = vunpack.c.l.b16 %v6241
  %v6313 = vunpack.c.l.b16 %v6242
  %v6314 = vunpack.c.l.b16 %v6243
  %v6315 = vunpack.c.l.b16 %v6244
  %v6316 = vunpack.c.l.b16 %v6245
  %v6317 = vunpack.c.l.b16 %v6246
  %v6318 = vunpack.c.l.b16 %v6247
  %v6319 = vunpack.c.l.b16 %v6248
  %v6320 = vunpack.c.l.b16 %v6249
  %v6321 = vunpack.c.l.b16 %v6250
  %v6322 = vunpack.c.l.b16 %v6251
  %v6323 = vunpack.c.l.b16 %v6252
  %v6324 = vunpack.c.l.b16 %v6253
  %v6325 = vunpack.c.l.b16 %v6254
  %v6326 = vpack.c.b16 %v6295, %v6294
  %v6327 = vpack.c.b16 %v6297, %v6296
  %v6328 = vpack.c.b16 %v6299, %v6298
  %v6329 = vpack.c.b16 %v6301, %v6300
  %v6330 = vpack.c.b16 %v6303, %v6302
  %v6331 = vpack.c.b16 %v6305, %v6304
  %v6332 = vpack.c.b16 %v6307, %v6306
  %v6333 = vpack.c.b16 %v6309, %v6308
  %v6334 = vpack.c.b16 %v6311, %v6310
  %v6335 = vpack.c.b16 %v6313, %v6312
  %v6336 = vpack.c.b16 %v6315, %v6314
  %v6337 = vpack.c.b16 %v6317, %v6316
  %v6338 = vpack.c.b16 %v6319, %v6318
  %v6339 = vpack.c.b16 %v6321, %v6320
  %v6340 = vpack.c.b16 %v6323, %v6322
  %v6341 = vpack.c.b16 %v6325, %v6324
  %6358 = vmatprep.subr.bf16.mxu0 0
  %6359 = vmatpush1.bf16.msra.mxu0 %v6326
  %6360 = vmatprep.subr.bf16.mxu0 0
  %6361 = vmatpush1.bf16.msra.mxu0 %v6327
  %6362 = vmatprep.subr.bf16.mxu0 0
  %6363 = vmatpush1.bf16.msra.mxu0 %v6328
  %6364 = vmatprep.subr.bf16.mxu0 0
  %6365 = vmatpush1.bf16.msra.mxu0 %v6329
  %6366 = vmatprep.subr.bf16.mxu0 0
  %6367 = vmatpush1.bf16.msra.mxu0 %v6330
  %6368 = vmatprep.subr.bf16.mxu0 0
  %6369 = vmatpush1.bf16.msra.mxu0 %v6331
  %6370 = vmatprep.subr.bf16.mxu0 0
  %6371 = vmatpush1.bf16.msra.mxu0 %v6332
  %6372 = vmatprep.subr.bf16.mxu0 0
  %6373 = vmatpush1.bf16.msra.mxu0 %v6333
  %6374 = vmatprep.subr.bf16.mxu0 0
  %6375 = vmatpush1.bf16.msra.mxu0 %v6334
  %6376 = vmatprep.subr.bf16.mxu0 0
  %6377 = vmatpush1.bf16.msra.mxu0 %v6335
  %6378 = vmatprep.subr.bf16.mxu0 0
  %6379 = vmatpush1.bf16.msra.mxu0 %v6336
  %6380 = vmatprep.subr.bf16.mxu0 0
  %6381 = vmatpush1.bf16.msra.mxu0 %v6337
  %6382 = vmatprep.subr.bf16.mxu0 0
  %6383 = vmatpush1.bf16.msra.mxu0 %v6338
  %6384 = vmatprep.subr.bf16.mxu0 0
  %6385 = vmatpush1.bf16.msra.mxu0 %v6339
  %6386 = vmatprep.subr.bf16.mxu0 0
  %6387 = vmatpush1.bf16.msra.mxu0 %v6340
  %6388 = vmatprep.subr.bf16.mxu0 0
  %6389 = vmatpush1.bf16.msra.mxu0 %v6341
  %6390 = vmatprep.mubr.bf16.mxu0 %v6222
  %6391 = vmatmul.mubr.bf16.gmra.mrb[0].mxu0 %v6221
  %v6392 = vpop.f32.mrb[0].mxu0
  %v6393 = vadd.f32 %v6260, %v6392
  %v6394 = vpop.f32.mrb[0].mxu0
  %v6395 = vpop.f32.mrb[0].mxu0
  %v6396 = vpop.f32.mrb[0].mxu0
  %6397 = vdwg.mxu0
  %6398 = vst [vmem:[%s9] sm:$0xff] %v6393
  // Predicated region
  $region38: #{siamese_forward.5} parent=0 // pred_check
    _
  $region39: #{siamese_forward.5} parent=0 // pred_check_branch
    %6400 = sbr.rel (0) target = $region41
  $region40: #{siamese_forward.5} parent=0 // pred_region
    _
  $region41: #{siamese_forward.5} parent=0 // pred_fallthru
    _
  // Predicated region
  $region42: #{siamese_forward.5} parent=0 // pred_check
    _
  $region43: #{siamese_forward.5} parent=0 // pred_check_branch
    %6402 = sbr.rel (0) target = $region45
  $region44: #{siamese_forward.5} parent=0 // pred_region
    _
  $region45: #{siamese_forward.5} parent=0 // pred_fallthru
    _

</llo_original>
